<compile_context>
chip_gen: v7x
topology: tpu7x:2x2x1
jax: 0.10.0
libtpu: 0.0.40
codegen_flags: <defaults>
</compile_context>

<pallas_src>
import math
from functools import partial

import jax
import jax.numpy as jnp
from jax.experimental import pallas as pl
from jax.experimental.pallas import tpu as pltpu


# ----------------------------------------------------------------------------------
# Pallas kernels
# ----------------------------------------------------------------------------------
def _conv_kernel(p_ref, w_ref, b_ref, o_ref):
    """p_ref: (1, K, TM) bf16 im2col patches, w_ref: (Cout, K) bf16, b_ref: (Cout, 1) f32.

    One deep-K matmul; output (Cout, TM) is lane-dense (spatial on the lane axis)."""
    acc = jnp.dot(w_ref[...], p_ref[0], preferred_element_type=jnp.float32)
    o_ref[0] = acc + b_ref[...]


def _matmul_kernel(x_ref, w_ref, o_ref):
    """Plain fused-projection matmul: (M, K) bf16 @ (K, N) bf16 -> (M, N) f32."""
    o_ref[...] = jnp.dot(x_ref[...], w_ref[...], preferred_element_type=jnp.float32)


def _attn_merge_ln_kernel(q_ref, k_ref, v_ref, wm_ref, g_ref, b_ref, o_ref, *, scale):
    """All attention windows in one step + merge projection + LayerNorm epilogue.

    q/k/v: (Wn, Lw, C) f32, wm: (C, C) bf16, g/b: (1, C) f32 -> o: (Wn*Lw, C) f32."""
    q = (q_ref[...] * scale).astype(jnp.bfloat16)          # fold 1/sqrt(C) into q (LxC)
    k = k_ref[...].astype(jnp.bfloat16)
    v = v_ref[...].astype(jnp.bfloat16)
    s = jnp.einsum("wqc,wkc->wqk", q, k, preferred_element_type=jnp.float32)
    m = jnp.max(s, axis=-1, keepdims=True)
    p = jnp.exp(s - m)
    l = jnp.sum(p, axis=-1, keepdims=True)
    o = jnp.einsum("wqk,wkc->wqc", p.astype(jnp.bfloat16), v,
                   preferred_element_type=jnp.float32)
    o = o * pl.reciprocal(l, approx=True)                   # EUP reciprocal, VALU-free
    Wn, Lw, C = o.shape
    msg = jnp.dot(o.reshape(Wn * Lw, C).astype(jnp.bfloat16), wm_ref[...],
                  preferred_element_type=jnp.float32)        # merge projection
    mu = jnp.mean(msg, axis=-1, keepdims=True)
    var = jnp.mean((msg - mu) ** 2, axis=-1, keepdims=True)
    msg = (msg - mu) * jax.lax.rsqrt(var + 1e-5)
    o_ref[...] = msg * g_ref[...] + b_ref[...]


def _ffn_ln_kernel(x_ref, w1_ref, w2_ref, g_ref, b_ref, o_ref):
    """Fused MLP: x @ w1 -> gelu -> @ w2 -> LayerNorm.  x:(M,2C) bf16, out:(M,C) f32."""
    h = jnp.dot(x_ref[...], w1_ref[...], preferred_element_type=jnp.float32)
    # TODO(synk): PyTorch nn.GELU default is exact erf; tanh approximation used here.
    h = jax.nn.gelu(h, approximate=True)
    y = jnp.dot(h.astype(jnp.bfloat16), w2_ref[...], preferred_element_type=jnp.float32)
    mu = jnp.mean(y, axis=-1, keepdims=True)
    var = jnp.mean((y - mu) ** 2, axis=-1, keepdims=True)
    y = (y - mu) * jax.lax.rsqrt(var + 1e-5)
    o_ref[...] = y * g_ref[...] + b_ref[...]


# ----------------------------------------------------------------------------------
# Kernel wrappers
# ----------------------------------------------------------------------------------
def _pick_m_tile(M, cap=2048):
    """Largest tile <= cap that divides M and is a multiple of 128 (or M itself)."""
    if M <= cap:
        return M
    t = cap - (cap % 128)
    while t >= 128:
        if M % t == 0:
            return t
        t -= 128
    return M


def conv2d(x, w, b, *, stride=1, padding=0):
    """x: (N, Cin, H, W) f32, w: (KH, KW, Cin, Cout), b: (Cout,). Returns (N, Cout, Ho, Wo)."""
    N, Cin, H, W = x.shape
    KH, KW, _, Cout = w.shape
    s = stride
    Ho = (H + 2 * padding - KH) // s + 1
    Wo = (W + 2 * padding - KW) // s + 1
    xp = jnp.pad(x, ((0, 0), (0, 0), (padding, padding), (padding, padding)))

    # im2col in glue: taps ordered (kh, kw, cin) along K, spatial flattened along M.
    taps = []
    for kh in range(KH):
        for kw in range(KW):
            taps.append(xp[:, :, kh:kh + s * Ho:s, kw:kw + s * Wo:s])   # (N, Cin, Ho, Wo)
    K = KH * KW * Cin
    M = Ho * Wo
    patches = jnp.stack(taps, axis=1).reshape(N, K, M).astype(jnp.bfloat16)
    w2 = jnp.transpose(w, (3, 0, 1, 2)).reshape(Cout, K).astype(jnp.bfloat16)
    b2 = b.reshape(Cout, 1).astype(jnp.float32)

    TM = _pick_m_tile(M)
    Mt = M // TM
    out = pl.pallas_call(
        _conv_kernel,
        out_shape=jax.ShapeDtypeStruct((N, Cout, M), jnp.float32),
        grid=(N, Mt),
        in_specs=[
            pl.BlockSpec((1, K, TM), lambda n, m: (n, 0, m)),
            pl.BlockSpec((Cout, K), lambda n, m: (0, 0)),
            pl.BlockSpec((Cout, 1), lambda n, m: (0, 0)),
        ],
        out_specs=pl.BlockSpec((1, Cout, TM), lambda n, m: (n, 0, m)),
        compiler_params=pltpu.CompilerParams(
            dimension_semantics=("parallel", "parallel")),
    )(patches, w2, b2)
    return out.reshape(N, Cout, Ho, Wo)


def fused_matmul(x, w):
    """x: (M, K) f32, w: (K, N) f32 -> (M, N) f32.  bf16 MXU operands, f32 accumulation."""
    M, K = x.shape
    N = w.shape[1]
    return pl.pallas_call(
        _matmul_kernel,
        out_shape=jax.ShapeDtypeStruct((M, N), jnp.float32),
        grid=(1,),
        in_specs=[
            pl.BlockSpec((M, K), lambda i: (0, 0)),
            pl.BlockSpec((K, N), lambda i: (0, 0)),
        ],
        out_specs=pl.BlockSpec((M, N), lambda i: (0, 0)),
        compiler_params=pltpu.CompilerParams(dimension_semantics=("arbitrary",)),
    )(x.astype(jnp.bfloat16), w.astype(jnp.bfloat16))


def attention_merge_ln(qw, kw, vw, wmerge, gamma, beta):
    """qw/kw/vw: (Wn, Lw, C) f32 windows.  Returns (Wn*Lw, C) f32 (window-ordered)."""
    Wn, Lw, C = qw.shape
    return pl.pallas_call(
        partial(_attn_merge_ln_kernel, scale=1.0 / math.sqrt(C)),
        out_shape=jax.ShapeDtypeStruct((Wn * Lw, C), jnp.float32),
        grid=(1,),
        in_specs=[pl.BlockSpec((Wn, Lw, C), lambda i: (0, 0, 0))] * 3 + [
            pl.BlockSpec((C, C), lambda i: (0, 0)),
            pl.BlockSpec((1, C), lambda i: (0, 0)),
            pl.BlockSpec((1, C), lambda i: (0, 0)),
        ],
        out_specs=pl.BlockSpec((Wn * Lw, C), lambda i: (0, 0)),
        compiler_params=pltpu.CompilerParams(dimension_semantics=("arbitrary",)),
    )(qw, kw, vw, wmerge.astype(jnp.bfloat16),
      gamma.reshape(1, C), beta.reshape(1, C))


def ffn_ln(x, w1, w2, gamma, beta):
    """x: (M, 2C) f32 -> (M, C) f32 via w1 -> gelu -> w2 -> LayerNorm, all in one call."""
    M, K = x.shape
    H = w1.shape[1]
    C = w2.shape[1]
    return pl.pallas_call(
        _ffn_ln_kernel,
        out_shape=jax.ShapeDtypeStruct((M, C), jnp.float32),
        grid=(1,),
        in_specs=[
            pl.BlockSpec((M, K), lambda i: (0, 0)),
            pl.BlockSpec((K, H), lambda i: (0, 0)),
            pl.BlockSpec((H, C), lambda i: (0, 0)),
            pl.BlockSpec((1, C), lambda i: (0, 0)),
            pl.BlockSpec((1, C), lambda i: (0, 0)),
        ],
        out_specs=pl.BlockSpec((M, C), lambda i: (0, 0)),
        compiler_params=pltpu.CompilerParams(dimension_semantics=("arbitrary",)),
    )(x.astype(jnp.bfloat16), w1.astype(jnp.bfloat16), w2.astype(jnp.bfloat16),
      gamma.reshape(1, C), beta.reshape(1, C))


# ----------------------------------------------------------------------------------
# JAX glue (BN+act, upsampling, windows, position encoding)
# ----------------------------------------------------------------------------------
def batchnorm_act(x, gamma, beta, *, act, eps=1e-5):
    """Training-mode BatchNorm2d (batch statistics over N,H,W) + activation. x: NCHW."""
    mean = jnp.mean(x, axis=(0, 2, 3), keepdims=True)
    var = jnp.mean((x - mean) ** 2, axis=(0, 2, 3), keepdims=True)
    scale = gamma.reshape(1, -1, 1, 1) * jax.lax.rsqrt(var + eps)
    y = (x - mean) * scale + beta.reshape(1, -1, 1, 1)
    if act == "leaky_relu":
        y = jnp.where(y >= 0.0, y, 0.1 * y)
    elif act == "swish":
        y = y * jax.nn.sigmoid(y)
    return y


def upsample2x_align_corners(x):
    """Bilinear x2 upsample, align_corners=True (matches F.interpolate). x: NCHW."""
    def interp_axis(a, axis):
        in_size = a.shape[axis]
        out_size = 2 * in_size
        denom = max(out_size - 1, 1)
        coords = jnp.arange(out_size, dtype=jnp.float32) * (in_size - 1) / denom
        lo = jnp.floor(coords).astype(jnp.int32)
        hi = jnp.minimum(lo + 1, in_size - 1)
        wgt = coords - lo.astype(jnp.float32)
        shape = [1] * a.ndim
        shape[axis] = out_size
        wgt = wgt.reshape(shape)
        return jnp.take(a, lo, axis=axis) * (1.0 - wgt) + jnp.take(a, hi, axis=axis) * wgt

    return interp_axis(interp_axis(x, 2), 3)


def split_windows(x, ns):
    """(B, H, W, C) -> (B*ns*ns, H/ns, W/ns, C), window order (b, i, j). == split_feature."""
    B, H, W, C = x.shape
    hs, ws = H // ns, W // ns
    x = x.reshape(B, ns, hs, ns, ws, C).transpose(0, 1, 3, 2, 4, 5)
    return x.reshape(B * ns * ns, hs, ws, C)


def merge_windows(x, ns):
    """Inverse of split_windows. == merge_splits."""
    Bn, hs, ws, C = x.shape
    B = Bn // (ns * ns)
    x = x.reshape(B, ns, ns, hs, ws, C).transpose(0, 1, 3, 2, 4, 5)
    return x.reshape(B, ns * hs, ns * ws, C)


def position_embedding_sine(h, w, num_pos_feats, temperature=10000.0):
    """PositionEmbeddingSine (normalize=True, scale=2*pi), channel-last (h, w, 2*npf)."""
    scale = 2.0 * math.pi
    eps = 1e-6
    y_embed = jnp.broadcast_to(jnp.arange(1, h + 1, dtype=jnp.float32)[:, None], (h, w))
    x_embed = jnp.broadcast_to(jnp.arange(1, w + 1, dtype=jnp.float32)[None, :], (h, w))
    y_embed = y_embed / (y_embed[-1:, :] + eps) * scale
    x_embed = x_embed / (x_embed[:, -1:] + eps) * scale
    dim_t = jnp.arange(num_pos_feats, dtype=jnp.float32)
    dim_t = temperature ** (2.0 * (dim_t // 2) / num_pos_feats)
    pos_x = x_embed[:, :, None] / dim_t
    pos_y = y_embed[:, :, None] / dim_t
    pos_x = jnp.stack([jnp.sin(pos_x[:, :, 0::2]), jnp.cos(pos_x[:, :, 1::2])], axis=-1).reshape(h, w, -1)
    pos_y = jnp.stack([jnp.sin(pos_y[:, :, 0::2]), jnp.cos(pos_y[:, :, 1::2])], axis=-1).reshape(h, w, -1)
    return jnp.concatenate([pos_y, pos_x], axis=-1)


# ----------------------------------------------------------------------------------
# Modules (forward logic)
# ----------------------------------------------------------------------------------
def conv_bn_lrelu(x, p, *, stride, padding):
    y = conv2d(x, p["w"], p["b"], stride=stride, padding=padding)
    return batchnorm_act(y, p["gamma"], p["beta"], act="leaky_relu")


def fpn_encoder(p, x, feat_chs):
    x = conv_bn_lrelu(x, p["conv00"], stride=1, padding=3)
    x = conv_bn_lrelu(x, p["conv01"], stride=1, padding=2)
    outs = [x]
    for i in range(1, len(feat_chs)):
        pad = 2 if (i - 1) < 2 else 1
        x = conv_bn_lrelu(x, p[f"downsample{i}"], stride=2, padding=pad)
        x = conv_bn_lrelu(x, p[f"conv{i}0"], stride=1, padding=1)
        x = conv_bn_lrelu(x, p[f"conv{i}1"], stride=1, padding=1)
        outs.append(x)
    return outs


def fpn_decoder(p, xs):
    """xs: [high-res small-ch, ..., low-res final-ch], NCHW."""
    intra = xs[-1]
    y = conv2d(intra, p["out0"]["w"], p["out0"]["b"], stride=1, padding=0)
    out = [batchnorm_act(y, p["out0"]["gamma"], p["out0"]["beta"], act="swish")]
    for i in range(1, len(xs)):
        lateral = conv2d(xs[-i - 1], p[f"inner{i}"]["w"], p[f"inner{i}"]["b"], stride=1, padding=0)
        intra = upsample2x_align_corners(intra) + lateral
        y = conv2d(intra, p[f"out{i}"]["w"], p[f"out{i}"]["b"], stride=1, padding=1)
        out.append(batchnorm_act(y, p[f"out{i}"]["gamma"], p[f"out{i}"]["beta"], act="swish"))
    return out


def transformer_layer(p, source, target, h, w, splits, *, with_ffn, is_self):
    """GMFlow TransformerLayer: (window) attention + merge + LN (+ FFN + LN), fused kernels."""
    N, L, C = source.shape
    src2 = source.reshape(N * L, C)
    if is_self:
        w_qkv = jnp.concatenate([p["wq"], p["wkv"]], axis=1)           # (C, 3C)
        qkv = fused_matmul(src2, w_qkv)                                 # one call
        q, k, v = qkv[:, :C], qkv[:, C:2 * C], qkv[:, 2 * C:]
    else:
        q = fused_matmul(src2, p["wq"])                                 # (N*L, C)
        kv = fused_matmul(target.reshape(N * L, C), p["wkv"])           # (N*L, 2C)
        k, v = kv[:, :C], kv[:, C:]
    q = q.reshape(N, L, C)
    k = k.reshape(N, L, C)
    v = v.reshape(N, L, C)

    # TODO(synk): shifted-window attention mask on odd layers is omitted.
    if splits > 1:
        hs, ws = h // splits, w // splits
        qw = split_windows(q.reshape(N, h, w, C), splits).reshape(-1, hs * ws, C)
        kw = split_windows(k.reshape(N, h, w, C), splits).reshape(-1, hs * ws, C)
        vw = split_windows(v.reshape(N, h, w, C), splits).reshape(-1, hs * ws, C)
        msg = attention_merge_ln(qw, kw, vw, p["wmerge"], p["ln1_g"], p["ln1_b"])
        msg = merge_windows(msg.reshape(-1, hs, ws, C), splits).reshape(N, L, C)
    else:
        msg = attention_merge_ln(q, k, v, p["wmerge"], p["ln1_g"], p["ln1_b"])
        msg = msg.reshape(N, L, C)

    if with_ffn:
        cat = jnp.concatenate([source, msg], axis=-1).reshape(N * L, 2 * C)
        msg = ffn_ln(cat, p["mlp_w1"], p["mlp_w2"], p["ln2_g"], p["ln2_b"]).reshape(N, L, C)
    return source + msg


def transformer_block(p, source, target, h, w, splits):
    source = transformer_layer(p["self"], source, source, h, w, splits,
                               with_ffn=False, is_self=True)
    source = transformer_layer(p["cross"], source, target, h, w, splits,
                               with_ffn=True, is_self=False)
    return source


def multiview_transformer(layers, features, h, w, splits):
    """features: list of V == 2 tensors (B, h, w, C), channel-last."""
    assert len(features) == 2, "2-view multi-view transformer implemented"
    b, _, _, C = features[0].shape
    concat0 = jnp.concatenate(features, axis=0).reshape(2 * b, h * w, C)
    concat1 = jnp.concatenate(features[::-1], axis=0).reshape(2 * b, h * w, C)
    for p in layers:
        concat0 = transformer_block(p, concat0, concat1, h, w, splits)
        c0, c1 = jnp.split(concat0, 2, axis=0)
        concat1 = jnp.concatenate([c1, c0], axis=0)
    outs = jnp.split(concat0, 2, axis=0)
    return [o.reshape(b, h, w, C) for o in outs]


def backbone_cascaded_forward(params, images, feature_channels, attn_splits=2):
    """images: (B, V, 3, H, W), range [0, 1] (PyTorch layout, NCHW kept throughout)."""
    B, V, _, H, W = images.shape
    feat_chs = tuple(feature_channels[::-1])

    # normalize_images
    mean = jnp.array([0.485, 0.456, 0.406], jnp.float32).reshape(1, 1, 3, 1, 1)
    std = jnp.array([0.229, 0.224, 0.225], jnp.float32).reshape(1, 1, 3, 1, 1)
    imgs = (images - mean) / std

    # extract_feature
    x = imgs.reshape(B * V, 3, H, W)
    enc = fpn_encoder(params["encoder"], x, feat_chs)
    enc = enc[::-1]                                                  # coarse (big ch) first
    cnn_features = [f.reshape(B, V, f.shape[1], f.shape[2], f.shape[3]) for f in enc]

    # transformer on coarsest features
    lvl0 = enc[0]                                                    # (B*V, C0, h0, w0)
    _, C0, h0, w0 = lvl0.shape
    lvl0_bv = lvl0.reshape(B, V, C0, h0, w0)
    per_view = [jnp.transpose(lvl0_bv[:, v], (0, 2, 3, 1)) for v in range(V)]   # (B, h, w, C)

    # feature_add_position_list
    npf = feature_channels[0] // 2
    if attn_splits > 1:
        pos = position_embedding_sine(h0 // attn_splits, w0 // attn_splits, npf)
        per_view = [
            merge_windows(split_windows(f, attn_splits) + pos[None], attn_splits) for f in per_view
        ]
    else:
        pos = position_embedding_sine(h0, w0, npf)
        per_view = [f + pos[None] for f in per_view]

    trans_views = multiview_transformer(params["transformer"], per_view, h0, w0, attn_splits)
    cur_features = jnp.stack([jnp.transpose(t, (0, 3, 1, 2)) for t in trans_views], axis=1)

    # decode_feature
    features = list(cnn_features)
    features[0] = cur_features
    feats_bv = [f.reshape(B * V, f.shape[2], f.shape[3], f.shape[4]) for f in features]
    dec_out = fpn_decoder(params["decoder"], feats_bv[::-1])
    trans_features = [f.reshape(B, V, f.shape[1], f.shape[2], f.shape[3]) for f in dec_out]
    return {"trans_features": trans_features, "cnn_features": cnn_features}


# ----------------------------------------------------------------------------------
# Deterministic parameter construction
# ----------------------------------------------------------------------------------
def make_params(key, feature_channels, num_transformer_layers, ffn_dim_expansion):
    feat_chs = tuple(feature_channels[::-1])
    keys = iter(jax.random.split(key, 256))

    def conv_p(cin, cout, k):
        bound = 1.0 / math.sqrt(cin * k * k)
        return {
            "w": jax.random.uniform(next(keys), (k, k, cin, cout), jnp.float32, -bound, bound),
            "b": jnp.zeros((cout,), jnp.float32),
        }

    def conv_bn_p(cin, cout, k):
        d = conv_p(cin, cout, k)
        d["gamma"] = jnp.ones((cout,), jnp.float32)
        d["beta"] = jnp.zeros((cout,), jnp.float32)
        return d

    def lin(cin, cout):
        bound = 1.0 / math.sqrt(cin)
        return jax.random.uniform(next(keys), (cin, cout), jnp.float32, -bound, bound)

    enc = {"conv00": conv_bn_p(3, feat_chs[0], 7), "conv01": conv_bn_p(feat_chs[0], feat_chs[0], 5)}
    for i, c in enumerate(feat_chs[1:]):
        k = 5 if i < 2 else 3
        enc[f"downsample{i + 1}"] = conv_bn_p(feat_chs[i], c, k)
        enc[f"conv{i + 1}0"] = conv_bn_p(c, c, 3)
        enc[f"conv{i + 1}1"] = conv_bn_p(c, c, 3)

    rev = feat_chs[::-1]
    final_ch = rev[0]
    dec = {"out0": conv_bn_p(final_ch, rev[0], 1)}
    for i, c in enumerate(rev[1:]):
        dec[f"inner{i + 1}"] = conv_p(c, final_ch, 1)
        dec[f"out{i + 1}"] = conv_bn_p(final_ch, c, 3)

    d = feature_channels[0]
    layers = []
    for _ in range(num_transformer_layers):
        def tl(with_ffn):
            p = {"wq": lin(d, d), "wkv": lin(d, 2 * d), "wmerge": lin(d, d),
                 "ln1_g": jnp.ones((d,), jnp.float32), "ln1_b": jnp.zeros((d,), jnp.float32)}
            if with_ffn:
                p["mlp_w1"] = lin(2 * d, 2 * d * ffn_dim_expansion)
                p["mlp_w2"] = lin(2 * d * ffn_dim_expansion, d)
                p["ln2_g"] = jnp.ones((d,), jnp.float32)
                p["ln2_b"] = jnp.zeros((d,), jnp.float32)
            return p
        layers.append({"self": tl(False), "cross": tl(True)})

    return {"encoder": enc, "decoder": dec, "transformer": layers}


# ----------------------------------------------------------------------------------
if __name__ == "__main__":
    feature_channels = (32, 16, 8)       # d_model = 32, encoder feat_chs = (8, 16, 32)
    num_transformer_layers = 2
    ffn_dim_expansion = 4
    B, V, H, W = 1, 2, 32, 32

    key = jax.random.PRNGKey(0)
    pkey, ikey = jax.random.split(key)
    params = make_params(pkey, feature_channels, num_transformer_layers, ffn_dim_expansion)
    images = jax.random.uniform(ikey, (B, V, 3, H, W), jnp.float32)   # range [0, 1]

    fwd = jax.jit(lambda p, im: backbone_cascaded_forward(p, im, feature_channels, attn_splits=2))
    out = fwd(params, images)
    out = jax.tree_util.tree_map(lambda a: a.block_until_ready(), out)

    assert out["cnn_features"][0].shape == (B, V, 32, H // 4, W // 4)
    assert out["cnn_features"][1].shape == (B, V, 16, H // 2, W // 2)
    assert out["cnn_features"][2].shape == (B, V, 8, H, W)
    assert out["trans_features"][0].shape == (B, V, 32, H // 4, W // 4)
    assert out["trans_features"][1].shape == (B, V, 16, H // 2, W // 2)
    assert out["trans_features"][2].shape == (B, V, 8, H, W)
    for t in out["trans_features"] + out["cnn_features"]:
        assert bool(jnp.all(jnp.isfinite(t)))
    print("KERNEL_OK")
</pallas_src>

<mosaic_0001>
module attributes {stable_mosaic.version = 11 : i64} {
  func.func @_conv_kernel(%arg0: i32, %arg1: i32, %arg2: memref<1x147x1024xbf16, #tpu.memory_space<vmem>>, %arg3: memref<8x147xbf16, #tpu.memory_space<vmem>>, %arg4: memref<8x1xf32, #tpu.memory_space<vmem>>, %arg5: memref<1x8x1024xf32, #tpu.memory_space<vmem>>) attributes {dimension_semantics = [#tpu.dimension_semantics<parallel>, #tpu.dimension_semantics<parallel>], iteration_bounds = array<i64: 2, 1>, scalar_prefetch = 0 : i64, scratch_operands = 0 : i64, tpu.core_type = #tpu.core_type<tc>, window_params = [{transform_indices = @transform_0, window_bounds = array<i64: 1, 147, 1024>}, {pipeline_mode = #tpu.pipeline_mode<synchronous>, transform_indices = @transform_1, window_bounds = array<i64: 8, 147>}, {pipeline_mode = #tpu.pipeline_mode<synchronous>, transform_indices = @transform_2, window_bounds = array<i64: 8, 1>}, {transform_indices = @transform_3, window_bounds = array<i64: 1, 8, 1024>}]} {
    %c0 = arith.constant 0 : index
    %c0_0 = arith.constant 0 : index
    %0 = vector.load %arg3[%c0, %c0_0] : memref<8x147xbf16, #tpu.memory_space<vmem>>, vector<8x147xbf16>
    %c0_1 = arith.constant 0 : index
    %c0_2 = arith.constant 0 : index
    %c0_3 = arith.constant 0 : index
    %1 = vector.load %arg2[%c0_1, %c0_2, %c0_3] : memref<1x147x1024xbf16, #tpu.memory_space<vmem>>, vector<1x147x1024xbf16>
    %2 = vector.shape_cast %1 : vector<1x147x1024xbf16> to vector<147x1024xbf16>
    %cst = arith.constant dense<0.000000e+00> : vector<8x1024xf32>
    %3 = tpu.matmul %0, %2, %cst {dimension_numbers = #tpu.dot_dimension_numbers<[1], [0], [0], [1], [0, 0, 1, 1], [], []>} : vector<8x147xbf16>, vector<147x1024xbf16>, vector<8x1024xf32> -> vector<8x1024xf32>
    %c0_4 = arith.constant 0 : index
    %c0_5 = arith.constant 0 : index
    %4 = vector.load %arg4[%c0_4, %c0_5] : memref<8x1xf32, #tpu.memory_space<vmem>>, vector<8x1xf32>
    %5 = vector.broadcast %4 : vector<8x1xf32> to vector<8x1024xf32>
    %6 = arith.addf %3, %5 : vector<8x1024xf32>
    %c0_6 = arith.constant 0 : index
    %c0_7 = arith.constant 0 : index
    %c0_8 = arith.constant 0 : index
    %7 = vector.load %arg5[%c0_6, %c0_7, %c0_8] : memref<1x8x1024xf32, #tpu.memory_space<vmem>>, vector<1x8x1024xf32>
    %8 = vector.shape_cast %7 : vector<1x8x1024xf32> to vector<8x1024xf32>
    %9 = vector.shape_cast %6 : vector<8x1024xf32> to vector<1x8x1024xf32>
    tpu.vector_store %arg5[%c0_6, %c0_7, %c0_8], %9 {strides = array<i32>} : memref<1x8x1024xf32, #tpu.memory_space<vmem>>, vector<1x8x1024xf32>,
    return
  }
  func.func @transform_0(%arg0: i32, %arg1: i32) -> (i32, i32, i32) {
    %c0_i32 = arith.constant 0 : i32
    %c0_i32_0 = arith.constant 0 : i32
    return %arg0, %c0_i32, %arg1 : i32, i32, i32
  }
  func.func @transform_1(%arg0: i32, %arg1: i32) -> (i32, i32) {
    %c0_i32 = arith.constant 0 : i32
    %c0_i32_0 = arith.constant 0 : i32
    %c0_i32_1 = arith.constant 0 : i32
    return %c0_i32, %c0_i32_0 : i32, i32
  }
  func.func @transform_2(%arg0: i32, %arg1: i32) -> (i32, i32) {
    %c0_i32 = arith.constant 0 : i32
    %c0_i32_0 = arith.constant 0 : i32
    %c0_i32_1 = arith.constant 0 : i32
    return %c0_i32, %c0_i32_0 : i32, i32
  }
  func.func @transform_3(%arg0: i32, %arg1: i32) -> (i32, i32, i32) {
    %c0_i32 = arith.constant 0 : i32
    %c0_i32_0 = arith.constant 0 : i32
    return %arg0, %c0_i32, %arg1 : i32, i32, i32
  }
}

module attributes {stable_mosaic.version = 11 : i64} {
  func.func @_conv_kernel(%arg0: i32, %arg1: i32, %arg2: memref<1x200x1024xbf16, #tpu.memory_space<vmem>>, %arg3: memref<8x200xbf16, #tpu.memory_space<vmem>>, %arg4: memref<8x1xf32, #tpu.memory_space<vmem>>, %arg5: memref<1x8x1024xf32, #tpu.memory_space<vmem>>) attributes {dimension_semantics = [#tpu.dimension_semantics<parallel>, #tpu.dimension_semantics<parallel>], iteration_bounds = array<i64: 2, 1>, scalar_prefetch = 0 : i64, scratch_operands = 0 : i64, tpu.core_type = #tpu.core_type<tc>, window_params = [{transform_indices = @transform_0, window_bounds = array<i64: 1, 200, 1024>}, {pipeline_mode = #tpu.pipeline_mode<synchronous>, transform_indices = @transform_1, window_bounds = array<i64: 8, 200>}, {pipeline_mode = #tpu.pipeline_mode<synchronous>, transform_indices = @transform_2, window_bounds = array<i64: 8, 1>}, {transform_indices = @transform_3, window_bounds = array<i64: 1, 8, 1024>}]} {
    %c0 = arith.constant 0 : index
    %c0_0 = arith.constant 0 : index
    %0 = vector.load %arg3[%c0, %c0_0] : memref<8x200xbf16, #tpu.memory_space<vmem>>, vector<8x200xbf16>
    %c0_1 = arith.constant 0 : index
    %c0_2 = arith.constant 0 : index
    %c0_3 = arith.constant 0 : index
    %1 = vector.load %arg2[%c0_1, %c0_2, %c0_3] : memref<1x200x1024xbf16, #tpu.memory_space<vmem>>, vector<1x200x1024xbf16>
    %2 = vector.shape_cast %1 : vector<1x200x1024xbf16> to vector<200x1024xbf16>
    %cst = arith.constant dense<0.000000e+00> : vector<8x1024xf32>
    %3 = tpu.matmul %0, %2, %cst {dimension_numbers = #tpu.dot_dimension_numbers<[1], [0], [0], [1], [0, 0, 1, 1], [], []>} : vector<8x200xbf16>, vector<200x1024xbf16>, vector<8x1024xf32> -> vector<8x1024xf32>
    %c0_4 = arith.constant 0 : index
    %c0_5 = arith.constant 0 : index
    %4 = vector.load %arg4[%c0_4, %c0_5] : memref<8x1xf32, #tpu.memory_space<vmem>>, vector<8x1xf32>
    %5 = vector.broadcast %4 : vector<8x1xf32> to vector<8x1024xf32>
    %6 = arith.addf %3, %5 : vector<8x1024xf32>
    %c0_6 = arith.constant 0 : index
    %c0_7 = arith.constant 0 : index
    %c0_8 = arith.constant 0 : index
    %7 = vector.load %arg5[%c0_6, %c0_7, %c0_8] : memref<1x8x1024xf32, #tpu.memory_space<vmem>>, vector<1x8x1024xf32>
    %8 = vector.shape_cast %7 : vector<1x8x1024xf32> to vector<8x1024xf32>
    %9 = vector.shape_cast %6 : vector<8x1024xf32> to vector<1x8x1024xf32>
    tpu.vector_store %arg5[%c0_6, %c0_7, %c0_8], %9 {strides = array<i32>} : memref<1x8x1024xf32, #tpu.memory_space<vmem>>, vector<1x8x1024xf32>,
    return
  }
  func.func @transform_0(%arg0: i32, %arg1: i32) -> (i32, i32, i32) {
    %c0_i32 = arith.constant 0 : i32
    %c0_i32_0 = arith.constant 0 : i32
    return %arg0, %c0_i32, %arg1 : i32, i32, i32
  }
  func.func @transform_1(%arg0: i32, %arg1: i32) -> (i32, i32) {
    %c0_i32 = arith.constant 0 : i32
    %c0_i32_0 = arith.constant 0 : i32
    %c0_i32_1 = arith.constant 0 : i32
    return %c0_i32, %c0_i32_0 : i32, i32
  }
  func.func @transform_2(%arg0: i32, %arg1: i32) -> (i32, i32) {
    %c0_i32 = arith.constant 0 : i32
    %c0_i32_0 = arith.constant 0 : i32
    %c0_i32_1 = arith.constant 0 : i32
    return %c0_i32, %c0_i32_0 : i32, i32
  }
  func.func @transform_3(%arg0: i32, %arg1: i32) -> (i32, i32, i32) {
    %c0_i32 = arith.constant 0 : i32
    %c0_i32_0 = arith.constant 0 : i32
    return %arg0, %c0_i32, %arg1 : i32, i32, i32
  }
}

module attributes {stable_mosaic.version = 11 : i64} {
  func.func @_conv_kernel(%arg0: i32, %arg1: i32, %arg2: memref<1x200x256xbf16, #tpu.memory_space<vmem>>, %arg3: memref<16x200xbf16, #tpu.memory_space<vmem>>, %arg4: memref<16x1xf32, #tpu.memory_space<vmem>>, %arg5: memref<1x16x256xf32, #tpu.memory_space<vmem>>) attributes {dimension_semantics = [#tpu.dimension_semantics<parallel>, #tpu.dimension_semantics<parallel>], iteration_bounds = array<i64: 2, 1>, scalar_prefetch = 0 : i64, scratch_operands = 0 : i64, tpu.core_type = #tpu.core_type<tc>, window_params = [{transform_indices = @transform_0, window_bounds = array<i64: 1, 200, 256>}, {pipeline_mode = #tpu.pipeline_mode<synchronous>, transform_indices = @transform_1, window_bounds = array<i64: 16, 200>}, {pipeline_mode = #tpu.pipeline_mode<synchronous>, transform_indices = @transform_2, window_bounds = array<i64: 16, 1>}, {transform_indices = @transform_3, window_bounds = array<i64: 1, 16, 256>}]} {
    %c0 = arith.constant 0 : index
    %c0_0 = arith.constant 0 : index
    %0 = vector.load %arg3[%c0, %c0_0] : memref<16x200xbf16, #tpu.memory_space<vmem>>, vector<16x200xbf16>
    %c0_1 = arith.constant 0 : index
    %c0_2 = arith.constant 0 : index
    %c0_3 = arith.constant 0 : index
    %1 = vector.load %arg2[%c0_1, %c0_2, %c0_3] : memref<1x200x256xbf16, #tpu.memory_space<vmem>>, vector<1x200x256xbf16>
    %2 = vector.shape_cast %1 : vector<1x200x256xbf16> to vector<200x256xbf16>
    %cst = arith.constant dense<0.000000e+00> : vector<16x256xf32>
    %3 = tpu.matmul %0, %2, %cst {dimension_numbers = #tpu.dot_dimension_numbers<[1], [0], [0], [1], [0, 0, 1, 1], [], []>} : vector<16x200xbf16>, vector<200x256xbf16>, vector<16x256xf32> -> vector<16x256xf32>
    %c0_4 = arith.constant 0 : index
    %c0_5 = arith.constant 0 : index
    %4 = vector.load %arg4[%c0_4, %c0_5] : memref<16x1xf32, #tpu.memory_space<vmem>>, vector<16x1xf32>
    %5 = vector.broadcast %4 : vector<16x1xf32> to vector<16x256xf32>
    %6 = arith.addf %3, %5 : vector<16x256xf32>
    %c0_6 = arith.constant 0 : index
    %c0_7 = arith.constant 0 : index
    %c0_8 = arith.constant 0 : index
    %7 = vector.load %arg5[%c0_6, %c0_7, %c0_8] : memref<1x16x256xf32, #tpu.memory_space<vmem>>, vector<1x16x256xf32>
    %8 = vector.shape_cast %7 : vector<1x16x256xf32> to vector<16x256xf32>
    %9 = vector.shape_cast %6 : vector<16x256xf32> to vector<1x16x256xf32>
    tpu.vector_store %arg5[%c0_6, %c0_7, %c0_8], %9 {strides = array<i32>} : memref<1x16x256xf32, #tpu.memory_space<vmem>>, vector<1x16x256xf32>,
    return
  }
  func.func @transform_0(%arg0: i32, %arg1: i32) -> (i32, i32, i32) {
    %c0_i32 = arith.constant 0 : i32
    %c0_i32_0 = arith.constant 0 : i32
    return %arg0, %c0_i32, %arg1 : i32, i32, i32
  }
  func.func @transform_1(%arg0: i32, %arg1: i32) -> (i32, i32) {
    %c0_i32 = arith.constant 0 : i32
    %c0_i32_0 = arith.constant 0 : i32
    %c0_i32_1 = arith.constant 0 : i32
    return %c0_i32, %c0_i32_0 : i32, i32
  }
  func.func @transform_2(%arg0: i32, %arg1: i32) -> (i32, i32) {
    %c0_i32 = arith.constant 0 : i32
    %c0_i32_0 = arith.constant 0 : i32
    %c0_i32_1 = arith.constant 0 : i32
    return %c0_i32, %c0_i32_0 : i32, i32
  }
  func.func @transform_3(%arg0: i32, %arg1: i32) -> (i32, i32, i32) {
    %c0_i32 = arith.constant 0 : i32
    %c0_i32_0 = arith.constant 0 : i32
    return %arg0, %c0_i32, %arg1 : i32, i32, i32
  }
}

module attributes {stable_mosaic.version = 11 : i64} {
  func.func @_conv_kernel(%arg0: i32, %arg1: i32, %arg2: memref<1x144x256xbf16, #tpu.memory_space<vmem>>, %arg3: memref<16x144xbf16, #tpu.memory_space<vmem>>, %arg4: memref<16x1xf32, #tpu.memory_space<vmem>>, %arg5: memref<1x16x256xf32, #tpu.memory_space<vmem>>) attributes {dimension_semantics = [#tpu.dimension_semantics<parallel>, #tpu.dimension_semantics<parallel>], iteration_bounds = array<i64: 2, 1>, scalar_prefetch = 0 : i64, scratch_operands = 0 : i64, tpu.core_type = #tpu.core_type<tc>, window_params = [{transform_indices = @transform_0, window_bounds = array<i64: 1, 144, 256>}, {pipeline_mode = #tpu.pipeline_mode<synchronous>, transform_indices = @transform_1, window_bounds = array<i64: 16, 144>}, {pipeline_mode = #tpu.pipeline_mode<synchronous>, transform_indices = @transform_2, window_bounds = array<i64: 16, 1>}, {transform_indices = @transform_3, window_bounds = array<i64: 1, 16, 256>}]} {
    %c0 = arith.constant 0 : index
    %c0_0 = arith.constant 0 : index
    %0 = vector.load %arg3[%c0, %c0_0] : memref<16x144xbf16, #tpu.memory_space<vmem>>, vector<16x144xbf16>
    %c0_1 = arith.constant 0 : index
    %c0_2 = arith.constant 0 : index
    %c0_3 = arith.constant 0 : index
    %1 = vector.load %arg2[%c0_1, %c0_2, %c0_3] : memref<1x144x256xbf16, #tpu.memory_space<vmem>>, vector<1x144x256xbf16>
    %2 = vector.shape_cast %1 : vector<1x144x256xbf16> to vector<144x256xbf16>
    %cst = arith.constant dense<0.000000e+00> : vector<16x256xf32>
    %3 = tpu.matmul %0, %2, %cst {dimension_numbers = #tpu.dot_dimension_numbers<[1], [0], [0], [1], [0, 0, 1, 1], [], []>} : vector<16x144xbf16>, vector<144x256xbf16>, vector<16x256xf32> -> vector<16x256xf32>
    %c0_4 = arith.constant 0 : index
    %c0_5 = arith.constant 0 : index
    %4 = vector.load %arg4[%c0_4, %c0_5] : memref<16x1xf32, #tpu.memory_space<vmem>>, vector<16x1xf32>
    %5 = vector.broadcast %4 : vector<16x1xf32> to vector<16x256xf32>
    %6 = arith.addf %3, %5 : vector<16x256xf32>
    %c0_6 = arith.constant 0 : index
    %c0_7 = arith.constant 0 : index
    %c0_8 = arith.constant 0 : index
    %7 = vector.load %arg5[%c0_6, %c0_7, %c0_8] : memref<1x16x256xf32, #tpu.memory_space<vmem>>, vector<1x16x256xf32>
    %8 = vector.shape_cast %7 : vector<1x16x256xf32> to vector<16x256xf32>
    %9 = vector.shape_cast %6 : vector<16x256xf32> to vector<1x16x256xf32>
    tpu.vector_store %arg5[%c0_6, %c0_7, %c0_8], %9 {strides = array<i32>} : memref<1x16x256xf32, #tpu.memory_space<vmem>>, vector<1x16x256xf32>,
    return
  }
  func.func @transform_0(%arg0: i32, %arg1: i32) -> (i32, i32, i32) {
    %c0_i32 = arith.constant 0 : i32
    %c0_i32_0 = arith.constant 0 : i32
    return %arg0, %c0_i32, %arg1 : i32, i32, i32
  }
  func.func @transform_1(%arg0: i32, %arg1: i32) -> (i32, i32) {
    %c0_i32 = arith.constant 0 : i32
    %c0_i32_0 = arith.constant 0 : i32
    %c0_i32_1 = arith.constant 0 : i32
    return %c0_i32, %c0_i32_0 : i32, i32
  }
  func.func @transform_2(%arg0: i32, %arg1: i32) -> (i32, i32) {
    %c0_i32 = arith.constant 0 : i32
    %c0_i32_0 = arith.constant 0 : i32
    %c0_i32_1 = arith.constant 0 : i32
    return %c0_i32, %c0_i32_0 : i32, i32
  }
  func.func @transform_3(%arg0: i32, %arg1: i32) -> (i32, i32, i32) {
    %c0_i32 = arith.constant 0 : i32
    %c0_i32_0 = arith.constant 0 : i32
    return %arg0, %c0_i32, %arg1 : i32, i32, i32
  }
}

module attributes {stable_mosaic.version = 11 : i64} {
  func.func @_conv_kernel(%arg0: i32, %arg1: i32, %arg2: memref<1x400x64xbf16, #tpu.memory_space<vmem>>, %arg3: memref<32x400xbf16, #tpu.memory_space<vmem>>, %arg4: memref<32x1xf32, #tpu.memory_space<vmem>>, %arg5: memref<1x32x64xf32, #tpu.memory_space<vmem>>) attributes {dimension_semantics = [#tpu.dimension_semantics<parallel>, #tpu.dimension_semantics<parallel>], iteration_bounds = array<i64: 2, 1>, scalar_prefetch = 0 : i64, scratch_operands = 0 : i64, tpu.core_type = #tpu.core_type<tc>, window_params = [{transform_indices = @transform_0, window_bounds = array<i64: 1, 400, 64>}, {pipeline_mode = #tpu.pipeline_mode<synchronous>, transform_indices = @transform_1, window_bounds = array<i64: 32, 400>}, {pipeline_mode = #tpu.pipeline_mode<synchronous>, transform_indices = @transform_2, window_bounds = array<i64: 32, 1>}, {transform_indices = @transform_3, window_bounds = array<i64: 1, 32, 64>}]} {
    %c0 = arith.constant 0 : index
    %c0_0 = arith.constant 0 : index
    %0 = vector.load %arg3[%c0, %c0_0] : memref<32x400xbf16, #tpu.memory_space<vmem>>, vector<32x400xbf16>
    %c0_1 = arith.constant 0 : index
    %c0_2 = arith.constant 0 : index
    %c0_3 = arith.constant 0 : index
    %1 = vector.load %arg2[%c0_1, %c0_2, %c0_3] : memref<1x400x64xbf16, #tpu.memory_space<vmem>>, vector<1x400x64xbf16>
    %2 = vector.shape_cast %1 : vector<1x400x64xbf16> to vector<400x64xbf16>
    %cst = arith.constant dense<0.000000e+00> : vector<32x64xf32>
    %3 = tpu.matmul %0, %2, %cst {dimension_numbers = #tpu.dot_dimension_numbers<[1], [0], [0], [1], [0, 0, 1, 1], [], []>} : vector<32x400xbf16>, vector<400x64xbf16>, vector<32x64xf32> -> vector<32x64xf32>
    %c0_4 = arith.constant 0 : index
    %c0_5 = arith.constant 0 : index
    %4 = vector.load %arg4[%c0_4, %c0_5] : memref<32x1xf32, #tpu.memory_space<vmem>>, vector<32x1xf32>
    %5 = vector.broadcast %4 : vector<32x1xf32> to vector<32x64xf32>
    %6 = arith.addf %3, %5 : vector<32x64xf32>
    %c0_6 = arith.constant 0 : index
    %c0_7 = arith.constant 0 : index
    %c0_8 = arith.constant 0 : index
    %7 = vector.load %arg5[%c0_6, %c0_7, %c0_8] : memref<1x32x64xf32, #tpu.memory_space<vmem>>, vector<1x32x64xf32>
    %8 = vector.shape_cast %7 : vector<1x32x64xf32> to vector<32x64xf32>
    %9 = vector.shape_cast %6 : vector<32x64xf32> to vector<1x32x64xf32>
    tpu.vector_store %arg5[%c0_6, %c0_7, %c0_8], %9 {strides = array<i32>} : memref<1x32x64xf32, #tpu.memory_space<vmem>>, vector<1x32x64xf32>,
    return
  }
  func.func @transform_0(%arg0: i32, %arg1: i32) -> (i32, i32, i32) {
    %c0_i32 = arith.constant 0 : i32
    %c0_i32_0 = arith.constant 0 : i32
    return %arg0, %c0_i32, %arg1 : i32, i32, i32
  }
  func.func @transform_1(%arg0: i32, %arg1: i32) -> (i32, i32) {
    %c0_i32 = arith.constant 0 : i32
    %c0_i32_0 = arith.constant 0 : i32
    %c0_i32_1 = arith.constant 0 : i32
    return %c0_i32, %c0_i32_0 : i32, i32
  }
  func.func @transform_2(%arg0: i32, %arg1: i32) -> (i32, i32) {
    %c0_i32 = arith.constant 0 : i32
    %c0_i32_0 = arith.constant 0 : i32
    %c0_i32_1 = arith.constant 0 : i32
    return %c0_i32, %c0_i32_0 : i32, i32
  }
  func.func @transform_3(%arg0: i32, %arg1: i32) -> (i32, i32, i32) {
    %c0_i32 = arith.constant 0 : i32
    %c0_i32_0 = arith.constant 0 : i32
    return %arg0, %c0_i32, %arg1 : i32, i32, i32
  }
}

module attributes {stable_mosaic.version = 11 : i64} {
  func.func @_conv_kernel(%arg0: i32, %arg1: i32, %arg2: memref<1x288x64xbf16, #tpu.memory_space<vmem>>, %arg3: memref<32x288xbf16, #tpu.memory_space<vmem>>, %arg4: memref<32x1xf32, #tpu.memory_space<vmem>>, %arg5: memref<1x32x64xf32, #tpu.memory_space<vmem>>) attributes {dimension_semantics = [#tpu.dimension_semantics<parallel>, #tpu.dimension_semantics<parallel>], iteration_bounds = array<i64: 2, 1>, scalar_prefetch = 0 : i64, scratch_operands = 0 : i64, tpu.core_type = #tpu.core_type<tc>, window_params = [{transform_indices = @transform_0, window_bounds = array<i64: 1, 288, 64>}, {pipeline_mode = #tpu.pipeline_mode<synchronous>, transform_indices = @transform_1, window_bounds = array<i64: 32, 288>}, {pipeline_mode = #tpu.pipeline_mode<synchronous>, transform_indices = @transform_2, window_bounds = array<i64: 32, 1>}, {transform_indices = @transform_3, window_bounds = array<i64: 1, 32, 64>}]} {
    %c0 = arith.constant 0 : index
    %c0_0 = arith.constant 0 : index
    %0 = vector.load %arg3[%c0, %c0_0] : memref<32x288xbf16, #tpu.memory_space<vmem>>, vector<32x288xbf16>
    %c0_1 = arith.constant 0 : index
    %c0_2 = arith.constant 0 : index
    %c0_3 = arith.constant 0 : index
    %1 = vector.load %arg2[%c0_1, %c0_2, %c0_3] : memref<1x288x64xbf16, #tpu.memory_space<vmem>>, vector<1x288x64xbf16>
    %2 = vector.shape_cast %1 : vector<1x288x64xbf16> to vector<288x64xbf16>
    %cst = arith.constant dense<0.000000e+00> : vector<32x64xf32>
    %3 = tpu.matmul %0, %2, %cst {dimension_numbers = #tpu.dot_dimension_numbers<[1], [0], [0], [1], [0, 0, 1, 1], [], []>} : vector<32x288xbf16>, vector<288x64xbf16>, vector<32x64xf32> -> vector<32x64xf32>
    %c0_4 = arith.constant 0 : index
    %c0_5 = arith.constant 0 : index
    %4 = vector.load %arg4[%c0_4, %c0_5] : memref<32x1xf32, #tpu.memory_space<vmem>>, vector<32x1xf32>
    %5 = vector.broadcast %4 : vector<32x1xf32> to vector<32x64xf32>
    %6 = arith.addf %3, %5 : vector<32x64xf32>
    %c0_6 = arith.constant 0 : index
    %c0_7 = arith.constant 0 : index
    %c0_8 = arith.constant 0 : index
    %7 = vector.load %arg5[%c0_6, %c0_7, %c0_8] : memref<1x32x64xf32, #tpu.memory_space<vmem>>, vector<1x32x64xf32>
    %8 = vector.shape_cast %7 : vector<1x32x64xf32> to vector<32x64xf32>
    %9 = vector.shape_cast %6 : vector<32x64xf32> to vector<1x32x64xf32>
    tpu.vector_store %arg5[%c0_6, %c0_7, %c0_8], %9 {strides = array<i32>} : memref<1x32x64xf32, #tpu.memory_space<vmem>>, vector<1x32x64xf32>,
    return
  }
  func.func @transform_0(%arg0: i32, %arg1: i32) -> (i32, i32, i32) {
    %c0_i32 = arith.constant 0 : i32
    %c0_i32_0 = arith.constant 0 : i32
    return %arg0, %c0_i32, %arg1 : i32, i32, i32
  }
  func.func @transform_1(%arg0: i32, %arg1: i32) -> (i32, i32) {
    %c0_i32 = arith.constant 0 : i32
    %c0_i32_0 = arith.constant 0 : i32
    %c0_i32_1 = arith.constant 0 : i32
    return %c0_i32, %c0_i32_0 : i32, i32
  }
  func.func @transform_2(%arg0: i32, %arg1: i32) -> (i32, i32) {
    %c0_i32 = arith.constant 0 : i32
    %c0_i32_0 = arith.constant 0 : i32
    %c0_i32_1 = arith.constant 0 : i32
    return %c0_i32, %c0_i32_0 : i32, i32
  }
  func.func @transform_3(%arg0: i32, %arg1: i32) -> (i32, i32, i32) {
    %c0_i32 = arith.constant 0 : i32
    %c0_i32_0 = arith.constant 0 : i32
    return %arg0, %c0_i32, %arg1 : i32, i32, i32
  }
}

module attributes {stable_mosaic.version = 11 : i64} {
  func.func @_matmul_kernel(%arg0: i32, %arg1: memref<128x32xbf16, #tpu.memory_space<vmem>>, %arg2: memref<32x96xbf16, #tpu.memory_space<vmem>>, %arg3: memref<128x96xf32, #tpu.memory_space<vmem>>) attributes {dimension_semantics = [#tpu.dimension_semantics<arbitrary>], iteration_bounds = array<i64: 1>, scalar_prefetch = 0 : i64, scratch_operands = 0 : i64, tpu.core_type = #tpu.core_type<tc>, window_params = [{pipeline_mode = #tpu.pipeline_mode<synchronous>, transform_indices = @transform_0, window_bounds = array<i64: 128, 32>}, {pipeline_mode = #tpu.pipeline_mode<synchronous>, transform_indices = @transform_1, window_bounds = array<i64: 32, 96>}, {pipeline_mode = #tpu.pipeline_mode<synchronous>, transform_indices = @transform_2, window_bounds = array<i64: 128, 96>}]} {
    %c0 = arith.constant 0 : index
    %c0_0 = arith.constant 0 : index
    %0 = vector.load %arg1[%c0, %c0_0] : memref<128x32xbf16, #tpu.memory_space<vmem>>, vector<128x32xbf16>
    %c0_1 = arith.constant 0 : index
    %c0_2 = arith.constant 0 : index
    %1 = vector.load %arg2[%c0_1, %c0_2] : memref<32x96xbf16, #tpu.memory_space<vmem>>, vector<32x96xbf16>
    %cst = arith.constant dense<0.000000e+00> : vector<128x96xf32>
    %2 = tpu.matmul %0, %1, %cst {dimension_numbers = #tpu.dot_dimension_numbers<[1], [0], [0], [1], [0, 0, 1, 1], [], []>} : vector<128x32xbf16>, vector<32x96xbf16>, vector<128x96xf32> -> vector<128x96xf32>
    %c0_3 = arith.constant 0 : index
    %c0_4 = arith.constant 0 : index
    %3 = vector.load %arg3[%c0_3, %c0_4] : memref<128x96xf32, #tpu.memory_space<vmem>>, vector<128x96xf32>
    tpu.vector_store %arg3[%c0_3, %c0_4], %2 {strides = array<i32>} : memref<128x96xf32, #tpu.memory_space<vmem>>, vector<128x96xf32>,
    return
  }
  func.func @transform_0(%arg0: i32) -> (i32, i32) {
    %c0_i32 = arith.constant 0 : i32
    %c0_i32_0 = arith.constant 0 : i32
    %c0_i32_1 = arith.constant 0 : i32
    return %c0_i32, %c0_i32_0 : i32, i32
  }
  func.func @transform_1(%arg0: i32) -> (i32, i32) {
    %c0_i32 = arith.constant 0 : i32
    %c0_i32_0 = arith.constant 0 : i32
    %c0_i32_1 = arith.constant 0 : i32
    return %c0_i32, %c0_i32_0 : i32, i32
  }
  func.func @transform_2(%arg0: i32) -> (i32, i32) {
    %c0_i32 = arith.constant 0 : i32
    %c0_i32_0 = arith.constant 0 : i32
    %c0_i32_1 = arith.constant 0 : i32
    return %c0_i32, %c0_i32_0 : i32, i32
  }
}

module attributes {stable_mosaic.version = 11 : i64} {
  func.func @_attn_merge_ln_kernel(%arg0: i32, %arg1: memref<8x16x32xf32, #tpu.memory_space<vmem>>, %arg2: memref<8x16x32xf32, #tpu.memory_space<vmem>>, %arg3: memref<8x16x32xf32, #tpu.memory_space<vmem>>, %arg4: memref<32x32xbf16, #tpu.memory_space<vmem>>, %arg5: memref<1x32xf32, #tpu.memory_space<vmem>>, %arg6: memref<1x32xf32, #tpu.memory_space<vmem>>, %arg7: memref<128x32xf32, #tpu.memory_space<vmem>>) attributes {dimension_semantics = [#tpu.dimension_semantics<arbitrary>], iteration_bounds = array<i64: 1>, scalar_prefetch = 0 : i64, scratch_operands = 0 : i64, tpu.core_type = #tpu.core_type<tc>, window_params = [{pipeline_mode = #tpu.pipeline_mode<synchronous>, transform_indices = @transform_0, window_bounds = array<i64: 8, 16, 32>}, {pipeline_mode = #tpu.pipeline_mode<synchronous>, transform_indices = @transform_1, window_bounds = array<i64: 8, 16, 32>}, {pipeline_mode = #tpu.pipeline_mode<synchronous>, transform_indices = @transform_2, window_bounds = array<i64: 8, 16, 32>}, {pipeline_mode = #tpu.pipeline_mode<synchronous>, transform_indices = @transform_3, window_bounds = array<i64: 32, 32>}, {pipeline_mode = #tpu.pipeline_mode<synchronous>, transform_indices = @transform_4, window_bounds = array<i64: 1, 32>}, {pipeline_mode = #tpu.pipeline_mode<synchronous>, transform_indices = @transform_5, window_bounds = array<i64: 1, 32>}, {pipeline_mode = #tpu.pipeline_mode<synchronous>, transform_indices = @transform_6, window_bounds = array<i64: 128, 32>}]} {
    %c0 = arith.constant 0 : index
    %c0_0 = arith.constant 0 : index
    %c0_1 = arith.constant 0 : index
    %0 = vector.load %arg1[%c0, %c0_0, %c0_1] : memref<8x16x32xf32, #tpu.memory_space<vmem>>, vector<8x16x32xf32>
    %cst = arith.constant 0.176776692 : f32
    %1 = vector.broadcast %cst : f32 to vector<8x16x32xf32>
    %2 = arith.mulf %0, %1 : vector<8x16x32xf32>
    %3 = arith.truncf %2 : vector<8x16x32xf32> to vector<8x16x32xbf16>
    %c0_2 = arith.constant 0 : index
    %c0_3 = arith.constant 0 : index
    %c0_4 = arith.constant 0 : index
    %4 = vector.load %arg2[%c0_2, %c0_3, %c0_4] : memref<8x16x32xf32, #tpu.memory_space<vmem>>, vector<8x16x32xf32>
    %5 = arith.truncf %4 : vector<8x16x32xf32> to vector<8x16x32xbf16>
    %c0_5 = arith.constant 0 : index
    %c0_6 = arith.constant 0 : index
    %c0_7 = arith.constant 0 : index
    %6 = vector.load %arg3[%c0_5, %c0_6, %c0_7] : memref<8x16x32xf32, #tpu.memory_space<vmem>>, vector<8x16x32xf32>
    %7 = arith.truncf %6 : vector<8x16x32xf32> to vector<8x16x32xbf16>
    "tpu.trace_start"() <{level = 10 : i32, message = "wqc,wkc->wqk"}> : () -> ()
    %cst_8 = arith.constant dense<0.000000e+00> : vector<8x16x16xf32>
    %8 = tpu.matmul %3, %5, %cst_8 {dimension_numbers = #tpu.dot_dimension_numbers<[2], [2], [1], [1], [0, 0, 0, 1, 1, 1], [0], [0]>} : vector<8x16x32xbf16>, vector<8x16x32xbf16>, vector<8x16x16xf32> -> vector<8x16x16xf32>
    "tpu.trace_stop"() : () -> ()
    %cst_9 = arith.constant dense<0xFF800000> : vector<8x16xf32>
    %9 = vector.multi_reduction <maximumf>, %8, %cst_9 [2] : vector<8x16x16xf32> to vector<8x16xf32>
    %10 = vector.shape_cast %9 : vector<8x16xf32> to vector<8x16x1xf32>
    %11 = vector.broadcast %10 : vector<8x16x1xf32> to vector<8x16x16xf32>
    %12 = arith.subf %8, %11 : vector<8x16x16xf32>
    %13 = math.exp %12 : vector<8x16x16xf32>
    %cst_10 = arith.constant dense<0.000000e+00> : vector<8x16xf32>
    %14 = vector.multi_reduction <add>, %13, %cst_10 [2] : vector<8x16x16xf32> to vector<8x16xf32>
    %15 = vector.shape_cast %14 : vector<8x16xf32> to vector<8x16x1xf32>
    %16 = arith.truncf %13 : vector<8x16x16xf32> to vector<8x16x16xbf16>
    "tpu.trace_start"() <{level = 10 : i32, message = "wqk,wkc->wqc"}> : () -> ()
    %cst_11 = arith.constant dense<0.000000e+00> : vector<8x16x32xf32>
    %17 = tpu.matmul %16, %7, %cst_11 {dimension_numbers = #tpu.dot_dimension_numbers<[2], [1], [1], [2], [0, 0, 0, 1, 1, 2], [0], [0]>} : vector<8x16x16xbf16>, vector<8x16x32xbf16>, vector<8x16x32xf32> -> vector<8x16x32xf32>
    "tpu.trace_stop"() : () -> ()
    %18 = tpu.reciprocal %15 {approx = true} : vector<8x16x1xf32> -> vector<8x16x1xf32>
    %19 = vector.broadcast %18 : vector<8x16x1xf32> to vector<8x16x32xf32>
    %20 = arith.mulf %17, %19 : vector<8x16x32xf32>
    %21 = vector.shape_cast %20 : vector<8x16x32xf32> to vector<128x32xf32>
    %22 = arith.truncf %21 : vector<128x32xf32> to vector<128x32xbf16>
    %c0_12 = arith.constant 0 : index
    %c0_13 = arith.constant 0 : index
    %23 = vector.load %arg4[%c0_12, %c0_13] : memref<32x32xbf16, #tpu.memory_space<vmem>>, vector<32x32xbf16>
    %cst_14 = arith.constant dense<0.000000e+00> : vector<128x32xf32>
    %24 = tpu.matmul %22, %23, %cst_14 {dimension_numbers = #tpu.dot_dimension_numbers<[1], [0], [0], [1], [0, 0, 1, 1], [], []>} : vector<128x32xbf16>, vector<32x32xbf16>, vector<128x32xf32> -> vector<128x32xf32>
    %cst_15 = arith.constant dense<0.000000e+00> : vector<128xf32>
    %25 = vector.multi_reduction <add>, %24, %cst_15 [1] : vector<128x32xf32> to vector<128xf32>
    %26 = vector.shape_cast %25 : vector<128xf32> to vector<128x1xf32>
    %cst_16 = arith.constant 3.200000e+01 : f32
    %27 = vector.broadcast %cst_16 : f32 to vector<128x1xf32>
    %28 = arith.divf %26, %27 : vector<128x1xf32>
    %29 = vector.broadcast %28 : vector<128x1xf32> to vector<128x32xf32>
    %30 = arith.subf %24, %29 : vector<128x32xf32>
    %31 = arith.mulf %30, %30 : vector<128x32xf32>
    %cst_17 = arith.constant dense<0.000000e+00> : vector<128xf32>
    %32 = vector.multi_reduction <add>, %31, %cst_17 [1] : vector<128x32xf32> to vector<128xf32>
    %33 = vector.shape_cast %32 : vector<128xf32> to vector<128x1xf32>
    %cst_18 = arith.constant 3.200000e+01 : f32
    %34 = vector.broadcast %cst_18 : f32 to vector<128x1xf32>
    %35 = arith.divf %33, %34 : vector<128x1xf32>
    %36 = vector.broadcast %28 : vector<128x1xf32> to vector<128x32xf32>
    %37 = arith.subf %24, %36 : vector<128x32xf32>
    %cst_19 = arith.constant 9.99999974E-6 : f32
    %38 = vector.broadcast %cst_19 : f32 to vector<128x1xf32>
    %39 = arith.addf %35, %38 : vector<128x1xf32>
    %40 = math.rsqrt %39 : vector<128x1xf32>
    %41 = vector.broadcast %40 : vector<128x1xf32> to vector<128x32xf32>
    %42 = arith.mulf %37, %41 : vector<128x32xf32>
    %c0_20 = arith.constant 0 : index
    %c0_21 = arith.constant 0 : index
    %43 = vector.load %arg5[%c0_20, %c0_21] : memref<1x32xf32, #tpu.memory_space<vmem>>, vector<1x32xf32>
    %44 = vector.broadcast %43 : vector<1x32xf32> to vector<128x32xf32>
    %45 = arith.mulf %42, %44 : vector<128x32xf32>
    %c0_22 = arith.constant 0 : index
    %c0_23 = arith.constant 0 : index
    %46 = vector.load %arg6[%c0_22, %c0_23] : memref<1x32xf32, #tpu.memory_space<vmem>>, vector<1x32xf32>
    %47 = vector.broadcast %46 : vector<1x32xf32> to vector<128x32xf32>
    %48 = arith.addf %45, %47 : vector<128x32xf32>
    %c0_24 = arith.constant 0 : index
    %c0_25 = arith.constant 0 : index
    %49 = vector.load %arg7[%c0_24, %c0_25] : memref<128x32xf32, #tpu.memory_space<vmem>>, vector<128x32xf32>
    tpu.vector_store %arg7[%c0_24, %c0_25], %48 {strides = array<i32>} : memref<128x32xf32, #tpu.memory_space<vmem>>, vector<128x32xf32>,
    return
  }
  func.func @transform_0(%arg0: i32) -> (i32, i32, i32) {
    %c0_i32 = arith.constant 0 : i32
    %c0_i32_0 = arith.constant 0 : i32
    %c0_i32_1 = arith.constant 0 : i32
    %c0_i32_2 = arith.constant 0 : i32
    return %c0_i32, %c0_i32_0, %c0_i32_1 : i32, i32, i32
  }
  func.func @transform_1(%arg0: i32) -> (i32, i32, i32) {
    %c0_i32 = arith.constant 0 : i32
    %c0_i32_0 = arith.constant 0 : i32
    %c0_i32_1 = arith.constant 0 : i32
    %c0_i32_2 = arith.constant 0 : i32
    return %c0_i32, %c0_i32_0, %c0_i32_1 : i32, i32, i32
  }
  func.func @transform_2(%arg0: i32) -> (i32, i32, i32) {
    %c0_i32 = arith.constant 0 : i32
    %c0_i32_0 = arith.constant 0 : i32
    %c0_i32_1 = arith.constant 0 : i32
    %c0_i32_2 = arith.constant 0 : i32
    return %c0_i32, %c0_i32_0, %c0_i32_1 : i32, i32, i32
  }
  func.func @transform_3(%arg0: i32) -> (i32, i32) {
    %c0_i32 = arith.constant 0 : i32
    %c0_i32_0 = arith.constant 0 : i32
    %c0_i32_1 = arith.constant 0 : i32
    return %c0_i32, %c0_i32_0 : i32, i32
  }
  func.func @transform_4(%arg0: i32) -> (i32, i32) {
    %c0_i32 = arith.constant 0 : i32
    %c0_i32_0 = arith.constant 0 : i32
    %c0_i32_1 = arith.constant 0 : i32
    return %c0_i32, %c0_i32_0 : i32, i32
  }
  func.func @transform_5(%arg0: i32) -> (i32, i32) {
    %c0_i32 = arith.constant 0 : i32
    %c0_i32_0 = arith.constant 0 : i32
    %c0_i32_1 = arith.constant 0 : i32
    return %c0_i32, %c0_i32_0 : i32, i32
  }
  func.func @transform_6(%arg0: i32) -> (i32, i32) {
    %c0_i32 = arith.constant 0 : i32
    %c0_i32_0 = arith.constant 0 : i32
    %c0_i32_1 = arith.constant 0 : i32
    return %c0_i32, %c0_i32_0 : i32, i32
  }
}

module attributes {stable_mosaic.version = 11 : i64} {
  func.func @_matmul_kernel(%arg0: i32, %arg1: memref<128x32xbf16, #tpu.memory_space<vmem>>, %arg2: memref<32x32xbf16, #tpu.memory_space<vmem>>, %arg3: memref<128x32xf32, #tpu.memory_space<vmem>>) attributes {dimension_semantics = [#tpu.dimension_semantics<arbitrary>], iteration_bounds = array<i64: 1>, scalar_prefetch = 0 : i64, scratch_operands = 0 : i64, tpu.core_type = #tpu.core_type<tc>, window_params = [{pipeline_mode = #tpu.pipeline_mode<synchronous>, transform_indices = @transform_0, window_bounds = array<i64: 128, 32>}, {pipeline_mode = #tpu.pipeline_mode<synchronous>, transform_indices = @transform_1, window_bounds = array<i64: 32, 32>}, {pipeline_mode = #tpu.pipeline_mode<synchronous>, transform_indices = @transform_2, window_bounds = array<i64: 128, 32>}]} {
    %c0 = arith.constant 0 : index
    %c0_0 = arith.constant 0 : index
    %0 = vector.load %arg1[%c0, %c0_0] : memref<128x32xbf16, #tpu.memory_space<vmem>>, vector<128x32xbf16>
    %c0_1 = arith.constant 0 : index
    %c0_2 = arith.constant 0 : index
    %1 = vector.load %arg2[%c0_1, %c0_2] : memref<32x32xbf16, #tpu.memory_space<vmem>>, vector<32x32xbf16>
    %cst = arith.constant dense<0.000000e+00> : vector<128x32xf32>
    %2 = tpu.matmul %0, %1, %cst {dimension_numbers = #tpu.dot_dimension_numbers<[1], [0], [0], [1], [0, 0, 1, 1], [], []>} : vector<128x32xbf16>, vector<32x32xbf16>, vector<128x32xf32> -> vector<128x32xf32>
    %c0_3 = arith.constant 0 : index
    %c0_4 = arith.constant 0 : index
    %3 = vector.load %arg3[%c0_3, %c0_4] : memref<128x32xf32, #tpu.memory_space<vmem>>, vector<128x32xf32>
    tpu.vector_store %arg3[%c0_3, %c0_4], %2 {strides = array<i32>} : memref<128x32xf32, #tpu.memory_space<vmem>>, vector<128x32xf32>,
    return
  }
  func.func @transform_0(%arg0: i32) -> (i32, i32) {
    %c0_i32 = arith.constant 0 : i32
    %c0_i32_0 = arith.constant 0 : i32
    %c0_i32_1 = arith.constant 0 : i32
    return %c0_i32, %c0_i32_0 : i32, i32
  }
  func.func @transform_1(%arg0: i32) -> (i32, i32) {
    %c0_i32 = arith.constant 0 : i32
    %c0_i32_0 = arith.constant 0 : i32
    %c0_i32_1 = arith.constant 0 : i32
    return %c0_i32, %c0_i32_0 : i32, i32
  }
  func.func @transform_2(%arg0: i32) -> (i32, i32) {
    %c0_i32 = arith.constant 0 : i32
    %c0_i32_0 = arith.constant 0 : i32
    %c0_i32_1 = arith.constant 0 : i32
    return %c0_i32, %c0_i32_0 : i32, i32
  }
}

module attributes {stable_mosaic.version = 11 : i64} {
  func.func @_matmul_kernel(%arg0: i32, %arg1: memref<128x32xbf16, #tpu.memory_space<vmem>>, %arg2: memref<32x64xbf16, #tpu.memory_space<vmem>>, %arg3: memref<128x64xf32, #tpu.memory_space<vmem>>) attributes {dimension_semantics = [#tpu.dimension_semantics<arbitrary>], iteration_bounds = array<i64: 1>, scalar_prefetch = 0 : i64, scratch_operands = 0 : i64, tpu.core_type = #tpu.core_type<tc>, window_params = [{pipeline_mode = #tpu.pipeline_mode<synchronous>, transform_indices = @transform_0, window_bounds = array<i64: 128, 32>}, {pipeline_mode = #tpu.pipeline_mode<synchronous>, transform_indices = @transform_1, window_bounds = array<i64: 32, 64>}, {pipeline_mode = #tpu.pipeline_mode<synchronous>, transform_indices = @transform_2, window_bounds = array<i64: 128, 64>}]} {
    %c0 = arith.constant 0 : index
    %c0_0 = arith.constant 0 : index
    %0 = vector.load %arg1[%c0, %c0_0] : memref<128x32xbf16, #tpu.memory_space<vmem>>, vector<128x32xbf16>
    %c0_1 = arith.constant 0 : index
    %c0_2 = arith.constant 0 : index
    %1 = vector.load %arg2[%c0_1, %c0_2] : memref<32x64xbf16, #tpu.memory_space<vmem>>, vector<32x64xbf16>
    %cst = arith.constant dense<0.000000e+00> : vector<128x64xf32>
    %2 = tpu.matmul %0, %1, %cst {dimension_numbers = #tpu.dot_dimension_numbers<[1], [0], [0], [1], [0, 0, 1, 1], [], []>} : vector<128x32xbf16>, vector<32x64xbf16>, vector<128x64xf32> -> vector<128x64xf32>
    %c0_3 = arith.constant 0 : index
    %c0_4 = arith.constant 0 : index
    %3 = vector.load %arg3[%c0_3, %c0_4] : memref<128x64xf32, #tpu.memory_space<vmem>>, vector<128x64xf32>
    tpu.vector_store %arg3[%c0_3, %c0_4], %2 {strides = array<i32>} : memref<128x64xf32, #tpu.memory_space<vmem>>, vector<128x64xf32>,
    return
  }
  func.func @transform_0(%arg0: i32) -> (i32, i32) {
    %c0_i32 = arith.constant 0 : i32
    %c0_i32_0 = arith.constant 0 : i32
    %c0_i32_1 = arith.constant 0 : i32
    return %c0_i32, %c0_i32_0 : i32, i32
  }
  func.func @transform_1(%arg0: i32) -> (i32, i32) {
    %c0_i32 = arith.constant 0 : i32
    %c0_i32_0 = arith.constant 0 : i32
    %c0_i32_1 = arith.constant 0 : i32
    return %c0_i32, %c0_i32_0 : i32, i32
  }
  func.func @transform_2(%arg0: i32) -> (i32, i32) {
    %c0_i32 = arith.constant 0 : i32
    %c0_i32_0 = arith.constant 0 : i32
    %c0_i32_1 = arith.constant 0 : i32
    return %c0_i32, %c0_i32_0 : i32, i32
  }
}

module attributes {stable_mosaic.version = 11 : i64} {
  func.func @_ffn_ln_kernel(%arg0: i32, %arg1: memref<128x64xbf16, #tpu.memory_space<vmem>>, %arg2: memref<64x256xbf16, #tpu.memory_space<vmem>>, %arg3: memref<256x32xbf16, #tpu.memory_space<vmem>>, %arg4: memref<1x32xf32, #tpu.memory_space<vmem>>, %arg5: memref<1x32xf32, #tpu.memory_space<vmem>>, %arg6: memref<128x32xf32, #tpu.memory_space<vmem>>) attributes {dimension_semantics = [#tpu.dimension_semantics<arbitrary>], iteration_bounds = array<i64: 1>, scalar_prefetch = 0 : i64, scratch_operands = 0 : i64, tpu.core_type = #tpu.core_type<tc>, window_params = [{pipeline_mode = #tpu.pipeline_mode<synchronous>, transform_indices = @transform_0, window_bounds = array<i64: 128, 64>}, {pipeline_mode = #tpu.pipeline_mode<synchronous>, transform_indices = @transform_1, window_bounds = array<i64: 64, 256>}, {pipeline_mode = #tpu.pipeline_mode<synchronous>, transform_indices = @transform_2, window_bounds = array<i64: 256, 32>}, {pipeline_mode = #tpu.pipeline_mode<synchronous>, transform_indices = @transform_3, window_bounds = array<i64: 1, 32>}, {pipeline_mode = #tpu.pipeline_mode<synchronous>, transform_indices = @transform_4, window_bounds = array<i64: 1, 32>}, {pipeline_mode = #tpu.pipeline_mode<synchronous>, transform_indices = @transform_5, window_bounds = array<i64: 128, 32>}]} {
    %c0 = arith.constant 0 : index
    %c0_0 = arith.constant 0 : index
    %0 = vector.load %arg1[%c0, %c0_0] : memref<128x64xbf16, #tpu.memory_space<vmem>>, vector<128x64xbf16>
    %c0_1 = arith.constant 0 : index
    %c0_2 = arith.constant 0 : index
    %1 = vector.load %arg2[%c0_1, %c0_2] : memref<64x256xbf16, #tpu.memory_space<vmem>>, vector<64x256xbf16>
    %cst = arith.constant dense<0.000000e+00> : vector<128x256xf32>
    %2 = tpu.matmul %0, %1, %cst {dimension_numbers = #tpu.dot_dimension_numbers<[1], [0], [0], [1], [0, 0, 1, 1], [], []>} : vector<128x64xbf16>, vector<64x256xbf16>, vector<128x256xf32> -> vector<128x256xf32>
    %3 = arith.mulf %2, %2 : vector<128x256xf32>
    %4 = arith.mulf %2, %3 : vector<128x256xf32>
    %cst_3 = arith.constant 4.471500e-02 : f32
    %5 = vector.broadcast %cst_3 : f32 to vector<128x256xf32>
    %6 = arith.mulf %5, %4 : vector<128x256xf32>
    %7 = arith.addf %2, %6 : vector<128x256xf32>
    %cst_4 = arith.constant 0.797884583 : f32
    %8 = vector.broadcast %cst_4 : f32 to vector<128x256xf32>
    %9 = arith.mulf %8, %7 : vector<128x256xf32>
    %10 = math.tanh %9 : vector<128x256xf32>
    %cst_5 = arith.constant 1.000000e+00 : f32
    %11 = vector.broadcast %cst_5 : f32 to vector<128x256xf32>
    %12 = arith.addf %11, %10 : vector<128x256xf32>
    %cst_6 = arith.constant 5.000000e-01 : f32
    %13 = vector.broadcast %cst_6 : f32 to vector<128x256xf32>
    %14 = arith.mulf %13, %12 : vector<128x256xf32>
    %15 = arith.mulf %2, %14 : vector<128x256xf32>
    %16 = arith.truncf %15 : vector<128x256xf32> to vector<128x256xbf16>
    %c0_7 = arith.constant 0 : index
    %c0_8 = arith.constant 0 : index
    %17 = vector.load %arg3[%c0_7, %c0_8] : memref<256x32xbf16, #tpu.memory_space<vmem>>, vector<256x32xbf16>
    %cst_9 = arith.constant dense<0.000000e+00> : vector<128x32xf32>
    %18 = tpu.matmul %16, %17, %cst_9 {dimension_numbers = #tpu.dot_dimension_numbers<[1], [0], [0], [1], [0, 0, 1, 1], [], []>} : vector<128x256xbf16>, vector<256x32xbf16>, vector<128x32xf32> -> vector<128x32xf32>
    %cst_10 = arith.constant dense<0.000000e+00> : vector<128xf32>
    %19 = vector.multi_reduction <add>, %18, %cst_10 [1] : vector<128x32xf32> to vector<128xf32>
    %20 = vector.shape_cast %19 : vector<128xf32> to vector<128x1xf32>
    %cst_11 = arith.constant 3.200000e+01 : f32
    %21 = vector.broadcast %cst_11 : f32 to vector<128x1xf32>
    %22 = arith.divf %20, %21 : vector<128x1xf32>
    %23 = vector.broadcast %22 : vector<128x1xf32> to vector<128x32xf32>
    %24 = arith.subf %18, %23 : vector<128x32xf32>
    %25 = arith.mulf %24, %24 : vector<128x32xf32>
    %cst_12 = arith.constant dense<0.000000e+00> : vector<128xf32>
    %26 = vector.multi_reduction <add>, %25, %cst_12 [1] : vector<128x32xf32> to vector<128xf32>
    %27 = vector.shape_cast %26 : vector<128xf32> to vector<128x1xf32>
    %cst_13 = arith.constant 3.200000e+01 : f32
    %28 = vector.broadcast %cst_13 : f32 to vector<128x1xf32>
    %29 = arith.divf %27, %28 : vector<128x1xf32>
    %30 = vector.broadcast %22 : vector<128x1xf32> to vector<128x32xf32>
    %31 = arith.subf %18, %30 : vector<128x32xf32>
    %cst_14 = arith.constant 9.99999974E-6 : f32
    %32 = vector.broadcast %cst_14 : f32 to vector<128x1xf32>
    %33 = arith.addf %29, %32 : vector<128x1xf32>
    %34 = math.rsqrt %33 : vector<128x1xf32>
    %35 = vector.broadcast %34 : vector<128x1xf32> to vector<128x32xf32>
    %36 = arith.mulf %31, %35 : vector<128x32xf32>
    %c0_15 = arith.constant 0 : index
    %c0_16 = arith.constant 0 : index
    %37 = vector.load %arg4[%c0_15, %c0_16] : memref<1x32xf32, #tpu.memory_space<vmem>>, vector<1x32xf32>
    %38 = vector.broadcast %37 : vector<1x32xf32> to vector<128x32xf32>
    %39 = arith.mulf %36, %38 : vector<128x32xf32>
    %c0_17 = arith.constant 0 : index
    %c0_18 = arith.constant 0 : index
    %40 = vector.load %arg5[%c0_17, %c0_18] : memref<1x32xf32, #tpu.memory_space<vmem>>, vector<1x32xf32>
    %41 = vector.broadcast %40 : vector<1x32xf32> to vector<128x32xf32>
    %42 = arith.addf %39, %41 : vector<128x32xf32>
    %c0_19 = arith.constant 0 : index
    %c0_20 = arith.constant 0 : index
    %43 = vector.load %arg6[%c0_19, %c0_20] : memref<128x32xf32, #tpu.memory_space<vmem>>, vector<128x32xf32>
    tpu.vector_store %arg6[%c0_19, %c0_20], %42 {strides = array<i32>} : memref<128x32xf32, #tpu.memory_space<vmem>>, vector<128x32xf32>,
    return
  }
  func.func @transform_0(%arg0: i32) -> (i32, i32) {
    %c0_i32 = arith.constant 0 : i32
    %c0_i32_0 = arith.constant 0 : i32
    %c0_i32_1 = arith.constant 0 : i32
    return %c0_i32, %c0_i32_0 : i32, i32
  }
  func.func @transform_1(%arg0: i32) -> (i32, i32) {
    %c0_i32 = arith.constant 0 : i32
    %c0_i32_0 = arith.constant 0 : i32
    %c0_i32_1 = arith.constant 0 : i32
    return %c0_i32, %c0_i32_0 : i32, i32
  }
  func.func @transform_2(%arg0: i32) -> (i32, i32) {
    %c0_i32 = arith.constant 0 : i32
    %c0_i32_0 = arith.constant 0 : i32
    %c0_i32_1 = arith.constant 0 : i32
    return %c0_i32, %c0_i32_0 : i32, i32
  }
  func.func @transform_3(%arg0: i32) -> (i32, i32) {
    %c0_i32 = arith.constant 0 : i32
    %c0_i32_0 = arith.constant 0 : i32
    %c0_i32_1 = arith.constant 0 : i32
    return %c0_i32, %c0_i32_0 : i32, i32
  }
  func.func @transform_4(%arg0: i32) -> (i32, i32) {
    %c0_i32 = arith.constant 0 : i32
    %c0_i32_0 = arith.constant 0 : i32
    %c0_i32_1 = arith.constant 0 : i32
    return %c0_i32, %c0_i32_0 : i32, i32
  }
  func.func @transform_5(%arg0: i32) -> (i32, i32) {
    %c0_i32 = arith.constant 0 : i32
    %c0_i32_0 = arith.constant 0 : i32
    %c0_i32_1 = arith.constant 0 : i32
    return %c0_i32, %c0_i32_0 : i32, i32
  }
}

module attributes {stable_mosaic.version = 11 : i64} {
  func.func @_conv_kernel(%arg0: i32, %arg1: i32, %arg2: memref<1x16x256xbf16, #tpu.memory_space<vmem>>, %arg3: memref<32x16xbf16, #tpu.memory_space<vmem>>, %arg4: memref<32x1xf32, #tpu.memory_space<vmem>>, %arg5: memref<1x32x256xf32, #tpu.memory_space<vmem>>) attributes {dimension_semantics = [#tpu.dimension_semantics<parallel>, #tpu.dimension_semantics<parallel>], iteration_bounds = array<i64: 2, 1>, scalar_prefetch = 0 : i64, scratch_operands = 0 : i64, tpu.core_type = #tpu.core_type<tc>, window_params = [{transform_indices = @transform_0, window_bounds = array<i64: 1, 16, 256>}, {pipeline_mode = #tpu.pipeline_mode<synchronous>, transform_indices = @transform_1, window_bounds = array<i64: 32, 16>}, {pipeline_mode = #tpu.pipeline_mode<synchronous>, transform_indices = @transform_2, window_bounds = array<i64: 32, 1>}, {transform_indices = @transform_3, window_bounds = array<i64: 1, 32, 256>}]} {
    %c0 = arith.constant 0 : index
    %c0_0 = arith.constant 0 : index
    %0 = vector.load %arg3[%c0, %c0_0] : memref<32x16xbf16, #tpu.memory_space<vmem>>, vector<32x16xbf16>
    %c0_1 = arith.constant 0 : index
    %c0_2 = arith.constant 0 : index
    %c0_3 = arith.constant 0 : index
    %1 = vector.load %arg2[%c0_1, %c0_2, %c0_3] : memref<1x16x256xbf16, #tpu.memory_space<vmem>>, vector<1x16x256xbf16>
    %2 = vector.shape_cast %1 : vector<1x16x256xbf16> to vector<16x256xbf16>
    %cst = arith.constant dense<0.000000e+00> : vector<32x256xf32>
    %3 = tpu.matmul %0, %2, %cst {dimension_numbers = #tpu.dot_dimension_numbers<[1], [0], [0], [1], [0, 0, 1, 1], [], []>} : vector<32x16xbf16>, vector<16x256xbf16>, vector<32x256xf32> -> vector<32x256xf32>
    %c0_4 = arith.constant 0 : index
    %c0_5 = arith.constant 0 : index
    %4 = vector.load %arg4[%c0_4, %c0_5] : memref<32x1xf32, #tpu.memory_space<vmem>>, vector<32x1xf32>
    %5 = vector.broadcast %4 : vector<32x1xf32> to vector<32x256xf32>
    %6 = arith.addf %3, %5 : vector<32x256xf32>
    %c0_6 = arith.constant 0 : index
    %c0_7 = arith.constant 0 : index
    %c0_8 = arith.constant 0 : index
    %7 = vector.load %arg5[%c0_6, %c0_7, %c0_8] : memref<1x32x256xf32, #tpu.memory_space<vmem>>, vector<1x32x256xf32>
    %8 = vector.shape_cast %7 : vector<1x32x256xf32> to vector<32x256xf32>
    %9 = vector.shape_cast %6 : vector<32x256xf32> to vector<1x32x256xf32>
    tpu.vector_store %arg5[%c0_6, %c0_7, %c0_8], %9 {strides = array<i32>} : memref<1x32x256xf32, #tpu.memory_space<vmem>>, vector<1x32x256xf32>,
    return
  }
  func.func @transform_0(%arg0: i32, %arg1: i32) -> (i32, i32, i32) {
    %c0_i32 = arith.constant 0 : i32
    %c0_i32_0 = arith.constant 0 : i32
    return %arg0, %c0_i32, %arg1 : i32, i32, i32
  }
  func.func @transform_1(%arg0: i32, %arg1: i32) -> (i32, i32) {
    %c0_i32 = arith.constant 0 : i32
    %c0_i32_0 = arith.constant 0 : i32
    %c0_i32_1 = arith.constant 0 : i32
    return %c0_i32, %c0_i32_0 : i32, i32
  }
  func.func @transform_2(%arg0: i32, %arg1: i32) -> (i32, i32) {
    %c0_i32 = arith.constant 0 : i32
    %c0_i32_0 = arith.constant 0 : i32
    %c0_i32_1 = arith.constant 0 : i32
    return %c0_i32, %c0_i32_0 : i32, i32
  }
  func.func @transform_3(%arg0: i32, %arg1: i32) -> (i32, i32, i32) {
    %c0_i32 = arith.constant 0 : i32
    %c0_i32_0 = arith.constant 0 : i32
    return %arg0, %c0_i32, %arg1 : i32, i32, i32
  }
}

module attributes {stable_mosaic.version = 11 : i64} {
  func.func @_conv_kernel(%arg0: i32, %arg1: i32, %arg2: memref<1x8x1024xbf16, #tpu.memory_space<vmem>>, %arg3: memref<32x8xbf16, #tpu.memory_space<vmem>>, %arg4: memref<32x1xf32, #tpu.memory_space<vmem>>, %arg5: memref<1x32x1024xf32, #tpu.memory_space<vmem>>) attributes {dimension_semantics = [#tpu.dimension_semantics<parallel>, #tpu.dimension_semantics<parallel>], iteration_bounds = array<i64: 2, 1>, scalar_prefetch = 0 : i64, scratch_operands = 0 : i64, tpu.core_type = #tpu.core_type<tc>, window_params = [{transform_indices = @transform_0, window_bounds = array<i64: 1, 8, 1024>}, {pipeline_mode = #tpu.pipeline_mode<synchronous>, transform_indices = @transform_1, window_bounds = array<i64: 32, 8>}, {pipeline_mode = #tpu.pipeline_mode<synchronous>, transform_indices = @transform_2, window_bounds = array<i64: 32, 1>}, {transform_indices = @transform_3, window_bounds = array<i64: 1, 32, 1024>}]} {
    %c0 = arith.constant 0 : index
    %c0_0 = arith.constant 0 : index
    %0 = vector.load %arg3[%c0, %c0_0] : memref<32x8xbf16, #tpu.memory_space<vmem>>, vector<32x8xbf16>
    %c0_1 = arith.constant 0 : index
    %c0_2 = arith.constant 0 : index
    %c0_3 = arith.constant 0 : index
    %1 = vector.load %arg2[%c0_1, %c0_2, %c0_3] : memref<1x8x1024xbf16, #tpu.memory_space<vmem>>, vector<1x8x1024xbf16>
    %2 = vector.shape_cast %1 : vector<1x8x1024xbf16> to vector<8x1024xbf16>
    %cst = arith.constant dense<0.000000e+00> : vector<32x1024xf32>
    %3 = tpu.matmul %0, %2, %cst {dimension_numbers = #tpu.dot_dimension_numbers<[1], [0], [0], [1], [0, 0, 1, 1], [], []>} : vector<32x8xbf16>, vector<8x1024xbf16>, vector<32x1024xf32> -> vector<32x1024xf32>
    %c0_4 = arith.constant 0 : index
    %c0_5 = arith.constant 0 : index
    %4 = vector.load %arg4[%c0_4, %c0_5] : memref<32x1xf32, #tpu.memory_space<vmem>>, vector<32x1xf32>
    %5 = vector.broadcast %4 : vector<32x1xf32> to vector<32x1024xf32>
    %6 = arith.addf %3, %5 : vector<32x1024xf32>
    %c0_6 = arith.constant 0 : index
    %c0_7 = arith.constant 0 : index
    %c0_8 = arith.constant 0 : index
    %7 = vector.load %arg5[%c0_6, %c0_7, %c0_8] : memref<1x32x1024xf32, #tpu.memory_space<vmem>>, vector<1x32x1024xf32>
    %8 = vector.shape_cast %7 : vector<1x32x1024xf32> to vector<32x1024xf32>
    %9 = vector.shape_cast %6 : vector<32x1024xf32> to vector<1x32x1024xf32>
    tpu.vector_store %arg5[%c0_6, %c0_7, %c0_8], %9 {strides = array<i32>} : memref<1x32x1024xf32, #tpu.memory_space<vmem>>, vector<1x32x1024xf32>,
    return
  }
  func.func @transform_0(%arg0: i32, %arg1: i32) -> (i32, i32, i32) {
    %c0_i32 = arith.constant 0 : i32
    %c0_i32_0 = arith.constant 0 : i32
    return %arg0, %c0_i32, %arg1 : i32, i32, i32
  }
  func.func @transform_1(%arg0: i32, %arg1: i32) -> (i32, i32) {
    %c0_i32 = arith.constant 0 : i32
    %c0_i32_0 = arith.constant 0 : i32
    %c0_i32_1 = arith.constant 0 : i32
    return %c0_i32, %c0_i32_0 : i32, i32
  }
  func.func @transform_2(%arg0: i32, %arg1: i32) -> (i32, i32) {
    %c0_i32 = arith.constant 0 : i32
    %c0_i32_0 = arith.constant 0 : i32
    %c0_i32_1 = arith.constant 0 : i32
    return %c0_i32, %c0_i32_0 : i32, i32
  }
  func.func @transform_3(%arg0: i32, %arg1: i32) -> (i32, i32, i32) {
    %c0_i32 = arith.constant 0 : i32
    %c0_i32_0 = arith.constant 0 : i32
    return %arg0, %c0_i32, %arg1 : i32, i32, i32
  }
}

module attributes {stable_mosaic.version = 11 : i64} {
  func.func @_conv_kernel(%arg0: i32, %arg1: i32, %arg2: memref<1x288x1024xbf16, #tpu.memory_space<vmem>>, %arg3: memref<8x288xbf16, #tpu.memory_space<vmem>>, %arg4: memref<8x1xf32, #tpu.memory_space<vmem>>, %arg5: memref<1x8x1024xf32, #tpu.memory_space<vmem>>) attributes {dimension_semantics = [#tpu.dimension_semantics<parallel>, #tpu.dimension_semantics<parallel>], iteration_bounds = array<i64: 2, 1>, scalar_prefetch = 0 : i64, scratch_operands = 0 : i64, tpu.core_type = #tpu.core_type<tc>, window_params = [{transform_indices = @transform_0, window_bounds = array<i64: 1, 288, 1024>}, {pipeline_mode = #tpu.pipeline_mode<synchronous>, transform_indices = @transform_1, window_bounds = array<i64: 8, 288>}, {pipeline_mode = #tpu.pipeline_mode<synchronous>, transform_indices = @transform_2, window_bounds = array<i64: 8, 1>}, {transform_indices = @transform_3, window_bounds = array<i64: 1, 8, 1024>}]} {
    %c0 = arith.constant 0 : index
    %c0_0 = arith.constant 0 : index
    %0 = vector.load %arg3[%c0, %c0_0] : memref<8x288xbf16, #tpu.memory_space<vmem>>, vector<8x288xbf16>
    %c0_1 = arith.constant 0 : index
    %c0_2 = arith.constant 0 : index
    %c0_3 = arith.constant 0 : index
    %1 = vector.load %arg2[%c0_1, %c0_2, %c0_3] : memref<1x288x1024xbf16, #tpu.memory_space<vmem>>, vector<1x288x1024xbf16>
    %2 = vector.shape_cast %1 : vector<1x288x1024xbf16> to vector<288x1024xbf16>
    %cst = arith.constant dense<0.000000e+00> : vector<8x1024xf32>
    %3 = tpu.matmul %0, %2, %cst {dimension_numbers = #tpu.dot_dimension_numbers<[1], [0], [0], [1], [0, 0, 1, 1], [], []>} : vector<8x288xbf16>, vector<288x1024xbf16>, vector<8x1024xf32> -> vector<8x1024xf32>
    %c0_4 = arith.constant 0 : index
    %c0_5 = arith.constant 0 : index
    %4 = vector.load %arg4[%c0_4, %c0_5] : memref<8x1xf32, #tpu.memory_space<vmem>>, vector<8x1xf32>
    %5 = vector.broadcast %4 : vector<8x1xf32> to vector<8x1024xf32>
    %6 = arith.addf %3, %5 : vector<8x1024xf32>
    %c0_6 = arith.constant 0 : index
    %c0_7 = arith.constant 0 : index
    %c0_8 = arith.constant 0 : index
    %7 = vector.load %arg5[%c0_6, %c0_7, %c0_8] : memref<1x8x1024xf32, #tpu.memory_space<vmem>>, vector<1x8x1024xf32>
    %8 = vector.shape_cast %7 : vector<1x8x1024xf32> to vector<8x1024xf32>
    %9 = vector.shape_cast %6 : vector<8x1024xf32> to vector<1x8x1024xf32>
    tpu.vector_store %arg5[%c0_6, %c0_7, %c0_8], %9 {strides = array<i32>} : memref<1x8x1024xf32, #tpu.memory_space<vmem>>, vector<1x8x1024xf32>,
    return
  }
  func.func @transform_0(%arg0: i32, %arg1: i32) -> (i32, i32, i32) {
    %c0_i32 = arith.constant 0 : i32
    %c0_i32_0 = arith.constant 0 : i32
    return %arg0, %c0_i32, %arg1 : i32, i32, i32
  }
  func.func @transform_1(%arg0: i32, %arg1: i32) -> (i32, i32) {
    %c0_i32 = arith.constant 0 : i32
    %c0_i32_0 = arith.constant 0 : i32
    %c0_i32_1 = arith.constant 0 : i32
    return %c0_i32, %c0_i32_0 : i32, i32
  }
  func.func @transform_2(%arg0: i32, %arg1: i32) -> (i32, i32) {
    %c0_i32 = arith.constant 0 : i32
    %c0_i32_0 = arith.constant 0 : i32
    %c0_i32_1 = arith.constant 0 : i32
    return %c0_i32, %c0_i32_0 : i32, i32
  }
  func.func @transform_3(%arg0: i32, %arg1: i32) -> (i32, i32, i32) {
    %c0_i32 = arith.constant 0 : i32
    %c0_i32_0 = arith.constant 0 : i32
    return %arg0, %c0_i32, %arg1 : i32, i32, i32
  }
}

module attributes {stable_mosaic.version = 11 : i64} {
  func.func @_conv_kernel(%arg0: i32, %arg1: i32, %arg2: memref<1x288x256xbf16, #tpu.memory_space<vmem>>, %arg3: memref<16x288xbf16, #tpu.memory_space<vmem>>, %arg4: memref<16x1xf32, #tpu.memory_space<vmem>>, %arg5: memref<1x16x256xf32, #tpu.memory_space<vmem>>) attributes {dimension_semantics = [#tpu.dimension_semantics<parallel>, #tpu.dimension_semantics<parallel>], iteration_bounds = array<i64: 2, 1>, scalar_prefetch = 0 : i64, scratch_operands = 0 : i64, tpu.core_type = #tpu.core_type<tc>, window_params = [{transform_indices = @transform_0, window_bounds = array<i64: 1, 288, 256>}, {pipeline_mode = #tpu.pipeline_mode<synchronous>, transform_indices = @transform_1, window_bounds = array<i64: 16, 288>}, {pipeline_mode = #tpu.pipeline_mode<synchronous>, transform_indices = @transform_2, window_bounds = array<i64: 16, 1>}, {transform_indices = @transform_3, window_bounds = array<i64: 1, 16, 256>}]} {
    %c0 = arith.constant 0 : index
    %c0_0 = arith.constant 0 : index
    %0 = vector.load %arg3[%c0, %c0_0] : memref<16x288xbf16, #tpu.memory_space<vmem>>, vector<16x288xbf16>
    %c0_1 = arith.constant 0 : index
    %c0_2 = arith.constant 0 : index
    %c0_3 = arith.constant 0 : index
    %1 = vector.load %arg2[%c0_1, %c0_2, %c0_3] : memref<1x288x256xbf16, #tpu.memory_space<vmem>>, vector<1x288x256xbf16>
    %2 = vector.shape_cast %1 : vector<1x288x256xbf16> to vector<288x256xbf16>
    %cst = arith.constant dense<0.000000e+00> : vector<16x256xf32>
    %3 = tpu.matmul %0, %2, %cst {dimension_numbers = #tpu.dot_dimension_numbers<[1], [0], [0], [1], [0, 0, 1, 1], [], []>} : vector<16x288xbf16>, vector<288x256xbf16>, vector<16x256xf32> -> vector<16x256xf32>
    %c0_4 = arith.constant 0 : index
    %c0_5 = arith.constant 0 : index
    %4 = vector.load %arg4[%c0_4, %c0_5] : memref<16x1xf32, #tpu.memory_space<vmem>>, vector<16x1xf32>
    %5 = vector.broadcast %4 : vector<16x1xf32> to vector<16x256xf32>
    %6 = arith.addf %3, %5 : vector<16x256xf32>
    %c0_6 = arith.constant 0 : index
    %c0_7 = arith.constant 0 : index
    %c0_8 = arith.constant 0 : index
    %7 = vector.load %arg5[%c0_6, %c0_7, %c0_8] : memref<1x16x256xf32, #tpu.memory_space<vmem>>, vector<1x16x256xf32>
    %8 = vector.shape_cast %7 : vector<1x16x256xf32> to vector<16x256xf32>
    %9 = vector.shape_cast %6 : vector<16x256xf32> to vector<1x16x256xf32>
    tpu.vector_store %arg5[%c0_6, %c0_7, %c0_8], %9 {strides = array<i32>} : memref<1x16x256xf32, #tpu.memory_space<vmem>>, vector<1x16x256xf32>,
    return
  }
  func.func @transform_0(%arg0: i32, %arg1: i32) -> (i32, i32, i32) {
    %c0_i32 = arith.constant 0 : i32
    %c0_i32_0 = arith.constant 0 : i32
    return %arg0, %c0_i32, %arg1 : i32, i32, i32
  }
  func.func @transform_1(%arg0: i32, %arg1: i32) -> (i32, i32) {
    %c0_i32 = arith.constant 0 : i32
    %c0_i32_0 = arith.constant 0 : i32
    %c0_i32_1 = arith.constant 0 : i32
    return %c0_i32, %c0_i32_0 : i32, i32
  }
  func.func @transform_2(%arg0: i32, %arg1: i32) -> (i32, i32) {
    %c0_i32 = arith.constant 0 : i32
    %c0_i32_0 = arith.constant 0 : i32
    %c0_i32_1 = arith.constant 0 : i32
    return %c0_i32, %c0_i32_0 : i32, i32
  }
  func.func @transform_3(%arg0: i32, %arg1: i32) -> (i32, i32, i32) {
    %c0_i32 = arith.constant 0 : i32
    %c0_i32_0 = arith.constant 0 : i32
    return %arg0, %c0_i32, %arg1 : i32, i32, i32
  }
}

module attributes {stable_mosaic.version = 11 : i64} {
  func.func @_conv_kernel(%arg0: i32, %arg1: i32, %arg2: memref<1x32x64xbf16, #tpu.memory_space<vmem>>, %arg3: memref<32x32xbf16, #tpu.memory_space<vmem>>, %arg4: memref<32x1xf32, #tpu.memory_space<vmem>>, %arg5: memref<1x32x64xf32, #tpu.memory_space<vmem>>) attributes {dimension_semantics = [#tpu.dimension_semantics<parallel>, #tpu.dimension_semantics<parallel>], iteration_bounds = array<i64: 2, 1>, scalar_prefetch = 0 : i64, scratch_operands = 0 : i64, tpu.core_type = #tpu.core_type<tc>, window_params = [{transform_indices = @transform_0, window_bounds = array<i64: 1, 32, 64>}, {pipeline_mode = #tpu.pipeline_mode<synchronous>, transform_indices = @transform_1, window_bounds = array<i64: 32, 32>}, {pipeline_mode = #tpu.pipeline_mode<synchronous>, transform_indices = @transform_2, window_bounds = array<i64: 32, 1>}, {transform_indices = @transform_3, window_bounds = array<i64: 1, 32, 64>}]} {
    %c0 = arith.constant 0 : index
    %c0_0 = arith.constant 0 : index
    %0 = vector.load %arg3[%c0, %c0_0] : memref<32x32xbf16, #tpu.memory_space<vmem>>, vector<32x32xbf16>
    %c0_1 = arith.constant 0 : index
    %c0_2 = arith.constant 0 : index
    %c0_3 = arith.constant 0 : index
    %1 = vector.load %arg2[%c0_1, %c0_2, %c0_3] : memref<1x32x64xbf16, #tpu.memory_space<vmem>>, vector<1x32x64xbf16>
    %2 = vector.shape_cast %1 : vector<1x32x64xbf16> to vector<32x64xbf16>
    %cst = arith.constant dense<0.000000e+00> : vector<32x64xf32>
    %3 = tpu.matmul %0, %2, %cst {dimension_numbers = #tpu.dot_dimension_numbers<[1], [0], [0], [1], [0, 0, 1, 1], [], []>} : vector<32x32xbf16>, vector<32x64xbf16>, vector<32x64xf32> -> vector<32x64xf32>
    %c0_4 = arith.constant 0 : index
    %c0_5 = arith.constant 0 : index
    %4 = vector.load %arg4[%c0_4, %c0_5] : memref<32x1xf32, #tpu.memory_space<vmem>>, vector<32x1xf32>
    %5 = vector.broadcast %4 : vector<32x1xf32> to vector<32x64xf32>
    %6 = arith.addf %3, %5 : vector<32x64xf32>
    %c0_6 = arith.constant 0 : index
    %c0_7 = arith.constant 0 : index
    %c0_8 = arith.constant 0 : index
    %7 = vector.load %arg5[%c0_6, %c0_7, %c0_8] : memref<1x32x64xf32, #tpu.memory_space<vmem>>, vector<1x32x64xf32>
    %8 = vector.shape_cast %7 : vector<1x32x64xf32> to vector<32x64xf32>
    %9 = vector.shape_cast %6 : vector<32x64xf32> to vector<1x32x64xf32>
    tpu.vector_store %arg5[%c0_6, %c0_7, %c0_8], %9 {strides = array<i32>} : memref<1x32x64xf32, #tpu.memory_space<vmem>>, vector<1x32x64xf32>,
    return
  }
  func.func @transform_0(%arg0: i32, %arg1: i32) -> (i32, i32, i32) {
    %c0_i32 = arith.constant 0 : i32
    %c0_i32_0 = arith.constant 0 : i32
    return %arg0, %c0_i32, %arg1 : i32, i32, i32
  }
  func.func @transform_1(%arg0: i32, %arg1: i32) -> (i32, i32) {
    %c0_i32 = arith.constant 0 : i32
    %c0_i32_0 = arith.constant 0 : i32
    %c0_i32_1 = arith.constant 0 : i32
    return %c0_i32, %c0_i32_0 : i32, i32
  }
  func.func @transform_2(%arg0: i32, %arg1: i32) -> (i32, i32) {
    %c0_i32 = arith.constant 0 : i32
    %c0_i32_0 = arith.constant 0 : i32
    %c0_i32_1 = arith.constant 0 : i32
    return %c0_i32, %c0_i32_0 : i32, i32
  }
  func.func @transform_3(%arg0: i32, %arg1: i32) -> (i32, i32, i32) {
    %c0_i32 = arith.constant 0 : i32
    %c0_i32_0 = arith.constant 0 : i32
    return %arg0, %c0_i32, %arg1 : i32, i32, i32
  }
}

</mosaic_0001>

<llo_original>
// kernel: _lambda_.25
$region0: #{_lambda_.25}
  #allocation0 [shape = 'u32[]', space=smem, size = 0x4, offset = 0x4, fixed_abs, tag = 'smem constant byte address 0x4 - core index']
  #allocation1 [shape = 'u32[144,128]{1,0:T(1,128)}', space=vmem, size = 0x12000, scoped, tag = 'internal scratch']
  %s0 = inlined_call_operand.vmem [shape: bf16[2,147,1024], index: 0, kind: input, shape index: {}]
  %s1 = inlined_call_operand.vmem [shape: bf16[8,147], index: 1, kind: input, shape index: {}]
  %s2 = inlined_call_operand.vmem [shape: f32[8,1], index: 2, kind: input, shape index: {}]
  %s3 = inlined_call_operand.vmem [shape: f32[2,8,1024], index: 3, kind: output, shape index: {}]
  %s4 = sld [smem:[#allocation0]]
  $region45: #{_lambda_.25} parent=0
    _
  %s6 = ssub.s32 1, %s4
  %s7 = scalar_select 0, %s6, %s4
  loop: start=0, step=1, limit=4
  $region2: #{_lambda_.25} parent=0 // loop_pre_header
    _
  $region3: #{_lambda_.25} parent=0 // loop_header
    %s9 = sphi 0, %s13
    %p10 = scmp.ge.s32.totalorder %s9, 4
    %s16 = sphi 0, %s28
    %s17 = sphi 0, %s24
    %s18 = sphi 0, %s16
    %s19 = sphi 0, %s17
    %s20 = sphi 0, %s18
    %s21 = sphi 0, %s19
    %s33 = sphi 0, %s35
    %s36 = sphi 0, %s33
    %s37 = sphi 0, %s36
    %s53 = sphi 0, %s37
    %s57 = sphi 0, %s57
    %s59 = sphi 0, %s57
    %s60 = sphi 0, %s59
    %s74 = sphi 0, %s60
    %s78 = sphi 0, %s78
    %s80 = sphi 0, %s78
    %s81 = sphi 0, %s80
    %s95 = sphi 0, %s81
    %s103 = sphi 0, %s105
    %s106 = sphi 0, %s103
    %s107 = sphi 0, %s106
    %s123 = sphi 0, %s107
  $region4: #{_lambda_.25} parent=0 // loop_header_branch
    %12 = sbr.rel (%p10) target = $region8
  $region5: #{_lambda_.25} parent=0 // loop_body
    %s14 = ssub.s32 %s9, 1
    %s15 = ssub.s32 %s9, 2
    %s22 = sadd.s32 1, %s17
    %p23 = scmp.ge.s32.totalorder %s22, 1
    %s24 = scalar_select %p23, 0, %s22
    %s25 = sadd.s32 1, %s16
    %s26 = scalar_select %p23, %s25, %s16
    %p27 = scmp.ge.s32.totalorder %s26, 2
    %s28 = scalar_select %p27, 0, %s26
    %s29 = ssub.s32 %s16, %s28
    %s30 = ssub.s32 %s17, %s24
    %s31 = sor.u32 %s29, %s30
    %p32 = scmp.eq.s32.totalorder %s31, 0
    %s34 = sadd.s32 %s33, 1
    %s35 = scalar_select %p32, %s33, %s34
    %p38 = pneg %p32
    %p39 = scmp.eq.s32.totalorder %s9, 1
    %p40 = por %p38, %p39
    %p41 = scmp.ne.s32.totalorder %s33, %s36
    %p42 = scmp.eq.s32.totalorder %s9, 0
    %p43 = por %p41, %p42
    %p44 = scmp.ne.s32.totalorder %s33, %s36
    %p45 = scmp.eq.s32.totalorder %s14, 1
    %p46 = por %p44, %p45
    %p47 = scmp.ne.s32.totalorder %s36, %s37
    %p48 = scmp.eq.s32.totalorder %s14, 0
    %p49 = por %p47, %p48
    %p50 = scmp.ne.s32.totalorder %s36, %s37
    %p51 = scmp.eq.s32.totalorder %s15, 1
    %p52 = por %p50, %p51
    %p54 = scmp.ne.s32.totalorder %s37, %s53
    %p55 = scmp.eq.s32.totalorder %s15, 0
    %p56 = por %p54, %p55
    %s58 = sadd.s32 %s57, 1
    %p61 = scmp.eq.s32.totalorder %s9, 1
    %p62 = scmp.ne.s32.totalorder %s57, %s59
    %p63 = scmp.eq.s32.totalorder %s9, 0
    %p64 = por %p62, %p63
    %p65 = scmp.ne.s32.totalorder %s57, %s59
    %p66 = scmp.eq.s32.totalorder %s14, 1
    %p67 = por %p65, %p66
    %p68 = scmp.ne.s32.totalorder %s59, %s60
    %p69 = scmp.eq.s32.totalorder %s14, 0
    %p70 = por %p68, %p69
    %p71 = scmp.ne.s32.totalorder %s59, %s60
    %p72 = scmp.eq.s32.totalorder %s15, 1
    %p73 = por %p71, %p72
    %p75 = scmp.ne.s32.totalorder %s60, %s74
    %p76 = scmp.eq.s32.totalorder %s15, 0
    %p77 = por %p75, %p76
    %s79 = sadd.s32 %s78, 1
    %p82 = scmp.eq.s32.totalorder %s9, 1
    %p83 = scmp.ne.s32.totalorder %s78, %s80
    %p84 = scmp.eq.s32.totalorder %s9, 0
    %p85 = por %p83, %p84
    %p86 = scmp.ne.s32.totalorder %s78, %s80
    %p87 = scmp.eq.s32.totalorder %s14, 1
    %p88 = por %p86, %p87
    %p89 = scmp.ne.s32.totalorder %s80, %s81
    %p90 = scmp.eq.s32.totalorder %s14, 0
    %p91 = por %p89, %p90
    %p92 = scmp.ne.s32.totalorder %s80, %s81
    %p93 = scmp.eq.s32.totalorder %s15, 1
    %p94 = por %p92, %p93
    %p96 = scmp.ne.s32.totalorder %s81, %s95
    %p97 = scmp.eq.s32.totalorder %s15, 0
    %p98 = por %p96, %p97
    %s99 = ssub.s32 %s16, %s28
    %s100 = ssub.s32 %s17, %s24
    %s101 = sor.u32 %s99, %s100
    %p102 = scmp.eq.s32.totalorder %s101, 0
    %s104 = sadd.s32 %s103, 1
    %s105 = scalar_select %p102, %s103, %s104
    %p108 = pneg %p102
    %p109 = scmp.eq.s32.totalorder %s9, 1
    %p110 = por %p108, %p109
    %p111 = scmp.ne.s32.totalorder %s103, %s106
    %p112 = scmp.eq.s32.totalorder %s9, 0
    %p113 = por %p111, %p112
    %p114 = scmp.ne.s32.totalorder %s103, %s106
    %p115 = scmp.eq.s32.totalorder %s14, 1
    %p116 = por %p114, %p115
    %p117 = scmp.ne.s32.totalorder %s106, %s107
    %p118 = scmp.eq.s32.totalorder %s14, 0
    %p119 = por %p117, %p118
    %p120 = scmp.ne.s32.totalorder %s106, %s107
    %p121 = scmp.eq.s32.totalorder %s15, 1
    %p122 = por %p120, %p121
    %p124 = scmp.ne.s32.totalorder %s107, %s123
    %p125 = scmp.eq.s32.totalorder %s15, 0
    %p126 = por %p124, %p125
    %p127 = scmp.le.s32.totalorder 1, %s9
    %p128 = scmp.lt.s32.totalorder %s9, 3
    %p129 = pnand %p127, %p128
    %p130 = pneg %p129
    // Predicated region
    $region9: #{_lambda_.25} parent=5 // pred_check
      _
    $region10: #{_lambda_.25} parent=5 // pred_check_branch
      %132 = sbr.rel (%p129) target = $region12
    $region11: #{_lambda_.25} parent=5 // pred_region
      %s133 = ssub.s32 %s9, 1
      // Predicated region
      $region13: #{_lambda_.25} parent=11 // pred_check
        %p134 = pneg %p70
      $region14: #{_lambda_.25} parent=11 // pred_check_branch
        %136 = sbr.rel (%p134) target = $region16
      $region15: #{_lambda_.25} parent=11 // pred_region
        _
      $region16: #{_lambda_.25} parent=11 // pred_fallthru
        _
      // Predicated region
      $region17: #{_lambda_.25} parent=11 // pred_check
        %p137 = pneg %p91
      $region18: #{_lambda_.25} parent=11 // pred_check_branch
        %139 = sbr.rel (%p137) target = $region20
      $region19: #{_lambda_.25} parent=11 // pred_region
        _
      $region20: #{_lambda_.25} parent=11 // pred_fallthru
        _
    $region12: #{_lambda_.25} parent=5 // pred_fallthru
      _
    %p140 = scmp.lt.s32.totalorder %s9, 2
    // Predicated region
    $region21: #{_lambda_.25} parent=5 // pred_check
      %p141 = pneg %p140
    $region22: #{_lambda_.25} parent=5 // pred_check_branch
      %143 = sbr.rel (%p141) target = $region24
    $region23: #{_lambda_.25} parent=5 // pred_region
      // Predicated region
      $region25: #{_lambda_.25} parent=23 // pred_check
        %p144 = pneg %p43
      $region26: #{_lambda_.25} parent=23 // pred_check_branch
        %146 = sbr.rel (%p144) target = $region28
      $region27: #{_lambda_.25} parent=23 // pred_region
        %s147 = smul.u32 8, %s17
        %p148 = scmp.lt.s32.totalorder %s16, 1
        %s149 = scalar_select %p148, %s16, 1
        %p150 = scmp.lt.s32.totalorder %s147, 7
        %s151 = scalar_select %p150, %s147, 7
        %s152 = smul.addr %s149, 152
        %s153 = sadd.s32 %s151, %s152
        %s154 = smul.addr %s153, 4
        %s155 = scalar_lea.vmem %s0, %s154
        %s156 = smul.u32 8, %s17
      $region28: #{_lambda_.25} parent=23 // pred_fallthru
        _
    $region24: #{_lambda_.25} parent=5 // pred_fallthru
      _
    %p157 = scmp.le.s32.totalorder 1, %s9
    %p158 = scmp.lt.s32.totalorder %s9, 3
    %p159 = pnand %p157, %p158
    %p160 = pneg %p159
    // Predicated region
    $region29: #{_lambda_.25} parent=5 // pred_check
      _
    $region30: #{_lambda_.25} parent=5 // pred_check_branch
      %162 = sbr.rel (%p159) target = $region32
    $region31: #{_lambda_.25} parent=5 // pred_region
      %s163 = ssub.s32 %s9, 1
      %s164 = smul.u32 8, %s19
      %p165 = scmp.lt.s32.totalorder %s18, 1
      %s166 = scalar_select %p165, %s18, 1
      %p167 = scmp.lt.s32.totalorder %s164, 7
      %s168 = scalar_select %p167, %s164, 7
      %s169 = smul.addr %s166, 152
      %s170 = sadd.s32 %s168, %s169
      %s171 = smul.addr %s170, 4
      %s172 = scalar_lea.vmem %s0, %s171
      %p173 = pneg %p49
      %p174 = pneg %p46
      %p175 = pneg %p70
      %p176 = pneg %p67
      %p177 = pneg %p91
      %p178 = pneg %p88
      %p179 = pneg %p119
      %p180 = pneg %p116
      %s181 = smul.u32 8, %s19
      %p182 = scmp.lt.s32.totalorder %s18, 1
      %s183 = scalar_select %p182, %s18, 1
      %p184 = scmp.lt.s32.totalorder %s181, 7
      %s185 = scalar_select %p184, %s181, 7
      %s186 = smul.addr %s183, 8
      %s187 = sadd.s32 %s185, %s186
      %s188 = smul.addr %s187, 8
      %s189 = scalar_lea.vmem %s3, %s188
      %s190 = smul.u32 8, %s19
      %p191 = scmp.lt.s32.totalorder %s18, 1
      %s192 = scalar_select %p191, %s18, 1
      %p193 = scmp.lt.s32.totalorder %s190, 7
      %s194 = scalar_select %p193, %s190, 7
      %s195 = smul.addr %s192, 152
      %s196 = sadd.s32 %s194, %s195
      %s197 = smul.addr %s196, 4
      %s198 = scalar_lea.vmem %s0, %s197
      %s199 = smul.u32 8, %s19
      %s200 = smul.u32 8, %s19
      %p201 = scmp.lt.s32.totalorder %s18, 1
      %s202 = scalar_select %p201, %s18, 1
      %p203 = scmp.lt.s32.totalorder %s200, 7
      %s204 = scalar_select %p203, %s200, 7
      %s205 = smul.addr %s202, 8
      %s206 = sadd.s32 %s204, %s205
      %s207 = smul.addr %s206, 8
      %s208 = scalar_lea.vmem %s3, %s207
      %s209 = smul.u32 8, %s19
      %v211 = vld [vmem:[%s1] sm:$0xff]
      %v212 = vld [vmem:[%s198] sm:$0xff]
      %v213 = vld [vmem:[%s198 + $0x8] sm:$0xff]
      %v214 = vld [vmem:[%s198 + $0x10] sm:$0xff]
      %v215 = vld [vmem:[%s198 + $0x18] sm:$0xff]
      %v216 = vld [vmem:[%s198 + $0x20] sm:$0xff]
      %v217 = vld [vmem:[%s198 + $0x28] sm:$0xff]
      %v218 = vld [vmem:[%s198 + $0x30] sm:$0xff]
      %v219 = vld [vmem:[%s198 + $0x38] sm:$0xff]
      %v220 = vld [vmem:[%s198 + $0x40] sm:$0xff]
      %v221 = vld [vmem:[%s198 + $0x48] sm:$0xff]
      %v222 = vld [vmem:[%s198 + $0x50] sm:$0xff]
      %v223 = vld [vmem:[%s198 + $0x58] sm:$0xff]
      %v224 = vld [vmem:[%s198 + $0x60] sm:$0xff]
      %v225 = vld [vmem:[%s198 + $0x68] sm:$0xff]
      %v226 = vld [vmem:[%s198 + $0x70] sm:$0xff]
      %v227 = vld [vmem:[%s198 + $0x78] sm:$0xff]
      %v228 = vld [vmem:[%s198 + $0x80] sm:$0xff]
      %v229 = vld [vmem:[%s198 + $0x88] sm:$0xff]
      %v230 = vld [vmem:[%s198 + $0x90] sm:$0xff]
      %v231 = vld [vmem:[%s198 + $0x98] sm:$0xff]
      %v232 = vld [vmem:[%s198 + $0xa0] sm:$0xff]
      %v233 = vld [vmem:[%s198 + $0xa8] sm:$0xff]
      %v234 = vld [vmem:[%s198 + $0xb0] sm:$0xff]
      %v235 = vld [vmem:[%s198 + $0xb8] sm:$0xff]
      %v236 = vld [vmem:[%s198 + $0xc0] sm:$0xff]
      %v237 = vld [vmem:[%s198 + $0xc8] sm:$0xff]
      %v238 = vld [vmem:[%s198 + $0xd0] sm:$0xff]
      %v239 = vld [vmem:[%s198 + $0xd8] sm:$0xff]
      %v240 = vld [vmem:[%s198 + $0xe0] sm:$0xff]
      %v241 = vld [vmem:[%s198 + $0xe8] sm:$0xff]
      %v242 = vld [vmem:[%s198 + $0xf0] sm:$0xff]
      %v243 = vld [vmem:[%s198 + $0xf8] sm:$0xff]
      %v244 = vld [vmem:[%s198 + $0x100] sm:$0xff]
      %v245 = vld [vmem:[%s198 + $0x108] sm:$0xff]
      %v246 = vld [vmem:[%s198 + $0x110] sm:$0xff]
      %v247 = vld [vmem:[%s198 + $0x118] sm:$0xff]
      %v248 = vld [vmem:[%s198 + $0x120] sm:$0xff]
      %v249 = vld [vmem:[%s198 + $0x128] sm:$0xff]
      %v250 = vld [vmem:[%s198 + $0x130] sm:$0xff]
      %v251 = vld [vmem:[%s198 + $0x138] sm:$0xff]
      %v252 = vld [vmem:[%s198 + $0x140] sm:$0xff]
      %v253 = vld [vmem:[%s198 + $0x148] sm:$0xff]
      %v254 = vld [vmem:[%s198 + $0x150] sm:$0xff]
      %v255 = vld [vmem:[%s198 + $0x158] sm:$0xff]
      %v256 = vld [vmem:[%s198 + $0x160] sm:$0xff]
      %v257 = vld [vmem:[%s198 + $0x168] sm:$0xff]
      %v258 = vld [vmem:[%s198 + $0x170] sm:$0xff]
      %v259 = vld [vmem:[%s198 + $0x178] sm:$0xff]
      %v260 = vld [vmem:[%s198 + $0x180] sm:$0xff]
      %v261 = vld [vmem:[%s198 + $0x188] sm:$0xff]
      %v262 = vld [vmem:[%s198 + $0x190] sm:$0xff]
      %v263 = vld [vmem:[%s198 + $0x198] sm:$0xff]
      %v264 = vld [vmem:[%s198 + $0x1a0] sm:$0xff]
      %v265 = vld [vmem:[%s198 + $0x1a8] sm:$0xff]
      %v266 = vld [vmem:[%s198 + $0x1b0] sm:$0xff]
      %v267 = vld [vmem:[%s198 + $0x1b8] sm:$0xff]
      %v268 = vld [vmem:[%s198 + $0x1c0] sm:$0xff]
      %v269 = vld [vmem:[%s198 + $0x1c8] sm:$0xff]
      %v270 = vld [vmem:[%s198 + $0x1d0] sm:$0xff]
      %v271 = vld [vmem:[%s198 + $0x1d8] sm:$0xff]
      %v272 = vld [vmem:[%s198 + $0x1e0] sm:$0xff]
      %v273 = vld [vmem:[%s198 + $0x1e8] sm:$0xff]
      %v274 = vld [vmem:[%s198 + $0x1f0] sm:$0xff]
      %v275 = vld [vmem:[%s198 + $0x1f8] sm:$0xff]
      %v276 = vld [vmem:[%s198 + $0x200] sm:$0xff]
      %v277 = vld [vmem:[%s198 + $0x208] sm:$0xff]
      %v278 = vld [vmem:[%s198 + $0x210] sm:$0xff]
      %v279 = vld [vmem:[%s198 + $0x218] sm:$0xff]
      %v280 = vld [vmem:[%s198 + $0x220] sm:$0xff]
      %v281 = vld [vmem:[%s198 + $0x228] sm:$0xff]
      %v282 = vld [vmem:[%s198 + $0x230] sm:$0xff]
      %v283 = vld [vmem:[%s198 + $0x238] sm:$0xff]
      %v284 = vld [vmem:[%s198 + $0x240] sm:$0x33]
      %v285 = vld [vmem:[%s198 + $0x248] sm:$0x33]
      %v286 = vld [vmem:[%s198 + $0x250] sm:$0x33]
      %v287 = vld [vmem:[%s198 + $0x258] sm:$0x33]
      %v288 = vld [vmem:[%s2] sm:$0xff]
      %290 = vset.pattern.permute.xlu0 0
      %291 = vperm.xlu0 %290, %v288
      %v292 = vpop.permute.xlu0 %291
      %v295 = vunpack.c.l.b16 %v211
      %v296 = vunpack.c.h.b16 %v211
      %v297 = vpack.c.b16 %v295, %v295
      %v298 = vpack.c.b16 %v296, %v296
      %v376 = vunpack.c.l.b16 %v212
      %v377 = vunpack.c.h.b16 %v212
      %v378 = vunpack.c.l.b16 %v213
      %v379 = vunpack.c.h.b16 %v213
      %v380 = vunpack.c.l.b16 %v214
      %v381 = vunpack.c.h.b16 %v214
      %v382 = vunpack.c.l.b16 %v215
      %v383 = vunpack.c.h.b16 %v215
      %v384 = vunpack.c.l.b16 %v216
      %v385 = vunpack.c.h.b16 %v216
      %v386 = vunpack.c.l.b16 %v217
      %v387 = vunpack.c.h.b16 %v217
      %v388 = vunpack.c.l.b16 %v218
      %v389 = vunpack.c.h.b16 %v218
      %v390 = vunpack.c.l.b16 %v219
      %v391 = vunpack.c.h.b16 %v219
      %v392 = vunpack.c.l.b16 %v220
      %v393 = vunpack.c.h.b16 %v220
      %v394 = vunpack.c.l.b16 %v221
      %v395 = vunpack.c.h.b16 %v221
      %v396 = vunpack.c.l.b16 %v222
      %v397 = vunpack.c.h.b16 %v222
      %v398 = vunpack.c.l.b16 %v223
      %v399 = vunpack.c.h.b16 %v223
      %v400 = vunpack.c.l.b16 %v224
      %v401 = vunpack.c.h.b16 %v224
      %v402 = vunpack.c.l.b16 %v225
      %v403 = vunpack.c.h.b16 %v225
      %v404 = vunpack.c.l.b16 %v226
      %v405 = vunpack.c.h.b16 %v226
      %v406 = vunpack.c.l.b16 %v227
      %v407 = vunpack.c.h.b16 %v227
      %v408 = vunpack.c.l.b16 %v228
      %v409 = vunpack.c.h.b16 %v228
      %v410 = vunpack.c.l.b16 %v229
      %v411 = vunpack.c.h.b16 %v229
      %v412 = vunpack.c.l.b16 %v230
      %v413 = vunpack.c.h.b16 %v230
      %v414 = vunpack.c.l.b16 %v231
      %v415 = vunpack.c.h.b16 %v231
      %v416 = vunpack.c.l.b16 %v232
      %v417 = vunpack.c.h.b16 %v232
      %v418 = vunpack.c.l.b16 %v233
      %v419 = vunpack.c.h.b16 %v233
      %v420 = vunpack.c.l.b16 %v234
      %v421 = vunpack.c.h.b16 %v234
      %v422 = vunpack.c.l.b16 %v235
      %v423 = vunpack.c.h.b16 %v235
      %v424 = vunpack.c.l.b16 %v236
      %v425 = vunpack.c.h.b16 %v236
      %v426 = vunpack.c.l.b16 %v237
      %v427 = vunpack.c.h.b16 %v237
      %v428 = vunpack.c.l.b16 %v238
      %v429 = vunpack.c.h.b16 %v238
      %v430 = vunpack.c.l.b16 %v239
      %v431 = vunpack.c.h.b16 %v239
      %v432 = vunpack.c.l.b16 %v240
      %v433 = vunpack.c.h.b16 %v240
      %v434 = vunpack.c.l.b16 %v241
      %v435 = vunpack.c.h.b16 %v241
      %v436 = vunpack.c.l.b16 %v242
      %v437 = vunpack.c.h.b16 %v242
      %v438 = vunpack.c.l.b16 %v243
      %v439 = vunpack.c.h.b16 %v243
      %v440 = vunpack.c.l.b16 %v244
      %v441 = vunpack.c.h.b16 %v244
      %v442 = vunpack.c.l.b16 %v245
      %v443 = vunpack.c.h.b16 %v245
      %v444 = vunpack.c.l.b16 %v246
      %v445 = vunpack.c.h.b16 %v246
      %v446 = vunpack.c.l.b16 %v247
      %v447 = vunpack.c.h.b16 %v247
      %v448 = vunpack.c.l.b16 %v248
      %v449 = vunpack.c.h.b16 %v248
      %v450 = vunpack.c.l.b16 %v249
      %v451 = vunpack.c.h.b16 %v249
      %v452 = vunpack.c.l.b16 %v250
      %v453 = vunpack.c.h.b16 %v250
      %v454 = vunpack.c.l.b16 %v251
      %v455 = vunpack.c.h.b16 %v251
      %v456 = vunpack.c.l.b16 %v252
      %v457 = vunpack.c.h.b16 %v252
      %v458 = vunpack.c.l.b16 %v253
      %v459 = vunpack.c.h.b16 %v253
      %v460 = vunpack.c.l.b16 %v254
      %v461 = vunpack.c.h.b16 %v254
      %v462 = vunpack.c.l.b16 %v255
      %v463 = vunpack.c.h.b16 %v255
      %v464 = vunpack.c.l.b16 %v256
      %v465 = vunpack.c.h.b16 %v256
      %v466 = vunpack.c.l.b16 %v257
      %v467 = vunpack.c.h.b16 %v257
      %v468 = vunpack.c.l.b16 %v258
      %v469 = vunpack.c.h.b16 %v258
      %v470 = vunpack.c.l.b16 %v259
      %v471 = vunpack.c.h.b16 %v259
      %v472 = vunpack.c.l.b16 %v260
      %v473 = vunpack.c.h.b16 %v260
      %v474 = vunpack.c.l.b16 %v261
      %v475 = vunpack.c.h.b16 %v261
      %v476 = vunpack.c.l.b16 %v262
      %v477 = vunpack.c.h.b16 %v262
      %v478 = vunpack.c.l.b16 %v263
      %v479 = vunpack.c.h.b16 %v263
      %v480 = vunpack.c.l.b16 %v264
      %v481 = vunpack.c.h.b16 %v264
      %v482 = vunpack.c.l.b16 %v265
      %v483 = vunpack.c.h.b16 %v265
      %v484 = vunpack.c.l.b16 %v266
      %v485 = vunpack.c.h.b16 %v266
      %v486 = vunpack.c.l.b16 %v267
      %v487 = vunpack.c.h.b16 %v267
      %v488 = vunpack.c.l.b16 %v268
      %v489 = vunpack.c.h.b16 %v268
      %v490 = vunpack.c.l.b16 %v269
      %v491 = vunpack.c.h.b16 %v269
      %v492 = vunpack.c.l.b16 %v270
      %v493 = vunpack.c.h.b16 %v270
      %v494 = vunpack.c.l.b16 %v271
      %v495 = vunpack.c.h.b16 %v271
      %v496 = vunpack.c.l.b16 %v272
      %v497 = vunpack.c.h.b16 %v272
      %v498 = vunpack.c.l.b16 %v273
      %v499 = vunpack.c.h.b16 %v273
      %v500 = vunpack.c.l.b16 %v274
      %v501 = vunpack.c.h.b16 %v274
      %v502 = vunpack.c.l.b16 %v275
      %v503 = vunpack.c.h.b16 %v275
      %v504 = vunpack.c.l.b16 %v276
      %v505 = vunpack.c.h.b16 %v276
      %v506 = vunpack.c.l.b16 %v277
      %v507 = vunpack.c.h.b16 %v277
      %v508 = vunpack.c.l.b16 %v278
      %v509 = vunpack.c.h.b16 %v278
      %v510 = vunpack.c.l.b16 %v279
      %v511 = vunpack.c.h.b16 %v279
      %v512 = vunpack.c.l.b16 %v280
      %v513 = vunpack.c.h.b16 %v280
      %v514 = vunpack.c.l.b16 %v281
      %v515 = vunpack.c.h.b16 %v281
      %v516 = vunpack.c.l.b16 %v282
      %v517 = vunpack.c.h.b16 %v282
      %v518 = vunpack.c.l.b16 %v283
      %v519 = vunpack.c.h.b16 %v283
      %v520 = vunpack.c.l.b16 %v284
      %v521 = vunpack.c.h.b16 %v284
      %v522 = vunpack.c.l.b16 %v285
      %v523 = vunpack.c.h.b16 %v285
      %v524 = vunpack.c.l.b16 %v286
      %v525 = vunpack.c.h.b16 %v286
      %v526 = vunpack.c.l.b16 %v287
      %v527 = vunpack.c.h.b16 %v287
      %v528 = vpack.c.b16 %v384, %v376
      %v529 = vpack.c.b16 %v385, %v377
      %v530 = vpack.c.b16 %v386, %v378
      %v531 = vpack.c.b16 %v387, %v379
      %v532 = vpack.c.b16 %v388, %v380
      %v533 = vpack.c.b16 %v389, %v381
      %v534 = vpack.c.b16 %v390, %v382
      %v535 = vpack.c.b16 %v391, %v383
      %v536 = vpack.c.b16 %v400, %v392
      %v537 = vpack.c.b16 %v401, %v393
      %v538 = vpack.c.b16 %v402, %v394
      %v539 = vpack.c.b16 %v403, %v395
      %v540 = vpack.c.b16 %v404, %v396
      %v541 = vpack.c.b16 %v405, %v397
      %v542 = vpack.c.b16 %v406, %v398
      %v543 = vpack.c.b16 %v407, %v399
      %v544 = vpack.c.b16 %v416, %v408
      %v545 = vpack.c.b16 %v417, %v409
      %v546 = vpack.c.b16 %v418, %v410
      %v547 = vpack.c.b16 %v419, %v411
      %v548 = vpack.c.b16 %v420, %v412
      %v549 = vpack.c.b16 %v421, %v413
      %v550 = vpack.c.b16 %v422, %v414
      %v551 = vpack.c.b16 %v423, %v415
      %v552 = vpack.c.b16 %v432, %v424
      %v553 = vpack.c.b16 %v433, %v425
      %v554 = vpack.c.b16 %v434, %v426
      %v555 = vpack.c.b16 %v435, %v427
      %v556 = vpack.c.b16 %v436, %v428
      %v557 = vpack.c.b16 %v437, %v429
      %v558 = vpack.c.b16 %v438, %v430
      %v559 = vpack.c.b16 %v439, %v431
      %v560 = vpack.c.b16 %v448, %v440
      %v561 = vpack.c.b16 %v449, %v441
      %v562 = vpack.c.b16 %v450, %v442
      %v563 = vpack.c.b16 %v451, %v443
      %v564 = vpack.c.b16 %v452, %v444
      %v565 = vpack.c.b16 %v453, %v445
      %v566 = vpack.c.b16 %v454, %v446
      %v567 = vpack.c.b16 %v455, %v447
      %v568 = vpack.c.b16 %v464, %v456
      %v569 = vpack.c.b16 %v465, %v457
      %v570 = vpack.c.b16 %v466, %v458
      %v571 = vpack.c.b16 %v467, %v459
      %v572 = vpack.c.b16 %v468, %v460
      %v573 = vpack.c.b16 %v469, %v461
      %v574 = vpack.c.b16 %v470, %v462
      %v575 = vpack.c.b16 %v471, %v463
      %v576 = vpack.c.b16 %v480, %v472
      %v577 = vpack.c.b16 %v481, %v473
      %v578 = vpack.c.b16 %v482, %v474
      %v579 = vpack.c.b16 %v483, %v475
      %v580 = vpack.c.b16 %v484, %v476
      %v581 = vpack.c.b16 %v485, %v477
      %v582 = vpack.c.b16 %v486, %v478
      %v583 = vpack.c.b16 %v487, %v479
      %v584 = vpack.c.b16 %v496, %v488
      %v585 = vpack.c.b16 %v497, %v489
      %v586 = vpack.c.b16 %v498, %v490
      %v587 = vpack.c.b16 %v499, %v491
      %v588 = vpack.c.b16 %v500, %v492
      %v589 = vpack.c.b16 %v501, %v493
      %v590 = vpack.c.b16 %v502, %v494
      %v591 = vpack.c.b16 %v503, %v495
      %v592 = vpack.c.b16 %v512, %v504
      %v593 = vpack.c.b16 %v513, %v505
      %v594 = vpack.c.b16 %v514, %v506
      %v595 = vpack.c.b16 %v515, %v507
      %v596 = vpack.c.b16 %v516, %v508
      %v597 = vpack.c.b16 %v517, %v509
      %v598 = vpack.c.b16 %v518, %v510
      %v599 = vpack.c.b16 %v519, %v511
      %v600 = vpack.c.b16 %v520, %v520
      %v601 = vpack.c.b16 %v521, %v521
      %v602 = vpack.c.b16 %v522, %v522
      %v603 = vpack.c.b16 %v523, %v523
      %v604 = vpack.c.b16 %v524, %v524
      %v605 = vpack.c.b16 %v525, %v525
      %v606 = vpack.c.b16 %v526, %v526
      %v607 = vpack.c.b16 %v527, %v527
      %vm680 = vcmask 154624
      %v682 = vsel %vm680, %v298, 0
      %vm684 = vcmask 1040384
      %vm685 = vcmask 1041408
      %v686 = vsel %vm684, 4294967295, 65535
      %v687 = vsel %vm685, %v686, 0
      %v689 = vand.u32 %v600, %v687
      %v692 = vand.u32 %v601, %v687
      %v695 = vand.u32 %v602, %v687
      %v698 = vand.u32 %v603, %v687
      %v701 = vand.u32 %v604, %v687
      %v704 = vand.u32 %v605, %v687
      %v707 = vand.u32 %v606, %v687
      %v710 = vand.u32 %v607, %v687
      %712 = vmatprep.subr.bf16.mxu0 %v529
      %713 = vmatpush1.bf16.msra.mxu0 %v528
      %714 = vmatprep.subr.bf16.mxu0 %v537
      %715 = vmatpush1.bf16.msra.mxu0 %v536
      %716 = vmatprep.subr.bf16.mxu0 %v545
      %717 = vmatpush1.bf16.msra.mxu0 %v544
      %718 = vmatprep.subr.bf16.mxu0 %v553
      %719 = vmatpush1.bf16.msra.mxu0 %v552
      %720 = vmatprep.subr.bf16.mxu0 %v561
      %721 = vmatpush1.bf16.msra.mxu0 %v560
      %722 = vmatprep.subr.bf16.mxu0 %v569
      %723 = vmatpush1.bf16.msra.mxu0 %v568
      %724 = vmatprep.subr.bf16.mxu0 %v577
      %725 = vmatpush1.bf16.msra.mxu0 %v576
      %726 = vmatprep.subr.bf16.mxu0 %v585
      %727 = vmatpush1.bf16.msra.mxu0 %v584
      %728 = vmatprep.subr.bf16.mxu0 %v593
      %729 = vmatpush1.bf16.msra.mxu0 %v592
      %730 = vmatprep.subr.bf16.mxu0 %v692
      %731 = vmatpush1.bf16.msra.mxu0 %v689
      %732 = vmatprep.subr.bf16.mxu0 0
      %733 = vmatpush1.bf16.msra.mxu0 0
      %734 = vmatprep.subr.bf16.mxu0 0
      %735 = vmatpush1.bf16.msra.mxu0 0
      %736 = vmatprep.subr.bf16.mxu0 0
      %737 = vmatpush1.bf16.msra.mxu0 0
      %738 = vmatprep.subr.bf16.mxu0 0
      %739 = vmatpush1.bf16.msra.mxu0 0
      %740 = vmatprep.subr.bf16.mxu0 0
      %741 = vmatpush1.bf16.msra.mxu0 0
      %742 = vmatprep.subr.bf16.mxu0 0
      %743 = vmatpush1.bf16.msra.mxu0 0
      %744 = vmatprep.mubr.bf16.mxu0 %v682
      %745 = vmatmul.mubr.bf16.gmra.mrb[0].mxu0 %v297
      %v746 = vpop.f32.mrb[0].mxu0
      %v747 = vadd.f32 %v292, %v746
      %v748 = vpop.f32.mrb[0].mxu0
      %v749 = vadd.f32 %v292, %v748
      %v750 = vpop.f32.mrb[0].mxu0
      %v751 = vpop.f32.mrb[0].mxu0
      %752 = vdwg.mxu0
      %753 = vmatprep.subr.bf16.mxu0 %v531
      %754 = vmatpush1.bf16.msra.mxu0 %v530
      %755 = vmatprep.subr.bf16.mxu0 %v539
      %756 = vmatpush1.bf16.msra.mxu0 %v538
      %757 = vmatprep.subr.bf16.mxu0 %v547
      %758 = vmatpush1.bf16.msra.mxu0 %v546
      %759 = vmatprep.subr.bf16.mxu0 %v555
      %760 = vmatpush1.bf16.msra.mxu0 %v554
      %761 = vmatprep.subr.bf16.mxu0 %v563
      %762 = vmatpush1.bf16.msra.mxu0 %v562
      %763 = vmatprep.subr.bf16.mxu0 %v571
      %764 = vmatpush1.bf16.msra.mxu0 %v570
      %765 = vmatprep.subr.bf16.mxu0 %v579
      %766 = vmatpush1.bf16.msra.mxu0 %v578
      %767 = vmatprep.subr.bf16.mxu0 %v587
      %768 = vmatpush1.bf16.msra.mxu0 %v586
      %769 = vmatprep.subr.bf16.mxu0 %v595
      %770 = vmatpush1.bf16.msra.mxu0 %v594
      %771 = vmatprep.subr.bf16.mxu0 %v698
      %772 = vmatpush1.bf16.msra.mxu0 %v695
      %773 = vmatprep.subr.bf16.mxu0 0
      %774 = vmatpush1.bf16.msra.mxu0 0
      %775 = vmatprep.subr.bf16.mxu0 0
      %776 = vmatpush1.bf16.msra.mxu0 0
      %777 = vmatprep.subr.bf16.mxu0 0
      %778 = vmatpush1.bf16.msra.mxu0 0
      %779 = vmatprep.subr.bf16.mxu0 0
      %780 = vmatpush1.bf16.msra.mxu0 0
      %781 = vmatprep.subr.bf16.mxu0 0
      %782 = vmatpush1.bf16.msra.mxu0 0
      %783 = vmatprep.subr.bf16.mxu0 0
      %784 = vmatpush1.bf16.msra.mxu0 0
      %785 = vmatprep.mubr.bf16.mxu0 %v682
      %786 = vmatmul.mubr.bf16.gmra.mrb[0].mxu0 %v297
      %v787 = vpop.f32.mrb[0].mxu0
      %v788 = vadd.f32 %v292, %v787
      %v789 = vpop.f32.mrb[0].mxu0
      %v790 = vadd.f32 %v292, %v789
      %v791 = vpop.f32.mrb[0].mxu0
      %v792 = vpop.f32.mrb[0].mxu0
      %793 = vdwg.mxu0
      %794 = vmatprep.subr.bf16.mxu0 %v533
      %795 = vmatpush1.bf16.msra.mxu0 %v532
      %796 = vmatprep.subr.bf16.mxu0 %v541
      %797 = vmatpush1.bf16.msra.mxu0 %v540
      %798 = vmatprep.subr.bf16.mxu0 %v549
      %799 = vmatpush1.bf16.msra.mxu0 %v548
      %800 = vmatprep.subr.bf16.mxu0 %v557
      %801 = vmatpush1.bf16.msra.mxu0 %v556
      %802 = vmatprep.subr.bf16.mxu0 %v565
      %803 = vmatpush1.bf16.msra.mxu0 %v564
      %804 = vmatprep.subr.bf16.mxu0 %v573
      %805 = vmatpush1.bf16.msra.mxu0 %v572
      %806 = vmatprep.subr.bf16.mxu0 %v581
      %807 = vmatpush1.bf16.msra.mxu0 %v580
      %808 = vmatprep.subr.bf16.mxu0 %v589
      %809 = vmatpush1.bf16.msra.mxu0 %v588
      %810 = vmatprep.subr.bf16.mxu0 %v597
      %811 = vmatpush1.bf16.msra.mxu0 %v596
      %812 = vmatprep.subr.bf16.mxu0 %v704
      %813 = vmatpush1.bf16.msra.mxu0 %v701
      %814 = vmatprep.subr.bf16.mxu0 0
      %815 = vmatpush1.bf16.msra.mxu0 0
      %816 = vmatprep.subr.bf16.mxu0 0
      %817 = vmatpush1.bf16.msra.mxu0 0
      %818 = vmatprep.subr.bf16.mxu0 0
      %819 = vmatpush1.bf16.msra.mxu0 0
      %820 = vmatprep.subr.bf16.mxu0 0
      %821 = vmatpush1.bf16.msra.mxu0 0
      %822 = vmatprep.subr.bf16.mxu0 0
      %823 = vmatpush1.bf16.msra.mxu0 0
      %824 = vmatprep.subr.bf16.mxu0 0
      %825 = vmatpush1.bf16.msra.mxu0 0
      %826 = vmatprep.mubr.bf16.mxu0 %v682
      %827 = vmatmul.mubr.bf16.gmra.mrb[0].mxu0 %v297
      %v828 = vpop.f32.mrb[0].mxu0
      %v829 = vadd.f32 %v292, %v828
      %v830 = vpop.f32.mrb[0].mxu0
      %v831 = vadd.f32 %v292, %v830
      %v832 = vpop.f32.mrb[0].mxu0
      %v833 = vpop.f32.mrb[0].mxu0
      %834 = vdwg.mxu0
      %835 = vmatprep.subr.bf16.mxu0 %v535
      %836 = vmatpush1.bf16.msra.mxu0 %v534
      %837 = vmatprep.subr.bf16.mxu0 %v543
      %838 = vmatpush1.bf16.msra.mxu0 %v542
      %839 = vmatprep.subr.bf16.mxu0 %v551
      %840 = vmatpush1.bf16.msra.mxu0 %v550
      %841 = vmatprep.subr.bf16.mxu0 %v559
      %842 = vmatpush1.bf16.msra.mxu0 %v558
      %843 = vmatprep.subr.bf16.mxu0 %v567
      %844 = vmatpush1.bf16.msra.mxu0 %v566
      %845 = vmatprep.subr.bf16.mxu0 %v575
      %846 = vmatpush1.bf16.msra.mxu0 %v574
      %847 = vmatprep.subr.bf16.mxu0 %v583
      %848 = vmatpush1.bf16.msra.mxu0 %v582
      %849 = vmatprep.subr.bf16.mxu0 %v591
      %850 = vmatpush1.bf16.msra.mxu0 %v590
      %851 = vmatprep.subr.bf16.mxu0 %v599
      %852 = vmatpush1.bf16.msra.mxu0 %v598
      %853 = vmatprep.subr.bf16.mxu0 %v710
      %854 = vmatpush1.bf16.msra.mxu0 %v707
      %855 = vmatprep.subr.bf16.mxu0 0
      %856 = vmatpush1.bf16.msra.mxu0 0
      %857 = vmatprep.subr.bf16.mxu0 0
      %858 = vmatpush1.bf16.msra.mxu0 0
      %859 = vmatprep.subr.bf16.mxu0 0
      %860 = vmatpush1.bf16.msra.mxu0 0
      %861 = vmatprep.subr.bf16.mxu0 0
      %862 = vmatpush1.bf16.msra.mxu0 0
      %863 = vmatprep.subr.bf16.mxu0 0
      %864 = vmatpush1.bf16.msra.mxu0 0
      %865 = vmatprep.subr.bf16.mxu0 0
      %866 = vmatpush1.bf16.msra.mxu0 0
      %867 = vmatprep.mubr.bf16.mxu0 %v682
      %868 = vmatmul.mubr.bf16.gmra.mrb[0].mxu0 %v297
      %v869 = vpop.f32.mrb[0].mxu0
      %v870 = vadd.f32 %v292, %v869
      %v871 = vpop.f32.mrb[0].mxu0
      %v872 = vadd.f32 %v292, %v871
      %v873 = vpop.f32.mrb[0].mxu0
      %v874 = vpop.f32.mrb[0].mxu0
      %875 = vdwg.mxu0
      %876 = vst [vmem:[%s208] sm:$0xff] %v747
      %877 = vst [vmem:[%s208 + $0x8] sm:$0xff] %v749
      %878 = vst [vmem:[%s208 + $0x10] sm:$0xff] %v788
      %879 = vst [vmem:[%s208 + $0x18] sm:$0xff] %v790
      %880 = vst [vmem:[%s208 + $0x20] sm:$0xff] %v829
      %881 = vst [vmem:[%s208 + $0x28] sm:$0xff] %v831
      %882 = vst [vmem:[%s208 + $0x30] sm:$0xff] %v870
      %883 = vst [vmem:[%s208 + $0x38] sm:$0xff] %v872
      %s884 = smul.u32 8, %s19
      %p885 = scmp.lt.s32.totalorder %s18, 1
      %s886 = scalar_select %p885, %s18, 1
      %p887 = scmp.lt.s32.totalorder %s884, 7
      %s888 = scalar_select %p887, %s884, 7
      %s889 = smul.addr %s886, 8
      %s890 = sadd.s32 %s888, %s889
      %s891 = smul.addr %s890, 8
      %s892 = scalar_lea.vmem %s3, %s891
      // Predicated region
      $region33: #{_lambda_.25} parent=31 // pred_check
        %p893 = pneg %p116
      $region34: #{_lambda_.25} parent=31 // pred_check_branch
        %895 = sbr.rel (%p893) target = $region36
      $region35: #{_lambda_.25} parent=31 // pred_region
        %s896 = smul.u32 8, %s19
      $region36: #{_lambda_.25} parent=31 // pred_fallthru
        _
    $region32: #{_lambda_.25} parent=5 // pred_fallthru
      _
    %p897 = scmp.le.s32.totalorder 2, %s9
    // Predicated region
    $region37: #{_lambda_.25} parent=5 // pred_check
      %p898 = pneg %p897
    $region38: #{_lambda_.25} parent=5 // pred_check_branch
      %900 = sbr.rel (%p898) target = $region40
    $region39: #{_lambda_.25} parent=5 // pred_region
      %s901 = ssub.s32 %s9, 2
      // Predicated region
      $region41: #{_lambda_.25} parent=39 // pred_check
        %p902 = pneg %p122
      $region42: #{_lambda_.25} parent=39 // pred_check_branch
        %904 = sbr.rel (%p902) target = $region44
      $region43: #{_lambda_.25} parent=39 // pred_region
        %s905 = smul.u32 8, %s21
        %p906 = scmp.lt.s32.totalorder %s20, 1
        %s907 = scalar_select %p906, %s20, 1
        %p908 = scmp.lt.s32.totalorder %s905, 7
        %s909 = scalar_select %p908, %s905, 7
        %s910 = smul.addr %s907, 8
        %s911 = sadd.s32 %s909, %s910
        %s912 = smul.addr %s911, 8
        %s913 = scalar_lea.vmem %s3, %s912
      $region44: #{_lambda_.25} parent=39 // pred_fallthru
        _
    $region40: #{_lambda_.25} parent=5 // pred_fallthru
      _
  $region6: #{_lambda_.25} parent=0 // loop_footer
    %s13 = sadd.s32 1, %s9
  $region7: #{_lambda_.25} parent=0 // loop_footer_branch
    %8 = sbr.rel target = $region3
  $region8: #{_lambda_.25} parent=0 // loop_exit
    _

// kernel: _lambda_.26
$region0: #{_lambda_.26}
  #allocation0 [shape = 'u32[]', space=smem, size = 0x4, offset = 0x4, fixed_abs, tag = 'smem constant byte address 0x4 - core index']
  #allocation1 [shape = 'u32[144,128]{1,0:T(1,128)}', space=vmem, size = 0x12000, scoped, tag = 'internal scratch']
  %s0 = inlined_call_operand.vmem [shape: bf16[2,200,1024], index: 0, kind: input, shape index: {}]
  %s1 = inlined_call_operand.vmem [shape: bf16[8,200], index: 1, kind: input, shape index: {}]
  %s2 = inlined_call_operand.vmem [shape: f32[8,1], index: 2, kind: input, shape index: {}]
  %s3 = inlined_call_operand.vmem [shape: f32[2,8,1024], index: 3, kind: output, shape index: {}]
  %s4 = sld [smem:[#allocation0]]
  $region45: #{_lambda_.26} parent=0
    _
  %s6 = ssub.s32 1, %s4
  %s7 = scalar_select 0, %s6, %s4
  loop: start=0, step=1, limit=4
  $region2: #{_lambda_.26} parent=0 // loop_pre_header
    _
  $region3: #{_lambda_.26} parent=0 // loop_header
    %s9 = sphi 0, %s13
    %p10 = scmp.ge.s32.totalorder %s9, 4
    %s16 = sphi 0, %s28
    %s17 = sphi 0, %s24
    %s18 = sphi 0, %s16
    %s19 = sphi 0, %s17
    %s20 = sphi 0, %s18
    %s21 = sphi 0, %s19
    %s33 = sphi 0, %s35
    %s36 = sphi 0, %s33
    %s37 = sphi 0, %s36
    %s53 = sphi 0, %s37
    %s57 = sphi 0, %s57
    %s59 = sphi 0, %s57
    %s60 = sphi 0, %s59
    %s74 = sphi 0, %s60
    %s78 = sphi 0, %s78
    %s80 = sphi 0, %s78
    %s81 = sphi 0, %s80
    %s95 = sphi 0, %s81
    %s103 = sphi 0, %s105
    %s106 = sphi 0, %s103
    %s107 = sphi 0, %s106
    %s123 = sphi 0, %s107
  $region4: #{_lambda_.26} parent=0 // loop_header_branch
    %12 = sbr.rel (%p10) target = $region8
  $region5: #{_lambda_.26} parent=0 // loop_body
    %s14 = ssub.s32 %s9, 1
    %s15 = ssub.s32 %s9, 2
    %s22 = sadd.s32 1, %s17
    %p23 = scmp.ge.s32.totalorder %s22, 1
    %s24 = scalar_select %p23, 0, %s22
    %s25 = sadd.s32 1, %s16
    %s26 = scalar_select %p23, %s25, %s16
    %p27 = scmp.ge.s32.totalorder %s26, 2
    %s28 = scalar_select %p27, 0, %s26
    %s29 = ssub.s32 %s16, %s28
    %s30 = ssub.s32 %s17, %s24
    %s31 = sor.u32 %s29, %s30
    %p32 = scmp.eq.s32.totalorder %s31, 0
    %s34 = sadd.s32 %s33, 1
    %s35 = scalar_select %p32, %s33, %s34
    %p38 = pneg %p32
    %p39 = scmp.eq.s32.totalorder %s9, 1
    %p40 = por %p38, %p39
    %p41 = scmp.ne.s32.totalorder %s33, %s36
    %p42 = scmp.eq.s32.totalorder %s9, 0
    %p43 = por %p41, %p42
    %p44 = scmp.ne.s32.totalorder %s33, %s36
    %p45 = scmp.eq.s32.totalorder %s14, 1
    %p46 = por %p44, %p45
    %p47 = scmp.ne.s32.totalorder %s36, %s37
    %p48 = scmp.eq.s32.totalorder %s14, 0
    %p49 = por %p47, %p48
    %p50 = scmp.ne.s32.totalorder %s36, %s37
    %p51 = scmp.eq.s32.totalorder %s15, 1
    %p52 = por %p50, %p51
    %p54 = scmp.ne.s32.totalorder %s37, %s53
    %p55 = scmp.eq.s32.totalorder %s15, 0
    %p56 = por %p54, %p55
    %s58 = sadd.s32 %s57, 1
    %p61 = scmp.eq.s32.totalorder %s9, 1
    %p62 = scmp.ne.s32.totalorder %s57, %s59
    %p63 = scmp.eq.s32.totalorder %s9, 0
    %p64 = por %p62, %p63
    %p65 = scmp.ne.s32.totalorder %s57, %s59
    %p66 = scmp.eq.s32.totalorder %s14, 1
    %p67 = por %p65, %p66
    %p68 = scmp.ne.s32.totalorder %s59, %s60
    %p69 = scmp.eq.s32.totalorder %s14, 0
    %p70 = por %p68, %p69
    %p71 = scmp.ne.s32.totalorder %s59, %s60
    %p72 = scmp.eq.s32.totalorder %s15, 1
    %p73 = por %p71, %p72
    %p75 = scmp.ne.s32.totalorder %s60, %s74
    %p76 = scmp.eq.s32.totalorder %s15, 0
    %p77 = por %p75, %p76
    %s79 = sadd.s32 %s78, 1
    %p82 = scmp.eq.s32.totalorder %s9, 1
    %p83 = scmp.ne.s32.totalorder %s78, %s80
    %p84 = scmp.eq.s32.totalorder %s9, 0
    %p85 = por %p83, %p84
    %p86 = scmp.ne.s32.totalorder %s78, %s80
    %p87 = scmp.eq.s32.totalorder %s14, 1
    %p88 = por %p86, %p87
    %p89 = scmp.ne.s32.totalorder %s80, %s81
    %p90 = scmp.eq.s32.totalorder %s14, 0
    %p91 = por %p89, %p90
    %p92 = scmp.ne.s32.totalorder %s80, %s81
    %p93 = scmp.eq.s32.totalorder %s15, 1
    %p94 = por %p92, %p93
    %p96 = scmp.ne.s32.totalorder %s81, %s95
    %p97 = scmp.eq.s32.totalorder %s15, 0
    %p98 = por %p96, %p97
    %s99 = ssub.s32 %s16, %s28
    %s100 = ssub.s32 %s17, %s24
    %s101 = sor.u32 %s99, %s100
    %p102 = scmp.eq.s32.totalorder %s101, 0
    %s104 = sadd.s32 %s103, 1
    %s105 = scalar_select %p102, %s103, %s104
    %p108 = pneg %p102
    %p109 = scmp.eq.s32.totalorder %s9, 1
    %p110 = por %p108, %p109
    %p111 = scmp.ne.s32.totalorder %s103, %s106
    %p112 = scmp.eq.s32.totalorder %s9, 0
    %p113 = por %p111, %p112
    %p114 = scmp.ne.s32.totalorder %s103, %s106
    %p115 = scmp.eq.s32.totalorder %s14, 1
    %p116 = por %p114, %p115
    %p117 = scmp.ne.s32.totalorder %s106, %s107
    %p118 = scmp.eq.s32.totalorder %s14, 0
    %p119 = por %p117, %p118
    %p120 = scmp.ne.s32.totalorder %s106, %s107
    %p121 = scmp.eq.s32.totalorder %s15, 1
    %p122 = por %p120, %p121
    %p124 = scmp.ne.s32.totalorder %s107, %s123
    %p125 = scmp.eq.s32.totalorder %s15, 0
    %p126 = por %p124, %p125
    %p127 = scmp.le.s32.totalorder 1, %s9
    %p128 = scmp.lt.s32.totalorder %s9, 3
    %p129 = pnand %p127, %p128
    %p130 = pneg %p129
    // Predicated region
    $region9: #{_lambda_.26} parent=5 // pred_check
      _
    $region10: #{_lambda_.26} parent=5 // pred_check_branch
      %132 = sbr.rel (%p129) target = $region12
    $region11: #{_lambda_.26} parent=5 // pred_region
      %s133 = ssub.s32 %s9, 1
      // Predicated region
      $region13: #{_lambda_.26} parent=11 // pred_check
        %p134 = pneg %p70
      $region14: #{_lambda_.26} parent=11 // pred_check_branch
        %136 = sbr.rel (%p134) target = $region16
      $region15: #{_lambda_.26} parent=11 // pred_region
        _
      $region16: #{_lambda_.26} parent=11 // pred_fallthru
        _
      // Predicated region
      $region17: #{_lambda_.26} parent=11 // pred_check
        %p137 = pneg %p91
      $region18: #{_lambda_.26} parent=11 // pred_check_branch
        %139 = sbr.rel (%p137) target = $region20
      $region19: #{_lambda_.26} parent=11 // pred_region
        _
      $region20: #{_lambda_.26} parent=11 // pred_fallthru
        _
    $region12: #{_lambda_.26} parent=5 // pred_fallthru
      _
    %p140 = scmp.lt.s32.totalorder %s9, 2
    // Predicated region
    $region21: #{_lambda_.26} parent=5 // pred_check
      %p141 = pneg %p140
    $region22: #{_lambda_.26} parent=5 // pred_check_branch
      %143 = sbr.rel (%p141) target = $region24
    $region23: #{_lambda_.26} parent=5 // pred_region
      // Predicated region
      $region25: #{_lambda_.26} parent=23 // pred_check
        %p144 = pneg %p43
      $region26: #{_lambda_.26} parent=23 // pred_check_branch
        %146 = sbr.rel (%p144) target = $region28
      $region27: #{_lambda_.26} parent=23 // pred_region
        %s147 = smul.u32 8, %s17
        %p148 = scmp.lt.s32.totalorder %s16, 1
        %s149 = scalar_select %p148, %s16, 1
        %p150 = scmp.lt.s32.totalorder %s147, 7
        %s151 = scalar_select %p150, %s147, 7
        %s152 = smul.addr %s149, 200
        %s153 = sadd.s32 %s151, %s152
        %s154 = smul.addr %s153, 4
        %s155 = scalar_lea.vmem %s0, %s154
        %s156 = smul.u32 8, %s17
      $region28: #{_lambda_.26} parent=23 // pred_fallthru
        _
    $region24: #{_lambda_.26} parent=5 // pred_fallthru
      _
    %p157 = scmp.le.s32.totalorder 1, %s9
    %p158 = scmp.lt.s32.totalorder %s9, 3
    %p159 = pnand %p157, %p158
    %p160 = pneg %p159
    // Predicated region
    $region29: #{_lambda_.26} parent=5 // pred_check
      _
    $region30: #{_lambda_.26} parent=5 // pred_check_branch
      %162 = sbr.rel (%p159) target = $region32
    $region31: #{_lambda_.26} parent=5 // pred_region
      %s163 = ssub.s32 %s9, 1
      %s164 = smul.u32 8, %s19
      %p165 = scmp.lt.s32.totalorder %s18, 1
      %s166 = scalar_select %p165, %s18, 1
      %p167 = scmp.lt.s32.totalorder %s164, 7
      %s168 = scalar_select %p167, %s164, 7
      %s169 = smul.addr %s166, 200
      %s170 = sadd.s32 %s168, %s169
      %s171 = smul.addr %s170, 4
      %s172 = scalar_lea.vmem %s0, %s171
      %p173 = pneg %p49
      %p174 = pneg %p46
      %p175 = pneg %p70
      %p176 = pneg %p67
      %p177 = pneg %p91
      %p178 = pneg %p88
      %p179 = pneg %p119
      %p180 = pneg %p116
      %s181 = smul.u32 8, %s19
      %p182 = scmp.lt.s32.totalorder %s18, 1
      %s183 = scalar_select %p182, %s18, 1
      %p184 = scmp.lt.s32.totalorder %s181, 7
      %s185 = scalar_select %p184, %s181, 7
      %s186 = smul.addr %s183, 8
      %s187 = sadd.s32 %s185, %s186
      %s188 = smul.addr %s187, 8
      %s189 = scalar_lea.vmem %s3, %s188
      %s190 = smul.u32 8, %s19
      %p191 = scmp.lt.s32.totalorder %s18, 1
      %s192 = scalar_select %p191, %s18, 1
      %p193 = scmp.lt.s32.totalorder %s190, 7
      %s194 = scalar_select %p193, %s190, 7
      %s195 = smul.addr %s192, 200
      %s196 = sadd.s32 %s194, %s195
      %s197 = smul.addr %s196, 4
      %s198 = scalar_lea.vmem %s0, %s197
      %s199 = smul.u32 8, %s19
      %s200 = smul.u32 8, %s19
      %p201 = scmp.lt.s32.totalorder %s18, 1
      %s202 = scalar_select %p201, %s18, 1
      %p203 = scmp.lt.s32.totalorder %s200, 7
      %s204 = scalar_select %p203, %s200, 7
      %s205 = smul.addr %s202, 8
      %s206 = sadd.s32 %s204, %s205
      %s207 = smul.addr %s206, 8
      %s208 = scalar_lea.vmem %s3, %s207
      %s209 = smul.u32 8, %s19
      %v211 = vld [vmem:[%s1] sm:$0xff]
      %v212 = vld [vmem:[%s198] sm:$0xff]
      %v213 = vld [vmem:[%s198 + $0x8] sm:$0xff]
      %v214 = vld [vmem:[%s198 + $0x10] sm:$0xff]
      %v215 = vld [vmem:[%s198 + $0x18] sm:$0xff]
      %v216 = vld [vmem:[%s198 + $0x20] sm:$0xff]
      %v217 = vld [vmem:[%s198 + $0x28] sm:$0xff]
      %v218 = vld [vmem:[%s198 + $0x30] sm:$0xff]
      %v219 = vld [vmem:[%s198 + $0x38] sm:$0xff]
      %v220 = vld [vmem:[%s198 + $0x40] sm:$0xff]
      %v221 = vld [vmem:[%s198 + $0x48] sm:$0xff]
      %v222 = vld [vmem:[%s198 + $0x50] sm:$0xff]
      %v223 = vld [vmem:[%s198 + $0x58] sm:$0xff]
      %v224 = vld [vmem:[%s198 + $0x60] sm:$0xff]
      %v225 = vld [vmem:[%s198 + $0x68] sm:$0xff]
      %v226 = vld [vmem:[%s198 + $0x70] sm:$0xff]
      %v227 = vld [vmem:[%s198 + $0x78] sm:$0xff]
      %v228 = vld [vmem:[%s198 + $0x80] sm:$0xff]
      %v229 = vld [vmem:[%s198 + $0x88] sm:$0xff]
      %v230 = vld [vmem:[%s198 + $0x90] sm:$0xff]
      %v231 = vld [vmem:[%s198 + $0x98] sm:$0xff]
      %v232 = vld [vmem:[%s198 + $0xa0] sm:$0xff]
      %v233 = vld [vmem:[%s198 + $0xa8] sm:$0xff]
      %v234 = vld [vmem:[%s198 + $0xb0] sm:$0xff]
      %v235 = vld [vmem:[%s198 + $0xb8] sm:$0xff]
      %v236 = vld [vmem:[%s198 + $0xc0] sm:$0xff]
      %v237 = vld [vmem:[%s198 + $0xc8] sm:$0xff]
      %v238 = vld [vmem:[%s198 + $0xd0] sm:$0xff]
      %v239 = vld [vmem:[%s198 + $0xd8] sm:$0xff]
      %v240 = vld [vmem:[%s198 + $0xe0] sm:$0xff]
      %v241 = vld [vmem:[%s198 + $0xe8] sm:$0xff]
      %v242 = vld [vmem:[%s198 + $0xf0] sm:$0xff]
      %v243 = vld [vmem:[%s198 + $0xf8] sm:$0xff]
      %v244 = vld [vmem:[%s198 + $0x100] sm:$0xff]
      %v245 = vld [vmem:[%s198 + $0x108] sm:$0xff]
      %v246 = vld [vmem:[%s198 + $0x110] sm:$0xff]
      %v247 = vld [vmem:[%s198 + $0x118] sm:$0xff]
      %v248 = vld [vmem:[%s198 + $0x120] sm:$0xff]
      %v249 = vld [vmem:[%s198 + $0x128] sm:$0xff]
      %v250 = vld [vmem:[%s198 + $0x130] sm:$0xff]
      %v251 = vld [vmem:[%s198 + $0x138] sm:$0xff]
      %v252 = vld [vmem:[%s198 + $0x140] sm:$0xff]
      %v253 = vld [vmem:[%s198 + $0x148] sm:$0xff]
      %v254 = vld [vmem:[%s198 + $0x150] sm:$0xff]
      %v255 = vld [vmem:[%s198 + $0x158] sm:$0xff]
      %v256 = vld [vmem:[%s198 + $0x160] sm:$0xff]
      %v257 = vld [vmem:[%s198 + $0x168] sm:$0xff]
      %v258 = vld [vmem:[%s198 + $0x170] sm:$0xff]
      %v259 = vld [vmem:[%s198 + $0x178] sm:$0xff]
      %v260 = vld [vmem:[%s198 + $0x180] sm:$0xff]
      %v261 = vld [vmem:[%s198 + $0x188] sm:$0xff]
      %v262 = vld [vmem:[%s198 + $0x190] sm:$0xff]
      %v263 = vld [vmem:[%s198 + $0x198] sm:$0xff]
      %v264 = vld [vmem:[%s198 + $0x1a0] sm:$0xff]
      %v265 = vld [vmem:[%s198 + $0x1a8] sm:$0xff]
      %v266 = vld [vmem:[%s198 + $0x1b0] sm:$0xff]
      %v267 = vld [vmem:[%s198 + $0x1b8] sm:$0xff]
      %v268 = vld [vmem:[%s198 + $0x1c0] sm:$0xff]
      %v269 = vld [vmem:[%s198 + $0x1c8] sm:$0xff]
      %v270 = vld [vmem:[%s198 + $0x1d0] sm:$0xff]
      %v271 = vld [vmem:[%s198 + $0x1d8] sm:$0xff]
      %v272 = vld [vmem:[%s198 + $0x1e0] sm:$0xff]
      %v273 = vld [vmem:[%s198 + $0x1e8] sm:$0xff]
      %v274 = vld [vmem:[%s198 + $0x1f0] sm:$0xff]
      %v275 = vld [vmem:[%s198 + $0x1f8] sm:$0xff]
      %v276 = vld [vmem:[%s198 + $0x200] sm:$0xff]
      %v277 = vld [vmem:[%s198 + $0x208] sm:$0xff]
      %v278 = vld [vmem:[%s198 + $0x210] sm:$0xff]
      %v279 = vld [vmem:[%s198 + $0x218] sm:$0xff]
      %v280 = vld [vmem:[%s198 + $0x220] sm:$0xff]
      %v281 = vld [vmem:[%s198 + $0x228] sm:$0xff]
      %v282 = vld [vmem:[%s198 + $0x230] sm:$0xff]
      %v283 = vld [vmem:[%s198 + $0x238] sm:$0xff]
      %v284 = vld [vmem:[%s198 + $0x240] sm:$0xff]
      %v285 = vld [vmem:[%s198 + $0x248] sm:$0xff]
      %v286 = vld [vmem:[%s198 + $0x250] sm:$0xff]
      %v287 = vld [vmem:[%s198 + $0x258] sm:$0xff]
      %v288 = vld [vmem:[%s198 + $0x260] sm:$0xff]
      %v289 = vld [vmem:[%s198 + $0x268] sm:$0xff]
      %v290 = vld [vmem:[%s198 + $0x270] sm:$0xff]
      %v291 = vld [vmem:[%s198 + $0x278] sm:$0xff]
      %v292 = vld [vmem:[%s198 + $0x280] sm:$0xff]
      %v293 = vld [vmem:[%s198 + $0x288] sm:$0xff]
      %v294 = vld [vmem:[%s198 + $0x290] sm:$0xff]
      %v295 = vld [vmem:[%s198 + $0x298] sm:$0xff]
      %v296 = vld [vmem:[%s198 + $0x2a0] sm:$0xff]
      %v297 = vld [vmem:[%s198 + $0x2a8] sm:$0xff]
      %v298 = vld [vmem:[%s198 + $0x2b0] sm:$0xff]
      %v299 = vld [vmem:[%s198 + $0x2b8] sm:$0xff]
      %v300 = vld [vmem:[%s198 + $0x2c0] sm:$0xff]
      %v301 = vld [vmem:[%s198 + $0x2c8] sm:$0xff]
      %v302 = vld [vmem:[%s198 + $0x2d0] sm:$0xff]
      %v303 = vld [vmem:[%s198 + $0x2d8] sm:$0xff]
      %v304 = vld [vmem:[%s198 + $0x2e0] sm:$0xff]
      %v305 = vld [vmem:[%s198 + $0x2e8] sm:$0xff]
      %v306 = vld [vmem:[%s198 + $0x2f0] sm:$0xff]
      %v307 = vld [vmem:[%s198 + $0x2f8] sm:$0xff]
      %v308 = vld [vmem:[%s198 + $0x300] sm:$0xff]
      %v309 = vld [vmem:[%s198 + $0x308] sm:$0xff]
      %v310 = vld [vmem:[%s198 + $0x310] sm:$0xff]
      %v311 = vld [vmem:[%s198 + $0x318] sm:$0xff]
      %v312 = vld [vmem:[%s2] sm:$0xff]
      %314 = vset.pattern.permute.xlu0 0
      %315 = vperm.xlu0 %314, %v312
      %v316 = vpop.permute.xlu0 %315
      %v319 = vunpack.c.l.b16 %v211
      %v320 = vunpack.c.h.b16 %v211
      %v321 = vpack.c.b16 %v319, %v319
      %v322 = vpack.c.b16 %v320, %v320
      %v424 = vunpack.c.l.b16 %v212
      %v425 = vunpack.c.h.b16 %v212
      %v426 = vunpack.c.l.b16 %v213
      %v427 = vunpack.c.h.b16 %v213
      %v428 = vunpack.c.l.b16 %v214
      %v429 = vunpack.c.h.b16 %v214
      %v430 = vunpack.c.l.b16 %v215
      %v431 = vunpack.c.h.b16 %v215
      %v432 = vunpack.c.l.b16 %v216
      %v433 = vunpack.c.h.b16 %v216
      %v434 = vunpack.c.l.b16 %v217
      %v435 = vunpack.c.h.b16 %v217
      %v436 = vunpack.c.l.b16 %v218
      %v437 = vunpack.c.h.b16 %v218
      %v438 = vunpack.c.l.b16 %v219
      %v439 = vunpack.c.h.b16 %v219
      %v440 = vunpack.c.l.b16 %v220
      %v441 = vunpack.c.h.b16 %v220
      %v442 = vunpack.c.l.b16 %v221
      %v443 = vunpack.c.h.b16 %v221
      %v444 = vunpack.c.l.b16 %v222
      %v445 = vunpack.c.h.b16 %v222
      %v446 = vunpack.c.l.b16 %v223
      %v447 = vunpack.c.h.b16 %v223
      %v448 = vunpack.c.l.b16 %v224
      %v449 = vunpack.c.h.b16 %v224
      %v450 = vunpack.c.l.b16 %v225
      %v451 = vunpack.c.h.b16 %v225
      %v452 = vunpack.c.l.b16 %v226
      %v453 = vunpack.c.h.b16 %v226
      %v454 = vunpack.c.l.b16 %v227
      %v455 = vunpack.c.h.b16 %v227
      %v456 = vunpack.c.l.b16 %v228
      %v457 = vunpack.c.h.b16 %v228
      %v458 = vunpack.c.l.b16 %v229
      %v459 = vunpack.c.h.b16 %v229
      %v460 = vunpack.c.l.b16 %v230
      %v461 = vunpack.c.h.b16 %v230
      %v462 = vunpack.c.l.b16 %v231
      %v463 = vunpack.c.h.b16 %v231
      %v464 = vunpack.c.l.b16 %v232
      %v465 = vunpack.c.h.b16 %v232
      %v466 = vunpack.c.l.b16 %v233
      %v467 = vunpack.c.h.b16 %v233
      %v468 = vunpack.c.l.b16 %v234
      %v469 = vunpack.c.h.b16 %v234
      %v470 = vunpack.c.l.b16 %v235
      %v471 = vunpack.c.h.b16 %v235
      %v472 = vunpack.c.l.b16 %v236
      %v473 = vunpack.c.h.b16 %v236
      %v474 = vunpack.c.l.b16 %v237
      %v475 = vunpack.c.h.b16 %v237
      %v476 = vunpack.c.l.b16 %v238
      %v477 = vunpack.c.h.b16 %v238
      %v478 = vunpack.c.l.b16 %v239
      %v479 = vunpack.c.h.b16 %v239
      %v480 = vunpack.c.l.b16 %v240
      %v481 = vunpack.c.h.b16 %v240
      %v482 = vunpack.c.l.b16 %v241
      %v483 = vunpack.c.h.b16 %v241
      %v484 = vunpack.c.l.b16 %v242
      %v485 = vunpack.c.h.b16 %v242
      %v486 = vunpack.c.l.b16 %v243
      %v487 = vunpack.c.h.b16 %v243
      %v488 = vunpack.c.l.b16 %v244
      %v489 = vunpack.c.h.b16 %v244
      %v490 = vunpack.c.l.b16 %v245
      %v491 = vunpack.c.h.b16 %v245
      %v492 = vunpack.c.l.b16 %v246
      %v493 = vunpack.c.h.b16 %v246
      %v494 = vunpack.c.l.b16 %v247
      %v495 = vunpack.c.h.b16 %v247
      %v496 = vunpack.c.l.b16 %v248
      %v497 = vunpack.c.h.b16 %v248
      %v498 = vunpack.c.l.b16 %v249
      %v499 = vunpack.c.h.b16 %v249
      %v500 = vunpack.c.l.b16 %v250
      %v501 = vunpack.c.h.b16 %v250
      %v502 = vunpack.c.l.b16 %v251
      %v503 = vunpack.c.h.b16 %v251
      %v504 = vunpack.c.l.b16 %v252
      %v505 = vunpack.c.h.b16 %v252
      %v506 = vunpack.c.l.b16 %v253
      %v507 = vunpack.c.h.b16 %v253
      %v508 = vunpack.c.l.b16 %v254
      %v509 = vunpack.c.h.b16 %v254
      %v510 = vunpack.c.l.b16 %v255
      %v511 = vunpack.c.h.b16 %v255
      %v512 = vunpack.c.l.b16 %v256
      %v513 = vunpack.c.h.b16 %v256
      %v514 = vunpack.c.l.b16 %v257
      %v515 = vunpack.c.h.b16 %v257
      %v516 = vunpack.c.l.b16 %v258
      %v517 = vunpack.c.h.b16 %v258
      %v518 = vunpack.c.l.b16 %v259
      %v519 = vunpack.c.h.b16 %v259
      %v520 = vunpack.c.l.b16 %v260
      %v521 = vunpack.c.h.b16 %v260
      %v522 = vunpack.c.l.b16 %v261
      %v523 = vunpack.c.h.b16 %v261
      %v524 = vunpack.c.l.b16 %v262
      %v525 = vunpack.c.h.b16 %v262
      %v526 = vunpack.c.l.b16 %v263
      %v527 = vunpack.c.h.b16 %v263
      %v528 = vunpack.c.l.b16 %v264
      %v529 = vunpack.c.h.b16 %v264
      %v530 = vunpack.c.l.b16 %v265
      %v531 = vunpack.c.h.b16 %v265
      %v532 = vunpack.c.l.b16 %v266
      %v533 = vunpack.c.h.b16 %v266
      %v534 = vunpack.c.l.b16 %v267
      %v535 = vunpack.c.h.b16 %v267
      %v536 = vunpack.c.l.b16 %v268
      %v537 = vunpack.c.h.b16 %v268
      %v538 = vunpack.c.l.b16 %v269
      %v539 = vunpack.c.h.b16 %v269
      %v540 = vunpack.c.l.b16 %v270
      %v541 = vunpack.c.h.b16 %v270
      %v542 = vunpack.c.l.b16 %v271
      %v543 = vunpack.c.h.b16 %v271
      %v544 = vunpack.c.l.b16 %v272
      %v545 = vunpack.c.h.b16 %v272
      %v546 = vunpack.c.l.b16 %v273
      %v547 = vunpack.c.h.b16 %v273
      %v548 = vunpack.c.l.b16 %v274
      %v549 = vunpack.c.h.b16 %v274
      %v550 = vunpack.c.l.b16 %v275
      %v551 = vunpack.c.h.b16 %v275
      %v552 = vunpack.c.l.b16 %v276
      %v553 = vunpack.c.h.b16 %v276
      %v554 = vunpack.c.l.b16 %v277
      %v555 = vunpack.c.h.b16 %v277
      %v556 = vunpack.c.l.b16 %v278
      %v557 = vunpack.c.h.b16 %v278
      %v558 = vunpack.c.l.b16 %v279
      %v559 = vunpack.c.h.b16 %v279
      %v560 = vunpack.c.l.b16 %v280
      %v561 = vunpack.c.h.b16 %v280
      %v562 = vunpack.c.l.b16 %v281
      %v563 = vunpack.c.h.b16 %v281
      %v564 = vunpack.c.l.b16 %v282
      %v565 = vunpack.c.h.b16 %v282
      %v566 = vunpack.c.l.b16 %v283
      %v567 = vunpack.c.h.b16 %v283
      %v568 = vunpack.c.l.b16 %v284
      %v569 = vunpack.c.h.b16 %v284
      %v570 = vunpack.c.l.b16 %v285
      %v571 = vunpack.c.h.b16 %v285
      %v572 = vunpack.c.l.b16 %v286
      %v573 = vunpack.c.h.b16 %v286
      %v574 = vunpack.c.l.b16 %v287
      %v575 = vunpack.c.h.b16 %v287
      %v576 = vunpack.c.l.b16 %v288
      %v577 = vunpack.c.h.b16 %v288
      %v578 = vunpack.c.l.b16 %v289
      %v579 = vunpack.c.h.b16 %v289
      %v580 = vunpack.c.l.b16 %v290
      %v581 = vunpack.c.h.b16 %v290
      %v582 = vunpack.c.l.b16 %v291
      %v583 = vunpack.c.h.b16 %v291
      %v584 = vunpack.c.l.b16 %v292
      %v585 = vunpack.c.h.b16 %v292
      %v586 = vunpack.c.l.b16 %v293
      %v587 = vunpack.c.h.b16 %v293
      %v588 = vunpack.c.l.b16 %v294
      %v589 = vunpack.c.h.b16 %v294
      %v590 = vunpack.c.l.b16 %v295
      %v591 = vunpack.c.h.b16 %v295
      %v592 = vunpack.c.l.b16 %v296
      %v593 = vunpack.c.h.b16 %v296
      %v594 = vunpack.c.l.b16 %v297
      %v595 = vunpack.c.h.b16 %v297
      %v596 = vunpack.c.l.b16 %v298
      %v597 = vunpack.c.h.b16 %v298
      %v598 = vunpack.c.l.b16 %v299
      %v599 = vunpack.c.h.b16 %v299
      %v600 = vunpack.c.l.b16 %v300
      %v601 = vunpack.c.h.b16 %v300
      %v602 = vunpack.c.l.b16 %v301
      %v603 = vunpack.c.h.b16 %v301
      %v604 = vunpack.c.l.b16 %v302
      %v605 = vunpack.c.h.b16 %v302
      %v606 = vunpack.c.l.b16 %v303
      %v607 = vunpack.c.h.b16 %v303
      %v608 = vunpack.c.l.b16 %v304
      %v609 = vunpack.c.h.b16 %v304
      %v610 = vunpack.c.l.b16 %v305
      %v611 = vunpack.c.h.b16 %v305
      %v612 = vunpack.c.l.b16 %v306
      %v613 = vunpack.c.h.b16 %v306
      %v614 = vunpack.c.l.b16 %v307
      %v615 = vunpack.c.h.b16 %v307
      %v616 = vunpack.c.l.b16 %v308
      %v617 = vunpack.c.h.b16 %v308
      %v618 = vunpack.c.l.b16 %v309
      %v619 = vunpack.c.h.b16 %v309
      %v620 = vunpack.c.l.b16 %v310
      %v621 = vunpack.c.h.b16 %v310
      %v622 = vunpack.c.l.b16 %v311
      %v623 = vunpack.c.h.b16 %v311
      %v624 = vpack.c.b16 %v432, %v424
      %v625 = vpack.c.b16 %v433, %v425
      %v626 = vpack.c.b16 %v434, %v426
      %v627 = vpack.c.b16 %v435, %v427
      %v628 = vpack.c.b16 %v436, %v428
      %v629 = vpack.c.b16 %v437, %v429
      %v630 = vpack.c.b16 %v438, %v430
      %v631 = vpack.c.b16 %v439, %v431
      %v632 = vpack.c.b16 %v448, %v440
      %v633 = vpack.c.b16 %v449, %v441
      %v634 = vpack.c.b16 %v450, %v442
      %v635 = vpack.c.b16 %v451, %v443
      %v636 = vpack.c.b16 %v452, %v444
      %v637 = vpack.c.b16 %v453, %v445
      %v638 = vpack.c.b16 %v454, %v446
      %v639 = vpack.c.b16 %v455, %v447
      %v640 = vpack.c.b16 %v464, %v456
      %v641 = vpack.c.b16 %v465, %v457
      %v642 = vpack.c.b16 %v466, %v458
      %v643 = vpack.c.b16 %v467, %v459
      %v644 = vpack.c.b16 %v468, %v460
      %v645 = vpack.c.b16 %v469, %v461
      %v646 = vpack.c.b16 %v470, %v462
      %v647 = vpack.c.b16 %v471, %v463
      %v648 = vpack.c.b16 %v480, %v472
      %v649 = vpack.c.b16 %v481, %v473
      %v650 = vpack.c.b16 %v482, %v474
      %v651 = vpack.c.b16 %v483, %v475
      %v652 = vpack.c.b16 %v484, %v476
      %v653 = vpack.c.b16 %v485, %v477
      %v654 = vpack.c.b16 %v486, %v478
      %v655 = vpack.c.b16 %v487, %v479
      %v656 = vpack.c.b16 %v496, %v488
      %v657 = vpack.c.b16 %v497, %v489
      %v658 = vpack.c.b16 %v498, %v490
      %v659 = vpack.c.b16 %v499, %v491
      %v660 = vpack.c.b16 %v500, %v492
      %v661 = vpack.c.b16 %v501, %v493
      %v662 = vpack.c.b16 %v502, %v494
      %v663 = vpack.c.b16 %v503, %v495
      %v664 = vpack.c.b16 %v512, %v504
      %v665 = vpack.c.b16 %v513, %v505
      %v666 = vpack.c.b16 %v514, %v506
      %v667 = vpack.c.b16 %v515, %v507
      %v668 = vpack.c.b16 %v516, %v508
      %v669 = vpack.c.b16 %v517, %v509
      %v670 = vpack.c.b16 %v518, %v510
      %v671 = vpack.c.b16 %v519, %v511
      %v672 = vpack.c.b16 %v528, %v520
      %v673 = vpack.c.b16 %v529, %v521
      %v674 = vpack.c.b16 %v530, %v522
      %v675 = vpack.c.b16 %v531, %v523
      %v676 = vpack.c.b16 %v532, %v524
      %v677 = vpack.c.b16 %v533, %v525
      %v678 = vpack.c.b16 %v534, %v526
      %v679 = vpack.c.b16 %v535, %v527
      %v680 = vpack.c.b16 %v544, %v536
      %v681 = vpack.c.b16 %v545, %v537
      %v682 = vpack.c.b16 %v546, %v538
      %v683 = vpack.c.b16 %v547, %v539
      %v684 = vpack.c.b16 %v548, %v540
      %v685 = vpack.c.b16 %v549, %v541
      %v686 = vpack.c.b16 %v550, %v542
      %v687 = vpack.c.b16 %v551, %v543
      %v688 = vpack.c.b16 %v560, %v552
      %v689 = vpack.c.b16 %v561, %v553
      %v690 = vpack.c.b16 %v562, %v554
      %v691 = vpack.c.b16 %v563, %v555
      %v692 = vpack.c.b16 %v564, %v556
      %v693 = vpack.c.b16 %v565, %v557
      %v694 = vpack.c.b16 %v566, %v558
      %v695 = vpack.c.b16 %v567, %v559
      %v696 = vpack.c.b16 %v576, %v568
      %v697 = vpack.c.b16 %v577, %v569
      %v698 = vpack.c.b16 %v578, %v570
      %v699 = vpack.c.b16 %v579, %v571
      %v700 = vpack.c.b16 %v580, %v572
      %v701 = vpack.c.b16 %v581, %v573
      %v702 = vpack.c.b16 %v582, %v574
      %v703 = vpack.c.b16 %v583, %v575
      %v704 = vpack.c.b16 %v592, %v584
      %v705 = vpack.c.b16 %v593, %v585
      %v706 = vpack.c.b16 %v594, %v586
      %v707 = vpack.c.b16 %v595, %v587
      %v708 = vpack.c.b16 %v596, %v588
      %v709 = vpack.c.b16 %v597, %v589
      %v710 = vpack.c.b16 %v598, %v590
      %v711 = vpack.c.b16 %v599, %v591
      %v712 = vpack.c.b16 %v608, %v600
      %v713 = vpack.c.b16 %v609, %v601
      %v714 = vpack.c.b16 %v610, %v602
      %v715 = vpack.c.b16 %v611, %v603
      %v716 = vpack.c.b16 %v612, %v604
      %v717 = vpack.c.b16 %v613, %v605
      %v718 = vpack.c.b16 %v614, %v606
      %v719 = vpack.c.b16 %v615, %v607
      %v720 = vpack.c.b16 %v616, %v616
      %v721 = vpack.c.b16 %v617, %v617
      %v722 = vpack.c.b16 %v618, %v618
      %v723 = vpack.c.b16 %v619, %v619
      %v724 = vpack.c.b16 %v620, %v620
      %v725 = vpack.c.b16 %v621, %v621
      %v726 = vpack.c.b16 %v622, %v622
      %v727 = vpack.c.b16 %v623, %v623
      %vm824 = vcmask 588800
      %v826 = vsel %vm824, %v322, 0
      %vm828 = vcmask 1043456
      %v830 = vsel %vm828, %v720, 0
      %v833 = vsel %vm828, %v721, 0
      %v836 = vsel %vm828, %v722, 0
      %v839 = vsel %vm828, %v723, 0
      %v842 = vsel %vm828, %v724, 0
      %v845 = vsel %vm828, %v725, 0
      %v848 = vsel %vm828, %v726, 0
      %v851 = vsel %vm828, %v727, 0
      %853 = vmatprep.subr.bf16.mxu0 %v625
      %854 = vmatpush1.bf16.msra.mxu0 %v624
      %855 = vmatprep.subr.bf16.mxu0 %v633
      %856 = vmatpush1.bf16.msra.mxu0 %v632
      %857 = vmatprep.subr.bf16.mxu0 %v641
      %858 = vmatpush1.bf16.msra.mxu0 %v640
      %859 = vmatprep.subr.bf16.mxu0 %v649
      %860 = vmatpush1.bf16.msra.mxu0 %v648
      %861 = vmatprep.subr.bf16.mxu0 %v657
      %862 = vmatpush1.bf16.msra.mxu0 %v656
      %863 = vmatprep.subr.bf16.mxu0 %v665
      %864 = vmatpush1.bf16.msra.mxu0 %v664
      %865 = vmatprep.subr.bf16.mxu0 %v673
      %866 = vmatpush1.bf16.msra.mxu0 %v672
      %867 = vmatprep.subr.bf16.mxu0 %v681
      %868 = vmatpush1.bf16.msra.mxu0 %v680
      %869 = vmatprep.subr.bf16.mxu0 %v689
      %870 = vmatpush1.bf16.msra.mxu0 %v688
      %871 = vmatprep.subr.bf16.mxu0 %v697
      %872 = vmatpush1.bf16.msra.mxu0 %v696
      %873 = vmatprep.subr.bf16.mxu0 %v705
      %874 = vmatpush1.bf16.msra.mxu0 %v704
      %875 = vmatprep.subr.bf16.mxu0 %v713
      %876 = vmatpush1.bf16.msra.mxu0 %v712
      %877 = vmatprep.subr.bf16.mxu0 %v833
      %878 = vmatpush1.bf16.msra.mxu0 %v830
      %879 = vmatprep.subr.bf16.mxu0 0
      %880 = vmatpush1.bf16.msra.mxu0 0
      %881 = vmatprep.subr.bf16.mxu0 0
      %882 = vmatpush1.bf16.msra.mxu0 0
      %883 = vmatprep.subr.bf16.mxu0 0
      %884 = vmatpush1.bf16.msra.mxu0 0
      %885 = vmatprep.mubr.bf16.mxu0 %v826
      %886 = vmatmul.mubr.bf16.gmra.mrb[0].mxu0 %v321
      %v887 = vpop.f32.mrb[0].mxu0
      %v888 = vadd.f32 %v316, %v887
      %v889 = vpop.f32.mrb[0].mxu0
      %v890 = vadd.f32 %v316, %v889
      %v891 = vpop.f32.mrb[0].mxu0
      %v892 = vpop.f32.mrb[0].mxu0
      %893 = vdwg.mxu0
      %894 = vmatprep.subr.bf16.mxu0 %v627
      %895 = vmatpush1.bf16.msra.mxu0 %v626
      %896 = vmatprep.subr.bf16.mxu0 %v635
      %897 = vmatpush1.bf16.msra.mxu0 %v634
      %898 = vmatprep.subr.bf16.mxu0 %v643
      %899 = vmatpush1.bf16.msra.mxu0 %v642
      %900 = vmatprep.subr.bf16.mxu0 %v651
      %901 = vmatpush1.bf16.msra.mxu0 %v650
      %902 = vmatprep.subr.bf16.mxu0 %v659
      %903 = vmatpush1.bf16.msra.mxu0 %v658
      %904 = vmatprep.subr.bf16.mxu0 %v667
      %905 = vmatpush1.bf16.msra.mxu0 %v666
      %906 = vmatprep.subr.bf16.mxu0 %v675
      %907 = vmatpush1.bf16.msra.mxu0 %v674
      %908 = vmatprep.subr.bf16.mxu0 %v683
      %909 = vmatpush1.bf16.msra.mxu0 %v682
      %910 = vmatprep.subr.bf16.mxu0 %v691
      %911 = vmatpush1.bf16.msra.mxu0 %v690
      %912 = vmatprep.subr.bf16.mxu0 %v699
      %913 = vmatpush1.bf16.msra.mxu0 %v698
      %914 = vmatprep.subr.bf16.mxu0 %v707
      %915 = vmatpush1.bf16.msra.mxu0 %v706
      %916 = vmatprep.subr.bf16.mxu0 %v715
      %917 = vmatpush1.bf16.msra.mxu0 %v714
      %918 = vmatprep.subr.bf16.mxu0 %v839
      %919 = vmatpush1.bf16.msra.mxu0 %v836
      %920 = vmatprep.subr.bf16.mxu0 0
      %921 = vmatpush1.bf16.msra.mxu0 0
      %922 = vmatprep.subr.bf16.mxu0 0
      %923 = vmatpush1.bf16.msra.mxu0 0
      %924 = vmatprep.subr.bf16.mxu0 0
      %925 = vmatpush1.bf16.msra.mxu0 0
      %926 = vmatprep.mubr.bf16.mxu0 %v826
      %927 = vmatmul.mubr.bf16.gmra.mrb[0].mxu0 %v321
      %v928 = vpop.f32.mrb[0].mxu0
      %v929 = vadd.f32 %v316, %v928
      %v930 = vpop.f32.mrb[0].mxu0
      %v931 = vadd.f32 %v316, %v930
      %v932 = vpop.f32.mrb[0].mxu0
      %v933 = vpop.f32.mrb[0].mxu0
      %934 = vdwg.mxu0
      %935 = vmatprep.subr.bf16.mxu0 %v629
      %936 = vmatpush1.bf16.msra.mxu0 %v628
      %937 = vmatprep.subr.bf16.mxu0 %v637
      %938 = vmatpush1.bf16.msra.mxu0 %v636
      %939 = vmatprep.subr.bf16.mxu0 %v645
      %940 = vmatpush1.bf16.msra.mxu0 %v644
      %941 = vmatprep.subr.bf16.mxu0 %v653
      %942 = vmatpush1.bf16.msra.mxu0 %v652
      %943 = vmatprep.subr.bf16.mxu0 %v661
      %944 = vmatpush1.bf16.msra.mxu0 %v660
      %945 = vmatprep.subr.bf16.mxu0 %v669
      %946 = vmatpush1.bf16.msra.mxu0 %v668
      %947 = vmatprep.subr.bf16.mxu0 %v677
      %948 = vmatpush1.bf16.msra.mxu0 %v676
      %949 = vmatprep.subr.bf16.mxu0 %v685
      %950 = vmatpush1.bf16.msra.mxu0 %v684
      %951 = vmatprep.subr.bf16.mxu0 %v693
      %952 = vmatpush1.bf16.msra.mxu0 %v692
      %953 = vmatprep.subr.bf16.mxu0 %v701
      %954 = vmatpush1.bf16.msra.mxu0 %v700
      %955 = vmatprep.subr.bf16.mxu0 %v709
      %956 = vmatpush1.bf16.msra.mxu0 %v708
      %957 = vmatprep.subr.bf16.mxu0 %v717
      %958 = vmatpush1.bf16.msra.mxu0 %v716
      %959 = vmatprep.subr.bf16.mxu0 %v845
      %960 = vmatpush1.bf16.msra.mxu0 %v842
      %961 = vmatprep.subr.bf16.mxu0 0
      %962 = vmatpush1.bf16.msra.mxu0 0
      %963 = vmatprep.subr.bf16.mxu0 0
      %964 = vmatpush1.bf16.msra.mxu0 0
      %965 = vmatprep.subr.bf16.mxu0 0
      %966 = vmatpush1.bf16.msra.mxu0 0
      %967 = vmatprep.mubr.bf16.mxu0 %v826
      %968 = vmatmul.mubr.bf16.gmra.mrb[0].mxu0 %v321
      %v969 = vpop.f32.mrb[0].mxu0
      %v970 = vadd.f32 %v316, %v969
      %v971 = vpop.f32.mrb[0].mxu0
      %v972 = vadd.f32 %v316, %v971
      %v973 = vpop.f32.mrb[0].mxu0
      %v974 = vpop.f32.mrb[0].mxu0
      %975 = vdwg.mxu0
      %976 = vmatprep.subr.bf16.mxu0 %v631
      %977 = vmatpush1.bf16.msra.mxu0 %v630
      %978 = vmatprep.subr.bf16.mxu0 %v639
      %979 = vmatpush1.bf16.msra.mxu0 %v638
      %980 = vmatprep.subr.bf16.mxu0 %v647
      %981 = vmatpush1.bf16.msra.mxu0 %v646
      %982 = vmatprep.subr.bf16.mxu0 %v655
      %983 = vmatpush1.bf16.msra.mxu0 %v654
      %984 = vmatprep.subr.bf16.mxu0 %v663
      %985 = vmatpush1.bf16.msra.mxu0 %v662
      %986 = vmatprep.subr.bf16.mxu0 %v671
      %987 = vmatpush1.bf16.msra.mxu0 %v670
      %988 = vmatprep.subr.bf16.mxu0 %v679
      %989 = vmatpush1.bf16.msra.mxu0 %v678
      %990 = vmatprep.subr.bf16.mxu0 %v687
      %991 = vmatpush1.bf16.msra.mxu0 %v686
      %992 = vmatprep.subr.bf16.mxu0 %v695
      %993 = vmatpush1.bf16.msra.mxu0 %v694
      %994 = vmatprep.subr.bf16.mxu0 %v703
      %995 = vmatpush1.bf16.msra.mxu0 %v702
      %996 = vmatprep.subr.bf16.mxu0 %v711
      %997 = vmatpush1.bf16.msra.mxu0 %v710
      %998 = vmatprep.subr.bf16.mxu0 %v719
      %999 = vmatpush1.bf16.msra.mxu0 %v718
      %1000 = vmatprep.subr.bf16.mxu0 %v851
      %1001 = vmatpush1.bf16.msra.mxu0 %v848
      %1002 = vmatprep.subr.bf16.mxu0 0
      %1003 = vmatpush1.bf16.msra.mxu0 0
      %1004 = vmatprep.subr.bf16.mxu0 0
      %1005 = vmatpush1.bf16.msra.mxu0 0
      %1006 = vmatprep.subr.bf16.mxu0 0
      %1007 = vmatpush1.bf16.msra.mxu0 0
      %1008 = vmatprep.mubr.bf16.mxu0 %v826
      %1009 = vmatmul.mubr.bf16.gmra.mrb[0].mxu0 %v321
      %v1010 = vpop.f32.mrb[0].mxu0
      %v1011 = vadd.f32 %v316, %v1010
      %v1012 = vpop.f32.mrb[0].mxu0
      %v1013 = vadd.f32 %v316, %v1012
      %v1014 = vpop.f32.mrb[0].mxu0
      %v1015 = vpop.f32.mrb[0].mxu0
      %1016 = vdwg.mxu0
      %1017 = vst [vmem:[%s208] sm:$0xff] %v888
      %1018 = vst [vmem:[%s208 + $0x8] sm:$0xff] %v890
      %1019 = vst [vmem:[%s208 + $0x10] sm:$0xff] %v929
      %1020 = vst [vmem:[%s208 + $0x18] sm:$0xff] %v931
      %1021 = vst [vmem:[%s208 + $0x20] sm:$0xff] %v970
      %1022 = vst [vmem:[%s208 + $0x28] sm:$0xff] %v972
      %1023 = vst [vmem:[%s208 + $0x30] sm:$0xff] %v1011
      %1024 = vst [vmem:[%s208 + $0x38] sm:$0xff] %v1013
      %s1025 = smul.u32 8, %s19
      %p1026 = scmp.lt.s32.totalorder %s18, 1
      %s1027 = scalar_select %p1026, %s18, 1
      %p1028 = scmp.lt.s32.totalorder %s1025, 7
      %s1029 = scalar_select %p1028, %s1025, 7
      %s1030 = smul.addr %s1027, 8
      %s1031 = sadd.s32 %s1029, %s1030
      %s1032 = smul.addr %s1031, 8
      %s1033 = scalar_lea.vmem %s3, %s1032
      // Predicated region
      $region33: #{_lambda_.26} parent=31 // pred_check
        %p1034 = pneg %p116
      $region34: #{_lambda_.26} parent=31 // pred_check_branch
        %1036 = sbr.rel (%p1034) target = $region36
      $region35: #{_lambda_.26} parent=31 // pred_region
        %s1037 = smul.u32 8, %s19
      $region36: #{_lambda_.26} parent=31 // pred_fallthru
        _
    $region32: #{_lambda_.26} parent=5 // pred_fallthru
      _
    %p1038 = scmp.le.s32.totalorder 2, %s9
    // Predicated region
    $region37: #{_lambda_.26} parent=5 // pred_check
      %p1039 = pneg %p1038
    $region38: #{_lambda_.26} parent=5 // pred_check_branch
      %1041 = sbr.rel (%p1039) target = $region40
    $region39: #{_lambda_.26} parent=5 // pred_region
      %s1042 = ssub.s32 %s9, 2
      // Predicated region
      $region41: #{_lambda_.26} parent=39 // pred_check
        %p1043 = pneg %p122
      $region42: #{_lambda_.26} parent=39 // pred_check_branch
        %1045 = sbr.rel (%p1043) target = $region44
      $region43: #{_lambda_.26} parent=39 // pred_region
        %s1046 = smul.u32 8, %s21
        %p1047 = scmp.lt.s32.totalorder %s20, 1
        %s1048 = scalar_select %p1047, %s20, 1
        %p1049 = scmp.lt.s32.totalorder %s1046, 7
        %s1050 = scalar_select %p1049, %s1046, 7
        %s1051 = smul.addr %s1048, 8
        %s1052 = sadd.s32 %s1050, %s1051
        %s1053 = smul.addr %s1052, 8
        %s1054 = scalar_lea.vmem %s3, %s1053
      $region44: #{_lambda_.26} parent=39 // pred_fallthru
        _
    $region40: #{_lambda_.26} parent=5 // pred_fallthru
      _
  $region6: #{_lambda_.26} parent=0 // loop_footer
    %s13 = sadd.s32 1, %s9
  $region7: #{_lambda_.26} parent=0 // loop_footer_branch
    %8 = sbr.rel target = $region3
  $region8: #{_lambda_.26} parent=0 // loop_exit
    _

// kernel: _lambda_.27
$region0: #{_lambda_.27}
  #allocation0 [shape = 'u32[]', space=smem, size = 0x4, offset = 0x4, fixed_abs, tag = 'smem constant byte address 0x4 - core index']
  #allocation1 [shape = 'u32[144,128]{1,0:T(1,128)}', space=vmem, size = 0x12000, scoped, tag = 'internal scratch']
  %s0 = inlined_call_operand.vmem [shape: bf16[2,200,256], index: 0, kind: input, shape index: {}]
  %s1 = inlined_call_operand.vmem [shape: bf16[16,200], index: 1, kind: input, shape index: {}]
  %s2 = inlined_call_operand.vmem [shape: f32[16,1], index: 2, kind: input, shape index: {}]
  %s3 = inlined_call_operand.vmem [shape: f32[2,16,256], index: 3, kind: output, shape index: {}]
  %s4 = sld [smem:[#allocation0]]
  $region45: #{_lambda_.27} parent=0
    _
  %s6 = ssub.s32 1, %s4
  %s7 = scalar_select 0, %s6, %s4
  loop: start=0, step=1, limit=4
  $region2: #{_lambda_.27} parent=0 // loop_pre_header
    _
  $region3: #{_lambda_.27} parent=0 // loop_header
    %s9 = sphi 0, %s13
    %p10 = scmp.ge.s32.totalorder %s9, 4
    %s16 = sphi 0, %s28
    %s17 = sphi 0, %s24
    %s18 = sphi 0, %s16
    %s19 = sphi 0, %s17
    %s20 = sphi 0, %s18
    %s21 = sphi 0, %s19
    %s33 = sphi 0, %s35
    %s36 = sphi 0, %s33
    %s37 = sphi 0, %s36
    %s53 = sphi 0, %s37
    %s57 = sphi 0, %s57
    %s59 = sphi 0, %s57
    %s60 = sphi 0, %s59
    %s74 = sphi 0, %s60
    %s78 = sphi 0, %s78
    %s80 = sphi 0, %s78
    %s81 = sphi 0, %s80
    %s95 = sphi 0, %s81
    %s103 = sphi 0, %s105
    %s106 = sphi 0, %s103
    %s107 = sphi 0, %s106
    %s123 = sphi 0, %s107
  $region4: #{_lambda_.27} parent=0 // loop_header_branch
    %12 = sbr.rel (%p10) target = $region8
  $region5: #{_lambda_.27} parent=0 // loop_body
    %s14 = ssub.s32 %s9, 1
    %s15 = ssub.s32 %s9, 2
    %s22 = sadd.s32 1, %s17
    %p23 = scmp.ge.s32.totalorder %s22, 1
    %s24 = scalar_select %p23, 0, %s22
    %s25 = sadd.s32 1, %s16
    %s26 = scalar_select %p23, %s25, %s16
    %p27 = scmp.ge.s32.totalorder %s26, 2
    %s28 = scalar_select %p27, 0, %s26
    %s29 = ssub.s32 %s16, %s28
    %s30 = ssub.s32 %s17, %s24
    %s31 = sor.u32 %s29, %s30
    %p32 = scmp.eq.s32.totalorder %s31, 0
    %s34 = sadd.s32 %s33, 1
    %s35 = scalar_select %p32, %s33, %s34
    %p38 = pneg %p32
    %p39 = scmp.eq.s32.totalorder %s9, 1
    %p40 = por %p38, %p39
    %p41 = scmp.ne.s32.totalorder %s33, %s36
    %p42 = scmp.eq.s32.totalorder %s9, 0
    %p43 = por %p41, %p42
    %p44 = scmp.ne.s32.totalorder %s33, %s36
    %p45 = scmp.eq.s32.totalorder %s14, 1
    %p46 = por %p44, %p45
    %p47 = scmp.ne.s32.totalorder %s36, %s37
    %p48 = scmp.eq.s32.totalorder %s14, 0
    %p49 = por %p47, %p48
    %p50 = scmp.ne.s32.totalorder %s36, %s37
    %p51 = scmp.eq.s32.totalorder %s15, 1
    %p52 = por %p50, %p51
    %p54 = scmp.ne.s32.totalorder %s37, %s53
    %p55 = scmp.eq.s32.totalorder %s15, 0
    %p56 = por %p54, %p55
    %s58 = sadd.s32 %s57, 1
    %p61 = scmp.eq.s32.totalorder %s9, 1
    %p62 = scmp.ne.s32.totalorder %s57, %s59
    %p63 = scmp.eq.s32.totalorder %s9, 0
    %p64 = por %p62, %p63
    %p65 = scmp.ne.s32.totalorder %s57, %s59
    %p66 = scmp.eq.s32.totalorder %s14, 1
    %p67 = por %p65, %p66
    %p68 = scmp.ne.s32.totalorder %s59, %s60
    %p69 = scmp.eq.s32.totalorder %s14, 0
    %p70 = por %p68, %p69
    %p71 = scmp.ne.s32.totalorder %s59, %s60
    %p72 = scmp.eq.s32.totalorder %s15, 1
    %p73 = por %p71, %p72
    %p75 = scmp.ne.s32.totalorder %s60, %s74
    %p76 = scmp.eq.s32.totalorder %s15, 0
    %p77 = por %p75, %p76
    %s79 = sadd.s32 %s78, 1
    %p82 = scmp.eq.s32.totalorder %s9, 1
    %p83 = scmp.ne.s32.totalorder %s78, %s80
    %p84 = scmp.eq.s32.totalorder %s9, 0
    %p85 = por %p83, %p84
    %p86 = scmp.ne.s32.totalorder %s78, %s80
    %p87 = scmp.eq.s32.totalorder %s14, 1
    %p88 = por %p86, %p87
    %p89 = scmp.ne.s32.totalorder %s80, %s81
    %p90 = scmp.eq.s32.totalorder %s14, 0
    %p91 = por %p89, %p90
    %p92 = scmp.ne.s32.totalorder %s80, %s81
    %p93 = scmp.eq.s32.totalorder %s15, 1
    %p94 = por %p92, %p93
    %p96 = scmp.ne.s32.totalorder %s81, %s95
    %p97 = scmp.eq.s32.totalorder %s15, 0
    %p98 = por %p96, %p97
    %s99 = ssub.s32 %s16, %s28
    %s100 = ssub.s32 %s17, %s24
    %s101 = sor.u32 %s99, %s100
    %p102 = scmp.eq.s32.totalorder %s101, 0
    %s104 = sadd.s32 %s103, 1
    %s105 = scalar_select %p102, %s103, %s104
    %p108 = pneg %p102
    %p109 = scmp.eq.s32.totalorder %s9, 1
    %p110 = por %p108, %p109
    %p111 = scmp.ne.s32.totalorder %s103, %s106
    %p112 = scmp.eq.s32.totalorder %s9, 0
    %p113 = por %p111, %p112
    %p114 = scmp.ne.s32.totalorder %s103, %s106
    %p115 = scmp.eq.s32.totalorder %s14, 1
    %p116 = por %p114, %p115
    %p117 = scmp.ne.s32.totalorder %s106, %s107
    %p118 = scmp.eq.s32.totalorder %s14, 0
    %p119 = por %p117, %p118
    %p120 = scmp.ne.s32.totalorder %s106, %s107
    %p121 = scmp.eq.s32.totalorder %s15, 1
    %p122 = por %p120, %p121
    %p124 = scmp.ne.s32.totalorder %s107, %s123
    %p125 = scmp.eq.s32.totalorder %s15, 0
    %p126 = por %p124, %p125
    %p127 = scmp.le.s32.totalorder 1, %s9
    %p128 = scmp.lt.s32.totalorder %s9, 3
    %p129 = pnand %p127, %p128
    %p130 = pneg %p129
    // Predicated region
    $region9: #{_lambda_.27} parent=5 // pred_check
      _
    $region10: #{_lambda_.27} parent=5 // pred_check_branch
      %132 = sbr.rel (%p129) target = $region12
    $region11: #{_lambda_.27} parent=5 // pred_region
      %s133 = ssub.s32 %s9, 1
      // Predicated region
      $region13: #{_lambda_.27} parent=11 // pred_check
        %p134 = pneg %p70
      $region14: #{_lambda_.27} parent=11 // pred_check_branch
        %136 = sbr.rel (%p134) target = $region16
      $region15: #{_lambda_.27} parent=11 // pred_region
        _
      $region16: #{_lambda_.27} parent=11 // pred_fallthru
        _
      // Predicated region
      $region17: #{_lambda_.27} parent=11 // pred_check
        %p137 = pneg %p91
      $region18: #{_lambda_.27} parent=11 // pred_check_branch
        %139 = sbr.rel (%p137) target = $region20
      $region19: #{_lambda_.27} parent=11 // pred_region
        _
      $region20: #{_lambda_.27} parent=11 // pred_fallthru
        _
    $region12: #{_lambda_.27} parent=5 // pred_fallthru
      _
    %p140 = scmp.lt.s32.totalorder %s9, 2
    // Predicated region
    $region21: #{_lambda_.27} parent=5 // pred_check
      %p141 = pneg %p140
    $region22: #{_lambda_.27} parent=5 // pred_check_branch
      %143 = sbr.rel (%p141) target = $region24
    $region23: #{_lambda_.27} parent=5 // pred_region
      // Predicated region
      $region25: #{_lambda_.27} parent=23 // pred_check
        %p144 = pneg %p43
      $region26: #{_lambda_.27} parent=23 // pred_check_branch
        %146 = sbr.rel (%p144) target = $region28
      $region27: #{_lambda_.27} parent=23 // pred_region
        %s147 = smul.u32 2, %s17
        %p148 = scmp.lt.s32.totalorder %s16, 1
        %s149 = scalar_select %p148, %s16, 1
        %p150 = scmp.lt.s32.totalorder %s147, 1
        %s151 = scalar_select %p150, %s147, 1
        %s152 = smul.addr %s149, 50
        %s153 = sadd.s32 %s151, %s152
        %s154 = smul.addr %s153, 4
        %s155 = scalar_lea.vmem %s0, %s154
        %s156 = smul.u32 2, %s17
      $region28: #{_lambda_.27} parent=23 // pred_fallthru
        _
    $region24: #{_lambda_.27} parent=5 // pred_fallthru
      _
    %p157 = scmp.le.s32.totalorder 1, %s9
    %p158 = scmp.lt.s32.totalorder %s9, 3
    %p159 = pnand %p157, %p158
    %p160 = pneg %p159
    // Predicated region
    $region29: #{_lambda_.27} parent=5 // pred_check
      _
    $region30: #{_lambda_.27} parent=5 // pred_check_branch
      %162 = sbr.rel (%p159) target = $region32
    $region31: #{_lambda_.27} parent=5 // pred_region
      %s163 = ssub.s32 %s9, 1
      %s164 = smul.u32 2, %s19
      %p165 = scmp.lt.s32.totalorder %s18, 1
      %s166 = scalar_select %p165, %s18, 1
      %p167 = scmp.lt.s32.totalorder %s164, 1
      %s168 = scalar_select %p167, %s164, 1
      %s169 = smul.addr %s166, 50
      %s170 = sadd.s32 %s168, %s169
      %s171 = smul.addr %s170, 4
      %s172 = scalar_lea.vmem %s0, %s171
      %p173 = pneg %p49
      %p174 = pneg %p46
      %p175 = pneg %p70
      %p176 = pneg %p67
      %p177 = pneg %p91
      %p178 = pneg %p88
      %p179 = pneg %p119
      %p180 = pneg %p116
      %s181 = smul.u32 2, %s19
      %p182 = scmp.lt.s32.totalorder %s18, 1
      %s183 = scalar_select %p182, %s18, 1
      %p184 = scmp.lt.s32.totalorder %s181, 1
      %s185 = scalar_select %p184, %s181, 1
      %s186 = smul.addr %s183, 4
      %s187 = sadd.s32 %s185, %s186
      %s188 = smul.addr %s187, 8
      %s189 = scalar_lea.vmem %s3, %s188
      %s190 = smul.u32 2, %s19
      %p191 = scmp.lt.s32.totalorder %s18, 1
      %s192 = scalar_select %p191, %s18, 1
      %p193 = scmp.lt.s32.totalorder %s190, 1
      %s194 = scalar_select %p193, %s190, 1
      %s195 = smul.addr %s192, 50
      %s196 = sadd.s32 %s194, %s195
      %s197 = smul.addr %s196, 4
      %s198 = scalar_lea.vmem %s0, %s197
      %s199 = smul.u32 2, %s19
      %s200 = smul.u32 2, %s19
      %p201 = scmp.lt.s32.totalorder %s18, 1
      %s202 = scalar_select %p201, %s18, 1
      %p203 = scmp.lt.s32.totalorder %s200, 1
      %s204 = scalar_select %p203, %s200, 1
      %s205 = smul.addr %s202, 4
      %s206 = sadd.s32 %s204, %s205
      %s207 = smul.addr %s206, 8
      %s208 = scalar_lea.vmem %s3, %s207
      %s209 = smul.u32 2, %s19
      %v211 = vld [vmem:[%s1] sm:$0xff]
      %v212 = vld [vmem:[%s1 + $0x8] sm:$0xff]
      %v213 = vld [vmem:[%s198] sm:$0xff]
      %v214 = vld [vmem:[%s198 + $0x8] sm:$0xff]
      %v215 = vld [vmem:[%s198 + $0x10] sm:$0xff]
      %v216 = vld [vmem:[%s198 + $0x18] sm:$0xff]
      %v217 = vld [vmem:[%s198 + $0x20] sm:$0xff]
      %v218 = vld [vmem:[%s198 + $0x28] sm:$0xff]
      %v219 = vld [vmem:[%s198 + $0x30] sm:$0xff]
      %v220 = vld [vmem:[%s198 + $0x38] sm:$0xff]
      %v221 = vld [vmem:[%s198 + $0x40] sm:$0xff]
      %v222 = vld [vmem:[%s198 + $0x48] sm:$0xff]
      %v223 = vld [vmem:[%s198 + $0x50] sm:$0xff]
      %v224 = vld [vmem:[%s198 + $0x58] sm:$0xff]
      %v225 = vld [vmem:[%s198 + $0x60] sm:$0xff]
      %v226 = vld [vmem:[%s198 + $0x68] sm:$0xff]
      %v227 = vld [vmem:[%s198 + $0x70] sm:$0xff]
      %v228 = vld [vmem:[%s198 + $0x78] sm:$0xff]
      %v229 = vld [vmem:[%s198 + $0x80] sm:$0xff]
      %v230 = vld [vmem:[%s198 + $0x88] sm:$0xff]
      %v231 = vld [vmem:[%s198 + $0x90] sm:$0xff]
      %v232 = vld [vmem:[%s198 + $0x98] sm:$0xff]
      %v233 = vld [vmem:[%s198 + $0xa0] sm:$0xff]
      %v234 = vld [vmem:[%s198 + $0xa8] sm:$0xff]
      %v235 = vld [vmem:[%s198 + $0xb0] sm:$0xff]
      %v236 = vld [vmem:[%s198 + $0xb8] sm:$0xff]
      %v237 = vld [vmem:[%s198 + $0xc0] sm:$0xff]
      %v238 = vld [vmem:[%s2] sm:$0xff]
      %v239 = vld [vmem:[%s2 + $0x8] sm:$0xff]
      %241 = vset.pattern.permute.xlu0 0
      %242 = vperm.xlu0 %241, %v238
      %v243 = vpop.permute.xlu0 %242
      %246 = vset.pattern.permute.xlu0 0
      %247 = vperm.xlu0 %246, %v239
      %v248 = vpop.permute.xlu0 %247
      %v252 = vunpack.c.l.b16 %v211
      %v253 = vunpack.c.h.b16 %v211
      %v254 = vunpack.c.l.b16 %v212
      %v255 = vunpack.c.h.b16 %v212
      %v256 = vpack.c.b16 %v254, %v252
      %v257 = vpack.c.b16 %v255, %v253
      %v284 = vunpack.c.l.b16 %v213
      %v285 = vunpack.c.h.b16 %v213
      %v286 = vunpack.c.l.b16 %v214
      %v287 = vunpack.c.h.b16 %v214
      %v288 = vunpack.c.l.b16 %v215
      %v289 = vunpack.c.h.b16 %v215
      %v290 = vunpack.c.l.b16 %v216
      %v291 = vunpack.c.h.b16 %v216
      %v292 = vunpack.c.l.b16 %v217
      %v293 = vunpack.c.h.b16 %v217
      %v294 = vunpack.c.l.b16 %v218
      %v295 = vunpack.c.h.b16 %v218
      %v296 = vunpack.c.l.b16 %v219
      %v297 = vunpack.c.h.b16 %v219
      %v298 = vunpack.c.l.b16 %v220
      %v299 = vunpack.c.h.b16 %v220
      %v300 = vunpack.c.l.b16 %v221
      %v301 = vunpack.c.h.b16 %v221
      %v302 = vunpack.c.l.b16 %v222
      %v303 = vunpack.c.h.b16 %v222
      %v304 = vunpack.c.l.b16 %v223
      %v305 = vunpack.c.h.b16 %v223
      %v306 = vunpack.c.l.b16 %v224
      %v307 = vunpack.c.h.b16 %v224
      %v308 = vunpack.c.l.b16 %v225
      %v309 = vunpack.c.h.b16 %v225
      %v310 = vunpack.c.l.b16 %v226
      %v311 = vunpack.c.h.b16 %v226
      %v312 = vunpack.c.l.b16 %v227
      %v313 = vunpack.c.h.b16 %v227
      %v314 = vunpack.c.l.b16 %v228
      %v315 = vunpack.c.h.b16 %v228
      %v316 = vunpack.c.l.b16 %v229
      %v317 = vunpack.c.h.b16 %v229
      %v318 = vunpack.c.l.b16 %v230
      %v319 = vunpack.c.h.b16 %v230
      %v320 = vunpack.c.l.b16 %v231
      %v321 = vunpack.c.h.b16 %v231
      %v322 = vunpack.c.l.b16 %v232
      %v323 = vunpack.c.h.b16 %v232
      %v324 = vunpack.c.l.b16 %v233
      %v325 = vunpack.c.h.b16 %v233
      %v326 = vunpack.c.l.b16 %v234
      %v327 = vunpack.c.h.b16 %v234
      %v328 = vunpack.c.l.b16 %v235
      %v329 = vunpack.c.h.b16 %v235
      %v330 = vunpack.c.l.b16 %v236
      %v331 = vunpack.c.h.b16 %v236
      %v332 = vunpack.c.l.b16 %v237
      %v333 = vunpack.c.h.b16 %v237
      %v334 = vpack.c.b16 %v286, %v284
      %v335 = vpack.c.b16 %v287, %v285
      %v336 = vpack.c.b16 %v290, %v288
      %v337 = vpack.c.b16 %v291, %v289
      %v338 = vpack.c.b16 %v294, %v292
      %v339 = vpack.c.b16 %v295, %v293
      %v340 = vpack.c.b16 %v298, %v296
      %v341 = vpack.c.b16 %v299, %v297
      %v342 = vpack.c.b16 %v302, %v300
      %v343 = vpack.c.b16 %v303, %v301
      %v344 = vpack.c.b16 %v306, %v304
      %v345 = vpack.c.b16 %v307, %v305
      %v346 = vpack.c.b16 %v310, %v308
      %v347 = vpack.c.b16 %v311, %v309
      %v348 = vpack.c.b16 %v314, %v312
      %v349 = vpack.c.b16 %v315, %v313
      %v350 = vpack.c.b16 %v318, %v316
      %v351 = vpack.c.b16 %v319, %v317
      %v352 = vpack.c.b16 %v322, %v320
      %v353 = vpack.c.b16 %v323, %v321
      %v354 = vpack.c.b16 %v326, %v324
      %v355 = vpack.c.b16 %v327, %v325
      %v356 = vpack.c.b16 %v330, %v328
      %v357 = vpack.c.b16 %v331, %v329
      %v358 = vpack.c.b16 %v332, %v332
      %v359 = vpack.c.b16 %v333, %v333
      %vm384 = vcmask 588800
      %v386 = vsel %vm384, %v257, 0
      %vm388 = vcmask 1043456
      %v390 = vsel %vm388, %v358, 0
      %v393 = vsel %vm388, %v359, 0
      %395 = vmatprep.subr.bf16.mxu0 %v335
      %396 = vmatpush1.bf16.msra.mxu0 %v334
      %397 = vmatprep.subr.bf16.mxu0 %v337
      %398 = vmatpush1.bf16.msra.mxu0 %v336
      %399 = vmatprep.subr.bf16.mxu0 %v339
      %400 = vmatpush1.bf16.msra.mxu0 %v338
      %401 = vmatprep.subr.bf16.mxu0 %v341
      %402 = vmatpush1.bf16.msra.mxu0 %v340
      %403 = vmatprep.subr.bf16.mxu0 %v343
      %404 = vmatpush1.bf16.msra.mxu0 %v342
      %405 = vmatprep.subr.bf16.mxu0 %v345
      %406 = vmatpush1.bf16.msra.mxu0 %v344
      %407 = vmatprep.subr.bf16.mxu0 %v347
      %408 = vmatpush1.bf16.msra.mxu0 %v346
      %409 = vmatprep.subr.bf16.mxu0 %v349
      %410 = vmatpush1.bf16.msra.mxu0 %v348
      %411 = vmatprep.subr.bf16.mxu0 %v351
      %412 = vmatpush1.bf16.msra.mxu0 %v350
      %413 = vmatprep.subr.bf16.mxu0 %v353
      %414 = vmatpush1.bf16.msra.mxu0 %v352
      %415 = vmatprep.subr.bf16.mxu0 %v355
      %416 = vmatpush1.bf16.msra.mxu0 %v354
      %417 = vmatprep.subr.bf16.mxu0 %v357
      %418 = vmatpush1.bf16.msra.mxu0 %v356
      %419 = vmatprep.subr.bf16.mxu0 %v393
      %420 = vmatpush1.bf16.msra.mxu0 %v390
      %421 = vmatprep.subr.bf16.mxu0 0
      %422 = vmatpush1.bf16.msra.mxu0 0
      %423 = vmatprep.subr.bf16.mxu0 0
      %424 = vmatpush1.bf16.msra.mxu0 0
      %425 = vmatprep.subr.bf16.mxu0 0
      %426 = vmatpush1.bf16.msra.mxu0 0
      %427 = vmatprep.mubr.bf16.mxu0 %v386
      %428 = vmatmul.mubr.bf16.gmra.mrb[0].mxu0 %v256
      %v429 = vpop.f32.mrb[0].mxu0
      %v430 = vadd.f32 %v243, %v429
      %v431 = vpop.f32.mrb[0].mxu0
      %v432 = vadd.f32 %v243, %v431
      %v433 = vpop.f32.mrb[0].mxu0
      %v434 = vadd.f32 %v248, %v433
      %v435 = vpop.f32.mrb[0].mxu0
      %v436 = vadd.f32 %v248, %v435
      %437 = vdwg.mxu0
      %438 = vst [vmem:[%s208] sm:$0xff] %v430
      %439 = vst [vmem:[%s208 + $0x8] sm:$0xff] %v432
      %440 = vst [vmem:[%s208 + $0x10] sm:$0xff] %v434
      %441 = vst [vmem:[%s208 + $0x18] sm:$0xff] %v436
      %s442 = smul.u32 2, %s19
      %p443 = scmp.lt.s32.totalorder %s18, 1
      %s444 = scalar_select %p443, %s18, 1
      %p445 = scmp.lt.s32.totalorder %s442, 1
      %s446 = scalar_select %p445, %s442, 1
      %s447 = smul.addr %s444, 4
      %s448 = sadd.s32 %s446, %s447
      %s449 = smul.addr %s448, 8
      %s450 = scalar_lea.vmem %s3, %s449
      // Predicated region
      $region33: #{_lambda_.27} parent=31 // pred_check
        %p451 = pneg %p116
      $region34: #{_lambda_.27} parent=31 // pred_check_branch
        %453 = sbr.rel (%p451) target = $region36
      $region35: #{_lambda_.27} parent=31 // pred_region
        %s454 = smul.u32 2, %s19
      $region36: #{_lambda_.27} parent=31 // pred_fallthru
        _
    $region32: #{_lambda_.27} parent=5 // pred_fallthru
      _
    %p455 = scmp.le.s32.totalorder 2, %s9
    // Predicated region
    $region37: #{_lambda_.27} parent=5 // pred_check
      %p456 = pneg %p455
    $region38: #{_lambda_.27} parent=5 // pred_check_branch
      %458 = sbr.rel (%p456) target = $region40
    $region39: #{_lambda_.27} parent=5 // pred_region
      %s459 = ssub.s32 %s9, 2
      // Predicated region
      $region41: #{_lambda_.27} parent=39 // pred_check
        %p460 = pneg %p122
      $region42: #{_lambda_.27} parent=39 // pred_check_branch
        %462 = sbr.rel (%p460) target = $region44
      $region43: #{_lambda_.27} parent=39 // pred_region
        %s463 = smul.u32 2, %s21
        %p464 = scmp.lt.s32.totalorder %s20, 1
        %s465 = scalar_select %p464, %s20, 1
        %p466 = scmp.lt.s32.totalorder %s463, 1
        %s467 = scalar_select %p466, %s463, 1
        %s468 = smul.addr %s465, 4
        %s469 = sadd.s32 %s467, %s468
        %s470 = smul.addr %s469, 8
        %s471 = scalar_lea.vmem %s3, %s470
      $region44: #{_lambda_.27} parent=39 // pred_fallthru
        _
    $region40: #{_lambda_.27} parent=5 // pred_fallthru
      _
  $region6: #{_lambda_.27} parent=0 // loop_footer
    %s13 = sadd.s32 1, %s9
  $region7: #{_lambda_.27} parent=0 // loop_footer_branch
    %8 = sbr.rel target = $region3
  $region8: #{_lambda_.27} parent=0 // loop_exit
    _

// kernel: _lambda_.28
$region0: #{_lambda_.28}
  #allocation0 [shape = 'u32[]', space=smem, size = 0x4, offset = 0x4, fixed_abs, tag = 'smem constant byte address 0x4 - core index']
  #allocation1 [shape = 'u32[144,128]{1,0:T(1,128)}', space=vmem, size = 0x12000, scoped, tag = 'internal scratch']
  %s0 = inlined_call_operand.vmem [shape: bf16[2,144,256], index: 0, kind: input, shape index: {}]
  %s1 = inlined_call_operand.vmem [shape: bf16[16,144], index: 1, kind: input, shape index: {}]
  %s2 = inlined_call_operand.vmem [shape: f32[16,1], index: 2, kind: input, shape index: {}]
  %s3 = inlined_call_operand.vmem [shape: f32[2,16,256], index: 3, kind: output, shape index: {}]
  %s4 = sld [smem:[#allocation0]]
  $region45: #{_lambda_.28} parent=0
    _
  %s6 = ssub.s32 1, %s4
  %s7 = scalar_select 0, %s6, %s4
  loop: start=0, step=1, limit=4
  $region2: #{_lambda_.28} parent=0 // loop_pre_header
    _
  $region3: #{_lambda_.28} parent=0 // loop_header
    %s9 = sphi 0, %s13
    %p10 = scmp.ge.s32.totalorder %s9, 4
    %s16 = sphi 0, %s28
    %s17 = sphi 0, %s24
    %s18 = sphi 0, %s16
    %s19 = sphi 0, %s17
    %s20 = sphi 0, %s18
    %s21 = sphi 0, %s19
    %s33 = sphi 0, %s35
    %s36 = sphi 0, %s33
    %s37 = sphi 0, %s36
    %s53 = sphi 0, %s37
    %s57 = sphi 0, %s57
    %s59 = sphi 0, %s57
    %s60 = sphi 0, %s59
    %s74 = sphi 0, %s60
    %s78 = sphi 0, %s78
    %s80 = sphi 0, %s78
    %s81 = sphi 0, %s80
    %s95 = sphi 0, %s81
    %s103 = sphi 0, %s105
    %s106 = sphi 0, %s103
    %s107 = sphi 0, %s106
    %s123 = sphi 0, %s107
  $region4: #{_lambda_.28} parent=0 // loop_header_branch
    %12 = sbr.rel (%p10) target = $region8
  $region5: #{_lambda_.28} parent=0 // loop_body
    %s14 = ssub.s32 %s9, 1
    %s15 = ssub.s32 %s9, 2
    %s22 = sadd.s32 1, %s17
    %p23 = scmp.ge.s32.totalorder %s22, 1
    %s24 = scalar_select %p23, 0, %s22
    %s25 = sadd.s32 1, %s16
    %s26 = scalar_select %p23, %s25, %s16
    %p27 = scmp.ge.s32.totalorder %s26, 2
    %s28 = scalar_select %p27, 0, %s26
    %s29 = ssub.s32 %s16, %s28
    %s30 = ssub.s32 %s17, %s24
    %s31 = sor.u32 %s29, %s30
    %p32 = scmp.eq.s32.totalorder %s31, 0
    %s34 = sadd.s32 %s33, 1
    %s35 = scalar_select %p32, %s33, %s34
    %p38 = pneg %p32
    %p39 = scmp.eq.s32.totalorder %s9, 1
    %p40 = por %p38, %p39
    %p41 = scmp.ne.s32.totalorder %s33, %s36
    %p42 = scmp.eq.s32.totalorder %s9, 0
    %p43 = por %p41, %p42
    %p44 = scmp.ne.s32.totalorder %s33, %s36
    %p45 = scmp.eq.s32.totalorder %s14, 1
    %p46 = por %p44, %p45
    %p47 = scmp.ne.s32.totalorder %s36, %s37
    %p48 = scmp.eq.s32.totalorder %s14, 0
    %p49 = por %p47, %p48
    %p50 = scmp.ne.s32.totalorder %s36, %s37
    %p51 = scmp.eq.s32.totalorder %s15, 1
    %p52 = por %p50, %p51
    %p54 = scmp.ne.s32.totalorder %s37, %s53
    %p55 = scmp.eq.s32.totalorder %s15, 0
    %p56 = por %p54, %p55
    %s58 = sadd.s32 %s57, 1
    %p61 = scmp.eq.s32.totalorder %s9, 1
    %p62 = scmp.ne.s32.totalorder %s57, %s59
    %p63 = scmp.eq.s32.totalorder %s9, 0
    %p64 = por %p62, %p63
    %p65 = scmp.ne.s32.totalorder %s57, %s59
    %p66 = scmp.eq.s32.totalorder %s14, 1
    %p67 = por %p65, %p66
    %p68 = scmp.ne.s32.totalorder %s59, %s60
    %p69 = scmp.eq.s32.totalorder %s14, 0
    %p70 = por %p68, %p69
    %p71 = scmp.ne.s32.totalorder %s59, %s60
    %p72 = scmp.eq.s32.totalorder %s15, 1
    %p73 = por %p71, %p72
    %p75 = scmp.ne.s32.totalorder %s60, %s74
    %p76 = scmp.eq.s32.totalorder %s15, 0
    %p77 = por %p75, %p76
    %s79 = sadd.s32 %s78, 1
    %p82 = scmp.eq.s32.totalorder %s9, 1
    %p83 = scmp.ne.s32.totalorder %s78, %s80
    %p84 = scmp.eq.s32.totalorder %s9, 0
    %p85 = por %p83, %p84
    %p86 = scmp.ne.s32.totalorder %s78, %s80
    %p87 = scmp.eq.s32.totalorder %s14, 1
    %p88 = por %p86, %p87
    %p89 = scmp.ne.s32.totalorder %s80, %s81
    %p90 = scmp.eq.s32.totalorder %s14, 0
    %p91 = por %p89, %p90
    %p92 = scmp.ne.s32.totalorder %s80, %s81
    %p93 = scmp.eq.s32.totalorder %s15, 1
    %p94 = por %p92, %p93
    %p96 = scmp.ne.s32.totalorder %s81, %s95
    %p97 = scmp.eq.s32.totalorder %s15, 0
    %p98 = por %p96, %p97
    %s99 = ssub.s32 %s16, %s28
    %s100 = ssub.s32 %s17, %s24
    %s101 = sor.u32 %s99, %s100
    %p102 = scmp.eq.s32.totalorder %s101, 0
    %s104 = sadd.s32 %s103, 1
    %s105 = scalar_select %p102, %s103, %s104
    %p108 = pneg %p102
    %p109 = scmp.eq.s32.totalorder %s9, 1
    %p110 = por %p108, %p109
    %p111 = scmp.ne.s32.totalorder %s103, %s106
    %p112 = scmp.eq.s32.totalorder %s9, 0
    %p113 = por %p111, %p112
    %p114 = scmp.ne.s32.totalorder %s103, %s106
    %p115 = scmp.eq.s32.totalorder %s14, 1
    %p116 = por %p114, %p115
    %p117 = scmp.ne.s32.totalorder %s106, %s107
    %p118 = scmp.eq.s32.totalorder %s14, 0
    %p119 = por %p117, %p118
    %p120 = scmp.ne.s32.totalorder %s106, %s107
    %p121 = scmp.eq.s32.totalorder %s15, 1
    %p122 = por %p120, %p121
    %p124 = scmp.ne.s32.totalorder %s107, %s123
    %p125 = scmp.eq.s32.totalorder %s15, 0
    %p126 = por %p124, %p125
    %p127 = scmp.le.s32.totalorder 1, %s9
    %p128 = scmp.lt.s32.totalorder %s9, 3
    %p129 = pnand %p127, %p128
    %p130 = pneg %p129
    // Predicated region
    $region9: #{_lambda_.28} parent=5 // pred_check
      _
    $region10: #{_lambda_.28} parent=5 // pred_check_branch
      %132 = sbr.rel (%p129) target = $region12
    $region11: #{_lambda_.28} parent=5 // pred_region
      %s133 = ssub.s32 %s9, 1
      // Predicated region
      $region13: #{_lambda_.28} parent=11 // pred_check
        %p134 = pneg %p70
      $region14: #{_lambda_.28} parent=11 // pred_check_branch
        %136 = sbr.rel (%p134) target = $region16
      $region15: #{_lambda_.28} parent=11 // pred_region
        _
      $region16: #{_lambda_.28} parent=11 // pred_fallthru
        _
      // Predicated region
      $region17: #{_lambda_.28} parent=11 // pred_check
        %p137 = pneg %p91
      $region18: #{_lambda_.28} parent=11 // pred_check_branch
        %139 = sbr.rel (%p137) target = $region20
      $region19: #{_lambda_.28} parent=11 // pred_region
        _
      $region20: #{_lambda_.28} parent=11 // pred_fallthru
        _
    $region12: #{_lambda_.28} parent=5 // pred_fallthru
      _
    %p140 = scmp.lt.s32.totalorder %s9, 2
    // Predicated region
    $region21: #{_lambda_.28} parent=5 // pred_check
      %p141 = pneg %p140
    $region22: #{_lambda_.28} parent=5 // pred_check_branch
      %143 = sbr.rel (%p141) target = $region24
    $region23: #{_lambda_.28} parent=5 // pred_region
      // Predicated region
      $region25: #{_lambda_.28} parent=23 // pred_check
        %p144 = pneg %p43
      $region26: #{_lambda_.28} parent=23 // pred_check_branch
        %146 = sbr.rel (%p144) target = $region28
      $region27: #{_lambda_.28} parent=23 // pred_region
        %s147 = smul.u32 2, %s17
        %p148 = scmp.lt.s32.totalorder %s16, 1
        %s149 = scalar_select %p148, %s16, 1
        %p150 = scmp.lt.s32.totalorder %s147, 1
        %s151 = scalar_select %p150, %s147, 1
        %s152 = smul.addr %s149, 36
        %s153 = sadd.s32 %s151, %s152
        %s154 = smul.addr %s153, 4
        %s155 = scalar_lea.vmem %s0, %s154
        %s156 = smul.u32 2, %s17
      $region28: #{_lambda_.28} parent=23 // pred_fallthru
        _
    $region24: #{_lambda_.28} parent=5 // pred_fallthru
      _
    %p157 = scmp.le.s32.totalorder 1, %s9
    %p158 = scmp.lt.s32.totalorder %s9, 3
    %p159 = pnand %p157, %p158
    %p160 = pneg %p159
    // Predicated region
    $region29: #{_lambda_.28} parent=5 // pred_check
      _
    $region30: #{_lambda_.28} parent=5 // pred_check_branch
      %162 = sbr.rel (%p159) target = $region32
    $region31: #{_lambda_.28} parent=5 // pred_region
      %s163 = ssub.s32 %s9, 1
      %s164 = smul.u32 2, %s19
      %p165 = scmp.lt.s32.totalorder %s18, 1
      %s166 = scalar_select %p165, %s18, 1
      %p167 = scmp.lt.s32.totalorder %s164, 1
      %s168 = scalar_select %p167, %s164, 1
      %s169 = smul.addr %s166, 36
      %s170 = sadd.s32 %s168, %s169
      %s171 = smul.addr %s170, 4
      %s172 = scalar_lea.vmem %s0, %s171
      %p173 = pneg %p49
      %p174 = pneg %p46
      %p175 = pneg %p70
      %p176 = pneg %p67
      %p177 = pneg %p91
      %p178 = pneg %p88
      %p179 = pneg %p119
      %p180 = pneg %p116
      %s181 = smul.u32 2, %s19
      %p182 = scmp.lt.s32.totalorder %s18, 1
      %s183 = scalar_select %p182, %s18, 1
      %p184 = scmp.lt.s32.totalorder %s181, 1
      %s185 = scalar_select %p184, %s181, 1
      %s186 = smul.addr %s183, 4
      %s187 = sadd.s32 %s185, %s186
      %s188 = smul.addr %s187, 8
      %s189 = scalar_lea.vmem %s3, %s188
      %s190 = smul.u32 2, %s19
      %p191 = scmp.lt.s32.totalorder %s18, 1
      %s192 = scalar_select %p191, %s18, 1
      %p193 = scmp.lt.s32.totalorder %s190, 1
      %s194 = scalar_select %p193, %s190, 1
      %s195 = smul.addr %s192, 36
      %s196 = sadd.s32 %s194, %s195
      %s197 = smul.addr %s196, 4
      %s198 = scalar_lea.vmem %s0, %s197
      %s199 = smul.u32 2, %s19
      %s200 = smul.u32 2, %s19
      %p201 = scmp.lt.s32.totalorder %s18, 1
      %s202 = scalar_select %p201, %s18, 1
      %p203 = scmp.lt.s32.totalorder %s200, 1
      %s204 = scalar_select %p203, %s200, 1
      %s205 = smul.addr %s202, 4
      %s206 = sadd.s32 %s204, %s205
      %s207 = smul.addr %s206, 8
      %s208 = scalar_lea.vmem %s3, %s207
      %s209 = smul.u32 2, %s19
      %v211 = vld [vmem:[%s1] sm:$0xff]
      %v212 = vld [vmem:[%s1 + $0x8] sm:$0xff]
      %v213 = vld [vmem:[%s198] sm:$0xff]
      %v214 = vld [vmem:[%s198 + $0x8] sm:$0xff]
      %v215 = vld [vmem:[%s198 + $0x10] sm:$0xff]
      %v216 = vld [vmem:[%s198 + $0x18] sm:$0xff]
      %v217 = vld [vmem:[%s198 + $0x20] sm:$0xff]
      %v218 = vld [vmem:[%s198 + $0x28] sm:$0xff]
      %v219 = vld [vmem:[%s198 + $0x30] sm:$0xff]
      %v220 = vld [vmem:[%s198 + $0x38] sm:$0xff]
      %v221 = vld [vmem:[%s198 + $0x40] sm:$0xff]
      %v222 = vld [vmem:[%s198 + $0x48] sm:$0xff]
      %v223 = vld [vmem:[%s198 + $0x50] sm:$0xff]
      %v224 = vld [vmem:[%s198 + $0x58] sm:$0xff]
      %v225 = vld [vmem:[%s198 + $0x60] sm:$0xff]
      %v226 = vld [vmem:[%s198 + $0x68] sm:$0xff]
      %v227 = vld [vmem:[%s198 + $0x70] sm:$0xff]
      %v228 = vld [vmem:[%s198 + $0x78] sm:$0xff]
      %v229 = vld [vmem:[%s198 + $0x80] sm:$0xff]
      %v230 = vld [vmem:[%s198 + $0x88] sm:$0xff]
      %v231 = vld [vmem:[%s2] sm:$0xff]
      %v232 = vld [vmem:[%s2 + $0x8] sm:$0xff]
      %234 = vset.pattern.permute.xlu0 0
      %235 = vperm.xlu0 %234, %v231
      %v236 = vpop.permute.xlu0 %235
      %239 = vset.pattern.permute.xlu0 0
      %240 = vperm.xlu0 %239, %v232
      %v241 = vpop.permute.xlu0 %240
      %v245 = vunpack.c.l.b16 %v211
      %v246 = vunpack.c.h.b16 %v211
      %v247 = vunpack.c.l.b16 %v212
      %v248 = vunpack.c.h.b16 %v212
      %v249 = vpack.c.b16 %v247, %v245
      %v250 = vpack.c.b16 %v248, %v246
      %v270 = vunpack.c.l.b16 %v213
      %v271 = vunpack.c.h.b16 %v213
      %v272 = vunpack.c.l.b16 %v214
      %v273 = vunpack.c.h.b16 %v214
      %v274 = vunpack.c.l.b16 %v215
      %v275 = vunpack.c.h.b16 %v215
      %v276 = vunpack.c.l.b16 %v216
      %v277 = vunpack.c.h.b16 %v216
      %v278 = vunpack.c.l.b16 %v217
      %v279 = vunpack.c.h.b16 %v217
      %v280 = vunpack.c.l.b16 %v218
      %v281 = vunpack.c.h.b16 %v218
      %v282 = vunpack.c.l.b16 %v219
      %v283 = vunpack.c.h.b16 %v219
      %v284 = vunpack.c.l.b16 %v220
      %v285 = vunpack.c.h.b16 %v220
      %v286 = vunpack.c.l.b16 %v221
      %v287 = vunpack.c.h.b16 %v221
      %v288 = vunpack.c.l.b16 %v222
      %v289 = vunpack.c.h.b16 %v222
      %v290 = vunpack.c.l.b16 %v223
      %v291 = vunpack.c.h.b16 %v223
      %v292 = vunpack.c.l.b16 %v224
      %v293 = vunpack.c.h.b16 %v224
      %v294 = vunpack.c.l.b16 %v225
      %v295 = vunpack.c.h.b16 %v225
      %v296 = vunpack.c.l.b16 %v226
      %v297 = vunpack.c.h.b16 %v226
      %v298 = vunpack.c.l.b16 %v227
      %v299 = vunpack.c.h.b16 %v227
      %v300 = vunpack.c.l.b16 %v228
      %v301 = vunpack.c.h.b16 %v228
      %v302 = vunpack.c.l.b16 %v229
      %v303 = vunpack.c.h.b16 %v229
      %v304 = vunpack.c.l.b16 %v230
      %v305 = vunpack.c.h.b16 %v230
      %v306 = vpack.c.b16 %v272, %v270
      %v307 = vpack.c.b16 %v273, %v271
      %v308 = vpack.c.b16 %v276, %v274
      %v309 = vpack.c.b16 %v277, %v275
      %v310 = vpack.c.b16 %v280, %v278
      %v311 = vpack.c.b16 %v281, %v279
      %v312 = vpack.c.b16 %v284, %v282
      %v313 = vpack.c.b16 %v285, %v283
      %v314 = vpack.c.b16 %v288, %v286
      %v315 = vpack.c.b16 %v289, %v287
      %v316 = vpack.c.b16 %v292, %v290
      %v317 = vpack.c.b16 %v293, %v291
      %v318 = vpack.c.b16 %v296, %v294
      %v319 = vpack.c.b16 %v297, %v295
      %v320 = vpack.c.b16 %v300, %v298
      %v321 = vpack.c.b16 %v301, %v299
      %v322 = vpack.c.b16 %v304, %v302
      %v323 = vpack.c.b16 %v305, %v303
      %vm342 = vcmask 130048
      %v344 = vsel %vm342, %v250, 0
      %346 = vmatprep.subr.bf16.mxu0 %v307
      %347 = vmatpush1.bf16.msra.mxu0 %v306
      %348 = vmatprep.subr.bf16.mxu0 %v309
      %349 = vmatpush1.bf16.msra.mxu0 %v308
      %350 = vmatprep.subr.bf16.mxu0 %v311
      %351 = vmatpush1.bf16.msra.mxu0 %v310
      %352 = vmatprep.subr.bf16.mxu0 %v313
      %353 = vmatpush1.bf16.msra.mxu0 %v312
      %354 = vmatprep.subr.bf16.mxu0 %v315
      %355 = vmatpush1.bf16.msra.mxu0 %v314
      %356 = vmatprep.subr.bf16.mxu0 %v317
      %357 = vmatpush1.bf16.msra.mxu0 %v316
      %358 = vmatprep.subr.bf16.mxu0 %v319
      %359 = vmatpush1.bf16.msra.mxu0 %v318
      %360 = vmatprep.subr.bf16.mxu0 %v321
      %361 = vmatpush1.bf16.msra.mxu0 %v320
      %362 = vmatprep.subr.bf16.mxu0 %v323
      %363 = vmatpush1.bf16.msra.mxu0 %v322
      %364 = vmatprep.subr.bf16.mxu0 0
      %365 = vmatpush1.bf16.msra.mxu0 0
      %366 = vmatprep.subr.bf16.mxu0 0
      %367 = vmatpush1.bf16.msra.mxu0 0
      %368 = vmatprep.subr.bf16.mxu0 0
      %369 = vmatpush1.bf16.msra.mxu0 0
      %370 = vmatprep.subr.bf16.mxu0 0
      %371 = vmatpush1.bf16.msra.mxu0 0
      %372 = vmatprep.subr.bf16.mxu0 0
      %373 = vmatpush1.bf16.msra.mxu0 0
      %374 = vmatprep.subr.bf16.mxu0 0
      %375 = vmatpush1.bf16.msra.mxu0 0
      %376 = vmatprep.subr.bf16.mxu0 0
      %377 = vmatpush1.bf16.msra.mxu0 0
      %378 = vmatprep.mubr.bf16.mxu0 %v344
      %379 = vmatmul.mubr.bf16.gmra.mrb[0].mxu0 %v249
      %v380 = vpop.f32.mrb[0].mxu0
      %v381 = vadd.f32 %v236, %v380
      %v382 = vpop.f32.mrb[0].mxu0
      %v383 = vadd.f32 %v236, %v382
      %v384 = vpop.f32.mrb[0].mxu0
      %v385 = vadd.f32 %v241, %v384
      %v386 = vpop.f32.mrb[0].mxu0
      %v387 = vadd.f32 %v241, %v386
      %388 = vdwg.mxu0
      %389 = vst [vmem:[%s208] sm:$0xff] %v381
      %390 = vst [vmem:[%s208 + $0x8] sm:$0xff] %v383
      %391 = vst [vmem:[%s208 + $0x10] sm:$0xff] %v385
      %392 = vst [vmem:[%s208 + $0x18] sm:$0xff] %v387
      %s393 = smul.u32 2, %s19
      %p394 = scmp.lt.s32.totalorder %s18, 1
      %s395 = scalar_select %p394, %s18, 1
      %p396 = scmp.lt.s32.totalorder %s393, 1
      %s397 = scalar_select %p396, %s393, 1
      %s398 = smul.addr %s395, 4
      %s399 = sadd.s32 %s397, %s398
      %s400 = smul.addr %s399, 8
      %s401 = scalar_lea.vmem %s3, %s400
      // Predicated region
      $region33: #{_lambda_.28} parent=31 // pred_check
        %p402 = pneg %p116
      $region34: #{_lambda_.28} parent=31 // pred_check_branch
        %404 = sbr.rel (%p402) target = $region36
      $region35: #{_lambda_.28} parent=31 // pred_region
        %s405 = smul.u32 2, %s19
      $region36: #{_lambda_.28} parent=31 // pred_fallthru
        _
    $region32: #{_lambda_.28} parent=5 // pred_fallthru
      _
    %p406 = scmp.le.s32.totalorder 2, %s9
    // Predicated region
    $region37: #{_lambda_.28} parent=5 // pred_check
      %p407 = pneg %p406
    $region38: #{_lambda_.28} parent=5 // pred_check_branch
      %409 = sbr.rel (%p407) target = $region40
    $region39: #{_lambda_.28} parent=5 // pred_region
      %s410 = ssub.s32 %s9, 2
      // Predicated region
      $region41: #{_lambda_.28} parent=39 // pred_check
        %p411 = pneg %p122
      $region42: #{_lambda_.28} parent=39 // pred_check_branch
        %413 = sbr.rel (%p411) target = $region44
      $region43: #{_lambda_.28} parent=39 // pred_region
        %s414 = smul.u32 2, %s21
        %p415 = scmp.lt.s32.totalorder %s20, 1
        %s416 = scalar_select %p415, %s20, 1
        %p417 = scmp.lt.s32.totalorder %s414, 1
        %s418 = scalar_select %p417, %s414, 1
        %s419 = smul.addr %s416, 4
        %s420 = sadd.s32 %s418, %s419
        %s421 = smul.addr %s420, 8
        %s422 = scalar_lea.vmem %s3, %s421
      $region44: #{_lambda_.28} parent=39 // pred_fallthru
        _
    $region40: #{_lambda_.28} parent=5 // pred_fallthru
      _
  $region6: #{_lambda_.28} parent=0 // loop_footer
    %s13 = sadd.s32 1, %s9
  $region7: #{_lambda_.28} parent=0 // loop_footer_branch
    %8 = sbr.rel target = $region3
  $region8: #{_lambda_.28} parent=0 // loop_exit
    _

// kernel: _lambda_.30
$region0: #{_lambda_.30}
  #allocation0 [shape = 'u32[]', space=smem, size = 0x4, offset = 0x4, fixed_abs, tag = 'smem constant byte address 0x4 - core index']
  #allocation1 [shape = 'u32[144,128]{1,0:T(1,128)}', space=vmem, size = 0x12000, scoped, tag = 'internal scratch']
  %s0 = inlined_call_operand.vmem [shape: bf16[2,400,64], index: 0, kind: input, shape index: {}]
  %s1 = inlined_call_operand.vmem [shape: bf16[32,400], index: 1, kind: input, shape index: {}]
  %s2 = inlined_call_operand.vmem [shape: f32[32,1], index: 2, kind: input, shape index: {}]
  %s3 = inlined_call_operand.vmem [shape: f32[2,32,64], index: 3, kind: output, shape index: {}]
  %s4 = sld [smem:[#allocation0]]
  $region45: #{_lambda_.30} parent=0
    _
  %s6 = ssub.s32 1, %s4
  %s7 = scalar_select 0, %s6, %s4
  loop: start=0, step=1, limit=4
  $region2: #{_lambda_.30} parent=0 // loop_pre_header
    _
  $region3: #{_lambda_.30} parent=0 // loop_header
    %s9 = sphi 0, %s13
    %p10 = scmp.ge.s32.totalorder %s9, 4
    %s16 = sphi 0, %s28
    %s17 = sphi 0, %s24
    %s18 = sphi 0, %s16
    %s19 = sphi 0, %s17
    %s20 = sphi 0, %s18
    %s21 = sphi 0, %s19
    %s33 = sphi 0, %s35
    %s36 = sphi 0, %s33
    %s37 = sphi 0, %s36
    %s53 = sphi 0, %s37
    %s57 = sphi 0, %s57
    %s59 = sphi 0, %s57
    %s60 = sphi 0, %s59
    %s74 = sphi 0, %s60
    %s78 = sphi 0, %s78
    %s80 = sphi 0, %s78
    %s81 = sphi 0, %s80
    %s95 = sphi 0, %s81
    %s103 = sphi 0, %s105
    %s106 = sphi 0, %s103
    %s107 = sphi 0, %s106
    %s123 = sphi 0, %s107
  $region4: #{_lambda_.30} parent=0 // loop_header_branch
    %12 = sbr.rel (%p10) target = $region8
  $region5: #{_lambda_.30} parent=0 // loop_body
    %s14 = ssub.s32 %s9, 1
    %s15 = ssub.s32 %s9, 2
    %s22 = sadd.s32 1, %s17
    %p23 = scmp.ge.s32.totalorder %s22, 1
    %s24 = scalar_select %p23, 0, %s22
    %s25 = sadd.s32 1, %s16
    %s26 = scalar_select %p23, %s25, %s16
    %p27 = scmp.ge.s32.totalorder %s26, 2
    %s28 = scalar_select %p27, 0, %s26
    %s29 = ssub.s32 %s16, %s28
    %s30 = ssub.s32 %s17, %s24
    %s31 = sor.u32 %s29, %s30
    %p32 = scmp.eq.s32.totalorder %s31, 0
    %s34 = sadd.s32 %s33, 1
    %s35 = scalar_select %p32, %s33, %s34
    %p38 = pneg %p32
    %p39 = scmp.eq.s32.totalorder %s9, 1
    %p40 = por %p38, %p39
    %p41 = scmp.ne.s32.totalorder %s33, %s36
    %p42 = scmp.eq.s32.totalorder %s9, 0
    %p43 = por %p41, %p42
    %p44 = scmp.ne.s32.totalorder %s33, %s36
    %p45 = scmp.eq.s32.totalorder %s14, 1
    %p46 = por %p44, %p45
    %p47 = scmp.ne.s32.totalorder %s36, %s37
    %p48 = scmp.eq.s32.totalorder %s14, 0
    %p49 = por %p47, %p48
    %p50 = scmp.ne.s32.totalorder %s36, %s37
    %p51 = scmp.eq.s32.totalorder %s15, 1
    %p52 = por %p50, %p51
    %p54 = scmp.ne.s32.totalorder %s37, %s53
    %p55 = scmp.eq.s32.totalorder %s15, 0
    %p56 = por %p54, %p55
    %s58 = sadd.s32 %s57, 1
    %p61 = scmp.eq.s32.totalorder %s9, 1
    %p62 = scmp.ne.s32.totalorder %s57, %s59
    %p63 = scmp.eq.s32.totalorder %s9, 0
    %p64 = por %p62, %p63
    %p65 = scmp.ne.s32.totalorder %s57, %s59
    %p66 = scmp.eq.s32.totalorder %s14, 1
    %p67 = por %p65, %p66
    %p68 = scmp.ne.s32.totalorder %s59, %s60
    %p69 = scmp.eq.s32.totalorder %s14, 0
    %p70 = por %p68, %p69
    %p71 = scmp.ne.s32.totalorder %s59, %s60
    %p72 = scmp.eq.s32.totalorder %s15, 1
    %p73 = por %p71, %p72
    %p75 = scmp.ne.s32.totalorder %s60, %s74
    %p76 = scmp.eq.s32.totalorder %s15, 0
    %p77 = por %p75, %p76
    %s79 = sadd.s32 %s78, 1
    %p82 = scmp.eq.s32.totalorder %s9, 1
    %p83 = scmp.ne.s32.totalorder %s78, %s80
    %p84 = scmp.eq.s32.totalorder %s9, 0
    %p85 = por %p83, %p84
    %p86 = scmp.ne.s32.totalorder %s78, %s80
    %p87 = scmp.eq.s32.totalorder %s14, 1
    %p88 = por %p86, %p87
    %p89 = scmp.ne.s32.totalorder %s80, %s81
    %p90 = scmp.eq.s32.totalorder %s14, 0
    %p91 = por %p89, %p90
    %p92 = scmp.ne.s32.totalorder %s80, %s81
    %p93 = scmp.eq.s32.totalorder %s15, 1
    %p94 = por %p92, %p93
    %p96 = scmp.ne.s32.totalorder %s81, %s95
    %p97 = scmp.eq.s32.totalorder %s15, 0
    %p98 = por %p96, %p97
    %s99 = ssub.s32 %s16, %s28
    %s100 = ssub.s32 %s17, %s24
    %s101 = sor.u32 %s99, %s100
    %p102 = scmp.eq.s32.totalorder %s101, 0
    %s104 = sadd.s32 %s103, 1
    %s105 = scalar_select %p102, %s103, %s104
    %p108 = pneg %p102
    %p109 = scmp.eq.s32.totalorder %s9, 1
    %p110 = por %p108, %p109
    %p111 = scmp.ne.s32.totalorder %s103, %s106
    %p112 = scmp.eq.s32.totalorder %s9, 0
    %p113 = por %p111, %p112
    %p114 = scmp.ne.s32.totalorder %s103, %s106
    %p115 = scmp.eq.s32.totalorder %s14, 1
    %p116 = por %p114, %p115
    %p117 = scmp.ne.s32.totalorder %s106, %s107
    %p118 = scmp.eq.s32.totalorder %s14, 0
    %p119 = por %p117, %p118
    %p120 = scmp.ne.s32.totalorder %s106, %s107
    %p121 = scmp.eq.s32.totalorder %s15, 1
    %p122 = por %p120, %p121
    %p124 = scmp.ne.s32.totalorder %s107, %s123
    %p125 = scmp.eq.s32.totalorder %s15, 0
    %p126 = por %p124, %p125
    %p127 = scmp.le.s32.totalorder 1, %s9
    %p128 = scmp.lt.s32.totalorder %s9, 3
    %p129 = pnand %p127, %p128
    %p130 = pneg %p129
    // Predicated region
    $region9: #{_lambda_.30} parent=5 // pred_check
      _
    $region10: #{_lambda_.30} parent=5 // pred_check_branch
      %132 = sbr.rel (%p129) target = $region12
    $region11: #{_lambda_.30} parent=5 // pred_region
      %s133 = ssub.s32 %s9, 1
      // Predicated region
      $region13: #{_lambda_.30} parent=11 // pred_check
        %p134 = pneg %p70
      $region14: #{_lambda_.30} parent=11 // pred_check_branch
        %136 = sbr.rel (%p134) target = $region16
      $region15: #{_lambda_.30} parent=11 // pred_region
        _
      $region16: #{_lambda_.30} parent=11 // pred_fallthru
        _
      // Predicated region
      $region17: #{_lambda_.30} parent=11 // pred_check
        %p137 = pneg %p91
      $region18: #{_lambda_.30} parent=11 // pred_check_branch
        %139 = sbr.rel (%p137) target = $region20
      $region19: #{_lambda_.30} parent=11 // pred_region
        _
      $region20: #{_lambda_.30} parent=11 // pred_fallthru
        _
    $region12: #{_lambda_.30} parent=5 // pred_fallthru
      _
    %p140 = scmp.lt.s32.totalorder %s9, 2
    // Predicated region
    $region21: #{_lambda_.30} parent=5 // pred_check
      %p141 = pneg %p140
    $region22: #{_lambda_.30} parent=5 // pred_check_branch
      %143 = sbr.rel (%p141) target = $region24
    $region23: #{_lambda_.30} parent=5 // pred_region
      // Predicated region
      $region25: #{_lambda_.30} parent=23 // pred_check
        %p144 = pneg %p43
      $region26: #{_lambda_.30} parent=23 // pred_check_branch
        %146 = sbr.rel (%p144) target = $region28
      $region27: #{_lambda_.30} parent=23 // pred_region
        %p147 = scmp.lt.s32.totalorder %s16, 1
        %s148 = scalar_select %p147, %s16, 1
        %p149 = scmp.lt.s32.totalorder %s17, 0
        %s150 = scalar_select %p149, %s17, 0
        %s151 = smul.addr %s148, 50
        %s152 = sadd.s32 %s150, %s151
        %s153 = smul.addr %s152, 4
        %s154 = scalar_lea.vmem %s0, %s153
      $region28: #{_lambda_.30} parent=23 // pred_fallthru
        _
    $region24: #{_lambda_.30} parent=5 // pred_fallthru
      _
    %p155 = scmp.le.s32.totalorder 1, %s9
    %p156 = scmp.lt.s32.totalorder %s9, 3
    %p157 = pnand %p155, %p156
    %p158 = pneg %p157
    // Predicated region
    $region29: #{_lambda_.30} parent=5 // pred_check
      _
    $region30: #{_lambda_.30} parent=5 // pred_check_branch
      %160 = sbr.rel (%p157) target = $region32
    $region31: #{_lambda_.30} parent=5 // pred_region
      %s161 = ssub.s32 %s9, 1
      %p162 = scmp.lt.s32.totalorder %s18, 1
      %s163 = scalar_select %p162, %s18, 1
      %p164 = scmp.lt.s32.totalorder %s19, 0
      %s165 = scalar_select %p164, %s19, 0
      %s166 = smul.addr %s163, 50
      %s167 = sadd.s32 %s165, %s166
      %s168 = smul.addr %s167, 4
      %s169 = scalar_lea.vmem %s0, %s168
      %p170 = pneg %p49
      %p171 = pneg %p46
      %p172 = pneg %p70
      %p173 = pneg %p67
      %p174 = pneg %p91
      %p175 = pneg %p88
      %p176 = pneg %p119
      %p177 = pneg %p116
      %p178 = scmp.lt.s32.totalorder %s18, 1
      %s179 = scalar_select %p178, %s18, 1
      %p180 = scmp.lt.s32.totalorder %s19, 0
      %s181 = scalar_select %p180, %s19, 0
      %s182 = smul.addr %s179, 4
      %s183 = sadd.s32 %s181, %s182
      %s184 = smul.addr %s183, 8
      %s185 = scalar_lea.vmem %s3, %s184
      %p186 = scmp.lt.s32.totalorder %s18, 1
      %s187 = scalar_select %p186, %s18, 1
      %p188 = scmp.lt.s32.totalorder %s19, 0
      %s189 = scalar_select %p188, %s19, 0
      %s190 = smul.addr %s187, 50
      %s191 = sadd.s32 %s189, %s190
      %s192 = smul.addr %s191, 4
      %s193 = scalar_lea.vmem %s0, %s192
      %p194 = scmp.lt.s32.totalorder %s18, 1
      %s195 = scalar_select %p194, %s18, 1
      %p196 = scmp.lt.s32.totalorder %s19, 0
      %s197 = scalar_select %p196, %s19, 0
      %s198 = smul.addr %s195, 4
      %s199 = sadd.s32 %s197, %s198
      %s200 = smul.addr %s199, 8
      %s201 = scalar_lea.vmem %s3, %s200
      %v203 = vld [vmem:[%s1] sm:$0xff]
      %v204 = vld [vmem:[%s1 + $0x8] sm:$0xff]
      %v205 = vld [vmem:[%s1 + $0x10] sm:$0xff]
      %v206 = vld [vmem:[%s1 + $0x18] sm:$0xff]
      %v207 = vld [vmem:[%s1 + $0x20] sm:$0xff]
      %v208 = vld [vmem:[%s1 + $0x28] sm:$0xff]
      %v209 = vld [vmem:[%s1 + $0x30] sm:$0xff]
      %v210 = vld [vmem:[%s1 + $0x38] sm:$0xff]
      %v211 = vld [vmem:[%s193] sm:$0xf]
      %v212 = vld [vmem:[%s193 + $0x4] sm:$0xf]
      %v213 = vld [vmem:[%s193 + $0x8] sm:$0xf]
      %v214 = vld [vmem:[%s193 + $0xc] sm:$0xf]
      %v215 = vld [vmem:[%s193 + $0x10] sm:$0xf]
      %v216 = vld [vmem:[%s193 + $0x14] sm:$0xf]
      %v217 = vld [vmem:[%s193 + $0x18] sm:$0xf]
      %v218 = vld [vmem:[%s193 + $0x1c] sm:$0xf]
      %v219 = vld [vmem:[%s193 + $0x20] sm:$0xf]
      %v220 = vld [vmem:[%s193 + $0x24] sm:$0xf]
      %v221 = vld [vmem:[%s193 + $0x28] sm:$0xf]
      %v222 = vld [vmem:[%s193 + $0x2c] sm:$0xf]
      %v223 = vld [vmem:[%s193 + $0x30] sm:$0xf]
      %v224 = vld [vmem:[%s193 + $0x34] sm:$0xf]
      %v225 = vld [vmem:[%s193 + $0x38] sm:$0xf]
      %v226 = vld [vmem:[%s193 + $0x3c] sm:$0xf]
      %v227 = vld [vmem:[%s193 + $0x40] sm:$0xf]
      %v228 = vld [vmem:[%s193 + $0x44] sm:$0xf]
      %v229 = vld [vmem:[%s193 + $0x48] sm:$0xf]
      %v230 = vld [vmem:[%s193 + $0x4c] sm:$0xf]
      %v231 = vld [vmem:[%s193 + $0x50] sm:$0xf]
      %v232 = vld [vmem:[%s193 + $0x54] sm:$0xf]
      %v233 = vld [vmem:[%s193 + $0x58] sm:$0xf]
      %v234 = vld [vmem:[%s193 + $0x5c] sm:$0xf]
      %v235 = vld [vmem:[%s193 + $0x60] sm:$0xf]
      %v236 = vld [vmem:[%s193 + $0x64] sm:$0xf]
      %v237 = vld [vmem:[%s193 + $0x68] sm:$0xf]
      %v238 = vld [vmem:[%s193 + $0x6c] sm:$0xf]
      %v239 = vld [vmem:[%s193 + $0x70] sm:$0xf]
      %v240 = vld [vmem:[%s193 + $0x74] sm:$0xf]
      %v241 = vld [vmem:[%s193 + $0x78] sm:$0xf]
      %v242 = vld [vmem:[%s193 + $0x7c] sm:$0xf]
      %v243 = vld [vmem:[%s193 + $0x80] sm:$0xf]
      %v244 = vld [vmem:[%s193 + $0x84] sm:$0xf]
      %v245 = vld [vmem:[%s193 + $0x88] sm:$0xf]
      %v246 = vld [vmem:[%s193 + $0x8c] sm:$0xf]
      %v247 = vld [vmem:[%s193 + $0x90] sm:$0xf]
      %v248 = vld [vmem:[%s193 + $0x94] sm:$0xf]
      %v249 = vld [vmem:[%s193 + $0x98] sm:$0xf]
      %v250 = vld [vmem:[%s193 + $0x9c] sm:$0xf]
      %v251 = vld [vmem:[%s193 + $0xa0] sm:$0xf]
      %v252 = vld [vmem:[%s193 + $0xa4] sm:$0xf]
      %v253 = vld [vmem:[%s193 + $0xa8] sm:$0xf]
      %v254 = vld [vmem:[%s193 + $0xac] sm:$0xf]
      %v255 = vld [vmem:[%s193 + $0xb0] sm:$0xf]
      %v256 = vld [vmem:[%s193 + $0xb4] sm:$0xf]
      %v257 = vld [vmem:[%s193 + $0xb8] sm:$0xf]
      %v258 = vld [vmem:[%s193 + $0xbc] sm:$0xf]
      %v259 = vld [vmem:[%s193 + $0xc0] sm:$0xf]
      %v260 = vld [vmem:[%s193 + $0xc4] sm:$0xf]
      %v261 = vld [vmem:[%s2] sm:$0xff]
      %v262 = vld [vmem:[%s2 + $0x8] sm:$0xff]
      %v263 = vld [vmem:[%s2 + $0x10] sm:$0xff]
      %v264 = vld [vmem:[%s2 + $0x18] sm:$0xff]
      %266 = vset.pattern.permute.xlu0 0
      %267 = vperm.xlu0 %266, %v261
      %v268 = vpop.permute.xlu0 %267
      %271 = vset.pattern.permute.xlu0 0
      %272 = vperm.xlu0 %271, %v262
      %v273 = vpop.permute.xlu0 %272
      %276 = vset.pattern.permute.xlu0 0
      %277 = vperm.xlu0 %276, %v263
      %v278 = vpop.permute.xlu0 %277
      %281 = vset.pattern.permute.xlu0 0
      %282 = vperm.xlu0 %281, %v264
      %v283 = vpop.permute.xlu0 %282
      %v293 = vunpack.c.l.b16 %v203
      %v294 = vunpack.c.h.b16 %v203
      %v295 = vunpack.c.l.b16 %v204
      %v296 = vunpack.c.h.b16 %v204
      %v297 = vunpack.c.l.b16 %v205
      %v298 = vunpack.c.h.b16 %v205
      %v299 = vunpack.c.l.b16 %v206
      %v300 = vunpack.c.h.b16 %v206
      %v301 = vunpack.c.l.b16 %v207
      %v302 = vunpack.c.h.b16 %v207
      %v303 = vunpack.c.l.b16 %v208
      %v304 = vunpack.c.h.b16 %v208
      %v305 = vunpack.c.l.b16 %v209
      %v306 = vunpack.c.h.b16 %v209
      %v307 = vunpack.c.l.b16 %v210
      %v308 = vunpack.c.h.b16 %v210
      %v309 = vpack.c.b16 %v297, %v293
      %v310 = vpack.c.b16 %v298, %v294
      %v311 = vpack.c.b16 %v299, %v295
      %v312 = vpack.c.b16 %v300, %v296
      %v313 = vpack.c.b16 %v305, %v301
      %v314 = vpack.c.b16 %v306, %v302
      %v315 = vpack.c.b16 %v307, %v303
      %v316 = vpack.c.b16 %v308, %v304
      %v373 = vunpack.c.l.b16 %v211
      %v374 = vunpack.c.l.b16 %v212
      %v375 = vunpack.c.l.b16 %v213
      %v376 = vunpack.c.l.b16 %v214
      %v377 = vunpack.c.l.b16 %v215
      %v378 = vunpack.c.l.b16 %v216
      %v379 = vunpack.c.l.b16 %v217
      %v380 = vunpack.c.l.b16 %v218
      %v381 = vunpack.c.l.b16 %v219
      %v382 = vunpack.c.l.b16 %v220
      %v383 = vunpack.c.l.b16 %v221
      %v384 = vunpack.c.l.b16 %v222
      %v385 = vunpack.c.l.b16 %v223
      %v386 = vunpack.c.l.b16 %v224
      %v387 = vunpack.c.l.b16 %v225
      %v388 = vunpack.c.l.b16 %v226
      %v389 = vunpack.c.l.b16 %v227
      %v390 = vunpack.c.l.b16 %v228
      %v391 = vunpack.c.l.b16 %v229
      %v392 = vunpack.c.l.b16 %v230
      %v393 = vunpack.c.l.b16 %v231
      %v394 = vunpack.c.l.b16 %v232
      %v395 = vunpack.c.l.b16 %v233
      %v396 = vunpack.c.l.b16 %v234
      %v397 = vunpack.c.l.b16 %v235
      %v398 = vunpack.c.l.b16 %v236
      %v399 = vunpack.c.l.b16 %v237
      %v400 = vunpack.c.l.b16 %v238
      %v401 = vunpack.c.l.b16 %v239
      %v402 = vunpack.c.l.b16 %v240
      %v403 = vunpack.c.l.b16 %v241
      %v404 = vunpack.c.l.b16 %v242
      %v405 = vunpack.c.l.b16 %v243
      %v406 = vunpack.c.l.b16 %v244
      %v407 = vunpack.c.l.b16 %v245
      %v408 = vunpack.c.l.b16 %v246
      %v409 = vunpack.c.l.b16 %v247
      %v410 = vunpack.c.l.b16 %v248
      %v411 = vunpack.c.l.b16 %v249
      %v412 = vunpack.c.l.b16 %v250
      %v413 = vunpack.c.l.b16 %v251
      %v414 = vunpack.c.l.b16 %v252
      %v415 = vunpack.c.l.b16 %v253
      %v416 = vunpack.c.l.b16 %v254
      %v417 = vunpack.c.l.b16 %v255
      %v418 = vunpack.c.l.b16 %v256
      %v419 = vunpack.c.l.b16 %v257
      %v420 = vunpack.c.l.b16 %v258
      %v421 = vunpack.c.l.b16 %v259
      %v422 = vunpack.c.l.b16 %v260
      %v423 = vpack.c.b16 %v374, %v373
      %v424 = vpack.c.b16 %v376, %v375
      %v425 = vpack.c.b16 %v378, %v377
      %v426 = vpack.c.b16 %v380, %v379
      %v427 = vpack.c.b16 %v382, %v381
      %v428 = vpack.c.b16 %v384, %v383
      %v429 = vpack.c.b16 %v386, %v385
      %v430 = vpack.c.b16 %v388, %v387
      %v431 = vpack.c.b16 %v390, %v389
      %v432 = vpack.c.b16 %v392, %v391
      %v433 = vpack.c.b16 %v394, %v393
      %v434 = vpack.c.b16 %v396, %v395
      %v435 = vpack.c.b16 %v398, %v397
      %v436 = vpack.c.b16 %v400, %v399
      %v437 = vpack.c.b16 %v402, %v401
      %v438 = vpack.c.b16 %v404, %v403
      %v439 = vpack.c.b16 %v406, %v405
      %v440 = vpack.c.b16 %v408, %v407
      %v441 = vpack.c.b16 %v410, %v409
      %v442 = vpack.c.b16 %v412, %v411
      %v443 = vpack.c.b16 %v414, %v413
      %v444 = vpack.c.b16 %v416, %v415
      %v445 = vpack.c.b16 %v418, %v417
      %v446 = vpack.c.b16 %v420, %v419
      %v447 = vpack.c.b16 %v422, %v421
      %vm473 = vcmask 130048
      %v475 = vsel %vm473, %v312, 0
      %v478 = vsel %vm473, %v316, 0
      %480 = vmatprep.subr.bf16.mxu0 0
      %481 = vmatpush1.bf16.msra.mxu0 %v423
      %482 = vmatprep.subr.bf16.mxu0 0
      %483 = vmatpush1.bf16.msra.mxu0 %v424
      %484 = vmatprep.subr.bf16.mxu0 0
      %485 = vmatpush1.bf16.msra.mxu0 %v425
      %486 = vmatprep.subr.bf16.mxu0 0
      %487 = vmatpush1.bf16.msra.mxu0 %v426
      %488 = vmatprep.subr.bf16.mxu0 0
      %489 = vmatpush1.bf16.msra.mxu0 %v427
      %490 = vmatprep.subr.bf16.mxu0 0
      %491 = vmatpush1.bf16.msra.mxu0 %v428
      %492 = vmatprep.subr.bf16.mxu0 0
      %493 = vmatpush1.bf16.msra.mxu0 %v429
      %494 = vmatprep.subr.bf16.mxu0 0
      %495 = vmatpush1.bf16.msra.mxu0 %v430
      %496 = vmatprep.subr.bf16.mxu0 0
      %497 = vmatpush1.bf16.msra.mxu0 %v431
      %498 = vmatprep.subr.bf16.mxu0 0
      %499 = vmatpush1.bf16.msra.mxu0 %v432
      %500 = vmatprep.subr.bf16.mxu0 0
      %501 = vmatpush1.bf16.msra.mxu0 %v433
      %502 = vmatprep.subr.bf16.mxu0 0
      %503 = vmatpush1.bf16.msra.mxu0 %v434
      %504 = vmatprep.subr.bf16.mxu0 0
      %505 = vmatpush1.bf16.msra.mxu0 %v435
      %506 = vmatprep.subr.bf16.mxu0 0
      %507 = vmatpush1.bf16.msra.mxu0 %v436
      %508 = vmatprep.subr.bf16.mxu0 0
      %509 = vmatpush1.bf16.msra.mxu0 %v437
      %510 = vmatprep.subr.bf16.mxu0 0
      %511 = vmatpush1.bf16.msra.mxu0 %v438
      %512 = vmatprep.mubr.bf16.mxu0 %v310
      %513 = vmatmul.mubr.bf16.gmra.mrb[0].mxu0 %v309
      %v514 = vpop.f32.mrb[0].mxu0
      %v515 = vadd.f32 %v268, %v514
      %v516 = vpop.f32.mrb[0].mxu0
      %v517 = vpop.f32.mrb[0].mxu0
      %v518 = vadd.f32 %v273, %v517
      %v519 = vpop.f32.mrb[0].mxu0
      %520 = vmatprep.mubr.bf16.mxu0 %v314
      %521 = vmatmul.mubr.bf16.gmra.mrb[0].mxu0 %v313
      %v522 = vpop.f32.mrb[0].mxu0
      %v523 = vadd.f32 %v278, %v522
      %v524 = vpop.f32.mrb[0].mxu0
      %v525 = vpop.f32.mrb[0].mxu0
      %v526 = vadd.f32 %v283, %v525
      %v527 = vpop.f32.mrb[0].mxu0
      %528 = vdwg.mxu0
      %529 = vmatprep.subr.bf16.mxu0 0
      %530 = vmatpush1.bf16.msra.mxu0 %v439
      %531 = vmatprep.subr.bf16.mxu0 0
      %532 = vmatpush1.bf16.msra.mxu0 %v440
      %533 = vmatprep.subr.bf16.mxu0 0
      %534 = vmatpush1.bf16.msra.mxu0 %v441
      %535 = vmatprep.subr.bf16.mxu0 0
      %536 = vmatpush1.bf16.msra.mxu0 %v442
      %537 = vmatprep.subr.bf16.mxu0 0
      %538 = vmatpush1.bf16.msra.mxu0 %v443
      %539 = vmatprep.subr.bf16.mxu0 0
      %540 = vmatpush1.bf16.msra.mxu0 %v444
      %541 = vmatprep.subr.bf16.mxu0 0
      %542 = vmatpush1.bf16.msra.mxu0 %v445
      %543 = vmatprep.subr.bf16.mxu0 0
      %544 = vmatpush1.bf16.msra.mxu0 %v446
      %545 = vmatprep.subr.bf16.mxu0 0
      %546 = vmatpush1.bf16.msra.mxu0 %v447
      %547 = vmatprep.subr.bf16.mxu0 0
      %548 = vmatpush1.bf16.msra.mxu0 0
      %549 = vmatprep.subr.bf16.mxu0 0
      %550 = vmatpush1.bf16.msra.mxu0 0
      %551 = vmatprep.subr.bf16.mxu0 0
      %552 = vmatpush1.bf16.msra.mxu0 0
      %553 = vmatprep.subr.bf16.mxu0 0
      %554 = vmatpush1.bf16.msra.mxu0 0
      %555 = vmatprep.subr.bf16.mxu0 0
      %556 = vmatpush1.bf16.msra.mxu0 0
      %557 = vmatprep.subr.bf16.mxu0 0
      %558 = vmatpush1.bf16.msra.mxu0 0
      %559 = vmatprep.subr.bf16.mxu0 0
      %560 = vmatpush1.bf16.msra.mxu0 0
      %561 = vmatprep.mubr.bf16.mxu0 %v475
      %562 = vmatmul.mubr.bf16.gmra.mrb[0].mxu0 %v311
      %v563 = vpop.f32.mrb[0].mxu0
      %v564 = vadd.f32 %v515, %v563
      %v565 = vpop.f32.mrb[0].mxu0
      %v566 = vpop.f32.mrb[0].mxu0
      %v567 = vadd.f32 %v518, %v566
      %v568 = vpop.f32.mrb[0].mxu0
      %569 = vmatprep.mubr.bf16.mxu0 %v478
      %570 = vmatmul.mubr.bf16.gmra.mrb[0].mxu0 %v315
      %v571 = vpop.f32.mrb[0].mxu0
      %v572 = vadd.f32 %v523, %v571
      %v573 = vpop.f32.mrb[0].mxu0
      %v574 = vpop.f32.mrb[0].mxu0
      %v575 = vadd.f32 %v526, %v574
      %v576 = vpop.f32.mrb[0].mxu0
      %577 = vdwg.mxu0
      %vm578 = vcmask 523264
      %579 = vst.msk [vmem:[%s201] sm:$0xff] %vm578, %v564
      %580 = vst.msk [vmem:[%s201 + $0x8] sm:$0xff] %vm578, %v567
      %581 = vst.msk [vmem:[%s201 + $0x10] sm:$0xff] %vm578, %v572
      %582 = vst.msk [vmem:[%s201 + $0x18] sm:$0xff] %vm578, %v575
      %p583 = scmp.lt.s32.totalorder %s18, 1
      %s584 = scalar_select %p583, %s18, 1
      %p585 = scmp.lt.s32.totalorder %s19, 0
      %s586 = scalar_select %p585, %s19, 0
      %s587 = smul.addr %s584, 4
      %s588 = sadd.s32 %s586, %s587
      %s589 = smul.addr %s588, 8
      %s590 = scalar_lea.vmem %s3, %s589
      // Predicated region
      $region33: #{_lambda_.30} parent=31 // pred_check
        %p591 = pneg %p116
      $region34: #{_lambda_.30} parent=31 // pred_check_branch
        %593 = sbr.rel (%p591) target = $region36
      $region35: #{_lambda_.30} parent=31 // pred_region
        _
      $region36: #{_lambda_.30} parent=31 // pred_fallthru
        _
    $region32: #{_lambda_.30} parent=5 // pred_fallthru
      _
    %p594 = scmp.le.s32.totalorder 2, %s9
    // Predicated region
    $region37: #{_lambda_.30} parent=5 // pred_check
      %p595 = pneg %p594
    $region38: #{_lambda_.30} parent=5 // pred_check_branch
      %597 = sbr.rel (%p595) target = $region40
    $region39: #{_lambda_.30} parent=5 // pred_region
      %s598 = ssub.s32 %s9, 2
      // Predicated region
      $region41: #{_lambda_.30} parent=39 // pred_check
        %p599 = pneg %p122
      $region42: #{_lambda_.30} parent=39 // pred_check_branch
        %601 = sbr.rel (%p599) target = $region44
      $region43: #{_lambda_.30} parent=39 // pred_region
        %p602 = scmp.lt.s32.totalorder %s20, 1
        %s603 = scalar_select %p602, %s20, 1
        %p604 = scmp.lt.s32.totalorder %s21, 0
        %s605 = scalar_select %p604, %s21, 0
        %s606 = smul.addr %s603, 4
        %s607 = sadd.s32 %s605, %s606
        %s608 = smul.addr %s607, 8
        %s609 = scalar_lea.vmem %s3, %s608
      $region44: #{_lambda_.30} parent=39 // pred_fallthru
        _
    $region40: #{_lambda_.30} parent=5 // pred_fallthru
      _
  $region6: #{_lambda_.30} parent=0 // loop_footer
    %s13 = sadd.s32 1, %s9
  $region7: #{_lambda_.30} parent=0 // loop_footer_branch
    %8 = sbr.rel target = $region3
  $region8: #{_lambda_.30} parent=0 // loop_exit
    _

// kernel: _lambda_.31
$region0: #{_lambda_.31}
  #allocation0 [shape = 'u32[]', space=smem, size = 0x4, offset = 0x4, fixed_abs, tag = 'smem constant byte address 0x4 - core index']
  #allocation1 [shape = 'u32[144,128]{1,0:T(1,128)}', space=vmem, size = 0x12000, scoped, tag = 'internal scratch']
  %s0 = inlined_call_operand.vmem [shape: bf16[2,288,64], index: 0, kind: input, shape index: {}]
  %s1 = inlined_call_operand.vmem [shape: bf16[32,288], index: 1, kind: input, shape index: {}]
  %s2 = inlined_call_operand.vmem [shape: f32[32,1], index: 2, kind: input, shape index: {}]
  %s3 = inlined_call_operand.vmem [shape: f32[2,32,64], index: 3, kind: output, shape index: {}]
  %s4 = sld [smem:[#allocation0]]
  $region45: #{_lambda_.31} parent=0
    _
  %s6 = ssub.s32 1, %s4
  %s7 = scalar_select 0, %s6, %s4
  loop: start=0, step=1, limit=4
  $region2: #{_lambda_.31} parent=0 // loop_pre_header
    _
  $region3: #{_lambda_.31} parent=0 // loop_header
    %s9 = sphi 0, %s13
    %p10 = scmp.ge.s32.totalorder %s9, 4
    %s16 = sphi 0, %s28
    %s17 = sphi 0, %s24
    %s18 = sphi 0, %s16
    %s19 = sphi 0, %s17
    %s20 = sphi 0, %s18
    %s21 = sphi 0, %s19
    %s33 = sphi 0, %s35
    %s36 = sphi 0, %s33
    %s37 = sphi 0, %s36
    %s53 = sphi 0, %s37
    %s57 = sphi 0, %s57
    %s59 = sphi 0, %s57
    %s60 = sphi 0, %s59
    %s74 = sphi 0, %s60
    %s78 = sphi 0, %s78
    %s80 = sphi 0, %s78
    %s81 = sphi 0, %s80
    %s95 = sphi 0, %s81
    %s103 = sphi 0, %s105
    %s106 = sphi 0, %s103
    %s107 = sphi 0, %s106
    %s123 = sphi 0, %s107
  $region4: #{_lambda_.31} parent=0 // loop_header_branch
    %12 = sbr.rel (%p10) target = $region8
  $region5: #{_lambda_.31} parent=0 // loop_body
    %s14 = ssub.s32 %s9, 1
    %s15 = ssub.s32 %s9, 2
    %s22 = sadd.s32 1, %s17
    %p23 = scmp.ge.s32.totalorder %s22, 1
    %s24 = scalar_select %p23, 0, %s22
    %s25 = sadd.s32 1, %s16
    %s26 = scalar_select %p23, %s25, %s16
    %p27 = scmp.ge.s32.totalorder %s26, 2
    %s28 = scalar_select %p27, 0, %s26
    %s29 = ssub.s32 %s16, %s28
    %s30 = ssub.s32 %s17, %s24
    %s31 = sor.u32 %s29, %s30
    %p32 = scmp.eq.s32.totalorder %s31, 0
    %s34 = sadd.s32 %s33, 1
    %s35 = scalar_select %p32, %s33, %s34
    %p38 = pneg %p32
    %p39 = scmp.eq.s32.totalorder %s9, 1
    %p40 = por %p38, %p39
    %p41 = scmp.ne.s32.totalorder %s33, %s36
    %p42 = scmp.eq.s32.totalorder %s9, 0
    %p43 = por %p41, %p42
    %p44 = scmp.ne.s32.totalorder %s33, %s36
    %p45 = scmp.eq.s32.totalorder %s14, 1
    %p46 = por %p44, %p45
    %p47 = scmp.ne.s32.totalorder %s36, %s37
    %p48 = scmp.eq.s32.totalorder %s14, 0
    %p49 = por %p47, %p48
    %p50 = scmp.ne.s32.totalorder %s36, %s37
    %p51 = scmp.eq.s32.totalorder %s15, 1
    %p52 = por %p50, %p51
    %p54 = scmp.ne.s32.totalorder %s37, %s53
    %p55 = scmp.eq.s32.totalorder %s15, 0
    %p56 = por %p54, %p55
    %s58 = sadd.s32 %s57, 1
    %p61 = scmp.eq.s32.totalorder %s9, 1
    %p62 = scmp.ne.s32.totalorder %s57, %s59
    %p63 = scmp.eq.s32.totalorder %s9, 0
    %p64 = por %p62, %p63
    %p65 = scmp.ne.s32.totalorder %s57, %s59
    %p66 = scmp.eq.s32.totalorder %s14, 1
    %p67 = por %p65, %p66
    %p68 = scmp.ne.s32.totalorder %s59, %s60
    %p69 = scmp.eq.s32.totalorder %s14, 0
    %p70 = por %p68, %p69
    %p71 = scmp.ne.s32.totalorder %s59, %s60
    %p72 = scmp.eq.s32.totalorder %s15, 1
    %p73 = por %p71, %p72
    %p75 = scmp.ne.s32.totalorder %s60, %s74
    %p76 = scmp.eq.s32.totalorder %s15, 0
    %p77 = por %p75, %p76
    %s79 = sadd.s32 %s78, 1
    %p82 = scmp.eq.s32.totalorder %s9, 1
    %p83 = scmp.ne.s32.totalorder %s78, %s80
    %p84 = scmp.eq.s32.totalorder %s9, 0
    %p85 = por %p83, %p84
    %p86 = scmp.ne.s32.totalorder %s78, %s80
    %p87 = scmp.eq.s32.totalorder %s14, 1
    %p88 = por %p86, %p87
    %p89 = scmp.ne.s32.totalorder %s80, %s81
    %p90 = scmp.eq.s32.totalorder %s14, 0
    %p91 = por %p89, %p90
    %p92 = scmp.ne.s32.totalorder %s80, %s81
    %p93 = scmp.eq.s32.totalorder %s15, 1
    %p94 = por %p92, %p93
    %p96 = scmp.ne.s32.totalorder %s81, %s95
    %p97 = scmp.eq.s32.totalorder %s15, 0
    %p98 = por %p96, %p97
    %s99 = ssub.s32 %s16, %s28
    %s100 = ssub.s32 %s17, %s24
    %s101 = sor.u32 %s99, %s100
    %p102 = scmp.eq.s32.totalorder %s101, 0
    %s104 = sadd.s32 %s103, 1
    %s105 = scalar_select %p102, %s103, %s104
    %p108 = pneg %p102
    %p109 = scmp.eq.s32.totalorder %s9, 1
    %p110 = por %p108, %p109
    %p111 = scmp.ne.s32.totalorder %s103, %s106
    %p112 = scmp.eq.s32.totalorder %s9, 0
    %p113 = por %p111, %p112
    %p114 = scmp.ne.s32.totalorder %s103, %s106
    %p115 = scmp.eq.s32.totalorder %s14, 1
    %p116 = por %p114, %p115
    %p117 = scmp.ne.s32.totalorder %s106, %s107
    %p118 = scmp.eq.s32.totalorder %s14, 0
    %p119 = por %p117, %p118
    %p120 = scmp.ne.s32.totalorder %s106, %s107
    %p121 = scmp.eq.s32.totalorder %s15, 1
    %p122 = por %p120, %p121
    %p124 = scmp.ne.s32.totalorder %s107, %s123
    %p125 = scmp.eq.s32.totalorder %s15, 0
    %p126 = por %p124, %p125
    %p127 = scmp.le.s32.totalorder 1, %s9
    %p128 = scmp.lt.s32.totalorder %s9, 3
    %p129 = pnand %p127, %p128
    %p130 = pneg %p129
    // Predicated region
    $region9: #{_lambda_.31} parent=5 // pred_check
      _
    $region10: #{_lambda_.31} parent=5 // pred_check_branch
      %132 = sbr.rel (%p129) target = $region12
    $region11: #{_lambda_.31} parent=5 // pred_region
      %s133 = ssub.s32 %s9, 1
      // Predicated region
      $region13: #{_lambda_.31} parent=11 // pred_check
        %p134 = pneg %p70
      $region14: #{_lambda_.31} parent=11 // pred_check_branch
        %136 = sbr.rel (%p134) target = $region16
      $region15: #{_lambda_.31} parent=11 // pred_region
        _
      $region16: #{_lambda_.31} parent=11 // pred_fallthru
        _
      // Predicated region
      $region17: #{_lambda_.31} parent=11 // pred_check
        %p137 = pneg %p91
      $region18: #{_lambda_.31} parent=11 // pred_check_branch
        %139 = sbr.rel (%p137) target = $region20
      $region19: #{_lambda_.31} parent=11 // pred_region
        _
      $region20: #{_lambda_.31} parent=11 // pred_fallthru
        _
    $region12: #{_lambda_.31} parent=5 // pred_fallthru
      _
    %p140 = scmp.lt.s32.totalorder %s9, 2
    // Predicated region
    $region21: #{_lambda_.31} parent=5 // pred_check
      %p141 = pneg %p140
    $region22: #{_lambda_.31} parent=5 // pred_check_branch
      %143 = sbr.rel (%p141) target = $region24
    $region23: #{_lambda_.31} parent=5 // pred_region
      // Predicated region
      $region25: #{_lambda_.31} parent=23 // pred_check
        %p144 = pneg %p43
      $region26: #{_lambda_.31} parent=23 // pred_check_branch
        %146 = sbr.rel (%p144) target = $region28
      $region27: #{_lambda_.31} parent=23 // pred_region
        %p147 = scmp.lt.s32.totalorder %s16, 1
        %s148 = scalar_select %p147, %s16, 1
        %p149 = scmp.lt.s32.totalorder %s17, 0
        %s150 = scalar_select %p149, %s17, 0
        %s151 = smul.addr %s148, 36
        %s152 = sadd.s32 %s150, %s151
        %s153 = smul.addr %s152, 4
        %s154 = scalar_lea.vmem %s0, %s153
      $region28: #{_lambda_.31} parent=23 // pred_fallthru
        _
    $region24: #{_lambda_.31} parent=5 // pred_fallthru
      _
    %p155 = scmp.le.s32.totalorder 1, %s9
    %p156 = scmp.lt.s32.totalorder %s9, 3
    %p157 = pnand %p155, %p156
    %p158 = pneg %p157
    // Predicated region
    $region29: #{_lambda_.31} parent=5 // pred_check
      _
    $region30: #{_lambda_.31} parent=5 // pred_check_branch
      %160 = sbr.rel (%p157) target = $region32
    $region31: #{_lambda_.31} parent=5 // pred_region
      %s161 = ssub.s32 %s9, 1
      %p162 = scmp.lt.s32.totalorder %s18, 1
      %s163 = scalar_select %p162, %s18, 1
      %p164 = scmp.lt.s32.totalorder %s19, 0
      %s165 = scalar_select %p164, %s19, 0
      %s166 = smul.addr %s163, 36
      %s167 = sadd.s32 %s165, %s166
      %s168 = smul.addr %s167, 4
      %s169 = scalar_lea.vmem %s0, %s168
      %p170 = pneg %p49
      %p171 = pneg %p46
      %p172 = pneg %p70
      %p173 = pneg %p67
      %p174 = pneg %p91
      %p175 = pneg %p88
      %p176 = pneg %p119
      %p177 = pneg %p116
      %p178 = scmp.lt.s32.totalorder %s18, 1
      %s179 = scalar_select %p178, %s18, 1
      %p180 = scmp.lt.s32.totalorder %s19, 0
      %s181 = scalar_select %p180, %s19, 0
      %s182 = smul.addr %s179, 4
      %s183 = sadd.s32 %s181, %s182
      %s184 = smul.addr %s183, 8
      %s185 = scalar_lea.vmem %s3, %s184
      %p186 = scmp.lt.s32.totalorder %s18, 1
      %s187 = scalar_select %p186, %s18, 1
      %p188 = scmp.lt.s32.totalorder %s19, 0
      %s189 = scalar_select %p188, %s19, 0
      %s190 = smul.addr %s187, 36
      %s191 = sadd.s32 %s189, %s190
      %s192 = smul.addr %s191, 4
      %s193 = scalar_lea.vmem %s0, %s192
      %p194 = scmp.lt.s32.totalorder %s18, 1
      %s195 = scalar_select %p194, %s18, 1
      %p196 = scmp.lt.s32.totalorder %s19, 0
      %s197 = scalar_select %p196, %s19, 0
      %s198 = smul.addr %s195, 4
      %s199 = sadd.s32 %s197, %s198
      %s200 = smul.addr %s199, 8
      %s201 = scalar_lea.vmem %s3, %s200
      %v203 = vld [vmem:[%s1] sm:$0xff]
      %v204 = vld [vmem:[%s1 + $0x8] sm:$0xf]
      %v205 = vld [vmem:[%s1 + $0xc] sm:$0xff]
      %v206 = vld [vmem:[%s1 + $0x14] sm:$0xf]
      %v207 = vld [vmem:[%s1 + $0x18] sm:$0xff]
      %v208 = vld [vmem:[%s1 + $0x20] sm:$0xf]
      %v209 = vld [vmem:[%s1 + $0x24] sm:$0xff]
      %v210 = vld [vmem:[%s1 + $0x2c] sm:$0xf]
      %v211 = vld [vmem:[%s193] sm:$0xf]
      %v212 = vld [vmem:[%s193 + $0x4] sm:$0xf]
      %v213 = vld [vmem:[%s193 + $0x8] sm:$0xf]
      %v214 = vld [vmem:[%s193 + $0xc] sm:$0xf]
      %v215 = vld [vmem:[%s193 + $0x10] sm:$0xf]
      %v216 = vld [vmem:[%s193 + $0x14] sm:$0xf]
      %v217 = vld [vmem:[%s193 + $0x18] sm:$0xf]
      %v218 = vld [vmem:[%s193 + $0x1c] sm:$0xf]
      %v219 = vld [vmem:[%s193 + $0x20] sm:$0xf]
      %v220 = vld [vmem:[%s193 + $0x24] sm:$0xf]
      %v221 = vld [vmem:[%s193 + $0x28] sm:$0xf]
      %v222 = vld [vmem:[%s193 + $0x2c] sm:$0xf]
      %v223 = vld [vmem:[%s193 + $0x30] sm:$0xf]
      %v224 = vld [vmem:[%s193 + $0x34] sm:$0xf]
      %v225 = vld [vmem:[%s193 + $0x38] sm:$0xf]
      %v226 = vld [vmem:[%s193 + $0x3c] sm:$0xf]
      %v227 = vld [vmem:[%s193 + $0x40] sm:$0xf]
      %v228 = vld [vmem:[%s193 + $0x44] sm:$0xf]
      %v229 = vld [vmem:[%s193 + $0x48] sm:$0xf]
      %v230 = vld [vmem:[%s193 + $0x4c] sm:$0xf]
      %v231 = vld [vmem:[%s193 + $0x50] sm:$0xf]
      %v232 = vld [vmem:[%s193 + $0x54] sm:$0xf]
      %v233 = vld [vmem:[%s193 + $0x58] sm:$0xf]
      %v234 = vld [vmem:[%s193 + $0x5c] sm:$0xf]
      %v235 = vld [vmem:[%s193 + $0x60] sm:$0xf]
      %v236 = vld [vmem:[%s193 + $0x64] sm:$0xf]
      %v237 = vld [vmem:[%s193 + $0x68] sm:$0xf]
      %v238 = vld [vmem:[%s193 + $0x6c] sm:$0xf]
      %v239 = vld [vmem:[%s193 + $0x70] sm:$0xf]
      %v240 = vld [vmem:[%s193 + $0x74] sm:$0xf]
      %v241 = vld [vmem:[%s193 + $0x78] sm:$0xf]
      %v242 = vld [vmem:[%s193 + $0x7c] sm:$0xf]
      %v243 = vld [vmem:[%s193 + $0x80] sm:$0xf]
      %v244 = vld [vmem:[%s193 + $0x84] sm:$0xf]
      %v245 = vld [vmem:[%s193 + $0x88] sm:$0xf]
      %v246 = vld [vmem:[%s193 + $0x8c] sm:$0xf]
      %v247 = vld [vmem:[%s2] sm:$0xff]
      %v248 = vld [vmem:[%s2 + $0x8] sm:$0xff]
      %v249 = vld [vmem:[%s2 + $0x10] sm:$0xff]
      %v250 = vld [vmem:[%s2 + $0x18] sm:$0xff]
      %252 = vset.pattern.permute.xlu0 0
      %253 = vperm.xlu0 %252, %v247
      %v254 = vpop.permute.xlu0 %253
      %257 = vset.pattern.permute.xlu0 0
      %258 = vperm.xlu0 %257, %v248
      %v259 = vpop.permute.xlu0 %258
      %262 = vset.pattern.permute.xlu0 0
      %263 = vperm.xlu0 %262, %v249
      %v264 = vpop.permute.xlu0 %263
      %267 = vset.pattern.permute.xlu0 0
      %268 = vperm.xlu0 %267, %v250
      %v269 = vpop.permute.xlu0 %268
      %v279 = vunpack.c.l.b16 %v203
      %v280 = vunpack.c.h.b16 %v203
      %v281 = vunpack.c.l.b16 %v204
      %v282 = vunpack.c.l.b16 %v205
      %v283 = vunpack.c.h.b16 %v205
      %v284 = vunpack.c.l.b16 %v206
      %v285 = vunpack.c.l.b16 %v207
      %v286 = vunpack.c.h.b16 %v207
      %v287 = vunpack.c.l.b16 %v208
      %v288 = vunpack.c.l.b16 %v209
      %v289 = vunpack.c.h.b16 %v209
      %v290 = vunpack.c.l.b16 %v210
      %v291 = vpack.c.b16 %v282, %v279
      %v292 = vpack.c.b16 %v283, %v280
      %v293 = vpack.c.b16 %v284, %v281
      %v294 = vpack.c.b16 %v288, %v285
      %v295 = vpack.c.b16 %v289, %v286
      %v296 = vpack.c.b16 %v290, %v287
      %v337 = vunpack.c.l.b16 %v211
      %v338 = vunpack.c.l.b16 %v212
      %v339 = vunpack.c.l.b16 %v213
      %v340 = vunpack.c.l.b16 %v214
      %v341 = vunpack.c.l.b16 %v215
      %v342 = vunpack.c.l.b16 %v216
      %v343 = vunpack.c.l.b16 %v217
      %v344 = vunpack.c.l.b16 %v218
      %v345 = vunpack.c.l.b16 %v219
      %v346 = vunpack.c.l.b16 %v220
      %v347 = vunpack.c.l.b16 %v221
      %v348 = vunpack.c.l.b16 %v222
      %v349 = vunpack.c.l.b16 %v223
      %v350 = vunpack.c.l.b16 %v224
      %v351 = vunpack.c.l.b16 %v225
      %v352 = vunpack.c.l.b16 %v226
      %v353 = vunpack.c.l.b16 %v227
      %v354 = vunpack.c.l.b16 %v228
      %v355 = vunpack.c.l.b16 %v229
      %v356 = vunpack.c.l.b16 %v230
      %v357 = vunpack.c.l.b16 %v231
      %v358 = vunpack.c.l.b16 %v232
      %v359 = vunpack.c.l.b16 %v233
      %v360 = vunpack.c.l.b16 %v234
      %v361 = vunpack.c.l.b16 %v235
      %v362 = vunpack.c.l.b16 %v236
      %v363 = vunpack.c.l.b16 %v237
      %v364 = vunpack.c.l.b16 %v238
      %v365 = vunpack.c.l.b16 %v239
      %v366 = vunpack.c.l.b16 %v240
      %v367 = vunpack.c.l.b16 %v241
      %v368 = vunpack.c.l.b16 %v242
      %v369 = vunpack.c.l.b16 %v243
      %v370 = vunpack.c.l.b16 %v244
      %v371 = vunpack.c.l.b16 %v245
      %v372 = vunpack.c.l.b16 %v246
      %v373 = vpack.c.b16 %v338, %v337
      %v374 = vpack.c.b16 %v340, %v339
      %v375 = vpack.c.b16 %v342, %v341
      %v376 = vpack.c.b16 %v344, %v343
      %v377 = vpack.c.b16 %v346, %v345
      %v378 = vpack.c.b16 %v348, %v347
      %v379 = vpack.c.b16 %v350, %v349
      %v380 = vpack.c.b16 %v352, %v351
      %v381 = vpack.c.b16 %v354, %v353
      %v382 = vpack.c.b16 %v356, %v355
      %v383 = vpack.c.b16 %v358, %v357
      %v384 = vpack.c.b16 %v360, %v359
      %v385 = vpack.c.b16 %v362, %v361
      %v386 = vpack.c.b16 %v364, %v363
      %v387 = vpack.c.b16 %v366, %v365
      %v388 = vpack.c.b16 %v368, %v367
      %v389 = vpack.c.b16 %v370, %v369
      %v390 = vpack.c.b16 %v372, %v371
      %vm409 = vcmask 261120
      %v411 = vsel %vm409, %v293, 0
      %v414 = vsel %vm409, %v296, 0
      %416 = vmatprep.subr.bf16.mxu0 0
      %417 = vmatpush1.bf16.msra.mxu0 %v373
      %418 = vmatprep.subr.bf16.mxu0 0
      %419 = vmatpush1.bf16.msra.mxu0 %v374
      %420 = vmatprep.subr.bf16.mxu0 0
      %421 = vmatpush1.bf16.msra.mxu0 %v375
      %422 = vmatprep.subr.bf16.mxu0 0
      %423 = vmatpush1.bf16.msra.mxu0 %v376
      %424 = vmatprep.subr.bf16.mxu0 0
      %425 = vmatpush1.bf16.msra.mxu0 %v377
      %426 = vmatprep.subr.bf16.mxu0 0
      %427 = vmatpush1.bf16.msra.mxu0 %v378
      %428 = vmatprep.subr.bf16.mxu0 0
      %429 = vmatpush1.bf16.msra.mxu0 %v379
      %430 = vmatprep.subr.bf16.mxu0 0
      %431 = vmatpush1.bf16.msra.mxu0 %v380
      %432 = vmatprep.subr.bf16.mxu0 0
      %433 = vmatpush1.bf16.msra.mxu0 %v381
      %434 = vmatprep.subr.bf16.mxu0 0
      %435 = vmatpush1.bf16.msra.mxu0 %v382
      %436 = vmatprep.subr.bf16.mxu0 0
      %437 = vmatpush1.bf16.msra.mxu0 %v383
      %438 = vmatprep.subr.bf16.mxu0 0
      %439 = vmatpush1.bf16.msra.mxu0 %v384
      %440 = vmatprep.subr.bf16.mxu0 0
      %441 = vmatpush1.bf16.msra.mxu0 %v385
      %442 = vmatprep.subr.bf16.mxu0 0
      %443 = vmatpush1.bf16.msra.mxu0 %v386
      %444 = vmatprep.subr.bf16.mxu0 0
      %445 = vmatpush1.bf16.msra.mxu0 %v387
      %446 = vmatprep.subr.bf16.mxu0 0
      %447 = vmatpush1.bf16.msra.mxu0 %v388
      %448 = vmatprep.mubr.bf16.mxu0 %v292
      %449 = vmatmul.mubr.bf16.gmra.mrb[0].mxu0 %v291
      %v450 = vpop.f32.mrb[0].mxu0
      %v451 = vadd.f32 %v254, %v450
      %v452 = vpop.f32.mrb[0].mxu0
      %v453 = vpop.f32.mrb[0].mxu0
      %v454 = vadd.f32 %v259, %v453
      %v455 = vpop.f32.mrb[0].mxu0
      %456 = vmatprep.mubr.bf16.mxu0 %v295
      %457 = vmatmul.mubr.bf16.gmra.mrb[0].mxu0 %v294
      %v458 = vpop.f32.mrb[0].mxu0
      %v459 = vadd.f32 %v264, %v458
      %v460 = vpop.f32.mrb[0].mxu0
      %v461 = vpop.f32.mrb[0].mxu0
      %v462 = vadd.f32 %v269, %v461
      %v463 = vpop.f32.mrb[0].mxu0
      %464 = vdwg.mxu0
      %465 = vmatprep.subr.bf16.mxu0 0
      %466 = vmatpush1.bf16.msra.mxu0 %v389
      %467 = vmatprep.subr.bf16.mxu0 0
      %468 = vmatpush1.bf16.msra.mxu0 %v390
      %469 = vmatprep.subr.bf16.mxu0 0
      %470 = vmatpush1.bf16.msra.mxu0 0
      %471 = vmatprep.subr.bf16.mxu0 0
      %472 = vmatpush1.bf16.msra.mxu0 0
      %473 = vmatprep.subr.bf16.mxu0 0
      %474 = vmatpush1.bf16.msra.mxu0 0
      %475 = vmatprep.subr.bf16.mxu0 0
      %476 = vmatpush1.bf16.msra.mxu0 0
      %477 = vmatprep.subr.bf16.mxu0 0
      %478 = vmatpush1.bf16.msra.mxu0 0
      %479 = vmatprep.subr.bf16.mxu0 0
      %480 = vmatpush1.bf16.msra.mxu0 0
      %481 = vmatprep.subr.bf16.mxu0 0
      %482 = vmatpush1.bf16.msra.mxu0 0
      %483 = vmatprep.subr.bf16.mxu0 0
      %484 = vmatpush1.bf16.msra.mxu0 0
      %485 = vmatprep.subr.bf16.mxu0 0
      %486 = vmatpush1.bf16.msra.mxu0 0
      %487 = vmatprep.subr.bf16.mxu0 0
      %488 = vmatpush1.bf16.msra.mxu0 0
      %489 = vmatprep.subr.bf16.mxu0 0
      %490 = vmatpush1.bf16.msra.mxu0 0
      %491 = vmatprep.subr.bf16.mxu0 0
      %492 = vmatpush1.bf16.msra.mxu0 0
      %493 = vmatprep.subr.bf16.mxu0 0
      %494 = vmatpush1.bf16.msra.mxu0 0
      %495 = vmatprep.subr.bf16.mxu0 0
      %496 = vmatpush1.bf16.msra.mxu0 0
      %497 = vmatprep.mubr.bf16.mxu0 0
      %498 = vmatmul.mubr.bf16.gmra.mrb[0].mxu0 %v411
      %v499 = vpop.f32.mrb[0].mxu0
      %v500 = vadd.f32 %v451, %v499
      %v501 = vpop.f32.mrb[0].mxu0
      %v502 = vpop.f32.mrb[0].mxu0
      %v503 = vadd.f32 %v454, %v502
      %v504 = vpop.f32.mrb[0].mxu0
      %505 = vmatprep.mubr.bf16.mxu0 0
      %506 = vmatmul.mubr.bf16.gmra.mrb[0].mxu0 %v414
      %v507 = vpop.f32.mrb[0].mxu0
      %v508 = vadd.f32 %v459, %v507
      %v509 = vpop.f32.mrb[0].mxu0
      %v510 = vpop.f32.mrb[0].mxu0
      %v511 = vadd.f32 %v462, %v510
      %v512 = vpop.f32.mrb[0].mxu0
      %513 = vdwg.mxu0
      %vm514 = vcmask 523264
      %515 = vst.msk [vmem:[%s201] sm:$0xff] %vm514, %v500
      %516 = vst.msk [vmem:[%s201 + $0x8] sm:$0xff] %vm514, %v503
      %517 = vst.msk [vmem:[%s201 + $0x10] sm:$0xff] %vm514, %v508
      %518 = vst.msk [vmem:[%s201 + $0x18] sm:$0xff] %vm514, %v511
      %p519 = scmp.lt.s32.totalorder %s18, 1
      %s520 = scalar_select %p519, %s18, 1
      %p521 = scmp.lt.s32.totalorder %s19, 0
      %s522 = scalar_select %p521, %s19, 0
      %s523 = smul.addr %s520, 4
      %s524 = sadd.s32 %s522, %s523
      %s525 = smul.addr %s524, 8
      %s526 = scalar_lea.vmem %s3, %s525
      // Predicated region
      $region33: #{_lambda_.31} parent=31 // pred_check
        %p527 = pneg %p116
      $region34: #{_lambda_.31} parent=31 // pred_check_branch
        %529 = sbr.rel (%p527) target = $region36
      $region35: #{_lambda_.31} parent=31 // pred_region
        _
      $region36: #{_lambda_.31} parent=31 // pred_fallthru
        _
    $region32: #{_lambda_.31} parent=5 // pred_fallthru
      _
    %p530 = scmp.le.s32.totalorder 2, %s9
    // Predicated region
    $region37: #{_lambda_.31} parent=5 // pred_check
      %p531 = pneg %p530
    $region38: #{_lambda_.31} parent=5 // pred_check_branch
      %533 = sbr.rel (%p531) target = $region40
    $region39: #{_lambda_.31} parent=5 // pred_region
      %s534 = ssub.s32 %s9, 2
      // Predicated region
      $region41: #{_lambda_.31} parent=39 // pred_check
        %p535 = pneg %p122
      $region42: #{_lambda_.31} parent=39 // pred_check_branch
        %537 = sbr.rel (%p535) target = $region44
      $region43: #{_lambda_.31} parent=39 // pred_region
        %p538 = scmp.lt.s32.totalorder %s20, 1
        %s539 = scalar_select %p538, %s20, 1
        %p540 = scmp.lt.s32.totalorder %s21, 0
        %s541 = scalar_select %p540, %s21, 0
        %s542 = smul.addr %s539, 4
        %s543 = sadd.s32 %s541, %s542
        %s544 = smul.addr %s543, 8
        %s545 = scalar_lea.vmem %s3, %s544
      $region44: #{_lambda_.31} parent=39 // pred_fallthru
        _
    $region40: #{_lambda_.31} parent=5 // pred_fallthru
      _
  $region6: #{_lambda_.31} parent=0 // loop_footer
    %s13 = sadd.s32 1, %s9
  $region7: #{_lambda_.31} parent=0 // loop_footer_branch
    %8 = sbr.rel target = $region3
  $region8: #{_lambda_.31} parent=0 // loop_exit
    _

// kernel: _lambda_.33
$region0: #{_lambda_.33}
  #allocation0 [shape = 'u32[]', space=smem, size = 0x4, offset = 0x4, fixed_abs, tag = 'smem constant byte address 0x4 - core index']
  #allocation1 [shape = 'u32[144,128]{1,0:T(1,128)}', space=vmem, size = 0x12000, scoped, tag = 'internal scratch']
  %s0 = inlined_call_operand.vmem [shape: bf16[128,32], index: 0, kind: input, shape index: {}]
  %s1 = inlined_call_operand.vmem [shape: bf16[32,96], index: 1, kind: input, shape index: {}]
  %s2 = inlined_call_operand.vmem [shape: f32[128,96], index: 2, kind: output, shape index: {}]
  %s3 = sld [smem:[#allocation0]]
  $region18: #{_lambda_.33} parent=0
    _
  %s5 = ssub.s32 1, %s3
  %s6 = scalar_select 0, %s5, %s3
  // Predicated region
  $region2: #{_lambda_.33} parent=0 // pred_check
    _
  $region3: #{_lambda_.33} parent=0 // pred_check_branch
    %8 = sbr.rel (0) target = $region5
  $region4: #{_lambda_.33} parent=0 // pred_region
    _
  $region5: #{_lambda_.33} parent=0 // pred_fallthru
    _
  // Predicated region
  $region6: #{_lambda_.33} parent=0 // pred_check
    _
  $region7: #{_lambda_.33} parent=0 // pred_check_branch
    %10 = sbr.rel (0) target = $region9
  $region8: #{_lambda_.33} parent=0 // pred_region
    _
  $region9: #{_lambda_.33} parent=0 // pred_fallthru
    _
  %v12 = vld [vmem:[%s0] sm:$0xf]
  %v13 = vld [vmem:[%s0 + $0x4] sm:$0xf]
  %v14 = vld [vmem:[%s0 + $0x8] sm:$0xf]
  %v15 = vld [vmem:[%s0 + $0xc] sm:$0xf]
  %v16 = vld [vmem:[%s0 + $0x10] sm:$0xf]
  %v17 = vld [vmem:[%s0 + $0x14] sm:$0xf]
  %v18 = vld [vmem:[%s0 + $0x18] sm:$0xf]
  %v19 = vld [vmem:[%s0 + $0x1c] sm:$0xf]
  %v20 = vld [vmem:[%s0 + $0x20] sm:$0xf]
  %v21 = vld [vmem:[%s0 + $0x24] sm:$0xf]
  %v22 = vld [vmem:[%s0 + $0x28] sm:$0xf]
  %v23 = vld [vmem:[%s0 + $0x2c] sm:$0xf]
  %v24 = vld [vmem:[%s0 + $0x30] sm:$0xf]
  %v25 = vld [vmem:[%s0 + $0x34] sm:$0xf]
  %v26 = vld [vmem:[%s0 + $0x38] sm:$0xf]
  %v27 = vld [vmem:[%s0 + $0x3c] sm:$0xf]
  %v28 = vld [vmem:[%s1] sm:$0xf]
  %v29 = vld [vmem:[%s1 + $0x4] sm:$0xf]
  %v30 = vld [vmem:[%s1 + $0x8] sm:$0xf]
  %v31 = vld [vmem:[%s1 + $0xc] sm:$0xf]
  %v48 = vunpack.c.l.b16 %v12
  %v49 = vunpack.c.l.b16 %v13
  %v50 = vunpack.c.l.b16 %v14
  %v51 = vunpack.c.l.b16 %v15
  %v52 = vunpack.c.l.b16 %v16
  %v53 = vunpack.c.l.b16 %v17
  %v54 = vunpack.c.l.b16 %v18
  %v55 = vunpack.c.l.b16 %v19
  %v56 = vunpack.c.l.b16 %v20
  %v57 = vunpack.c.l.b16 %v21
  %v58 = vunpack.c.l.b16 %v22
  %v59 = vunpack.c.l.b16 %v23
  %v60 = vunpack.c.l.b16 %v24
  %v61 = vunpack.c.l.b16 %v25
  %v62 = vunpack.c.l.b16 %v26
  %v63 = vunpack.c.l.b16 %v27
  %v64 = vpack.c.b16 %v49, %v48
  %v65 = vpack.c.b16 %v51, %v50
  %v66 = vpack.c.b16 %v53, %v52
  %v67 = vpack.c.b16 %v55, %v54
  %v68 = vpack.c.b16 %v57, %v56
  %v69 = vpack.c.b16 %v59, %v58
  %v70 = vpack.c.b16 %v61, %v60
  %v71 = vpack.c.b16 %v63, %v62
  %v76 = vunpack.c.l.b16 %v28
  %v77 = vunpack.c.l.b16 %v29
  %v78 = vunpack.c.l.b16 %v30
  %v79 = vunpack.c.l.b16 %v31
  %v80 = vpack.c.b16 %v77, %v76
  %v81 = vpack.c.b16 %v79, %v78
  %vm84 = vcmask 261120
  %v86 = vsel %vm84, %v64, 0
  %v89 = vsel %vm84, %v65, 0
  %v92 = vsel %vm84, %v66, 0
  %v95 = vsel %vm84, %v67, 0
  %v98 = vsel %vm84, %v68, 0
  %v101 = vsel %vm84, %v69, 0
  %v104 = vsel %vm84, %v70, 0
  %v107 = vsel %vm84, %v71, 0
  %109 = vmatprep.subr.bf16.mxu0 0
  %110 = vmatpush1.bf16.msra.mxu0 %v80
  %111 = vmatprep.subr.bf16.mxu0 0
  %112 = vmatpush1.bf16.msra.mxu0 %v81
  %113 = vmatprep.subr.bf16.mxu0 0
  %114 = vmatpush1.bf16.msra.mxu0 0
  %115 = vmatprep.subr.bf16.mxu0 0
  %116 = vmatpush1.bf16.msra.mxu0 0
  %117 = vmatprep.subr.bf16.mxu0 0
  %118 = vmatpush1.bf16.msra.mxu0 0
  %119 = vmatprep.subr.bf16.mxu0 0
  %120 = vmatpush1.bf16.msra.mxu0 0
  %121 = vmatprep.subr.bf16.mxu0 0
  %122 = vmatpush1.bf16.msra.mxu0 0
  %123 = vmatprep.subr.bf16.mxu0 0
  %124 = vmatpush1.bf16.msra.mxu0 0
  %125 = vmatprep.subr.bf16.mxu0 0
  %126 = vmatpush1.bf16.msra.mxu0 0
  %127 = vmatprep.subr.bf16.mxu0 0
  %128 = vmatpush1.bf16.msra.mxu0 0
  %129 = vmatprep.subr.bf16.mxu0 0
  %130 = vmatpush1.bf16.msra.mxu0 0
  %131 = vmatprep.subr.bf16.mxu0 0
  %132 = vmatpush1.bf16.msra.mxu0 0
  %133 = vmatprep.subr.bf16.mxu0 0
  %134 = vmatpush1.bf16.msra.mxu0 0
  %135 = vmatprep.subr.bf16.mxu0 0
  %136 = vmatpush1.bf16.msra.mxu0 0
  %137 = vmatprep.subr.bf16.mxu0 0
  %138 = vmatpush1.bf16.msra.mxu0 0
  %139 = vmatprep.subr.bf16.mxu0 0
  %140 = vmatpush1.bf16.msra.mxu0 0
  %141 = vmatprep.mubr.bf16.mxu0 0
  %142 = vmatmul.mubr.bf16.gmra.mrb[0].mxu0 %v86
  %v143 = vpop.f32.mrb[0].mxu0
  %v144 = vadd.f32 0.0, %v143
  %v145 = vpop.f32.mrb[0].mxu0
  %v146 = vpop.f32.mrb[0].mxu0
  %v147 = vadd.f32 0.0, %v146
  %v148 = vpop.f32.mrb[0].mxu0
  %149 = vmatprep.mubr.bf16.mxu0 0
  %150 = vmatmul.mubr.bf16.gmra.mrb[0].mxu0 %v89
  %v151 = vpop.f32.mrb[0].mxu0
  %v152 = vadd.f32 0.0, %v151
  %v153 = vpop.f32.mrb[0].mxu0
  %v154 = vpop.f32.mrb[0].mxu0
  %v155 = vadd.f32 0.0, %v154
  %v156 = vpop.f32.mrb[0].mxu0
  %157 = vmatprep.mubr.bf16.mxu0 0
  %158 = vmatmul.mubr.bf16.gmra.mrb[0].mxu0 %v92
  %v159 = vpop.f32.mrb[0].mxu0
  %v160 = vadd.f32 0.0, %v159
  %v161 = vpop.f32.mrb[0].mxu0
  %v162 = vpop.f32.mrb[0].mxu0
  %v163 = vadd.f32 0.0, %v162
  %v164 = vpop.f32.mrb[0].mxu0
  %165 = vmatprep.mubr.bf16.mxu0 0
  %166 = vmatmul.mubr.bf16.gmra.mrb[0].mxu0 %v95
  %v167 = vpop.f32.mrb[0].mxu0
  %v168 = vadd.f32 0.0, %v167
  %v169 = vpop.f32.mrb[0].mxu0
  %v170 = vpop.f32.mrb[0].mxu0
  %v171 = vadd.f32 0.0, %v170
  %v172 = vpop.f32.mrb[0].mxu0
  %173 = vmatprep.mubr.bf16.mxu0 0
  %174 = vmatmul.mubr.bf16.gmra.mrb[0].mxu0 %v98
  %v175 = vpop.f32.mrb[0].mxu0
  %v176 = vadd.f32 0.0, %v175
  %v177 = vpop.f32.mrb[0].mxu0
  %v178 = vpop.f32.mrb[0].mxu0
  %v179 = vadd.f32 0.0, %v178
  %v180 = vpop.f32.mrb[0].mxu0
  %181 = vmatprep.mubr.bf16.mxu0 0
  %182 = vmatmul.mubr.bf16.gmra.mrb[0].mxu0 %v101
  %v183 = vpop.f32.mrb[0].mxu0
  %v184 = vadd.f32 0.0, %v183
  %v185 = vpop.f32.mrb[0].mxu0
  %v186 = vpop.f32.mrb[0].mxu0
  %v187 = vadd.f32 0.0, %v186
  %v188 = vpop.f32.mrb[0].mxu0
  %189 = vmatprep.mubr.bf16.mxu0 0
  %190 = vmatmul.mubr.bf16.gmra.mrb[0].mxu0 %v104
  %v191 = vpop.f32.mrb[0].mxu0
  %v192 = vadd.f32 0.0, %v191
  %v193 = vpop.f32.mrb[0].mxu0
  %v194 = vpop.f32.mrb[0].mxu0
  %v195 = vadd.f32 0.0, %v194
  %v196 = vpop.f32.mrb[0].mxu0
  %197 = vmatprep.mubr.bf16.mxu0 0
  %198 = vmatmul.mubr.bf16.gmra.mrb[0].mxu0 %v107
  %v199 = vpop.f32.mrb[0].mxu0
  %v200 = vadd.f32 0.0, %v199
  %v201 = vpop.f32.mrb[0].mxu0
  %v202 = vpop.f32.mrb[0].mxu0
  %v203 = vadd.f32 0.0, %v202
  %v204 = vpop.f32.mrb[0].mxu0
  %205 = vdwg.mxu0
  %vm206 = vcmask 785408
  %207 = vst.msk [vmem:[%s2] sm:$0xff] %vm206, %v144
  %208 = vst.msk [vmem:[%s2 + $0x8] sm:$0xff] %vm206, %v147
  %209 = vst.msk [vmem:[%s2 + $0x10] sm:$0xff] %vm206, %v152
  %210 = vst.msk [vmem:[%s2 + $0x18] sm:$0xff] %vm206, %v155
  %211 = vst.msk [vmem:[%s2 + $0x20] sm:$0xff] %vm206, %v160
  %212 = vst.msk [vmem:[%s2 + $0x28] sm:$0xff] %vm206, %v163
  %213 = vst.msk [vmem:[%s2 + $0x30] sm:$0xff] %vm206, %v168
  %214 = vst.msk [vmem:[%s2 + $0x38] sm:$0xff] %vm206, %v171
  %215 = vst.msk [vmem:[%s2 + $0x40] sm:$0xff] %vm206, %v176
  %216 = vst.msk [vmem:[%s2 + $0x48] sm:$0xff] %vm206, %v179
  %217 = vst.msk [vmem:[%s2 + $0x50] sm:$0xff] %vm206, %v184
  %218 = vst.msk [vmem:[%s2 + $0x58] sm:$0xff] %vm206, %v187
  %219 = vst.msk [vmem:[%s2 + $0x60] sm:$0xff] %vm206, %v192
  %220 = vst.msk [vmem:[%s2 + $0x68] sm:$0xff] %vm206, %v195
  %221 = vst.msk [vmem:[%s2 + $0x70] sm:$0xff] %vm206, %v200
  %222 = vst.msk [vmem:[%s2 + $0x78] sm:$0xff] %vm206, %v203
  // Predicated region
  $region10: #{_lambda_.33} parent=0 // pred_check
    _
  $region11: #{_lambda_.33} parent=0 // pred_check_branch
    %224 = sbr.rel (0) target = $region13
  $region12: #{_lambda_.33} parent=0 // pred_region
    _
  $region13: #{_lambda_.33} parent=0 // pred_fallthru
    _
  // Predicated region
  $region14: #{_lambda_.33} parent=0 // pred_check
    _
  $region15: #{_lambda_.33} parent=0 // pred_check_branch
    %226 = sbr.rel (0) target = $region17
  $region16: #{_lambda_.33} parent=0 // pred_region
    _
  $region17: #{_lambda_.33} parent=0 // pred_fallthru
    _

// kernel: _lambda_.35
$region0: #{_lambda_.35}
  #allocation0 [shape = 'u32[]', space=smem, size = 0x4, offset = 0x4, fixed_abs, tag = 'smem constant byte address 0x4 - core index']
  #allocation1 [shape = 'u32[144,128]{1,0:T(1,128)}', space=vmem, size = 0x12000, scoped, tag = 'internal scratch']
  %s0 = inlined_call_operand.vmem [shape: bf16[128,32], index: 0, kind: input, shape index: {}]
  %s1 = inlined_call_operand.vmem [shape: bf16[32,32], index: 1, kind: input, shape index: {}]
  %s2 = inlined_call_operand.vmem [shape: f32[128,32], index: 2, kind: output, shape index: {}]
  %s3 = sld [smem:[#allocation0]]
  $region18: #{_lambda_.35} parent=0
    _
  %s5 = ssub.s32 1, %s3
  %s6 = scalar_select 0, %s5, %s3
  // Predicated region
  $region2: #{_lambda_.35} parent=0 // pred_check
    _
  $region3: #{_lambda_.35} parent=0 // pred_check_branch
    %8 = sbr.rel (0) target = $region5
  $region4: #{_lambda_.35} parent=0 // pred_region
    _
  $region5: #{_lambda_.35} parent=0 // pred_fallthru
    _
  // Predicated region
  $region6: #{_lambda_.35} parent=0 // pred_check
    _
  $region7: #{_lambda_.35} parent=0 // pred_check_branch
    %10 = sbr.rel (0) target = $region9
  $region8: #{_lambda_.35} parent=0 // pred_region
    _
  $region9: #{_lambda_.35} parent=0 // pred_fallthru
    _
  %v12 = vld [vmem:[%s0] sm:$0xf]
  %v13 = vld [vmem:[%s0 + $0x4] sm:$0xf]
  %v14 = vld [vmem:[%s0 + $0x8] sm:$0xf]
  %v15 = vld [vmem:[%s0 + $0xc] sm:$0xf]
  %v16 = vld [vmem:[%s0 + $0x10] sm:$0xf]
  %v17 = vld [vmem:[%s0 + $0x14] sm:$0xf]
  %v18 = vld [vmem:[%s0 + $0x18] sm:$0xf]
  %v19 = vld [vmem:[%s0 + $0x1c] sm:$0xf]
  %v20 = vld [vmem:[%s0 + $0x20] sm:$0xf]
  %v21 = vld [vmem:[%s0 + $0x24] sm:$0xf]
  %v22 = vld [vmem:[%s0 + $0x28] sm:$0xf]
  %v23 = vld [vmem:[%s0 + $0x2c] sm:$0xf]
  %v24 = vld [vmem:[%s0 + $0x30] sm:$0xf]
  %v25 = vld [vmem:[%s0 + $0x34] sm:$0xf]
  %v26 = vld [vmem:[%s0 + $0x38] sm:$0xf]
  %v27 = vld [vmem:[%s0 + $0x3c] sm:$0xf]
  %v28 = vld [vmem:[%s1] sm:$0xf]
  %v29 = vld [vmem:[%s1 + $0x4] sm:$0xf]
  %v30 = vld [vmem:[%s1 + $0x8] sm:$0xf]
  %v31 = vld [vmem:[%s1 + $0xc] sm:$0xf]
  %v48 = vunpack.c.l.b16 %v12
  %v49 = vunpack.c.l.b16 %v13
  %v50 = vunpack.c.l.b16 %v14
  %v51 = vunpack.c.l.b16 %v15
  %v52 = vunpack.c.l.b16 %v16
  %v53 = vunpack.c.l.b16 %v17
  %v54 = vunpack.c.l.b16 %v18
  %v55 = vunpack.c.l.b16 %v19
  %v56 = vunpack.c.l.b16 %v20
  %v57 = vunpack.c.l.b16 %v21
  %v58 = vunpack.c.l.b16 %v22
  %v59 = vunpack.c.l.b16 %v23
  %v60 = vunpack.c.l.b16 %v24
  %v61 = vunpack.c.l.b16 %v25
  %v62 = vunpack.c.l.b16 %v26
  %v63 = vunpack.c.l.b16 %v27
  %v64 = vpack.c.b16 %v49, %v48
  %v65 = vpack.c.b16 %v51, %v50
  %v66 = vpack.c.b16 %v53, %v52
  %v67 = vpack.c.b16 %v55, %v54
  %v68 = vpack.c.b16 %v57, %v56
  %v69 = vpack.c.b16 %v59, %v58
  %v70 = vpack.c.b16 %v61, %v60
  %v71 = vpack.c.b16 %v63, %v62
  %v76 = vunpack.c.l.b16 %v28
  %v77 = vunpack.c.l.b16 %v29
  %v78 = vunpack.c.l.b16 %v30
  %v79 = vunpack.c.l.b16 %v31
  %v80 = vpack.c.b16 %v77, %v76
  %v81 = vpack.c.b16 %v79, %v78
  %vm84 = vcmask 261120
  %v86 = vsel %vm84, %v64, 0
  %v89 = vsel %vm84, %v65, 0
  %v92 = vsel %vm84, %v66, 0
  %v95 = vsel %vm84, %v67, 0
  %v98 = vsel %vm84, %v68, 0
  %v101 = vsel %vm84, %v69, 0
  %v104 = vsel %vm84, %v70, 0
  %v107 = vsel %vm84, %v71, 0
  %109 = vmatprep.subr.bf16.mxu0 0
  %110 = vmatpush1.bf16.msra.mxu0 %v80
  %111 = vmatprep.subr.bf16.mxu0 0
  %112 = vmatpush1.bf16.msra.mxu0 %v81
  %113 = vmatprep.subr.bf16.mxu0 0
  %114 = vmatpush1.bf16.msra.mxu0 0
  %115 = vmatprep.subr.bf16.mxu0 0
  %116 = vmatpush1.bf16.msra.mxu0 0
  %117 = vmatprep.subr.bf16.mxu0 0
  %118 = vmatpush1.bf16.msra.mxu0 0
  %119 = vmatprep.subr.bf16.mxu0 0
  %120 = vmatpush1.bf16.msra.mxu0 0
  %121 = vmatprep.subr.bf16.mxu0 0
  %122 = vmatpush1.bf16.msra.mxu0 0
  %123 = vmatprep.subr.bf16.mxu0 0
  %124 = vmatpush1.bf16.msra.mxu0 0
  %125 = vmatprep.subr.bf16.mxu0 0
  %126 = vmatpush1.bf16.msra.mxu0 0
  %127 = vmatprep.subr.bf16.mxu0 0
  %128 = vmatpush1.bf16.msra.mxu0 0
  %129 = vmatprep.subr.bf16.mxu0 0
  %130 = vmatpush1.bf16.msra.mxu0 0
  %131 = vmatprep.subr.bf16.mxu0 0
  %132 = vmatpush1.bf16.msra.mxu0 0
  %133 = vmatprep.subr.bf16.mxu0 0
  %134 = vmatpush1.bf16.msra.mxu0 0
  %135 = vmatprep.subr.bf16.mxu0 0
  %136 = vmatpush1.bf16.msra.mxu0 0
  %137 = vmatprep.subr.bf16.mxu0 0
  %138 = vmatpush1.bf16.msra.mxu0 0
  %139 = vmatprep.subr.bf16.mxu0 0
  %140 = vmatpush1.bf16.msra.mxu0 0
  %141 = vmatprep.mubr.bf16.mxu0 0
  %142 = vmatmul.mubr.bf16.gmra.mrb[0].mxu0 %v86
  %v143 = vpop.f32.mrb[0].mxu0
  %v144 = vadd.f32 0.0, %v143
  %v145 = vpop.f32.mrb[0].mxu0
  %v146 = vpop.f32.mrb[0].mxu0
  %v147 = vadd.f32 0.0, %v146
  %v148 = vpop.f32.mrb[0].mxu0
  %149 = vmatprep.mubr.bf16.mxu0 0
  %150 = vmatmul.mubr.bf16.gmra.mrb[0].mxu0 %v89
  %v151 = vpop.f32.mrb[0].mxu0
  %v152 = vadd.f32 0.0, %v151
  %v153 = vpop.f32.mrb[0].mxu0
  %v154 = vpop.f32.mrb[0].mxu0
  %v155 = vadd.f32 0.0, %v154
  %v156 = vpop.f32.mrb[0].mxu0
  %157 = vmatprep.mubr.bf16.mxu0 0
  %158 = vmatmul.mubr.bf16.gmra.mrb[0].mxu0 %v92
  %v159 = vpop.f32.mrb[0].mxu0
  %v160 = vadd.f32 0.0, %v159
  %v161 = vpop.f32.mrb[0].mxu0
  %v162 = vpop.f32.mrb[0].mxu0
  %v163 = vadd.f32 0.0, %v162
  %v164 = vpop.f32.mrb[0].mxu0
  %165 = vmatprep.mubr.bf16.mxu0 0
  %166 = vmatmul.mubr.bf16.gmra.mrb[0].mxu0 %v95
  %v167 = vpop.f32.mrb[0].mxu0
  %v168 = vadd.f32 0.0, %v167
  %v169 = vpop.f32.mrb[0].mxu0
  %v170 = vpop.f32.mrb[0].mxu0
  %v171 = vadd.f32 0.0, %v170
  %v172 = vpop.f32.mrb[0].mxu0
  %173 = vmatprep.mubr.bf16.mxu0 0
  %174 = vmatmul.mubr.bf16.gmra.mrb[0].mxu0 %v98
  %v175 = vpop.f32.mrb[0].mxu0
  %v176 = vadd.f32 0.0, %v175
  %v177 = vpop.f32.mrb[0].mxu0
  %v178 = vpop.f32.mrb[0].mxu0
  %v179 = vadd.f32 0.0, %v178
  %v180 = vpop.f32.mrb[0].mxu0
  %181 = vmatprep.mubr.bf16.mxu0 0
  %182 = vmatmul.mubr.bf16.gmra.mrb[0].mxu0 %v101
  %v183 = vpop.f32.mrb[0].mxu0
  %v184 = vadd.f32 0.0, %v183
  %v185 = vpop.f32.mrb[0].mxu0
  %v186 = vpop.f32.mrb[0].mxu0
  %v187 = vadd.f32 0.0, %v186
  %v188 = vpop.f32.mrb[0].mxu0
  %189 = vmatprep.mubr.bf16.mxu0 0
  %190 = vmatmul.mubr.bf16.gmra.mrb[0].mxu0 %v104
  %v191 = vpop.f32.mrb[0].mxu0
  %v192 = vadd.f32 0.0, %v191
  %v193 = vpop.f32.mrb[0].mxu0
  %v194 = vpop.f32.mrb[0].mxu0
  %v195 = vadd.f32 0.0, %v194
  %v196 = vpop.f32.mrb[0].mxu0
  %197 = vmatprep.mubr.bf16.mxu0 0
  %198 = vmatmul.mubr.bf16.gmra.mrb[0].mxu0 %v107
  %v199 = vpop.f32.mrb[0].mxu0
  %v200 = vadd.f32 0.0, %v199
  %v201 = vpop.f32.mrb[0].mxu0
  %v202 = vpop.f32.mrb[0].mxu0
  %v203 = vadd.f32 0.0, %v202
  %v204 = vpop.f32.mrb[0].mxu0
  %205 = vdwg.mxu0
  %206 = vst.msk [vmem:[%s2] sm:$0xff] %vm84, %v144
  %207 = vst.msk [vmem:[%s2 + $0x8] sm:$0xff] %vm84, %v147
  %208 = vst.msk [vmem:[%s2 + $0x10] sm:$0xff] %vm84, %v152
  %209 = vst.msk [vmem:[%s2 + $0x18] sm:$0xff] %vm84, %v155
  %210 = vst.msk [vmem:[%s2 + $0x20] sm:$0xff] %vm84, %v160
  %211 = vst.msk [vmem:[%s2 + $0x28] sm:$0xff] %vm84, %v163
  %212 = vst.msk [vmem:[%s2 + $0x30] sm:$0xff] %vm84, %v168
  %213 = vst.msk [vmem:[%s2 + $0x38] sm:$0xff] %vm84, %v171
  %214 = vst.msk [vmem:[%s2 + $0x40] sm:$0xff] %vm84, %v176
  %215 = vst.msk [vmem:[%s2 + $0x48] sm:$0xff] %vm84, %v179
  %216 = vst.msk [vmem:[%s2 + $0x50] sm:$0xff] %vm84, %v184
  %217 = vst.msk [vmem:[%s2 + $0x58] sm:$0xff] %vm84, %v187
  %218 = vst.msk [vmem:[%s2 + $0x60] sm:$0xff] %vm84, %v192
  %219 = vst.msk [vmem:[%s2 + $0x68] sm:$0xff] %vm84, %v195
  %220 = vst.msk [vmem:[%s2 + $0x70] sm:$0xff] %vm84, %v200
  %221 = vst.msk [vmem:[%s2 + $0x78] sm:$0xff] %vm84, %v203
  // Predicated region
  $region10: #{_lambda_.35} parent=0 // pred_check
    _
  $region11: #{_lambda_.35} parent=0 // pred_check_branch
    %223 = sbr.rel (0) target = $region13
  $region12: #{_lambda_.35} parent=0 // pred_region
    _
  $region13: #{_lambda_.35} parent=0 // pred_fallthru
    _
  // Predicated region
  $region14: #{_lambda_.35} parent=0 // pred_check
    _
  $region15: #{_lambda_.35} parent=0 // pred_check_branch
    %225 = sbr.rel (0) target = $region17
  $region16: #{_lambda_.35} parent=0 // pred_region
    _
  $region17: #{_lambda_.35} parent=0 // pred_fallthru
    _

// kernel: _lambda_.36
$region0: #{_lambda_.36}
  #allocation0 [shape = 'u32[]', space=smem, size = 0x4, offset = 0x4, fixed_abs, tag = 'smem constant byte address 0x4 - core index']
  #allocation1 [shape = 'u32[144,128]{1,0:T(1,128)}', space=vmem, size = 0x12000, scoped, tag = 'internal scratch']
  %s0 = inlined_call_operand.vmem [shape: bf16[128,32], index: 0, kind: input, shape index: {}]
  %s1 = inlined_call_operand.vmem [shape: bf16[32,64], index: 1, kind: input, shape index: {}]
  %s2 = inlined_call_operand.vmem [shape: f32[128,64], index: 2, kind: output, shape index: {}]
  %s3 = sld [smem:[#allocation0]]
  $region18: #{_lambda_.36} parent=0
    _
  %s5 = ssub.s32 1, %s3
  %s6 = scalar_select 0, %s5, %s3
  // Predicated region
  $region2: #{_lambda_.36} parent=0 // pred_check
    _
  $region3: #{_lambda_.36} parent=0 // pred_check_branch
    %8 = sbr.rel (0) target = $region5
  $region4: #{_lambda_.36} parent=0 // pred_region
    _
  $region5: #{_lambda_.36} parent=0 // pred_fallthru
    _
  // Predicated region
  $region6: #{_lambda_.36} parent=0 // pred_check
    _
  $region7: #{_lambda_.36} parent=0 // pred_check_branch
    %10 = sbr.rel (0) target = $region9
  $region8: #{_lambda_.36} parent=0 // pred_region
    _
  $region9: #{_lambda_.36} parent=0 // pred_fallthru
    _
  %v12 = vld [vmem:[%s0] sm:$0xf]
  %v13 = vld [vmem:[%s0 + $0x4] sm:$0xf]
  %v14 = vld [vmem:[%s0 + $0x8] sm:$0xf]
  %v15 = vld [vmem:[%s0 + $0xc] sm:$0xf]
  %v16 = vld [vmem:[%s0 + $0x10] sm:$0xf]
  %v17 = vld [vmem:[%s0 + $0x14] sm:$0xf]
  %v18 = vld [vmem:[%s0 + $0x18] sm:$0xf]
  %v19 = vld [vmem:[%s0 + $0x1c] sm:$0xf]
  %v20 = vld [vmem:[%s0 + $0x20] sm:$0xf]
  %v21 = vld [vmem:[%s0 + $0x24] sm:$0xf]
  %v22 = vld [vmem:[%s0 + $0x28] sm:$0xf]
  %v23 = vld [vmem:[%s0 + $0x2c] sm:$0xf]
  %v24 = vld [vmem:[%s0 + $0x30] sm:$0xf]
  %v25 = vld [vmem:[%s0 + $0x34] sm:$0xf]
  %v26 = vld [vmem:[%s0 + $0x38] sm:$0xf]
  %v27 = vld [vmem:[%s0 + $0x3c] sm:$0xf]
  %v28 = vld [vmem:[%s1] sm:$0xf]
  %v29 = vld [vmem:[%s1 + $0x4] sm:$0xf]
  %v30 = vld [vmem:[%s1 + $0x8] sm:$0xf]
  %v31 = vld [vmem:[%s1 + $0xc] sm:$0xf]
  %v48 = vunpack.c.l.b16 %v12
  %v49 = vunpack.c.l.b16 %v13
  %v50 = vunpack.c.l.b16 %v14
  %v51 = vunpack.c.l.b16 %v15
  %v52 = vunpack.c.l.b16 %v16
  %v53 = vunpack.c.l.b16 %v17
  %v54 = vunpack.c.l.b16 %v18
  %v55 = vunpack.c.l.b16 %v19
  %v56 = vunpack.c.l.b16 %v20
  %v57 = vunpack.c.l.b16 %v21
  %v58 = vunpack.c.l.b16 %v22
  %v59 = vunpack.c.l.b16 %v23
  %v60 = vunpack.c.l.b16 %v24
  %v61 = vunpack.c.l.b16 %v25
  %v62 = vunpack.c.l.b16 %v26
  %v63 = vunpack.c.l.b16 %v27
  %v64 = vpack.c.b16 %v49, %v48
  %v65 = vpack.c.b16 %v51, %v50
  %v66 = vpack.c.b16 %v53, %v52
  %v67 = vpack.c.b16 %v55, %v54
  %v68 = vpack.c.b16 %v57, %v56
  %v69 = vpack.c.b16 %v59, %v58
  %v70 = vpack.c.b16 %v61, %v60
  %v71 = vpack.c.b16 %v63, %v62
  %v76 = vunpack.c.l.b16 %v28
  %v77 = vunpack.c.l.b16 %v29
  %v78 = vunpack.c.l.b16 %v30
  %v79 = vunpack.c.l.b16 %v31
  %v80 = vpack.c.b16 %v77, %v76
  %v81 = vpack.c.b16 %v79, %v78
  %vm84 = vcmask 261120
  %v86 = vsel %vm84, %v64, 0
  %v89 = vsel %vm84, %v65, 0
  %v92 = vsel %vm84, %v66, 0
  %v95 = vsel %vm84, %v67, 0
  %v98 = vsel %vm84, %v68, 0
  %v101 = vsel %vm84, %v69, 0
  %v104 = vsel %vm84, %v70, 0
  %v107 = vsel %vm84, %v71, 0
  %109 = vmatprep.subr.bf16.mxu0 0
  %110 = vmatpush1.bf16.msra.mxu0 %v80
  %111 = vmatprep.subr.bf16.mxu0 0
  %112 = vmatpush1.bf16.msra.mxu0 %v81
  %113 = vmatprep.subr.bf16.mxu0 0
  %114 = vmatpush1.bf16.msra.mxu0 0
  %115 = vmatprep.subr.bf16.mxu0 0
  %116 = vmatpush1.bf16.msra.mxu0 0
  %117 = vmatprep.subr.bf16.mxu0 0
  %118 = vmatpush1.bf16.msra.mxu0 0
  %119 = vmatprep.subr.bf16.mxu0 0
  %120 = vmatpush1.bf16.msra.mxu0 0
  %121 = vmatprep.subr.bf16.mxu0 0
  %122 = vmatpush1.bf16.msra.mxu0 0
  %123 = vmatprep.subr.bf16.mxu0 0
  %124 = vmatpush1.bf16.msra.mxu0 0
  %125 = vmatprep.subr.bf16.mxu0 0
  %126 = vmatpush1.bf16.msra.mxu0 0
  %127 = vmatprep.subr.bf16.mxu0 0
  %128 = vmatpush1.bf16.msra.mxu0 0
  %129 = vmatprep.subr.bf16.mxu0 0
  %130 = vmatpush1.bf16.msra.mxu0 0
  %131 = vmatprep.subr.bf16.mxu0 0
  %132 = vmatpush1.bf16.msra.mxu0 0
  %133 = vmatprep.subr.bf16.mxu0 0
  %134 = vmatpush1.bf16.msra.mxu0 0
  %135 = vmatprep.subr.bf16.mxu0 0
  %136 = vmatpush1.bf16.msra.mxu0 0
  %137 = vmatprep.subr.bf16.mxu0 0
  %138 = vmatpush1.bf16.msra.mxu0 0
  %139 = vmatprep.subr.bf16.mxu0 0
  %140 = vmatpush1.bf16.msra.mxu0 0
  %141 = vmatprep.mubr.bf16.mxu0 0
  %142 = vmatmul.mubr.bf16.gmra.mrb[0].mxu0 %v86
  %v143 = vpop.f32.mrb[0].mxu0
  %v144 = vadd.f32 0.0, %v143
  %v145 = vpop.f32.mrb[0].mxu0
  %v146 = vpop.f32.mrb[0].mxu0
  %v147 = vadd.f32 0.0, %v146
  %v148 = vpop.f32.mrb[0].mxu0
  %149 = vmatprep.mubr.bf16.mxu0 0
  %150 = vmatmul.mubr.bf16.gmra.mrb[0].mxu0 %v89
  %v151 = vpop.f32.mrb[0].mxu0
  %v152 = vadd.f32 0.0, %v151
  %v153 = vpop.f32.mrb[0].mxu0
  %v154 = vpop.f32.mrb[0].mxu0
  %v155 = vadd.f32 0.0, %v154
  %v156 = vpop.f32.mrb[0].mxu0
  %157 = vmatprep.mubr.bf16.mxu0 0
  %158 = vmatmul.mubr.bf16.gmra.mrb[0].mxu0 %v92
  %v159 = vpop.f32.mrb[0].mxu0
  %v160 = vadd.f32 0.0, %v159
  %v161 = vpop.f32.mrb[0].mxu0
  %v162 = vpop.f32.mrb[0].mxu0
  %v163 = vadd.f32 0.0, %v162
  %v164 = vpop.f32.mrb[0].mxu0
  %165 = vmatprep.mubr.bf16.mxu0 0
  %166 = vmatmul.mubr.bf16.gmra.mrb[0].mxu0 %v95
  %v167 = vpop.f32.mrb[0].mxu0
  %v168 = vadd.f32 0.0, %v167
  %v169 = vpop.f32.mrb[0].mxu0
  %v170 = vpop.f32.mrb[0].mxu0
  %v171 = vadd.f32 0.0, %v170
  %v172 = vpop.f32.mrb[0].mxu0
  %173 = vmatprep.mubr.bf16.mxu0 0
  %174 = vmatmul.mubr.bf16.gmra.mrb[0].mxu0 %v98
  %v175 = vpop.f32.mrb[0].mxu0
  %v176 = vadd.f32 0.0, %v175
  %v177 = vpop.f32.mrb[0].mxu0
  %v178 = vpop.f32.mrb[0].mxu0
  %v179 = vadd.f32 0.0, %v178
  %v180 = vpop.f32.mrb[0].mxu0
  %181 = vmatprep.mubr.bf16.mxu0 0
  %182 = vmatmul.mubr.bf16.gmra.mrb[0].mxu0 %v101
  %v183 = vpop.f32.mrb[0].mxu0
  %v184 = vadd.f32 0.0, %v183
  %v185 = vpop.f32.mrb[0].mxu0
  %v186 = vpop.f32.mrb[0].mxu0
  %v187 = vadd.f32 0.0, %v186
  %v188 = vpop.f32.mrb[0].mxu0
  %189 = vmatprep.mubr.bf16.mxu0 0
  %190 = vmatmul.mubr.bf16.gmra.mrb[0].mxu0 %v104
  %v191 = vpop.f32.mrb[0].mxu0
  %v192 = vadd.f32 0.0, %v191
  %v193 = vpop.f32.mrb[0].mxu0
  %v194 = vpop.f32.mrb[0].mxu0
  %v195 = vadd.f32 0.0, %v194
  %v196 = vpop.f32.mrb[0].mxu0
  %197 = vmatprep.mubr.bf16.mxu0 0
  %198 = vmatmul.mubr.bf16.gmra.mrb[0].mxu0 %v107
  %v199 = vpop.f32.mrb[0].mxu0
  %v200 = vadd.f32 0.0, %v199
  %v201 = vpop.f32.mrb[0].mxu0
  %v202 = vpop.f32.mrb[0].mxu0
  %v203 = vadd.f32 0.0, %v202
  %v204 = vpop.f32.mrb[0].mxu0
  %205 = vdwg.mxu0
  %vm206 = vcmask 523264
  %207 = vst.msk [vmem:[%s2] sm:$0xff] %vm206, %v144
  %208 = vst.msk [vmem:[%s2 + $0x8] sm:$0xff] %vm206, %v147
  %209 = vst.msk [vmem:[%s2 + $0x10] sm:$0xff] %vm206, %v152
  %210 = vst.msk [vmem:[%s2 + $0x18] sm:$0xff] %vm206, %v155
  %211 = vst.msk [vmem:[%s2 + $0x20] sm:$0xff] %vm206, %v160
  %212 = vst.msk [vmem:[%s2 + $0x28] sm:$0xff] %vm206, %v163
  %213 = vst.msk [vmem:[%s2 + $0x30] sm:$0xff] %vm206, %v168
  %214 = vst.msk [vmem:[%s2 + $0x38] sm:$0xff] %vm206, %v171
  %215 = vst.msk [vmem:[%s2 + $0x40] sm:$0xff] %vm206, %v176
  %216 = vst.msk [vmem:[%s2 + $0x48] sm:$0xff] %vm206, %v179
  %217 = vst.msk [vmem:[%s2 + $0x50] sm:$0xff] %vm206, %v184
  %218 = vst.msk [vmem:[%s2 + $0x58] sm:$0xff] %vm206, %v187
  %219 = vst.msk [vmem:[%s2 + $0x60] sm:$0xff] %vm206, %v192
  %220 = vst.msk [vmem:[%s2 + $0x68] sm:$0xff] %vm206, %v195
  %221 = vst.msk [vmem:[%s2 + $0x70] sm:$0xff] %vm206, %v200
  %222 = vst.msk [vmem:[%s2 + $0x78] sm:$0xff] %vm206, %v203
  // Predicated region
  $region10: #{_lambda_.36} parent=0 // pred_check
    _
  $region11: #{_lambda_.36} parent=0 // pred_check_branch
    %224 = sbr.rel (0) target = $region13
  $region12: #{_lambda_.36} parent=0 // pred_region
    _
  $region13: #{_lambda_.36} parent=0 // pred_fallthru
    _
  // Predicated region
  $region14: #{_lambda_.36} parent=0 // pred_check
    _
  $region15: #{_lambda_.36} parent=0 // pred_check_branch
    %226 = sbr.rel (0) target = $region17
  $region16: #{_lambda_.36} parent=0 // pred_region
    _
  $region17: #{_lambda_.36} parent=0 // pred_fallthru
    _

// kernel: _lambda_.34
$region0: #{_lambda_.34}
  #allocation0 [shape = 'u32[]', space=smem, size = 0x4, offset = 0x4, fixed_abs, tag = 'smem constant byte address 0x4 - core index']
  #allocation1 [shape = 'u32[144,128]{1,0:T(1,128)}', space=vmem, size = 0x12000, scoped, tag = 'internal scratch']
  %s0 = inlined_call_operand.vmem [shape: f32[8,16,32], index: 0, kind: input, shape index: {}]
  %s1 = inlined_call_operand.vmem [shape: f32[8,16,32], index: 1, kind: input, shape index: {}]
  %s2 = inlined_call_operand.vmem [shape: f32[8,16,32], index: 2, kind: input, shape index: {}]
  %s3 = inlined_call_operand.vmem [shape: bf16[32,32], index: 3, kind: input, shape index: {}]
  %s4 = inlined_call_operand.vmem [shape: f32[1,32], index: 4, kind: input, shape index: {}]
  %s5 = inlined_call_operand.vmem [shape: f32[1,32], index: 5, kind: input, shape index: {}]
  %s6 = inlined_call_operand.vmem [shape: f32[128,32], index: 6, kind: output, shape index: {}]
  %s7 = sld [smem:[#allocation0]]
  $region34: #{_lambda_.34} parent=0
    _
  %s9 = ssub.s32 1, %s7
  %s10 = scalar_select 0, %s9, %s7
  // Predicated region
  $region2: #{_lambda_.34} parent=0 // pred_check
    _
  $region3: #{_lambda_.34} parent=0 // pred_check_branch
    %12 = sbr.rel (0) target = $region5
  $region4: #{_lambda_.34} parent=0 // pred_region
    _
  $region5: #{_lambda_.34} parent=0 // pred_fallthru
    _
  // Predicated region
  $region6: #{_lambda_.34} parent=0 // pred_check
    _
  $region7: #{_lambda_.34} parent=0 // pred_check_branch
    %14 = sbr.rel (0) target = $region9
  $region8: #{_lambda_.34} parent=0 // pred_region
    _
  $region9: #{_lambda_.34} parent=0 // pred_fallthru
    _
  // Predicated region
  $region10: #{_lambda_.34} parent=0 // pred_check
    _
  $region11: #{_lambda_.34} parent=0 // pred_check_branch
    %16 = sbr.rel (0) target = $region13
  $region12: #{_lambda_.34} parent=0 // pred_region
    _
  $region13: #{_lambda_.34} parent=0 // pred_fallthru
    _
  // Predicated region
  $region14: #{_lambda_.34} parent=0 // pred_check
    _
  $region15: #{_lambda_.34} parent=0 // pred_check_branch
    %18 = sbr.rel (0) target = $region17
  $region16: #{_lambda_.34} parent=0 // pred_region
    _
  $region17: #{_lambda_.34} parent=0 // pred_fallthru
    _
  // Predicated region
  $region18: #{_lambda_.34} parent=0 // pred_check
    _
  $region19: #{_lambda_.34} parent=0 // pred_check_branch
    %20 = sbr.rel (0) target = $region21
  $region20: #{_lambda_.34} parent=0 // pred_region
    _
  $region21: #{_lambda_.34} parent=0 // pred_fallthru
    _
  // Predicated region
  $region22: #{_lambda_.34} parent=0 // pred_check
    _
  $region23: #{_lambda_.34} parent=0 // pred_check_branch
    %22 = sbr.rel (0) target = $region25
  $region24: #{_lambda_.34} parent=0 // pred_region
    _
  $region25: #{_lambda_.34} parent=0 // pred_fallthru
    _
  %v24 = vld [vmem:[%s0] sm:$0xff]
  %v25 = vld [vmem:[%s0 + $0x8] sm:$0xff]
  %v26 = vld [vmem:[%s0 + $0x10] sm:$0xff]
  %v27 = vld [vmem:[%s0 + $0x18] sm:$0xff]
  %v28 = vld [vmem:[%s0 + $0x20] sm:$0xff]
  %v29 = vld [vmem:[%s0 + $0x28] sm:$0xff]
  %v30 = vld [vmem:[%s0 + $0x30] sm:$0xff]
  %v31 = vld [vmem:[%s0 + $0x38] sm:$0xff]
  %v32 = vld [vmem:[%s0 + $0x40] sm:$0xff]
  %v33 = vld [vmem:[%s0 + $0x48] sm:$0xff]
  %v34 = vld [vmem:[%s0 + $0x50] sm:$0xff]
  %v35 = vld [vmem:[%s0 + $0x58] sm:$0xff]
  %v36 = vld [vmem:[%s0 + $0x60] sm:$0xff]
  %v37 = vld [vmem:[%s0 + $0x68] sm:$0xff]
  %v38 = vld [vmem:[%s0 + $0x70] sm:$0xff]
  %v39 = vld [vmem:[%s0 + $0x78] sm:$0xff]
  %v40 = vmul.f32 %v24, 0.17677669
  %v41 = vmul.f32 %v25, 0.17677669
  %v42 = vmul.f32 %v26, 0.17677669
  %v43 = vmul.f32 %v27, 0.17677669
  %v44 = vmul.f32 %v28, 0.17677669
  %v45 = vmul.f32 %v29, 0.17677669
  %v46 = vmul.f32 %v30, 0.17677669
  %v47 = vmul.f32 %v31, 0.17677669
  %v48 = vmul.f32 %v32, 0.17677669
  %v49 = vmul.f32 %v33, 0.17677669
  %v50 = vmul.f32 %v34, 0.17677669
  %v51 = vmul.f32 %v35, 0.17677669
  %v52 = vmul.f32 %v36, 0.17677669
  %v53 = vmul.f32 %v37, 0.17677669
  %v54 = vmul.f32 %v38, 0.17677669
  %v55 = vmul.f32 %v39, 0.17677669
  %v56 = vpack.c.bf16 %v41, %v40
  %v57 = vpack.c.bf16 %v43, %v42
  %v58 = vpack.c.bf16 %v45, %v44
  %v59 = vpack.c.bf16 %v47, %v46
  %v60 = vpack.c.bf16 %v49, %v48
  %v61 = vpack.c.bf16 %v51, %v50
  %v62 = vpack.c.bf16 %v53, %v52
  %v63 = vpack.c.bf16 %v55, %v54
  %v64 = vld [vmem:[%s1] sm:$0xff]
  %v65 = vld [vmem:[%s1 + $0x8] sm:$0xff]
  %v66 = vld [vmem:[%s1 + $0x10] sm:$0xff]
  %v67 = vld [vmem:[%s1 + $0x18] sm:$0xff]
  %v68 = vld [vmem:[%s1 + $0x20] sm:$0xff]
  %v69 = vld [vmem:[%s1 + $0x28] sm:$0xff]
  %v70 = vld [vmem:[%s1 + $0x30] sm:$0xff]
  %v71 = vld [vmem:[%s1 + $0x38] sm:$0xff]
  %v72 = vld [vmem:[%s1 + $0x40] sm:$0xff]
  %v73 = vld [vmem:[%s1 + $0x48] sm:$0xff]
  %v74 = vld [vmem:[%s1 + $0x50] sm:$0xff]
  %v75 = vld [vmem:[%s1 + $0x58] sm:$0xff]
  %v76 = vld [vmem:[%s1 + $0x60] sm:$0xff]
  %v77 = vld [vmem:[%s1 + $0x68] sm:$0xff]
  %v78 = vld [vmem:[%s1 + $0x70] sm:$0xff]
  %v79 = vld [vmem:[%s1 + $0x78] sm:$0xff]
  %v80 = vpack.c.bf16 %v65, %v64
  %v81 = vpack.c.bf16 %v67, %v66
  %v82 = vpack.c.bf16 %v69, %v68
  %v83 = vpack.c.bf16 %v71, %v70
  %v84 = vpack.c.bf16 %v73, %v72
  %v85 = vpack.c.bf16 %v75, %v74
  %v86 = vpack.c.bf16 %v77, %v76
  %v87 = vpack.c.bf16 %v79, %v78
  %v88 = vld [vmem:[%s2] sm:$0xff]
  %v89 = vld [vmem:[%s2 + $0x8] sm:$0xff]
  %v90 = vld [vmem:[%s2 + $0x10] sm:$0xff]
  %v91 = vld [vmem:[%s2 + $0x18] sm:$0xff]
  %v92 = vld [vmem:[%s2 + $0x20] sm:$0xff]
  %v93 = vld [vmem:[%s2 + $0x28] sm:$0xff]
  %v94 = vld [vmem:[%s2 + $0x30] sm:$0xff]
  %v95 = vld [vmem:[%s2 + $0x38] sm:$0xff]
  %v96 = vld [vmem:[%s2 + $0x40] sm:$0xff]
  %v97 = vld [vmem:[%s2 + $0x48] sm:$0xff]
  %v98 = vld [vmem:[%s2 + $0x50] sm:$0xff]
  %v99 = vld [vmem:[%s2 + $0x58] sm:$0xff]
  %v100 = vld [vmem:[%s2 + $0x60] sm:$0xff]
  %v101 = vld [vmem:[%s2 + $0x68] sm:$0xff]
  %v102 = vld [vmem:[%s2 + $0x70] sm:$0xff]
  %v103 = vld [vmem:[%s2 + $0x78] sm:$0xff]
  %v104 = vpack.c.bf16 %v89, %v88
  %v105 = vpack.c.bf16 %v91, %v90
  %v106 = vpack.c.bf16 %v93, %v92
  %v107 = vpack.c.bf16 %v95, %v94
  %v108 = vpack.c.bf16 %v97, %v96
  %v109 = vpack.c.bf16 %v99, %v98
  %v110 = vpack.c.bf16 %v101, %v100
  %v111 = vpack.c.bf16 %v103, %v102
  %vm112 = vcmask 261120
  %v114 = vsel %vm112, %v56, 0
  %v117 = vsel %vm112, %v80, 0
  %119 = vmatprep.subr.bf16.mxu0 0
  %120 = vmatpush1.bf16.xpose.msra.mxu0 %v117
  %121 = vmatprep.subr.bf16.mxu0 0
  %122 = vmatpush1.bf16.xpose.msra.mxu0 0
  %123 = vmatprep.subr.bf16.mxu0 0
  %124 = vmatpush1.bf16.xpose.msra.mxu0 0
  %125 = vmatprep.subr.bf16.mxu0 0
  %126 = vmatpush1.bf16.xpose.msra.mxu0 0
  %127 = vmatprep.subr.bf16.mxu0 0
  %128 = vmatpush1.bf16.xpose.msra.mxu0 0
  %129 = vmatprep.subr.bf16.mxu0 0
  %130 = vmatpush1.bf16.xpose.msra.mxu0 0
  %131 = vmatprep.subr.bf16.mxu0 0
  %132 = vmatpush1.bf16.xpose.msra.mxu0 0
  %133 = vmatprep.subr.bf16.mxu0 0
  %134 = vmatpush1.bf16.xpose.msra.mxu0 0
  %135 = vmatprep.subr.bf16.mxu0 0
  %136 = vmatpush1.bf16.xpose.msra.mxu0 0
  %137 = vmatprep.subr.bf16.mxu0 0
  %138 = vmatpush1.bf16.xpose.msra.mxu0 0
  %139 = vmatprep.subr.bf16.mxu0 0
  %140 = vmatpush1.bf16.xpose.msra.mxu0 0
  %141 = vmatprep.subr.bf16.mxu0 0
  %142 = vmatpush1.bf16.xpose.msra.mxu0 0
  %143 = vmatprep.subr.bf16.mxu0 0
  %144 = vmatpush1.bf16.xpose.msra.mxu0 0
  %145 = vmatprep.subr.bf16.mxu0 0
  %146 = vmatpush1.bf16.xpose.msra.mxu0 0
  %147 = vmatprep.subr.bf16.mxu0 0
  %148 = vmatpush1.bf16.xpose.msra.mxu0 0
  %149 = vmatprep.subr.bf16.mxu0 0
  %150 = vmatpush1.bf16.xpose.msra.mxu0 0
  %151 = vmatprep.mubr.bf16.mxu0 0
  %152 = vmatmul.mubr.bf16.gmra.mrb[0].mxu0 %v114
  %v153 = vpop.f32.mrb[0].mxu0
  %v154 = vadd.f32 0.0, %v153
  %v155 = vpop.f32.mrb[0].mxu0
  %v156 = vpop.f32.mrb[0].mxu0
  %v157 = vadd.f32 0.0, %v156
  %v158 = vpop.f32.mrb[0].mxu0
  %159 = vdwg.mxu0
  %v161 = vsel %vm112, %v57, 0
  %v164 = vsel %vm112, %v81, 0
  %166 = vmatprep.subr.bf16.mxu0 0
  %167 = vmatpush1.bf16.xpose.msra.mxu0 %v164
  %168 = vmatprep.subr.bf16.mxu0 0
  %169 = vmatpush1.bf16.xpose.msra.mxu0 0
  %170 = vmatprep.subr.bf16.mxu0 0
  %171 = vmatpush1.bf16.xpose.msra.mxu0 0
  %172 = vmatprep.subr.bf16.mxu0 0
  %173 = vmatpush1.bf16.xpose.msra.mxu0 0
  %174 = vmatprep.subr.bf16.mxu0 0
  %175 = vmatpush1.bf16.xpose.msra.mxu0 0
  %176 = vmatprep.subr.bf16.mxu0 0
  %177 = vmatpush1.bf16.xpose.msra.mxu0 0
  %178 = vmatprep.subr.bf16.mxu0 0
  %179 = vmatpush1.bf16.xpose.msra.mxu0 0
  %180 = vmatprep.subr.bf16.mxu0 0
  %181 = vmatpush1.bf16.xpose.msra.mxu0 0
  %182 = vmatprep.subr.bf16.mxu0 0
  %183 = vmatpush1.bf16.xpose.msra.mxu0 0
  %184 = vmatprep.subr.bf16.mxu0 0
  %185 = vmatpush1.bf16.xpose.msra.mxu0 0
  %186 = vmatprep.subr.bf16.mxu0 0
  %187 = vmatpush1.bf16.xpose.msra.mxu0 0
  %188 = vmatprep.subr.bf16.mxu0 0
  %189 = vmatpush1.bf16.xpose.msra.mxu0 0
  %190 = vmatprep.subr.bf16.mxu0 0
  %191 = vmatpush1.bf16.xpose.msra.mxu0 0
  %192 = vmatprep.subr.bf16.mxu0 0
  %193 = vmatpush1.bf16.xpose.msra.mxu0 0
  %194 = vmatprep.subr.bf16.mxu0 0
  %195 = vmatpush1.bf16.xpose.msra.mxu0 0
  %196 = vmatprep.subr.bf16.mxu0 0
  %197 = vmatpush1.bf16.xpose.msra.mxu0 0
  %198 = vmatprep.mubr.bf16.mxu0 0
  %199 = vmatmul.mubr.bf16.gmra.mrb[0].mxu0 %v161
  %v200 = vpop.f32.mrb[0].mxu0
  %v201 = vadd.f32 0.0, %v200
  %v202 = vpop.f32.mrb[0].mxu0
  %v203 = vpop.f32.mrb[0].mxu0
  %v204 = vadd.f32 0.0, %v203
  %v205 = vpop.f32.mrb[0].mxu0
  %206 = vdwg.mxu0
  %v208 = vsel %vm112, %v58, 0
  %v211 = vsel %vm112, %v82, 0
  %213 = vmatprep.subr.bf16.mxu0 0
  %214 = vmatpush1.bf16.xpose.msra.mxu0 %v211
  %215 = vmatprep.subr.bf16.mxu0 0
  %216 = vmatpush1.bf16.xpose.msra.mxu0 0
  %217 = vmatprep.subr.bf16.mxu0 0
  %218 = vmatpush1.bf16.xpose.msra.mxu0 0
  %219 = vmatprep.subr.bf16.mxu0 0
  %220 = vmatpush1.bf16.xpose.msra.mxu0 0
  %221 = vmatprep.subr.bf16.mxu0 0
  %222 = vmatpush1.bf16.xpose.msra.mxu0 0
  %223 = vmatprep.subr.bf16.mxu0 0
  %224 = vmatpush1.bf16.xpose.msra.mxu0 0
  %225 = vmatprep.subr.bf16.mxu0 0
  %226 = vmatpush1.bf16.xpose.msra.mxu0 0
  %227 = vmatprep.subr.bf16.mxu0 0
  %228 = vmatpush1.bf16.xpose.msra.mxu0 0
  %229 = vmatprep.subr.bf16.mxu0 0
  %230 = vmatpush1.bf16.xpose.msra.mxu0 0
  %231 = vmatprep.subr.bf16.mxu0 0
  %232 = vmatpush1.bf16.xpose.msra.mxu0 0
  %233 = vmatprep.subr.bf16.mxu0 0
  %234 = vmatpush1.bf16.xpose.msra.mxu0 0
  %235 = vmatprep.subr.bf16.mxu0 0
  %236 = vmatpush1.bf16.xpose.msra.mxu0 0
  %237 = vmatprep.subr.bf16.mxu0 0
  %238 = vmatpush1.bf16.xpose.msra.mxu0 0
  %239 = vmatprep.subr.bf16.mxu0 0
  %240 = vmatpush1.bf16.xpose.msra.mxu0 0
  %241 = vmatprep.subr.bf16.mxu0 0
  %242 = vmatpush1.bf16.xpose.msra.mxu0 0
  %243 = vmatprep.subr.bf16.mxu0 0
  %244 = vmatpush1.bf16.xpose.msra.mxu0 0
  %245 = vmatprep.mubr.bf16.mxu0 0
  %246 = vmatmul.mubr.bf16.gmra.mrb[0].mxu0 %v208
  %v247 = vpop.f32.mrb[0].mxu0
  %v248 = vadd.f32 0.0, %v247
  %v249 = vpop.f32.mrb[0].mxu0
  %v250 = vpop.f32.mrb[0].mxu0
  %v251 = vadd.f32 0.0, %v250
  %v252 = vpop.f32.mrb[0].mxu0
  %253 = vdwg.mxu0
  %v255 = vsel %vm112, %v59, 0
  %v258 = vsel %vm112, %v83, 0
  %260 = vmatprep.subr.bf16.mxu0 0
  %261 = vmatpush1.bf16.xpose.msra.mxu0 %v258
  %262 = vmatprep.subr.bf16.mxu0 0
  %263 = vmatpush1.bf16.xpose.msra.mxu0 0
  %264 = vmatprep.subr.bf16.mxu0 0
  %265 = vmatpush1.bf16.xpose.msra.mxu0 0
  %266 = vmatprep.subr.bf16.mxu0 0
  %267 = vmatpush1.bf16.xpose.msra.mxu0 0
  %268 = vmatprep.subr.bf16.mxu0 0
  %269 = vmatpush1.bf16.xpose.msra.mxu0 0
  %270 = vmatprep.subr.bf16.mxu0 0
  %271 = vmatpush1.bf16.xpose.msra.mxu0 0
  %272 = vmatprep.subr.bf16.mxu0 0
  %273 = vmatpush1.bf16.xpose.msra.mxu0 0
  %274 = vmatprep.subr.bf16.mxu0 0
  %275 = vmatpush1.bf16.xpose.msra.mxu0 0
  %276 = vmatprep.subr.bf16.mxu0 0
  %277 = vmatpush1.bf16.xpose.msra.mxu0 0
  %278 = vmatprep.subr.bf16.mxu0 0
  %279 = vmatpush1.bf16.xpose.msra.mxu0 0
  %280 = vmatprep.subr.bf16.mxu0 0
  %281 = vmatpush1.bf16.xpose.msra.mxu0 0
  %282 = vmatprep.subr.bf16.mxu0 0
  %283 = vmatpush1.bf16.xpose.msra.mxu0 0
  %284 = vmatprep.subr.bf16.mxu0 0
  %285 = vmatpush1.bf16.xpose.msra.mxu0 0
  %286 = vmatprep.subr.bf16.mxu0 0
  %287 = vmatpush1.bf16.xpose.msra.mxu0 0
  %288 = vmatprep.subr.bf16.mxu0 0
  %289 = vmatpush1.bf16.xpose.msra.mxu0 0
  %290 = vmatprep.subr.bf16.mxu0 0
  %291 = vmatpush1.bf16.xpose.msra.mxu0 0
  %292 = vmatprep.mubr.bf16.mxu0 0
  %293 = vmatmul.mubr.bf16.gmra.mrb[0].mxu0 %v255
  %v294 = vpop.f32.mrb[0].mxu0
  %v295 = vadd.f32 0.0, %v294
  %v296 = vpop.f32.mrb[0].mxu0
  %v297 = vpop.f32.mrb[0].mxu0
  %v298 = vadd.f32 0.0, %v297
  %v299 = vpop.f32.mrb[0].mxu0
  %300 = vdwg.mxu0
  %v302 = vsel %vm112, %v60, 0
  %v305 = vsel %vm112, %v84, 0
  %307 = vmatprep.subr.bf16.mxu0 0
  %308 = vmatpush1.bf16.xpose.msra.mxu0 %v305
  %309 = vmatprep.subr.bf16.mxu0 0
  %310 = vmatpush1.bf16.xpose.msra.mxu0 0
  %311 = vmatprep.subr.bf16.mxu0 0
  %312 = vmatpush1.bf16.xpose.msra.mxu0 0
  %313 = vmatprep.subr.bf16.mxu0 0
  %314 = vmatpush1.bf16.xpose.msra.mxu0 0
  %315 = vmatprep.subr.bf16.mxu0 0
  %316 = vmatpush1.bf16.xpose.msra.mxu0 0
  %317 = vmatprep.subr.bf16.mxu0 0
  %318 = vmatpush1.bf16.xpose.msra.mxu0 0
  %319 = vmatprep.subr.bf16.mxu0 0
  %320 = vmatpush1.bf16.xpose.msra.mxu0 0
  %321 = vmatprep.subr.bf16.mxu0 0
  %322 = vmatpush1.bf16.xpose.msra.mxu0 0
  %323 = vmatprep.subr.bf16.mxu0 0
  %324 = vmatpush1.bf16.xpose.msra.mxu0 0
  %325 = vmatprep.subr.bf16.mxu0 0
  %326 = vmatpush1.bf16.xpose.msra.mxu0 0
  %327 = vmatprep.subr.bf16.mxu0 0
  %328 = vmatpush1.bf16.xpose.msra.mxu0 0
  %329 = vmatprep.subr.bf16.mxu0 0
  %330 = vmatpush1.bf16.xpose.msra.mxu0 0
  %331 = vmatprep.subr.bf16.mxu0 0
  %332 = vmatpush1.bf16.xpose.msra.mxu0 0
  %333 = vmatprep.subr.bf16.mxu0 0
  %334 = vmatpush1.bf16.xpose.msra.mxu0 0
  %335 = vmatprep.subr.bf16.mxu0 0
  %336 = vmatpush1.bf16.xpose.msra.mxu0 0
  %337 = vmatprep.subr.bf16.mxu0 0
  %338 = vmatpush1.bf16.xpose.msra.mxu0 0
  %339 = vmatprep.mubr.bf16.mxu0 0
  %340 = vmatmul.mubr.bf16.gmra.mrb[0].mxu0 %v302
  %v341 = vpop.f32.mrb[0].mxu0
  %v342 = vadd.f32 0.0, %v341
  %v343 = vpop.f32.mrb[0].mxu0
  %v344 = vpop.f32.mrb[0].mxu0
  %v345 = vadd.f32 0.0, %v344
  %v346 = vpop.f32.mrb[0].mxu0
  %347 = vdwg.mxu0
  %v349 = vsel %vm112, %v61, 0
  %v352 = vsel %vm112, %v85, 0
  %354 = vmatprep.subr.bf16.mxu0 0
  %355 = vmatpush1.bf16.xpose.msra.mxu0 %v352
  %356 = vmatprep.subr.bf16.mxu0 0
  %357 = vmatpush1.bf16.xpose.msra.mxu0 0
  %358 = vmatprep.subr.bf16.mxu0 0
  %359 = vmatpush1.bf16.xpose.msra.mxu0 0
  %360 = vmatprep.subr.bf16.mxu0 0
  %361 = vmatpush1.bf16.xpose.msra.mxu0 0
  %362 = vmatprep.subr.bf16.mxu0 0
  %363 = vmatpush1.bf16.xpose.msra.mxu0 0
  %364 = vmatprep.subr.bf16.mxu0 0
  %365 = vmatpush1.bf16.xpose.msra.mxu0 0
  %366 = vmatprep.subr.bf16.mxu0 0
  %367 = vmatpush1.bf16.xpose.msra.mxu0 0
  %368 = vmatprep.subr.bf16.mxu0 0
  %369 = vmatpush1.bf16.xpose.msra.mxu0 0
  %370 = vmatprep.subr.bf16.mxu0 0
  %371 = vmatpush1.bf16.xpose.msra.mxu0 0
  %372 = vmatprep.subr.bf16.mxu0 0
  %373 = vmatpush1.bf16.xpose.msra.mxu0 0
  %374 = vmatprep.subr.bf16.mxu0 0
  %375 = vmatpush1.bf16.xpose.msra.mxu0 0
  %376 = vmatprep.subr.bf16.mxu0 0
  %377 = vmatpush1.bf16.xpose.msra.mxu0 0
  %378 = vmatprep.subr.bf16.mxu0 0
  %379 = vmatpush1.bf16.xpose.msra.mxu0 0
  %380 = vmatprep.subr.bf16.mxu0 0
  %381 = vmatpush1.bf16.xpose.msra.mxu0 0
  %382 = vmatprep.subr.bf16.mxu0 0
  %383 = vmatpush1.bf16.xpose.msra.mxu0 0
  %384 = vmatprep.subr.bf16.mxu0 0
  %385 = vmatpush1.bf16.xpose.msra.mxu0 0
  %386 = vmatprep.mubr.bf16.mxu0 0
  %387 = vmatmul.mubr.bf16.gmra.mrb[0].mxu0 %v349
  %v388 = vpop.f32.mrb[0].mxu0
  %v389 = vadd.f32 0.0, %v388
  %v390 = vpop.f32.mrb[0].mxu0
  %v391 = vpop.f32.mrb[0].mxu0
  %v392 = vadd.f32 0.0, %v391
  %v393 = vpop.f32.mrb[0].mxu0
  %394 = vdwg.mxu0
  %v396 = vsel %vm112, %v62, 0
  %v399 = vsel %vm112, %v86, 0
  %401 = vmatprep.subr.bf16.mxu0 0
  %402 = vmatpush1.bf16.xpose.msra.mxu0 %v399
  %403 = vmatprep.subr.bf16.mxu0 0
  %404 = vmatpush1.bf16.xpose.msra.mxu0 0
  %405 = vmatprep.subr.bf16.mxu0 0
  %406 = vmatpush1.bf16.xpose.msra.mxu0 0
  %407 = vmatprep.subr.bf16.mxu0 0
  %408 = vmatpush1.bf16.xpose.msra.mxu0 0
  %409 = vmatprep.subr.bf16.mxu0 0
  %410 = vmatpush1.bf16.xpose.msra.mxu0 0
  %411 = vmatprep.subr.bf16.mxu0 0
  %412 = vmatpush1.bf16.xpose.msra.mxu0 0
  %413 = vmatprep.subr.bf16.mxu0 0
  %414 = vmatpush1.bf16.xpose.msra.mxu0 0
  %415 = vmatprep.subr.bf16.mxu0 0
  %416 = vmatpush1.bf16.xpose.msra.mxu0 0
  %417 = vmatprep.subr.bf16.mxu0 0
  %418 = vmatpush1.bf16.xpose.msra.mxu0 0
  %419 = vmatprep.subr.bf16.mxu0 0
  %420 = vmatpush1.bf16.xpose.msra.mxu0 0
  %421 = vmatprep.subr.bf16.mxu0 0
  %422 = vmatpush1.bf16.xpose.msra.mxu0 0
  %423 = vmatprep.subr.bf16.mxu0 0
  %424 = vmatpush1.bf16.xpose.msra.mxu0 0
  %425 = vmatprep.subr.bf16.mxu0 0
  %426 = vmatpush1.bf16.xpose.msra.mxu0 0
  %427 = vmatprep.subr.bf16.mxu0 0
  %428 = vmatpush1.bf16.xpose.msra.mxu0 0
  %429 = vmatprep.subr.bf16.mxu0 0
  %430 = vmatpush1.bf16.xpose.msra.mxu0 0
  %431 = vmatprep.subr.bf16.mxu0 0
  %432 = vmatpush1.bf16.xpose.msra.mxu0 0
  %433 = vmatprep.mubr.bf16.mxu0 0
  %434 = vmatmul.mubr.bf16.gmra.mrb[0].mxu0 %v396
  %v435 = vpop.f32.mrb[0].mxu0
  %v436 = vadd.f32 0.0, %v435
  %v437 = vpop.f32.mrb[0].mxu0
  %v438 = vpop.f32.mrb[0].mxu0
  %v439 = vadd.f32 0.0, %v438
  %v440 = vpop.f32.mrb[0].mxu0
  %441 = vdwg.mxu0
  %v443 = vsel %vm112, %v63, 0
  %v446 = vsel %vm112, %v87, 0
  %448 = vmatprep.subr.bf16.mxu0 0
  %449 = vmatpush1.bf16.xpose.msra.mxu0 %v446
  %450 = vmatprep.subr.bf16.mxu0 0
  %451 = vmatpush1.bf16.xpose.msra.mxu0 0
  %452 = vmatprep.subr.bf16.mxu0 0
  %453 = vmatpush1.bf16.xpose.msra.mxu0 0
  %454 = vmatprep.subr.bf16.mxu0 0
  %455 = vmatpush1.bf16.xpose.msra.mxu0 0
  %456 = vmatprep.subr.bf16.mxu0 0
  %457 = vmatpush1.bf16.xpose.msra.mxu0 0
  %458 = vmatprep.subr.bf16.mxu0 0
  %459 = vmatpush1.bf16.xpose.msra.mxu0 0
  %460 = vmatprep.subr.bf16.mxu0 0
  %461 = vmatpush1.bf16.xpose.msra.mxu0 0
  %462 = vmatprep.subr.bf16.mxu0 0
  %463 = vmatpush1.bf16.xpose.msra.mxu0 0
  %464 = vmatprep.subr.bf16.mxu0 0
  %465 = vmatpush1.bf16.xpose.msra.mxu0 0
  %466 = vmatprep.subr.bf16.mxu0 0
  %467 = vmatpush1.bf16.xpose.msra.mxu0 0
  %468 = vmatprep.subr.bf16.mxu0 0
  %469 = vmatpush1.bf16.xpose.msra.mxu0 0
  %470 = vmatprep.subr.bf16.mxu0 0
  %471 = vmatpush1.bf16.xpose.msra.mxu0 0
  %472 = vmatprep.subr.bf16.mxu0 0
  %473 = vmatpush1.bf16.xpose.msra.mxu0 0
  %474 = vmatprep.subr.bf16.mxu0 0
  %475 = vmatpush1.bf16.xpose.msra.mxu0 0
  %476 = vmatprep.subr.bf16.mxu0 0
  %477 = vmatpush1.bf16.xpose.msra.mxu0 0
  %478 = vmatprep.subr.bf16.mxu0 0
  %479 = vmatpush1.bf16.xpose.msra.mxu0 0
  %480 = vmatprep.mubr.bf16.mxu0 0
  %481 = vmatmul.mubr.bf16.gmra.mrb[0].mxu0 %v443
  %v482 = vpop.f32.mrb[0].mxu0
  %v483 = vadd.f32 0.0, %v482
  %v484 = vpop.f32.mrb[0].mxu0
  %v485 = vpop.f32.mrb[0].mxu0
  %v486 = vadd.f32 0.0, %v485
  %v487 = vpop.f32.mrb[0].mxu0
  %488 = vdwg.mxu0
  %vm489 = vcmask 130048
  %v490 = vsel %vm489, %v154, -inf
  %491 = vmax.xlane.f32.xlu0 %v490
  %v492 = vpop.xlane.xlu0 %491
  %v493 = vsel %vm489, %v157, -inf
  %494 = vmax.xlane.f32.xlu0 %v493
  %v495 = vpop.xlane.xlu0 %494
  %v496 = vsel %vm489, %v201, -inf
  %497 = vmax.xlane.f32.xlu0 %v496
  %v498 = vpop.xlane.xlu0 %497
  %v499 = vsel %vm489, %v204, -inf
  %500 = vmax.xlane.f32.xlu0 %v499
  %v501 = vpop.xlane.xlu0 %500
  %v502 = vsel %vm489, %v248, -inf
  %503 = vmax.xlane.f32.xlu0 %v502
  %v504 = vpop.xlane.xlu0 %503
  %v505 = vsel %vm489, %v251, -inf
  %506 = vmax.xlane.f32.xlu0 %v505
  %v507 = vpop.xlane.xlu0 %506
  %v508 = vsel %vm489, %v295, -inf
  %509 = vmax.xlane.f32.xlu0 %v508
  %v510 = vpop.xlane.xlu0 %509
  %v511 = vsel %vm489, %v298, -inf
  %512 = vmax.xlane.f32.xlu0 %v511
  %v513 = vpop.xlane.xlu0 %512
  %v514 = vsel %vm489, %v342, -inf
  %515 = vmax.xlane.f32.xlu0 %v514
  %v516 = vpop.xlane.xlu0 %515
  %v517 = vsel %vm489, %v345, -inf
  %518 = vmax.xlane.f32.xlu0 %v517
  %v519 = vpop.xlane.xlu0 %518
  %v520 = vsel %vm489, %v389, -inf
  %521 = vmax.xlane.f32.xlu0 %v520
  %v522 = vpop.xlane.xlu0 %521
  %v523 = vsel %vm489, %v392, -inf
  %524 = vmax.xlane.f32.xlu0 %v523
  %v525 = vpop.xlane.xlu0 %524
  %v526 = vsel %vm489, %v436, -inf
  %527 = vmax.xlane.f32.xlu0 %v526
  %v528 = vpop.xlane.xlu0 %527
  %v529 = vsel %vm489, %v439, -inf
  %530 = vmax.xlane.f32.xlu0 %v529
  %v531 = vpop.xlane.xlu0 %530
  %v532 = vsel %vm489, %v483, -inf
  %533 = vmax.xlane.f32.xlu0 %v532
  %v534 = vpop.xlane.xlu0 %533
  %v535 = vsel %vm489, %v486, -inf
  %536 = vmax.xlane.f32.xlu0 %v535
  %v537 = vpop.xlane.xlu0 %536
  %v538 = vsub.f32 %v154, %v492
  %v539 = vsub.f32 %v157, %v495
  %v540 = vsub.f32 %v201, %v498
  %v541 = vsub.f32 %v204, %v501
  %v542 = vsub.f32 %v248, %v504
  %v543 = vsub.f32 %v251, %v507
  %v544 = vsub.f32 %v295, %v510
  %v545 = vsub.f32 %v298, %v513
  %v546 = vsub.f32 %v342, %v516
  %v547 = vsub.f32 %v345, %v519
  %v548 = vsub.f32 %v389, %v522
  %v549 = vsub.f32 %v392, %v525
  %v550 = vsub.f32 %v436, %v528
  %v551 = vsub.f32 %v439, %v531
  %v552 = vsub.f32 %v483, %v534
  %v553 = vsub.f32 %v486, %v537
  %v554 = vmul.f32 %v538, 1.442695
  %v555 = vpow.pop %v554
  %v556 = vmul.f32 %v539, 1.442695
  %v557 = vpow.pop %v556
  %v558 = vmul.f32 %v540, 1.442695
  %v559 = vpow.pop %v558
  %v560 = vmul.f32 %v541, 1.442695
  %v561 = vpow.pop %v560
  %v562 = vmul.f32 %v542, 1.442695
  %v563 = vpow.pop %v562
  %v564 = vmul.f32 %v543, 1.442695
  %v565 = vpow.pop %v564
  %v566 = vmul.f32 %v544, 1.442695
  %v567 = vpow.pop %v566
  %v568 = vmul.f32 %v545, 1.442695
  %v569 = vpow.pop %v568
  %v570 = vmul.f32 %v546, 1.442695
  %v571 = vpow.pop %v570
  %v572 = vmul.f32 %v547, 1.442695
  %v573 = vpow.pop %v572
  %v574 = vmul.f32 %v548, 1.442695
  %v575 = vpow.pop %v574
  %v576 = vmul.f32 %v549, 1.442695
  %v577 = vpow.pop %v576
  %v578 = vmul.f32 %v550, 1.442695
  %v579 = vpow.pop %v578
  %v580 = vmul.f32 %v551, 1.442695
  %v581 = vpow.pop %v580
  %v582 = vmul.f32 %v552, 1.442695
  %v583 = vpow.pop %v582
  %v584 = vmul.f32 %v553, 1.442695
  %v585 = vpow.pop %v584
  %v586 = vsel %vm489, %v555, 0.0
  %587 = vadd.xlane.f32.xlu0 %v586
  %v588 = vpop.xlane.xlu0 %587
  %v589 = vsel %vm489, %v557, 0.0
  %590 = vadd.xlane.f32.xlu0 %v589
  %v591 = vpop.xlane.xlu0 %590
  %v592 = vsel %vm489, %v559, 0.0
  %593 = vadd.xlane.f32.xlu0 %v592
  %v594 = vpop.xlane.xlu0 %593
  %v595 = vsel %vm489, %v561, 0.0
  %596 = vadd.xlane.f32.xlu0 %v595
  %v597 = vpop.xlane.xlu0 %596
  %v598 = vsel %vm489, %v563, 0.0
  %599 = vadd.xlane.f32.xlu0 %v598
  %v600 = vpop.xlane.xlu0 %599
  %v601 = vsel %vm489, %v565, 0.0
  %602 = vadd.xlane.f32.xlu0 %v601
  %v603 = vpop.xlane.xlu0 %602
  %v604 = vsel %vm489, %v567, 0.0
  %605 = vadd.xlane.f32.xlu0 %v604
  %v606 = vpop.xlane.xlu0 %605
  %v607 = vsel %vm489, %v569, 0.0
  %608 = vadd.xlane.f32.xlu0 %v607
  %v609 = vpop.xlane.xlu0 %608
  %v610 = vsel %vm489, %v571, 0.0
  %611 = vadd.xlane.f32.xlu0 %v610
  %v612 = vpop.xlane.xlu0 %611
  %v613 = vsel %vm489, %v573, 0.0
  %614 = vadd.xlane.f32.xlu0 %v613
  %v615 = vpop.xlane.xlu0 %614
  %v616 = vsel %vm489, %v575, 0.0
  %617 = vadd.xlane.f32.xlu0 %v616
  %v618 = vpop.xlane.xlu0 %617
  %v619 = vsel %vm489, %v577, 0.0
  %620 = vadd.xlane.f32.xlu0 %v619
  %v621 = vpop.xlane.xlu0 %620
  %v622 = vsel %vm489, %v579, 0.0
  %623 = vadd.xlane.f32.xlu0 %v622
  %v624 = vpop.xlane.xlu0 %623
  %v625 = vsel %vm489, %v581, 0.0
  %626 = vadd.xlane.f32.xlu0 %v625
  %v627 = vpop.xlane.xlu0 %626
  %v628 = vsel %vm489, %v583, 0.0
  %629 = vadd.xlane.f32.xlu0 %v628
  %v630 = vpop.xlane.xlu0 %629
  %v631 = vsel %vm489, %v585, 0.0
  %632 = vadd.xlane.f32.xlu0 %v631
  %v633 = vpop.xlane.xlu0 %632
  %v634 = vpack.c.bf16 %v557, %v555
  %v635 = vpack.c.bf16 %v561, %v559
  %v636 = vpack.c.bf16 %v565, %v563
  %v637 = vpack.c.bf16 %v569, %v567
  %v638 = vpack.c.bf16 %v573, %v571
  %v639 = vpack.c.bf16 %v577, %v575
  %v640 = vpack.c.bf16 %v581, %v579
  %v641 = vpack.c.bf16 %v585, %v583
  %v643 = vsel %vm489, %v634, 0
  %645 = vmatprep.subr.bf16.mxu0 0
  %646 = vmatpush1.bf16.msra.mxu0 %v104
  %647 = vmatprep.subr.bf16.mxu0 0
  %648 = vmatpush1.bf16.msra.mxu0 0
  %649 = vmatprep.subr.bf16.mxu0 0
  %650 = vmatpush1.bf16.msra.mxu0 0
  %651 = vmatprep.subr.bf16.mxu0 0
  %652 = vmatpush1.bf16.msra.mxu0 0
  %653 = vmatprep.subr.bf16.mxu0 0
  %654 = vmatpush1.bf16.msra.mxu0 0
  %655 = vmatprep.subr.bf16.mxu0 0
  %656 = vmatpush1.bf16.msra.mxu0 0
  %657 = vmatprep.subr.bf16.mxu0 0
  %658 = vmatpush1.bf16.msra.mxu0 0
  %659 = vmatprep.subr.bf16.mxu0 0
  %660 = vmatpush1.bf16.msra.mxu0 0
  %661 = vmatprep.subr.bf16.mxu0 0
  %662 = vmatpush1.bf16.msra.mxu0 0
  %663 = vmatprep.subr.bf16.mxu0 0
  %664 = vmatpush1.bf16.msra.mxu0 0
  %665 = vmatprep.subr.bf16.mxu0 0
  %666 = vmatpush1.bf16.msra.mxu0 0
  %667 = vmatprep.subr.bf16.mxu0 0
  %668 = vmatpush1.bf16.msra.mxu0 0
  %669 = vmatprep.subr.bf16.mxu0 0
  %670 = vmatpush1.bf16.msra.mxu0 0
  %671 = vmatprep.subr.bf16.mxu0 0
  %672 = vmatpush1.bf16.msra.mxu0 0
  %673 = vmatprep.subr.bf16.mxu0 0
  %674 = vmatpush1.bf16.msra.mxu0 0
  %675 = vmatprep.subr.bf16.mxu0 0
  %676 = vmatpush1.bf16.msra.mxu0 0
  %677 = vmatprep.mubr.bf16.mxu0 0
  %678 = vmatmul.mubr.bf16.gmra.mrb[0].mxu0 %v643
  %v679 = vpop.f32.mrb[0].mxu0
  %v680 = vadd.f32 0.0, %v679
  %v681 = vpop.f32.mrb[0].mxu0
  %v682 = vpop.f32.mrb[0].mxu0
  %v683 = vadd.f32 0.0, %v682
  %v684 = vpop.f32.mrb[0].mxu0
  %685 = vdwg.mxu0
  %v687 = vsel %vm489, %v635, 0
  %689 = vmatprep.subr.bf16.mxu0 0
  %690 = vmatpush1.bf16.msra.mxu0 %v105
  %691 = vmatprep.subr.bf16.mxu0 0
  %692 = vmatpush1.bf16.msra.mxu0 0
  %693 = vmatprep.subr.bf16.mxu0 0
  %694 = vmatpush1.bf16.msra.mxu0 0
  %695 = vmatprep.subr.bf16.mxu0 0
  %696 = vmatpush1.bf16.msra.mxu0 0
  %697 = vmatprep.subr.bf16.mxu0 0
  %698 = vmatpush1.bf16.msra.mxu0 0
  %699 = vmatprep.subr.bf16.mxu0 0
  %700 = vmatpush1.bf16.msra.mxu0 0
  %701 = vmatprep.subr.bf16.mxu0 0
  %702 = vmatpush1.bf16.msra.mxu0 0
  %703 = vmatprep.subr.bf16.mxu0 0
  %704 = vmatpush1.bf16.msra.mxu0 0
  %705 = vmatprep.subr.bf16.mxu0 0
  %706 = vmatpush1.bf16.msra.mxu0 0
  %707 = vmatprep.subr.bf16.mxu0 0
  %708 = vmatpush1.bf16.msra.mxu0 0
  %709 = vmatprep.subr.bf16.mxu0 0
  %710 = vmatpush1.bf16.msra.mxu0 0
  %711 = vmatprep.subr.bf16.mxu0 0
  %712 = vmatpush1.bf16.msra.mxu0 0
  %713 = vmatprep.subr.bf16.mxu0 0
  %714 = vmatpush1.bf16.msra.mxu0 0
  %715 = vmatprep.subr.bf16.mxu0 0
  %716 = vmatpush1.bf16.msra.mxu0 0
  %717 = vmatprep.subr.bf16.mxu0 0
  %718 = vmatpush1.bf16.msra.mxu0 0
  %719 = vmatprep.subr.bf16.mxu0 0
  %720 = vmatpush1.bf16.msra.mxu0 0
  %721 = vmatprep.mubr.bf16.mxu0 0
  %722 = vmatmul.mubr.bf16.gmra.mrb[0].mxu0 %v687
  %v723 = vpop.f32.mrb[0].mxu0
  %v724 = vadd.f32 0.0, %v723
  %v725 = vpop.f32.mrb[0].mxu0
  %v726 = vpop.f32.mrb[0].mxu0
  %v727 = vadd.f32 0.0, %v726
  %v728 = vpop.f32.mrb[0].mxu0
  %729 = vdwg.mxu0
  %v731 = vsel %vm489, %v636, 0
  %733 = vmatprep.subr.bf16.mxu0 0
  %734 = vmatpush1.bf16.msra.mxu0 %v106
  %735 = vmatprep.subr.bf16.mxu0 0
  %736 = vmatpush1.bf16.msra.mxu0 0
  %737 = vmatprep.subr.bf16.mxu0 0
  %738 = vmatpush1.bf16.msra.mxu0 0
  %739 = vmatprep.subr.bf16.mxu0 0
  %740 = vmatpush1.bf16.msra.mxu0 0
  %741 = vmatprep.subr.bf16.mxu0 0
  %742 = vmatpush1.bf16.msra.mxu0 0
  %743 = vmatprep.subr.bf16.mxu0 0
  %744 = vmatpush1.bf16.msra.mxu0 0
  %745 = vmatprep.subr.bf16.mxu0 0
  %746 = vmatpush1.bf16.msra.mxu0 0
  %747 = vmatprep.subr.bf16.mxu0 0
  %748 = vmatpush1.bf16.msra.mxu0 0
  %749 = vmatprep.subr.bf16.mxu0 0
  %750 = vmatpush1.bf16.msra.mxu0 0
  %751 = vmatprep.subr.bf16.mxu0 0
  %752 = vmatpush1.bf16.msra.mxu0 0
  %753 = vmatprep.subr.bf16.mxu0 0
  %754 = vmatpush1.bf16.msra.mxu0 0
  %755 = vmatprep.subr.bf16.mxu0 0
  %756 = vmatpush1.bf16.msra.mxu0 0
  %757 = vmatprep.subr.bf16.mxu0 0
  %758 = vmatpush1.bf16.msra.mxu0 0
  %759 = vmatprep.subr.bf16.mxu0 0
  %760 = vmatpush1.bf16.msra.mxu0 0
  %761 = vmatprep.subr.bf16.mxu0 0
  %762 = vmatpush1.bf16.msra.mxu0 0
  %763 = vmatprep.subr.bf16.mxu0 0
  %764 = vmatpush1.bf16.msra.mxu0 0
  %765 = vmatprep.mubr.bf16.mxu0 0
  %766 = vmatmul.mubr.bf16.gmra.mrb[0].mxu0 %v731
  %v767 = vpop.f32.mrb[0].mxu0
  %v768 = vadd.f32 0.0, %v767
  %v769 = vpop.f32.mrb[0].mxu0
  %v770 = vpop.f32.mrb[0].mxu0
  %v771 = vadd.f32 0.0, %v770
  %v772 = vpop.f32.mrb[0].mxu0
  %773 = vdwg.mxu0
  %v775 = vsel %vm489, %v637, 0
  %777 = vmatprep.subr.bf16.mxu0 0
  %778 = vmatpush1.bf16.msra.mxu0 %v107
  %779 = vmatprep.subr.bf16.mxu0 0
  %780 = vmatpush1.bf16.msra.mxu0 0
  %781 = vmatprep.subr.bf16.mxu0 0
  %782 = vmatpush1.bf16.msra.mxu0 0
  %783 = vmatprep.subr.bf16.mxu0 0
  %784 = vmatpush1.bf16.msra.mxu0 0
  %785 = vmatprep.subr.bf16.mxu0 0
  %786 = vmatpush1.bf16.msra.mxu0 0
  %787 = vmatprep.subr.bf16.mxu0 0
  %788 = vmatpush1.bf16.msra.mxu0 0
  %789 = vmatprep.subr.bf16.mxu0 0
  %790 = vmatpush1.bf16.msra.mxu0 0
  %791 = vmatprep.subr.bf16.mxu0 0
  %792 = vmatpush1.bf16.msra.mxu0 0
  %793 = vmatprep.subr.bf16.mxu0 0
  %794 = vmatpush1.bf16.msra.mxu0 0
  %795 = vmatprep.subr.bf16.mxu0 0
  %796 = vmatpush1.bf16.msra.mxu0 0
  %797 = vmatprep.subr.bf16.mxu0 0
  %798 = vmatpush1.bf16.msra.mxu0 0
  %799 = vmatprep.subr.bf16.mxu0 0
  %800 = vmatpush1.bf16.msra.mxu0 0
  %801 = vmatprep.subr.bf16.mxu0 0
  %802 = vmatpush1.bf16.msra.mxu0 0
  %803 = vmatprep.subr.bf16.mxu0 0
  %804 = vmatpush1.bf16.msra.mxu0 0
  %805 = vmatprep.subr.bf16.mxu0 0
  %806 = vmatpush1.bf16.msra.mxu0 0
  %807 = vmatprep.subr.bf16.mxu0 0
  %808 = vmatpush1.bf16.msra.mxu0 0
  %809 = vmatprep.mubr.bf16.mxu0 0
  %810 = vmatmul.mubr.bf16.gmra.mrb[0].mxu0 %v775
  %v811 = vpop.f32.mrb[0].mxu0
  %v812 = vadd.f32 0.0, %v811
  %v813 = vpop.f32.mrb[0].mxu0
  %v814 = vpop.f32.mrb[0].mxu0
  %v815 = vadd.f32 0.0, %v814
  %v816 = vpop.f32.mrb[0].mxu0
  %817 = vdwg.mxu0
  %v819 = vsel %vm489, %v638, 0
  %821 = vmatprep.subr.bf16.mxu0 0
  %822 = vmatpush1.bf16.msra.mxu0 %v108
  %823 = vmatprep.subr.bf16.mxu0 0
  %824 = vmatpush1.bf16.msra.mxu0 0
  %825 = vmatprep.subr.bf16.mxu0 0
  %826 = vmatpush1.bf16.msra.mxu0 0
  %827 = vmatprep.subr.bf16.mxu0 0
  %828 = vmatpush1.bf16.msra.mxu0 0
  %829 = vmatprep.subr.bf16.mxu0 0
  %830 = vmatpush1.bf16.msra.mxu0 0
  %831 = vmatprep.subr.bf16.mxu0 0
  %832 = vmatpush1.bf16.msra.mxu0 0
  %833 = vmatprep.subr.bf16.mxu0 0
  %834 = vmatpush1.bf16.msra.mxu0 0
  %835 = vmatprep.subr.bf16.mxu0 0
  %836 = vmatpush1.bf16.msra.mxu0 0
  %837 = vmatprep.subr.bf16.mxu0 0
  %838 = vmatpush1.bf16.msra.mxu0 0
  %839 = vmatprep.subr.bf16.mxu0 0
  %840 = vmatpush1.bf16.msra.mxu0 0
  %841 = vmatprep.subr.bf16.mxu0 0
  %842 = vmatpush1.bf16.msra.mxu0 0
  %843 = vmatprep.subr.bf16.mxu0 0
  %844 = vmatpush1.bf16.msra.mxu0 0
  %845 = vmatprep.subr.bf16.mxu0 0
  %846 = vmatpush1.bf16.msra.mxu0 0
  %847 = vmatprep.subr.bf16.mxu0 0
  %848 = vmatpush1.bf16.msra.mxu0 0
  %849 = vmatprep.subr.bf16.mxu0 0
  %850 = vmatpush1.bf16.msra.mxu0 0
  %851 = vmatprep.subr.bf16.mxu0 0
  %852 = vmatpush1.bf16.msra.mxu0 0
  %853 = vmatprep.mubr.bf16.mxu0 0
  %854 = vmatmul.mubr.bf16.gmra.mrb[0].mxu0 %v819
  %v855 = vpop.f32.mrb[0].mxu0
  %v856 = vadd.f32 0.0, %v855
  %v857 = vpop.f32.mrb[0].mxu0
  %v858 = vpop.f32.mrb[0].mxu0
  %v859 = vadd.f32 0.0, %v858
  %v860 = vpop.f32.mrb[0].mxu0
  %861 = vdwg.mxu0
  %v863 = vsel %vm489, %v639, 0
  %865 = vmatprep.subr.bf16.mxu0 0
  %866 = vmatpush1.bf16.msra.mxu0 %v109
  %867 = vmatprep.subr.bf16.mxu0 0
  %868 = vmatpush1.bf16.msra.mxu0 0
  %869 = vmatprep.subr.bf16.mxu0 0
  %870 = vmatpush1.bf16.msra.mxu0 0
  %871 = vmatprep.subr.bf16.mxu0 0
  %872 = vmatpush1.bf16.msra.mxu0 0
  %873 = vmatprep.subr.bf16.mxu0 0
  %874 = vmatpush1.bf16.msra.mxu0 0
  %875 = vmatprep.subr.bf16.mxu0 0
  %876 = vmatpush1.bf16.msra.mxu0 0
  %877 = vmatprep.subr.bf16.mxu0 0
  %878 = vmatpush1.bf16.msra.mxu0 0
  %879 = vmatprep.subr.bf16.mxu0 0
  %880 = vmatpush1.bf16.msra.mxu0 0
  %881 = vmatprep.subr.bf16.mxu0 0
  %882 = vmatpush1.bf16.msra.mxu0 0
  %883 = vmatprep.subr.bf16.mxu0 0
  %884 = vmatpush1.bf16.msra.mxu0 0
  %885 = vmatprep.subr.bf16.mxu0 0
  %886 = vmatpush1.bf16.msra.mxu0 0
  %887 = vmatprep.subr.bf16.mxu0 0
  %888 = vmatpush1.bf16.msra.mxu0 0
  %889 = vmatprep.subr.bf16.mxu0 0
  %890 = vmatpush1.bf16.msra.mxu0 0
  %891 = vmatprep.subr.bf16.mxu0 0
  %892 = vmatpush1.bf16.msra.mxu0 0
  %893 = vmatprep.subr.bf16.mxu0 0
  %894 = vmatpush1.bf16.msra.mxu0 0
  %895 = vmatprep.subr.bf16.mxu0 0
  %896 = vmatpush1.bf16.msra.mxu0 0
  %897 = vmatprep.mubr.bf16.mxu0 0
  %898 = vmatmul.mubr.bf16.gmra.mrb[0].mxu0 %v863
  %v899 = vpop.f32.mrb[0].mxu0
  %v900 = vadd.f32 0.0, %v899
  %v901 = vpop.f32.mrb[0].mxu0
  %v902 = vpop.f32.mrb[0].mxu0
  %v903 = vadd.f32 0.0, %v902
  %v904 = vpop.f32.mrb[0].mxu0
  %905 = vdwg.mxu0
  %v907 = vsel %vm489, %v640, 0
  %909 = vmatprep.subr.bf16.mxu0 0
  %910 = vmatpush1.bf16.msra.mxu0 %v110
  %911 = vmatprep.subr.bf16.mxu0 0
  %912 = vmatpush1.bf16.msra.mxu0 0
  %913 = vmatprep.subr.bf16.mxu0 0
  %914 = vmatpush1.bf16.msra.mxu0 0
  %915 = vmatprep.subr.bf16.mxu0 0
  %916 = vmatpush1.bf16.msra.mxu0 0
  %917 = vmatprep.subr.bf16.mxu0 0
  %918 = vmatpush1.bf16.msra.mxu0 0
  %919 = vmatprep.subr.bf16.mxu0 0
  %920 = vmatpush1.bf16.msra.mxu0 0
  %921 = vmatprep.subr.bf16.mxu0 0
  %922 = vmatpush1.bf16.msra.mxu0 0
  %923 = vmatprep.subr.bf16.mxu0 0
  %924 = vmatpush1.bf16.msra.mxu0 0
  %925 = vmatprep.subr.bf16.mxu0 0
  %926 = vmatpush1.bf16.msra.mxu0 0
  %927 = vmatprep.subr.bf16.mxu0 0
  %928 = vmatpush1.bf16.msra.mxu0 0
  %929 = vmatprep.subr.bf16.mxu0 0
  %930 = vmatpush1.bf16.msra.mxu0 0
  %931 = vmatprep.subr.bf16.mxu0 0
  %932 = vmatpush1.bf16.msra.mxu0 0
  %933 = vmatprep.subr.bf16.mxu0 0
  %934 = vmatpush1.bf16.msra.mxu0 0
  %935 = vmatprep.subr.bf16.mxu0 0
  %936 = vmatpush1.bf16.msra.mxu0 0
  %937 = vmatprep.subr.bf16.mxu0 0
  %938 = vmatpush1.bf16.msra.mxu0 0
  %939 = vmatprep.subr.bf16.mxu0 0
  %940 = vmatpush1.bf16.msra.mxu0 0
  %941 = vmatprep.mubr.bf16.mxu0 0
  %942 = vmatmul.mubr.bf16.gmra.mrb[0].mxu0 %v907
  %v943 = vpop.f32.mrb[0].mxu0
  %v944 = vadd.f32 0.0, %v943
  %v945 = vpop.f32.mrb[0].mxu0
  %v946 = vpop.f32.mrb[0].mxu0
  %v947 = vadd.f32 0.0, %v946
  %v948 = vpop.f32.mrb[0].mxu0
  %949 = vdwg.mxu0
  %v951 = vsel %vm489, %v641, 0
  %953 = vmatprep.subr.bf16.mxu0 0
  %954 = vmatpush1.bf16.msra.mxu0 %v111
  %955 = vmatprep.subr.bf16.mxu0 0
  %956 = vmatpush1.bf16.msra.mxu0 0
  %957 = vmatprep.subr.bf16.mxu0 0
  %958 = vmatpush1.bf16.msra.mxu0 0
  %959 = vmatprep.subr.bf16.mxu0 0
  %960 = vmatpush1.bf16.msra.mxu0 0
  %961 = vmatprep.subr.bf16.mxu0 0
  %962 = vmatpush1.bf16.msra.mxu0 0
  %963 = vmatprep.subr.bf16.mxu0 0
  %964 = vmatpush1.bf16.msra.mxu0 0
  %965 = vmatprep.subr.bf16.mxu0 0
  %966 = vmatpush1.bf16.msra.mxu0 0
  %967 = vmatprep.subr.bf16.mxu0 0
  %968 = vmatpush1.bf16.msra.mxu0 0
  %969 = vmatprep.subr.bf16.mxu0 0
  %970 = vmatpush1.bf16.msra.mxu0 0
  %971 = vmatprep.subr.bf16.mxu0 0
  %972 = vmatpush1.bf16.msra.mxu0 0
  %973 = vmatprep.subr.bf16.mxu0 0
  %974 = vmatpush1.bf16.msra.mxu0 0
  %975 = vmatprep.subr.bf16.mxu0 0
  %976 = vmatpush1.bf16.msra.mxu0 0
  %977 = vmatprep.subr.bf16.mxu0 0
  %978 = vmatpush1.bf16.msra.mxu0 0
  %979 = vmatprep.subr.bf16.mxu0 0
  %980 = vmatpush1.bf16.msra.mxu0 0
  %981 = vmatprep.subr.bf16.mxu0 0
  %982 = vmatpush1.bf16.msra.mxu0 0
  %983 = vmatprep.subr.bf16.mxu0 0
  %984 = vmatpush1.bf16.msra.mxu0 0
  %985 = vmatprep.mubr.bf16.mxu0 0
  %986 = vmatmul.mubr.bf16.gmra.mrb[0].mxu0 %v951
  %v987 = vpop.f32.mrb[0].mxu0
  %v988 = vadd.f32 0.0, %v987
  %v989 = vpop.f32.mrb[0].mxu0
  %v990 = vpop.f32.mrb[0].mxu0
  %v991 = vadd.f32 0.0, %v990
  %v992 = vpop.f32.mrb[0].mxu0
  %993 = vdwg.mxu0
  %v994 = vrcp.pop %v588
  %v995 = vrcp.pop %v591
  %v996 = vrcp.pop %v594
  %v997 = vrcp.pop %v597
  %v998 = vrcp.pop %v600
  %v999 = vrcp.pop %v603
  %v1000 = vrcp.pop %v606
  %v1001 = vrcp.pop %v609
  %v1002 = vrcp.pop %v612
  %v1003 = vrcp.pop %v615
  %v1004 = vrcp.pop %v618
  %v1005 = vrcp.pop %v621
  %v1006 = vrcp.pop %v624
  %v1007 = vrcp.pop %v627
  %v1008 = vrcp.pop %v630
  %v1009 = vrcp.pop %v633
  %v1010 = vmul.f32 %v680, %v994
  %v1011 = vmul.f32 %v683, %v995
  %v1012 = vmul.f32 %v724, %v996
  %v1013 = vmul.f32 %v727, %v997
  %v1014 = vmul.f32 %v768, %v998
  %v1015 = vmul.f32 %v771, %v999
  %v1016 = vmul.f32 %v812, %v1000
  %v1017 = vmul.f32 %v815, %v1001
  %v1018 = vmul.f32 %v856, %v1002
  %v1019 = vmul.f32 %v859, %v1003
  %v1020 = vmul.f32 %v900, %v1004
  %v1021 = vmul.f32 %v903, %v1005
  %v1022 = vmul.f32 %v944, %v1006
  %v1023 = vmul.f32 %v947, %v1007
  %v1024 = vmul.f32 %v988, %v1008
  %v1025 = vmul.f32 %v991, %v1009
  %v1026 = vpack.c.bf16 %v1011, %v1010
  %v1027 = vpack.c.bf16 %v1013, %v1012
  %v1028 = vpack.c.bf16 %v1015, %v1014
  %v1029 = vpack.c.bf16 %v1017, %v1016
  %v1030 = vpack.c.bf16 %v1019, %v1018
  %v1031 = vpack.c.bf16 %v1021, %v1020
  %v1032 = vpack.c.bf16 %v1023, %v1022
  %v1033 = vpack.c.bf16 %v1025, %v1024
  %v1034 = vld [vmem:[%s3] sm:$0xf]
  %v1035 = vld [vmem:[%s3 + $0x4] sm:$0xf]
  %v1036 = vld [vmem:[%s3 + $0x8] sm:$0xf]
  %v1037 = vld [vmem:[%s3 + $0xc] sm:$0xf]
  %v1042 = vunpack.c.l.b16 %v1034
  %v1043 = vunpack.c.l.b16 %v1035
  %v1044 = vunpack.c.l.b16 %v1036
  %v1045 = vunpack.c.l.b16 %v1037
  %v1046 = vpack.c.b16 %v1043, %v1042
  %v1047 = vpack.c.b16 %v1045, %v1044
  %v1051 = vsel %vm112, %v1026, 0
  %v1054 = vsel %vm112, %v1027, 0
  %v1057 = vsel %vm112, %v1028, 0
  %v1060 = vsel %vm112, %v1029, 0
  %v1063 = vsel %vm112, %v1030, 0
  %v1066 = vsel %vm112, %v1031, 0
  %v1069 = vsel %vm112, %v1032, 0
  %v1072 = vsel %vm112, %v1033, 0
  %1074 = vmatprep.subr.bf16.mxu0 0
  %1075 = vmatpush1.bf16.msra.mxu0 %v1046
  %1076 = vmatprep.subr.bf16.mxu0 0
  %1077 = vmatpush1.bf16.msra.mxu0 %v1047
  %1078 = vmatprep.subr.bf16.mxu0 0
  %1079 = vmatpush1.bf16.msra.mxu0 0
  %1080 = vmatprep.subr.bf16.mxu0 0
  %1081 = vmatpush1.bf16.msra.mxu0 0
  %1082 = vmatprep.subr.bf16.mxu0 0
  %1083 = vmatpush1.bf16.msra.mxu0 0
  %1084 = vmatprep.subr.bf16.mxu0 0
  %1085 = vmatpush1.bf16.msra.mxu0 0
  %1086 = vmatprep.subr.bf16.mxu0 0
  %1087 = vmatpush1.bf16.msra.mxu0 0
  %1088 = vmatprep.subr.bf16.mxu0 0
  %1089 = vmatpush1.bf16.msra.mxu0 0
  %1090 = vmatprep.subr.bf16.mxu0 0
  %1091 = vmatpush1.bf16.msra.mxu0 0
  %1092 = vmatprep.subr.bf16.mxu0 0
  %1093 = vmatpush1.bf16.msra.mxu0 0
  %1094 = vmatprep.subr.bf16.mxu0 0
  %1095 = vmatpush1.bf16.msra.mxu0 0
  %1096 = vmatprep.subr.bf16.mxu0 0
  %1097 = vmatpush1.bf16.msra.mxu0 0
  %1098 = vmatprep.subr.bf16.mxu0 0
  %1099 = vmatpush1.bf16.msra.mxu0 0
  %1100 = vmatprep.subr.bf16.mxu0 0
  %1101 = vmatpush1.bf16.msra.mxu0 0
  %1102 = vmatprep.subr.bf16.mxu0 0
  %1103 = vmatpush1.bf16.msra.mxu0 0
  %1104 = vmatprep.subr.bf16.mxu0 0
  %1105 = vmatpush1.bf16.msra.mxu0 0
  %1106 = vmatprep.mubr.bf16.mxu0 0
  %1107 = vmatmul.mubr.bf16.gmra.mrb[0].mxu0 %v1051
  %v1108 = vpop.f32.mrb[0].mxu0
  %v1109 = vadd.f32 0.0, %v1108
  %v1110 = vpop.f32.mrb[0].mxu0
  %v1111 = vpop.f32.mrb[0].mxu0
  %v1112 = vadd.f32 0.0, %v1111
  %v1113 = vpop.f32.mrb[0].mxu0
  %1114 = vmatprep.mubr.bf16.mxu0 0
  %1115 = vmatmul.mubr.bf16.gmra.mrb[0].mxu0 %v1054
  %v1116 = vpop.f32.mrb[0].mxu0
  %v1117 = vadd.f32 0.0, %v1116
  %v1118 = vpop.f32.mrb[0].mxu0
  %v1119 = vpop.f32.mrb[0].mxu0
  %v1120 = vadd.f32 0.0, %v1119
  %v1121 = vpop.f32.mrb[0].mxu0
  %1122 = vmatprep.mubr.bf16.mxu0 0
  %1123 = vmatmul.mubr.bf16.gmra.mrb[0].mxu0 %v1057
  %v1124 = vpop.f32.mrb[0].mxu0
  %v1125 = vadd.f32 0.0, %v1124
  %v1126 = vpop.f32.mrb[0].mxu0
  %v1127 = vpop.f32.mrb[0].mxu0
  %v1128 = vadd.f32 0.0, %v1127
  %v1129 = vpop.f32.mrb[0].mxu0
  %1130 = vmatprep.mubr.bf16.mxu0 0
  %1131 = vmatmul.mubr.bf16.gmra.mrb[0].mxu0 %v1060
  %v1132 = vpop.f32.mrb[0].mxu0
  %v1133 = vadd.f32 0.0, %v1132
  %v1134 = vpop.f32.mrb[0].mxu0
  %v1135 = vpop.f32.mrb[0].mxu0
  %v1136 = vadd.f32 0.0, %v1135
  %v1137 = vpop.f32.mrb[0].mxu0
  %1138 = vmatprep.mubr.bf16.mxu0 0
  %1139 = vmatmul.mubr.bf16.gmra.mrb[0].mxu0 %v1063
  %v1140 = vpop.f32.mrb[0].mxu0
  %v1141 = vadd.f32 0.0, %v1140
  %v1142 = vpop.f32.mrb[0].mxu0
  %v1143 = vpop.f32.mrb[0].mxu0
  %v1144 = vadd.f32 0.0, %v1143
  %v1145 = vpop.f32.mrb[0].mxu0
  %1146 = vmatprep.mubr.bf16.mxu0 0
  %1147 = vmatmul.mubr.bf16.gmra.mrb[0].mxu0 %v1066
  %v1148 = vpop.f32.mrb[0].mxu0
  %v1149 = vadd.f32 0.0, %v1148
  %v1150 = vpop.f32.mrb[0].mxu0
  %v1151 = vpop.f32.mrb[0].mxu0
  %v1152 = vadd.f32 0.0, %v1151
  %v1153 = vpop.f32.mrb[0].mxu0
  %1154 = vmatprep.mubr.bf16.mxu0 0
  %1155 = vmatmul.mubr.bf16.gmra.mrb[0].mxu0 %v1069
  %v1156 = vpop.f32.mrb[0].mxu0
  %v1157 = vadd.f32 0.0, %v1156
  %v1158 = vpop.f32.mrb[0].mxu0
  %v1159 = vpop.f32.mrb[0].mxu0
  %v1160 = vadd.f32 0.0, %v1159
  %v1161 = vpop.f32.mrb[0].mxu0
  %1162 = vmatprep.mubr.bf16.mxu0 0
  %1163 = vmatmul.mubr.bf16.gmra.mrb[0].mxu0 %v1072
  %v1164 = vpop.f32.mrb[0].mxu0
  %v1165 = vadd.f32 0.0, %v1164
  %v1166 = vpop.f32.mrb[0].mxu0
  %v1167 = vpop.f32.mrb[0].mxu0
  %v1168 = vadd.f32 0.0, %v1167
  %v1169 = vpop.f32.mrb[0].mxu0
  %1170 = vdwg.mxu0
  %v1171 = vsel %vm112, %v1109, 0.0
  %1172 = vadd.xlane.f32.xlu0 %v1171
  %v1173 = vpop.xlane.xlu0 %1172
  %v1174 = vsel %vm112, %v1112, 0.0
  %1175 = vadd.xlane.f32.xlu0 %v1174
  %v1176 = vpop.xlane.xlu0 %1175
  %v1177 = vsel %vm112, %v1117, 0.0
  %1178 = vadd.xlane.f32.xlu0 %v1177
  %v1179 = vpop.xlane.xlu0 %1178
  %v1180 = vsel %vm112, %v1120, 0.0
  %1181 = vadd.xlane.f32.xlu0 %v1180
  %v1182 = vpop.xlane.xlu0 %1181
  %v1183 = vsel %vm112, %v1125, 0.0
  %1184 = vadd.xlane.f32.xlu0 %v1183
  %v1185 = vpop.xlane.xlu0 %1184
  %v1186 = vsel %vm112, %v1128, 0.0
  %1187 = vadd.xlane.f32.xlu0 %v1186
  %v1188 = vpop.xlane.xlu0 %1187
  %v1189 = vsel %vm112, %v1133, 0.0
  %1190 = vadd.xlane.f32.xlu0 %v1189
  %v1191 = vpop.xlane.xlu0 %1190
  %v1192 = vsel %vm112, %v1136, 0.0
  %1193 = vadd.xlane.f32.xlu0 %v1192
  %v1194 = vpop.xlane.xlu0 %1193
  %v1195 = vsel %vm112, %v1141, 0.0
  %1196 = vadd.xlane.f32.xlu0 %v1195
  %v1197 = vpop.xlane.xlu0 %1196
  %v1198 = vsel %vm112, %v1144, 0.0
  %1199 = vadd.xlane.f32.xlu0 %v1198
  %v1200 = vpop.xlane.xlu0 %1199
  %v1201 = vsel %vm112, %v1149, 0.0
  %1202 = vadd.xlane.f32.xlu0 %v1201
  %v1203 = vpop.xlane.xlu0 %1202
  %v1204 = vsel %vm112, %v1152, 0.0
  %1205 = vadd.xlane.f32.xlu0 %v1204
  %v1206 = vpop.xlane.xlu0 %1205
  %v1207 = vsel %vm112, %v1157, 0.0
  %1208 = vadd.xlane.f32.xlu0 %v1207
  %v1209 = vpop.xlane.xlu0 %1208
  %v1210 = vsel %vm112, %v1160, 0.0
  %1211 = vadd.xlane.f32.xlu0 %v1210
  %v1212 = vpop.xlane.xlu0 %1211
  %v1213 = vsel %vm112, %v1165, 0.0
  %1214 = vadd.xlane.f32.xlu0 %v1213
  %v1215 = vpop.xlane.xlu0 %1214
  %v1216 = vsel %vm112, %v1168, 0.0
  %1217 = vadd.xlane.f32.xlu0 %v1216
  %v1218 = vpop.xlane.xlu0 %1217
  %v1219 = vrcp.pop 32.0
  %v1220 = vmul.f32 %v1173, %v1219
  %v1221 = vmul.f32 %v1176, %v1219
  %v1222 = vmul.f32 %v1179, %v1219
  %v1223 = vmul.f32 %v1182, %v1219
  %v1224 = vmul.f32 %v1185, %v1219
  %v1225 = vmul.f32 %v1188, %v1219
  %v1226 = vmul.f32 %v1191, %v1219
  %v1227 = vmul.f32 %v1194, %v1219
  %v1228 = vmul.f32 %v1197, %v1219
  %v1229 = vmul.f32 %v1200, %v1219
  %v1230 = vmul.f32 %v1203, %v1219
  %v1231 = vmul.f32 %v1206, %v1219
  %v1232 = vmul.f32 %v1209, %v1219
  %v1233 = vmul.f32 %v1212, %v1219
  %v1234 = vmul.f32 %v1215, %v1219
  %v1235 = vmul.f32 %v1218, %v1219
  %v1236 = vsub.f32 %v1109, %v1220
  %v1237 = vsub.f32 %v1112, %v1221
  %v1238 = vsub.f32 %v1117, %v1222
  %v1239 = vsub.f32 %v1120, %v1223
  %v1240 = vsub.f32 %v1125, %v1224
  %v1241 = vsub.f32 %v1128, %v1225
  %v1242 = vsub.f32 %v1133, %v1226
  %v1243 = vsub.f32 %v1136, %v1227
  %v1244 = vsub.f32 %v1141, %v1228
  %v1245 = vsub.f32 %v1144, %v1229
  %v1246 = vsub.f32 %v1149, %v1230
  %v1247 = vsub.f32 %v1152, %v1231
  %v1248 = vsub.f32 %v1157, %v1232
  %v1249 = vsub.f32 %v1160, %v1233
  %v1250 = vsub.f32 %v1165, %v1234
  %v1251 = vsub.f32 %v1168, %v1235
  %v1252 = vmul.f32 %v1236, %v1236
  %v1253 = vmul.f32 %v1237, %v1237
  %v1254 = vmul.f32 %v1238, %v1238
  %v1255 = vmul.f32 %v1239, %v1239
  %v1256 = vmul.f32 %v1240, %v1240
  %v1257 = vmul.f32 %v1241, %v1241
  %v1258 = vmul.f32 %v1242, %v1242
  %v1259 = vmul.f32 %v1243, %v1243
  %v1260 = vmul.f32 %v1244, %v1244
  %v1261 = vmul.f32 %v1245, %v1245
  %v1262 = vmul.f32 %v1246, %v1246
  %v1263 = vmul.f32 %v1247, %v1247
  %v1264 = vmul.f32 %v1248, %v1248
  %v1265 = vmul.f32 %v1249, %v1249
  %v1266 = vmul.f32 %v1250, %v1250
  %v1267 = vmul.f32 %v1251, %v1251
  %v1268 = vsel %vm112, %v1252, 0.0
  %1269 = vadd.xlane.f32.xlu0 %v1268
  %v1270 = vpop.xlane.xlu0 %1269
  %v1271 = vsel %vm112, %v1253, 0.0
  %1272 = vadd.xlane.f32.xlu0 %v1271
  %v1273 = vpop.xlane.xlu0 %1272
  %v1274 = vsel %vm112, %v1254, 0.0
  %1275 = vadd.xlane.f32.xlu0 %v1274
  %v1276 = vpop.xlane.xlu0 %1275
  %v1277 = vsel %vm112, %v1255, 0.0
  %1278 = vadd.xlane.f32.xlu0 %v1277
  %v1279 = vpop.xlane.xlu0 %1278
  %v1280 = vsel %vm112, %v1256, 0.0
  %1281 = vadd.xlane.f32.xlu0 %v1280
  %v1282 = vpop.xlane.xlu0 %1281
  %v1283 = vsel %vm112, %v1257, 0.0
  %1284 = vadd.xlane.f32.xlu0 %v1283
  %v1285 = vpop.xlane.xlu0 %1284
  %v1286 = vsel %vm112, %v1258, 0.0
  %1287 = vadd.xlane.f32.xlu0 %v1286
  %v1288 = vpop.xlane.xlu0 %1287
  %v1289 = vsel %vm112, %v1259, 0.0
  %1290 = vadd.xlane.f32.xlu0 %v1289
  %v1291 = vpop.xlane.xlu0 %1290
  %v1292 = vsel %vm112, %v1260, 0.0
  %1293 = vadd.xlane.f32.xlu0 %v1292
  %v1294 = vpop.xlane.xlu0 %1293
  %v1295 = vsel %vm112, %v1261, 0.0
  %1296 = vadd.xlane.f32.xlu0 %v1295
  %v1297 = vpop.xlane.xlu0 %1296
  %v1298 = vsel %vm112, %v1262, 0.0
  %1299 = vadd.xlane.f32.xlu0 %v1298
  %v1300 = vpop.xlane.xlu0 %1299
  %v1301 = vsel %vm112, %v1263, 0.0
  %1302 = vadd.xlane.f32.xlu0 %v1301
  %v1303 = vpop.xlane.xlu0 %1302
  %v1304 = vsel %vm112, %v1264, 0.0
  %1305 = vadd.xlane.f32.xlu0 %v1304
  %v1306 = vpop.xlane.xlu0 %1305
  %v1307 = vsel %vm112, %v1265, 0.0
  %1308 = vadd.xlane.f32.xlu0 %v1307
  %v1309 = vpop.xlane.xlu0 %1308
  %v1310 = vsel %vm112, %v1266, 0.0
  %1311 = vadd.xlane.f32.xlu0 %v1310
  %v1312 = vpop.xlane.xlu0 %1311
  %v1313 = vsel %vm112, %v1267, 0.0
  %1314 = vadd.xlane.f32.xlu0 %v1313
  %v1315 = vpop.xlane.xlu0 %1314
  %v1316 = vmul.f32 %v1270, %v1219
  %v1317 = vmul.f32 %v1273, %v1219
  %v1318 = vmul.f32 %v1276, %v1219
  %v1319 = vmul.f32 %v1279, %v1219
  %v1320 = vmul.f32 %v1282, %v1219
  %v1321 = vmul.f32 %v1285, %v1219
  %v1322 = vmul.f32 %v1288, %v1219
  %v1323 = vmul.f32 %v1291, %v1219
  %v1324 = vmul.f32 %v1294, %v1219
  %v1325 = vmul.f32 %v1297, %v1219
  %v1326 = vmul.f32 %v1300, %v1219
  %v1327 = vmul.f32 %v1303, %v1219
  %v1328 = vmul.f32 %v1306, %v1219
  %v1329 = vmul.f32 %v1309, %v1219
  %v1330 = vmul.f32 %v1312, %v1219
  %v1331 = vmul.f32 %v1315, %v1219
  %v1332 = vadd.f32 %v1316, 1e-05
  %v1333 = vadd.f32 %v1317, 1e-05
  %v1334 = vadd.f32 %v1318, 1e-05
  %v1335 = vadd.f32 %v1319, 1e-05
  %v1336 = vadd.f32 %v1320, 1e-05
  %v1337 = vadd.f32 %v1321, 1e-05
  %v1338 = vadd.f32 %v1322, 1e-05
  %v1339 = vadd.f32 %v1323, 1e-05
  %v1340 = vadd.f32 %v1324, 1e-05
  %v1341 = vadd.f32 %v1325, 1e-05
  %v1342 = vadd.f32 %v1326, 1e-05
  %v1343 = vadd.f32 %v1327, 1e-05
  %v1344 = vadd.f32 %v1328, 1e-05
  %v1345 = vadd.f32 %v1329, 1e-05
  %v1346 = vadd.f32 %v1330, 1e-05
  %v1347 = vadd.f32 %v1331, 1e-05
  %v1348 = vrsqrt.pop %v1332
  %v1349 = vrsqrt.pop %v1333
  %v1350 = vrsqrt.pop %v1334
  %v1351 = vrsqrt.pop %v1335
  %v1352 = vrsqrt.pop %v1336
  %v1353 = vrsqrt.pop %v1337
  %v1354 = vrsqrt.pop %v1338
  %v1355 = vrsqrt.pop %v1339
  %v1356 = vrsqrt.pop %v1340
  %v1357 = vrsqrt.pop %v1341
  %v1358 = vrsqrt.pop %v1342
  %v1359 = vrsqrt.pop %v1343
  %v1360 = vrsqrt.pop %v1344
  %v1361 = vrsqrt.pop %v1345
  %v1362 = vrsqrt.pop %v1346
  %v1363 = vrsqrt.pop %v1347
  %v1364 = vmul.f32 %v1236, %v1348
  %v1365 = vmul.f32 %v1237, %v1349
  %v1366 = vmul.f32 %v1238, %v1350
  %v1367 = vmul.f32 %v1239, %v1351
  %v1368 = vmul.f32 %v1240, %v1352
  %v1369 = vmul.f32 %v1241, %v1353
  %v1370 = vmul.f32 %v1242, %v1354
  %v1371 = vmul.f32 %v1243, %v1355
  %v1372 = vmul.f32 %v1244, %v1356
  %v1373 = vmul.f32 %v1245, %v1357
  %v1374 = vmul.f32 %v1246, %v1358
  %v1375 = vmul.f32 %v1247, %v1359
  %v1376 = vmul.f32 %v1248, %v1360
  %v1377 = vmul.f32 %v1249, %v1361
  %v1378 = vmul.f32 %v1250, %v1362
  %v1379 = vmul.f32 %v1251, %v1363
  %v1380 = vld [vmem:[%s4] sm:$0x1]
  %v1382 = vlaneseq
  %v1383 = vshrl.u32 %v1382, 7
  %v1384 = vsub.s32 0, %v1383
  %v1385 = vrot.slane %v1380, %v1384
  %v1387 = vmul.f32 %v1364, %v1385
  %v1388 = vmul.f32 %v1365, %v1385
  %v1389 = vmul.f32 %v1366, %v1385
  %v1390 = vmul.f32 %v1367, %v1385
  %v1391 = vmul.f32 %v1368, %v1385
  %v1392 = vmul.f32 %v1369, %v1385
  %v1393 = vmul.f32 %v1370, %v1385
  %v1394 = vmul.f32 %v1371, %v1385
  %v1395 = vmul.f32 %v1372, %v1385
  %v1396 = vmul.f32 %v1373, %v1385
  %v1397 = vmul.f32 %v1374, %v1385
  %v1398 = vmul.f32 %v1375, %v1385
  %v1399 = vmul.f32 %v1376, %v1385
  %v1400 = vmul.f32 %v1377, %v1385
  %v1401 = vmul.f32 %v1378, %v1385
  %v1402 = vmul.f32 %v1379, %v1385
  %v1403 = vld [vmem:[%s5] sm:$0x1]
  %v1405 = vlaneseq
  %v1406 = vshrl.u32 %v1405, 7
  %v1407 = vsub.s32 0, %v1406
  %v1408 = vrot.slane %v1403, %v1407
  %v1410 = vadd.f32 %v1387, %v1408
  %v1411 = vadd.f32 %v1388, %v1408
  %v1412 = vadd.f32 %v1389, %v1408
  %v1413 = vadd.f32 %v1390, %v1408
  %v1414 = vadd.f32 %v1391, %v1408
  %v1415 = vadd.f32 %v1392, %v1408
  %v1416 = vadd.f32 %v1393, %v1408
  %v1417 = vadd.f32 %v1394, %v1408
  %v1418 = vadd.f32 %v1395, %v1408
  %v1419 = vadd.f32 %v1396, %v1408
  %v1420 = vadd.f32 %v1397, %v1408
  %v1421 = vadd.f32 %v1398, %v1408
  %v1422 = vadd.f32 %v1399, %v1408
  %v1423 = vadd.f32 %v1400, %v1408
  %v1424 = vadd.f32 %v1401, %v1408
  %v1425 = vadd.f32 %v1402, %v1408
  %1426 = vst.msk [vmem:[%s6] sm:$0xff] %vm112, %v1410
  %1427 = vst.msk [vmem:[%s6 + $0x8] sm:$0xff] %vm112, %v1411
  %1428 = vst.msk [vmem:[%s6 + $0x10] sm:$0xff] %vm112, %v1412
  %1429 = vst.msk [vmem:[%s6 + $0x18] sm:$0xff] %vm112, %v1413
  %1430 = vst.msk [vmem:[%s6 + $0x20] sm:$0xff] %vm112, %v1414
  %1431 = vst.msk [vmem:[%s6 + $0x28] sm:$0xff] %vm112, %v1415
  %1432 = vst.msk [vmem:[%s6 + $0x30] sm:$0xff] %vm112, %v1416
  %1433 = vst.msk [vmem:[%s6 + $0x38] sm:$0xff] %vm112, %v1417
  %1434 = vst.msk [vmem:[%s6 + $0x40] sm:$0xff] %vm112, %v1418
  %1435 = vst.msk [vmem:[%s6 + $0x48] sm:$0xff] %vm112, %v1419
  %1436 = vst.msk [vmem:[%s6 + $0x50] sm:$0xff] %vm112, %v1420
  %1437 = vst.msk [vmem:[%s6 + $0x58] sm:$0xff] %vm112, %v1421
  %1438 = vst.msk [vmem:[%s6 + $0x60] sm:$0xff] %vm112, %v1422
  %1439 = vst.msk [vmem:[%s6 + $0x68] sm:$0xff] %vm112, %v1423
  %1440 = vst.msk [vmem:[%s6 + $0x70] sm:$0xff] %vm112, %v1424
  %1441 = vst.msk [vmem:[%s6 + $0x78] sm:$0xff] %vm112, %v1425
  // Predicated region
  $region26: #{_lambda_.34} parent=0 // pred_check
    _
  $region27: #{_lambda_.34} parent=0 // pred_check_branch
    %1443 = sbr.rel (0) target = $region29
  $region28: #{_lambda_.34} parent=0 // pred_region
    _
  $region29: #{_lambda_.34} parent=0 // pred_fallthru
    _
  // Predicated region
  $region30: #{_lambda_.34} parent=0 // pred_check
    _
  $region31: #{_lambda_.34} parent=0 // pred_check_branch
    %1445 = sbr.rel (0) target = $region33
  $region32: #{_lambda_.34} parent=0 // pred_region
    _
  $region33: #{_lambda_.34} parent=0 // pred_fallthru
    _

// kernel: _lambda_.38
$region0: #{_lambda_.38}
  #allocation0 [shape = 'u32[]', space=smem, size = 0x4, offset = 0x4, fixed_abs, tag = 'smem constant byte address 0x4 - core index']
  #allocation1 [shape = 'u32[144,128]{1,0:T(1,128)}', space=vmem, size = 0x12000, scoped, tag = 'internal scratch']
  %s0 = inlined_call_operand.vmem [shape: bf16[128,64], index: 0, kind: input, shape index: {}]
  %s1 = inlined_call_operand.vmem [shape: bf16[64,256], index: 1, kind: input, shape index: {}]
  %s2 = inlined_call_operand.vmem [shape: bf16[256,32], index: 2, kind: input, shape index: {}]
  %s3 = inlined_call_operand.vmem [shape: f32[1,32], index: 3, kind: input, shape index: {}]
  %s4 = inlined_call_operand.vmem [shape: f32[1,32], index: 4, kind: input, shape index: {}]
  %s5 = inlined_call_operand.vmem [shape: f32[128,32], index: 5, kind: output, shape index: {}]
  %s6 = sld [smem:[#allocation0]]
  $region30: #{_lambda_.38} parent=0
    _
  %s8 = ssub.s32 1, %s6
  %s9 = scalar_select 0, %s8, %s6
  // Predicated region
  $region2: #{_lambda_.38} parent=0 // pred_check
    _
  $region3: #{_lambda_.38} parent=0 // pred_check_branch
    %11 = sbr.rel (0) target = $region5
  $region4: #{_lambda_.38} parent=0 // pred_region
    _
  $region5: #{_lambda_.38} parent=0 // pred_fallthru
    _
  // Predicated region
  $region6: #{_lambda_.38} parent=0 // pred_check
    _
  $region7: #{_lambda_.38} parent=0 // pred_check_branch
    %13 = sbr.rel (0) target = $region9
  $region8: #{_lambda_.38} parent=0 // pred_region
    _
  $region9: #{_lambda_.38} parent=0 // pred_fallthru
    _
  // Predicated region
  $region10: #{_lambda_.38} parent=0 // pred_check
    _
  $region11: #{_lambda_.38} parent=0 // pred_check_branch
    %15 = sbr.rel (0) target = $region13
  $region12: #{_lambda_.38} parent=0 // pred_region
    _
  $region13: #{_lambda_.38} parent=0 // pred_fallthru
    _
  // Predicated region
  $region14: #{_lambda_.38} parent=0 // pred_check
    _
  $region15: #{_lambda_.38} parent=0 // pred_check_branch
    %17 = sbr.rel (0) target = $region17
  $region16: #{_lambda_.38} parent=0 // pred_region
    _
  $region17: #{_lambda_.38} parent=0 // pred_fallthru
    _
  // Predicated region
  $region18: #{_lambda_.38} parent=0 // pred_check
    _
  $region19: #{_lambda_.38} parent=0 // pred_check_branch
    %19 = sbr.rel (0) target = $region21
  $region20: #{_lambda_.38} parent=0 // pred_region
    _
  $region21: #{_lambda_.38} parent=0 // pred_fallthru
    _
  %v21 = vld [vmem:[%s0] sm:$0xf]
  %v22 = vld [vmem:[%s0 + $0x4] sm:$0xf]
  %v23 = vld [vmem:[%s0 + $0x8] sm:$0xf]
  %v24 = vld [vmem:[%s0 + $0xc] sm:$0xf]
  %v25 = vld [vmem:[%s0 + $0x10] sm:$0xf]
  %v26 = vld [vmem:[%s0 + $0x14] sm:$0xf]
  %v27 = vld [vmem:[%s0 + $0x18] sm:$0xf]
  %v28 = vld [vmem:[%s0 + $0x1c] sm:$0xf]
  %v29 = vld [vmem:[%s0 + $0x20] sm:$0xf]
  %v30 = vld [vmem:[%s0 + $0x24] sm:$0xf]
  %v31 = vld [vmem:[%s0 + $0x28] sm:$0xf]
  %v32 = vld [vmem:[%s0 + $0x2c] sm:$0xf]
  %v33 = vld [vmem:[%s0 + $0x30] sm:$0xf]
  %v34 = vld [vmem:[%s0 + $0x34] sm:$0xf]
  %v35 = vld [vmem:[%s0 + $0x38] sm:$0xf]
  %v36 = vld [vmem:[%s0 + $0x3c] sm:$0xf]
  %v37 = vld [vmem:[%s1] sm:$0xff]
  %v38 = vld [vmem:[%s1 + $0x8] sm:$0xff]
  %v39 = vld [vmem:[%s1 + $0x10] sm:$0xff]
  %v40 = vld [vmem:[%s1 + $0x18] sm:$0xff]
  %v41 = vld [vmem:[%s1 + $0x20] sm:$0xff]
  %v42 = vld [vmem:[%s1 + $0x28] sm:$0xff]
  %v43 = vld [vmem:[%s1 + $0x30] sm:$0xff]
  %v44 = vld [vmem:[%s1 + $0x38] sm:$0xff]
  %v61 = vunpack.c.l.b16 %v21
  %v62 = vunpack.c.l.b16 %v22
  %v63 = vunpack.c.l.b16 %v23
  %v64 = vunpack.c.l.b16 %v24
  %v65 = vunpack.c.l.b16 %v25
  %v66 = vunpack.c.l.b16 %v26
  %v67 = vunpack.c.l.b16 %v27
  %v68 = vunpack.c.l.b16 %v28
  %v69 = vunpack.c.l.b16 %v29
  %v70 = vunpack.c.l.b16 %v30
  %v71 = vunpack.c.l.b16 %v31
  %v72 = vunpack.c.l.b16 %v32
  %v73 = vunpack.c.l.b16 %v33
  %v74 = vunpack.c.l.b16 %v34
  %v75 = vunpack.c.l.b16 %v35
  %v76 = vunpack.c.l.b16 %v36
  %v77 = vpack.c.b16 %v62, %v61
  %v78 = vpack.c.b16 %v64, %v63
  %v79 = vpack.c.b16 %v66, %v65
  %v80 = vpack.c.b16 %v68, %v67
  %v81 = vpack.c.b16 %v70, %v69
  %v82 = vpack.c.b16 %v72, %v71
  %v83 = vpack.c.b16 %v74, %v73
  %v84 = vpack.c.b16 %v76, %v75
  %v93 = vunpack.c.l.b16 %v37
  %v94 = vunpack.c.h.b16 %v37
  %v95 = vunpack.c.l.b16 %v38
  %v96 = vunpack.c.h.b16 %v38
  %v97 = vunpack.c.l.b16 %v39
  %v98 = vunpack.c.h.b16 %v39
  %v99 = vunpack.c.l.b16 %v40
  %v100 = vunpack.c.h.b16 %v40
  %v101 = vunpack.c.l.b16 %v41
  %v102 = vunpack.c.h.b16 %v41
  %v103 = vunpack.c.l.b16 %v42
  %v104 = vunpack.c.h.b16 %v42
  %v105 = vunpack.c.l.b16 %v43
  %v106 = vunpack.c.h.b16 %v43
  %v107 = vunpack.c.l.b16 %v44
  %v108 = vunpack.c.h.b16 %v44
  %v109 = vpack.c.b16 %v95, %v93
  %v110 = vpack.c.b16 %v96, %v94
  %v111 = vpack.c.b16 %v99, %v97
  %v112 = vpack.c.b16 %v100, %v98
  %v113 = vpack.c.b16 %v103, %v101
  %v114 = vpack.c.b16 %v104, %v102
  %v115 = vpack.c.b16 %v107, %v105
  %v116 = vpack.c.b16 %v108, %v106
  %vm125 = vcmask 523264
  %v127 = vsel %vm125, %v77, 0
  %v130 = vsel %vm125, %v78, 0
  %v133 = vsel %vm125, %v79, 0
  %v136 = vsel %vm125, %v80, 0
  %v139 = vsel %vm125, %v81, 0
  %v142 = vsel %vm125, %v82, 0
  %v145 = vsel %vm125, %v83, 0
  %v148 = vsel %vm125, %v84, 0
  %150 = vmatprep.subr.bf16.mxu0 %v110
  %151 = vmatpush1.bf16.msra.mxu0 %v109
  %152 = vmatprep.subr.bf16.mxu0 %v112
  %153 = vmatpush1.bf16.msra.mxu0 %v111
  %154 = vmatprep.subr.bf16.mxu0 %v114
  %155 = vmatpush1.bf16.msra.mxu0 %v113
  %156 = vmatprep.subr.bf16.mxu0 %v116
  %157 = vmatpush1.bf16.msra.mxu0 %v115
  %158 = vmatprep.subr.bf16.mxu0 0
  %159 = vmatpush1.bf16.msra.mxu0 0
  %160 = vmatprep.subr.bf16.mxu0 0
  %161 = vmatpush1.bf16.msra.mxu0 0
  %162 = vmatprep.subr.bf16.mxu0 0
  %163 = vmatpush1.bf16.msra.mxu0 0
  %164 = vmatprep.subr.bf16.mxu0 0
  %165 = vmatpush1.bf16.msra.mxu0 0
  %166 = vmatprep.subr.bf16.mxu0 0
  %167 = vmatpush1.bf16.msra.mxu0 0
  %168 = vmatprep.subr.bf16.mxu0 0
  %169 = vmatpush1.bf16.msra.mxu0 0
  %170 = vmatprep.subr.bf16.mxu0 0
  %171 = vmatpush1.bf16.msra.mxu0 0
  %172 = vmatprep.subr.bf16.mxu0 0
  %173 = vmatpush1.bf16.msra.mxu0 0
  %174 = vmatprep.subr.bf16.mxu0 0
  %175 = vmatpush1.bf16.msra.mxu0 0
  %176 = vmatprep.subr.bf16.mxu0 0
  %177 = vmatpush1.bf16.msra.mxu0 0
  %178 = vmatprep.subr.bf16.mxu0 0
  %179 = vmatpush1.bf16.msra.mxu0 0
  %180 = vmatprep.subr.bf16.mxu0 0
  %181 = vmatpush1.bf16.msra.mxu0 0
  %182 = vmatprep.mubr.bf16.mxu0 0
  %183 = vmatmul.mubr.bf16.gmra.mrb[0].mxu0 %v127
  %v184 = vpop.f32.mrb[0].mxu0
  %v185 = vadd.f32 0.0, %v184
  %v186 = vpop.f32.mrb[0].mxu0
  %v187 = vadd.f32 0.0, %v186
  %v188 = vpop.f32.mrb[0].mxu0
  %v189 = vadd.f32 0.0, %v188
  %v190 = vpop.f32.mrb[0].mxu0
  %v191 = vadd.f32 0.0, %v190
  %192 = vmatprep.mubr.bf16.mxu0 0
  %193 = vmatmul.mubr.bf16.gmra.mrb[0].mxu0 %v130
  %v194 = vpop.f32.mrb[0].mxu0
  %v195 = vadd.f32 0.0, %v194
  %v196 = vpop.f32.mrb[0].mxu0
  %v197 = vadd.f32 0.0, %v196
  %v198 = vpop.f32.mrb[0].mxu0
  %v199 = vadd.f32 0.0, %v198
  %v200 = vpop.f32.mrb[0].mxu0
  %v201 = vadd.f32 0.0, %v200
  %202 = vmatprep.mubr.bf16.mxu0 0
  %203 = vmatmul.mubr.bf16.gmra.mrb[0].mxu0 %v133
  %v204 = vpop.f32.mrb[0].mxu0
  %v205 = vadd.f32 0.0, %v204
  %v206 = vpop.f32.mrb[0].mxu0
  %v207 = vadd.f32 0.0, %v206
  %v208 = vpop.f32.mrb[0].mxu0
  %v209 = vadd.f32 0.0, %v208
  %v210 = vpop.f32.mrb[0].mxu0
  %v211 = vadd.f32 0.0, %v210
  %212 = vmatprep.mubr.bf16.mxu0 0
  %213 = vmatmul.mubr.bf16.gmra.mrb[0].mxu0 %v136
  %v214 = vpop.f32.mrb[0].mxu0
  %v215 = vadd.f32 0.0, %v214
  %v216 = vpop.f32.mrb[0].mxu0
  %v217 = vadd.f32 0.0, %v216
  %v218 = vpop.f32.mrb[0].mxu0
  %v219 = vadd.f32 0.0, %v218
  %v220 = vpop.f32.mrb[0].mxu0
  %v221 = vadd.f32 0.0, %v220
  %222 = vmatprep.mubr.bf16.mxu0 0
  %223 = vmatmul.mubr.bf16.gmra.mrb[0].mxu0 %v139
  %v224 = vpop.f32.mrb[0].mxu0
  %v225 = vadd.f32 0.0, %v224
  %v226 = vpop.f32.mrb[0].mxu0
  %v227 = vadd.f32 0.0, %v226
  %v228 = vpop.f32.mrb[0].mxu0
  %v229 = vadd.f32 0.0, %v228
  %v230 = vpop.f32.mrb[0].mxu0
  %v231 = vadd.f32 0.0, %v230
  %232 = vmatprep.mubr.bf16.mxu0 0
  %233 = vmatmul.mubr.bf16.gmra.mrb[0].mxu0 %v142
  %v234 = vpop.f32.mrb[0].mxu0
  %v235 = vadd.f32 0.0, %v234
  %v236 = vpop.f32.mrb[0].mxu0
  %v237 = vadd.f32 0.0, %v236
  %v238 = vpop.f32.mrb[0].mxu0
  %v239 = vadd.f32 0.0, %v238
  %v240 = vpop.f32.mrb[0].mxu0
  %v241 = vadd.f32 0.0, %v240
  %242 = vmatprep.mubr.bf16.mxu0 0
  %243 = vmatmul.mubr.bf16.gmra.mrb[0].mxu0 %v145
  %v244 = vpop.f32.mrb[0].mxu0
  %v245 = vadd.f32 0.0, %v244
  %v246 = vpop.f32.mrb[0].mxu0
  %v247 = vadd.f32 0.0, %v246
  %v248 = vpop.f32.mrb[0].mxu0
  %v249 = vadd.f32 0.0, %v248
  %v250 = vpop.f32.mrb[0].mxu0
  %v251 = vadd.f32 0.0, %v250
  %252 = vmatprep.mubr.bf16.mxu0 0
  %253 = vmatmul.mubr.bf16.gmra.mrb[0].mxu0 %v148
  %v254 = vpop.f32.mrb[0].mxu0
  %v255 = vadd.f32 0.0, %v254
  %v256 = vpop.f32.mrb[0].mxu0
  %v257 = vadd.f32 0.0, %v256
  %v258 = vpop.f32.mrb[0].mxu0
  %v259 = vadd.f32 0.0, %v258
  %v260 = vpop.f32.mrb[0].mxu0
  %v261 = vadd.f32 0.0, %v260
  %262 = vdwg.mxu0
  %v263 = vmul.f32 %v185, %v185
  %v264 = vmul.f32 %v187, %v187
  %v265 = vmul.f32 %v189, %v189
  %v266 = vmul.f32 %v191, %v191
  %v267 = vmul.f32 %v195, %v195
  %v268 = vmul.f32 %v197, %v197
  %v269 = vmul.f32 %v199, %v199
  %v270 = vmul.f32 %v201, %v201
  %v271 = vmul.f32 %v205, %v205
  %v272 = vmul.f32 %v207, %v207
  %v273 = vmul.f32 %v209, %v209
  %v274 = vmul.f32 %v211, %v211
  %v275 = vmul.f32 %v215, %v215
  %v276 = vmul.f32 %v217, %v217
  %v277 = vmul.f32 %v219, %v219
  %v278 = vmul.f32 %v221, %v221
  %v279 = vmul.f32 %v225, %v225
  %v280 = vmul.f32 %v227, %v227
  %v281 = vmul.f32 %v229, %v229
  %v282 = vmul.f32 %v231, %v231
  %v283 = vmul.f32 %v235, %v235
  %v284 = vmul.f32 %v237, %v237
  %v285 = vmul.f32 %v239, %v239
  %v286 = vmul.f32 %v241, %v241
  %v287 = vmul.f32 %v245, %v245
  %v288 = vmul.f32 %v247, %v247
  %v289 = vmul.f32 %v249, %v249
  %v290 = vmul.f32 %v251, %v251
  %v291 = vmul.f32 %v255, %v255
  %v292 = vmul.f32 %v257, %v257
  %v293 = vmul.f32 %v259, %v259
  %v294 = vmul.f32 %v261, %v261
  %v295 = vmul.f32 %v185, %v263
  %v296 = vmul.f32 %v187, %v264
  %v297 = vmul.f32 %v189, %v265
  %v298 = vmul.f32 %v191, %v266
  %v299 = vmul.f32 %v195, %v267
  %v300 = vmul.f32 %v197, %v268
  %v301 = vmul.f32 %v199, %v269
  %v302 = vmul.f32 %v201, %v270
  %v303 = vmul.f32 %v205, %v271
  %v304 = vmul.f32 %v207, %v272
  %v305 = vmul.f32 %v209, %v273
  %v306 = vmul.f32 %v211, %v274
  %v307 = vmul.f32 %v215, %v275
  %v308 = vmul.f32 %v217, %v276
  %v309 = vmul.f32 %v219, %v277
  %v310 = vmul.f32 %v221, %v278
  %v311 = vmul.f32 %v225, %v279
  %v312 = vmul.f32 %v227, %v280
  %v313 = vmul.f32 %v229, %v281
  %v314 = vmul.f32 %v231, %v282
  %v315 = vmul.f32 %v235, %v283
  %v316 = vmul.f32 %v237, %v284
  %v317 = vmul.f32 %v239, %v285
  %v318 = vmul.f32 %v241, %v286
  %v319 = vmul.f32 %v245, %v287
  %v320 = vmul.f32 %v247, %v288
  %v321 = vmul.f32 %v249, %v289
  %v322 = vmul.f32 %v251, %v290
  %v323 = vmul.f32 %v255, %v291
  %v324 = vmul.f32 %v257, %v292
  %v325 = vmul.f32 %v259, %v293
  %v326 = vmul.f32 %v261, %v294
  %v327 = vmul.f32 %v295, 0.044715
  %v328 = vmul.f32 %v296, 0.044715
  %v329 = vmul.f32 %v297, 0.044715
  %v330 = vmul.f32 %v298, 0.044715
  %v331 = vmul.f32 %v299, 0.044715
  %v332 = vmul.f32 %v300, 0.044715
  %v333 = vmul.f32 %v301, 0.044715
  %v334 = vmul.f32 %v302, 0.044715
  %v335 = vmul.f32 %v303, 0.044715
  %v336 = vmul.f32 %v304, 0.044715
  %v337 = vmul.f32 %v305, 0.044715
  %v338 = vmul.f32 %v306, 0.044715
  %v339 = vmul.f32 %v307, 0.044715
  %v340 = vmul.f32 %v308, 0.044715
  %v341 = vmul.f32 %v309, 0.044715
  %v342 = vmul.f32 %v310, 0.044715
  %v343 = vmul.f32 %v311, 0.044715
  %v344 = vmul.f32 %v312, 0.044715
  %v345 = vmul.f32 %v313, 0.044715
  %v346 = vmul.f32 %v314, 0.044715
  %v347 = vmul.f32 %v315, 0.044715
  %v348 = vmul.f32 %v316, 0.044715
  %v349 = vmul.f32 %v317, 0.044715
  %v350 = vmul.f32 %v318, 0.044715
  %v351 = vmul.f32 %v319, 0.044715
  %v352 = vmul.f32 %v320, 0.044715
  %v353 = vmul.f32 %v321, 0.044715
  %v354 = vmul.f32 %v322, 0.044715
  %v355 = vmul.f32 %v323, 0.044715
  %v356 = vmul.f32 %v324, 0.044715
  %v357 = vmul.f32 %v325, 0.044715
  %v358 = vmul.f32 %v326, 0.044715
  %v359 = vadd.f32 %v185, %v327
  %v360 = vadd.f32 %v187, %v328
  %v361 = vadd.f32 %v189, %v329
  %v362 = vadd.f32 %v191, %v330
  %v363 = vadd.f32 %v195, %v331
  %v364 = vadd.f32 %v197, %v332
  %v365 = vadd.f32 %v199, %v333
  %v366 = vadd.f32 %v201, %v334
  %v367 = vadd.f32 %v205, %v335
  %v368 = vadd.f32 %v207, %v336
  %v369 = vadd.f32 %v209, %v337
  %v370 = vadd.f32 %v211, %v338
  %v371 = vadd.f32 %v215, %v339
  %v372 = vadd.f32 %v217, %v340
  %v373 = vadd.f32 %v219, %v341
  %v374 = vadd.f32 %v221, %v342
  %v375 = vadd.f32 %v225, %v343
  %v376 = vadd.f32 %v227, %v344
  %v377 = vadd.f32 %v229, %v345
  %v378 = vadd.f32 %v231, %v346
  %v379 = vadd.f32 %v235, %v347
  %v380 = vadd.f32 %v237, %v348
  %v381 = vadd.f32 %v239, %v349
  %v382 = vadd.f32 %v241, %v350
  %v383 = vadd.f32 %v245, %v351
  %v384 = vadd.f32 %v247, %v352
  %v385 = vadd.f32 %v249, %v353
  %v386 = vadd.f32 %v251, %v354
  %v387 = vadd.f32 %v255, %v355
  %v388 = vadd.f32 %v257, %v356
  %v389 = vadd.f32 %v259, %v357
  %v390 = vadd.f32 %v261, %v358
  %v391 = vmul.f32 %v359, 0.7978846
  %v392 = vmul.f32 %v360, 0.7978846
  %v393 = vmul.f32 %v361, 0.7978846
  %v394 = vmul.f32 %v362, 0.7978846
  %v395 = vmul.f32 %v363, 0.7978846
  %v396 = vmul.f32 %v364, 0.7978846
  %v397 = vmul.f32 %v365, 0.7978846
  %v398 = vmul.f32 %v366, 0.7978846
  %v399 = vmul.f32 %v367, 0.7978846
  %v400 = vmul.f32 %v368, 0.7978846
  %v401 = vmul.f32 %v369, 0.7978846
  %v402 = vmul.f32 %v370, 0.7978846
  %v403 = vmul.f32 %v371, 0.7978846
  %v404 = vmul.f32 %v372, 0.7978846
  %v405 = vmul.f32 %v373, 0.7978846
  %v406 = vmul.f32 %v374, 0.7978846
  %v407 = vmul.f32 %v375, 0.7978846
  %v408 = vmul.f32 %v376, 0.7978846
  %v409 = vmul.f32 %v377, 0.7978846
  %v410 = vmul.f32 %v378, 0.7978846
  %v411 = vmul.f32 %v379, 0.7978846
  %v412 = vmul.f32 %v380, 0.7978846
  %v413 = vmul.f32 %v381, 0.7978846
  %v414 = vmul.f32 %v382, 0.7978846
  %v415 = vmul.f32 %v383, 0.7978846
  %v416 = vmul.f32 %v384, 0.7978846
  %v417 = vmul.f32 %v385, 0.7978846
  %v418 = vmul.f32 %v386, 0.7978846
  %v419 = vmul.f32 %v387, 0.7978846
  %v420 = vmul.f32 %v388, 0.7978846
  %v421 = vmul.f32 %v389, 0.7978846
  %v422 = vmul.f32 %v390, 0.7978846
  %v423 = vtanh.pop %v391
  %v424 = vtanh.pop %v392
  %v425 = vtanh.pop %v393
  %v426 = vtanh.pop %v394
  %v427 = vtanh.pop %v395
  %v428 = vtanh.pop %v396
  %v429 = vtanh.pop %v397
  %v430 = vtanh.pop %v398
  %v431 = vtanh.pop %v399
  %v432 = vtanh.pop %v400
  %v433 = vtanh.pop %v401
  %v434 = vtanh.pop %v402
  %v435 = vtanh.pop %v403
  %v436 = vtanh.pop %v404
  %v437 = vtanh.pop %v405
  %v438 = vtanh.pop %v406
  %v439 = vtanh.pop %v407
  %v440 = vtanh.pop %v408
  %v441 = vtanh.pop %v409
  %v442 = vtanh.pop %v410
  %v443 = vtanh.pop %v411
  %v444 = vtanh.pop %v412
  %v445 = vtanh.pop %v413
  %v446 = vtanh.pop %v414
  %v447 = vtanh.pop %v415
  %v448 = vtanh.pop %v416
  %v449 = vtanh.pop %v417
  %v450 = vtanh.pop %v418
  %v451 = vtanh.pop %v419
  %v452 = vtanh.pop %v420
  %v453 = vtanh.pop %v421
  %v454 = vtanh.pop %v422
  %v455 = vadd.f32 %v423, 1.0
  %v456 = vadd.f32 %v424, 1.0
  %v457 = vadd.f32 %v425, 1.0
  %v458 = vadd.f32 %v426, 1.0
  %v459 = vadd.f32 %v427, 1.0
  %v460 = vadd.f32 %v428, 1.0
  %v461 = vadd.f32 %v429, 1.0
  %v462 = vadd.f32 %v430, 1.0
  %v463 = vadd.f32 %v431, 1.0
  %v464 = vadd.f32 %v432, 1.0
  %v465 = vadd.f32 %v433, 1.0
  %v466 = vadd.f32 %v434, 1.0
  %v467 = vadd.f32 %v435, 1.0
  %v468 = vadd.f32 %v436, 1.0
  %v469 = vadd.f32 %v437, 1.0
  %v470 = vadd.f32 %v438, 1.0
  %v471 = vadd.f32 %v439, 1.0
  %v472 = vadd.f32 %v440, 1.0
  %v473 = vadd.f32 %v441, 1.0
  %v474 = vadd.f32 %v442, 1.0
  %v475 = vadd.f32 %v443, 1.0
  %v476 = vadd.f32 %v444, 1.0
  %v477 = vadd.f32 %v445, 1.0
  %v478 = vadd.f32 %v446, 1.0
  %v479 = vadd.f32 %v447, 1.0
  %v480 = vadd.f32 %v448, 1.0
  %v481 = vadd.f32 %v449, 1.0
  %v482 = vadd.f32 %v450, 1.0
  %v483 = vadd.f32 %v451, 1.0
  %v484 = vadd.f32 %v452, 1.0
  %v485 = vadd.f32 %v453, 1.0
  %v486 = vadd.f32 %v454, 1.0
  %v487 = vmul.f32 %v455, 0.5
  %v488 = vmul.f32 %v456, 0.5
  %v489 = vmul.f32 %v457, 0.5
  %v490 = vmul.f32 %v458, 0.5
  %v491 = vmul.f32 %v459, 0.5
  %v492 = vmul.f32 %v460, 0.5
  %v493 = vmul.f32 %v461, 0.5
  %v494 = vmul.f32 %v462, 0.5
  %v495 = vmul.f32 %v463, 0.5
  %v496 = vmul.f32 %v464, 0.5
  %v497 = vmul.f32 %v465, 0.5
  %v498 = vmul.f32 %v466, 0.5
  %v499 = vmul.f32 %v467, 0.5
  %v500 = vmul.f32 %v468, 0.5
  %v501 = vmul.f32 %v469, 0.5
  %v502 = vmul.f32 %v470, 0.5
  %v503 = vmul.f32 %v471, 0.5
  %v504 = vmul.f32 %v472, 0.5
  %v505 = vmul.f32 %v473, 0.5
  %v506 = vmul.f32 %v474, 0.5
  %v507 = vmul.f32 %v475, 0.5
  %v508 = vmul.f32 %v476, 0.5
  %v509 = vmul.f32 %v477, 0.5
  %v510 = vmul.f32 %v478, 0.5
  %v511 = vmul.f32 %v479, 0.5
  %v512 = vmul.f32 %v480, 0.5
  %v513 = vmul.f32 %v481, 0.5
  %v514 = vmul.f32 %v482, 0.5
  %v515 = vmul.f32 %v483, 0.5
  %v516 = vmul.f32 %v484, 0.5
  %v517 = vmul.f32 %v485, 0.5
  %v518 = vmul.f32 %v486, 0.5
  %v519 = vmul.f32 %v185, %v487
  %v520 = vmul.f32 %v187, %v488
  %v521 = vmul.f32 %v189, %v489
  %v522 = vmul.f32 %v191, %v490
  %v523 = vmul.f32 %v195, %v491
  %v524 = vmul.f32 %v197, %v492
  %v525 = vmul.f32 %v199, %v493
  %v526 = vmul.f32 %v201, %v494
  %v527 = vmul.f32 %v205, %v495
  %v528 = vmul.f32 %v207, %v496
  %v529 = vmul.f32 %v209, %v497
  %v530 = vmul.f32 %v211, %v498
  %v531 = vmul.f32 %v215, %v499
  %v532 = vmul.f32 %v217, %v500
  %v533 = vmul.f32 %v219, %v501
  %v534 = vmul.f32 %v221, %v502
  %v535 = vmul.f32 %v225, %v503
  %v536 = vmul.f32 %v227, %v504
  %v537 = vmul.f32 %v229, %v505
  %v538 = vmul.f32 %v231, %v506
  %v539 = vmul.f32 %v235, %v507
  %v540 = vmul.f32 %v237, %v508
  %v541 = vmul.f32 %v239, %v509
  %v542 = vmul.f32 %v241, %v510
  %v543 = vmul.f32 %v245, %v511
  %v544 = vmul.f32 %v247, %v512
  %v545 = vmul.f32 %v249, %v513
  %v546 = vmul.f32 %v251, %v514
  %v547 = vmul.f32 %v255, %v515
  %v548 = vmul.f32 %v257, %v516
  %v549 = vmul.f32 %v259, %v517
  %v550 = vmul.f32 %v261, %v518
  %v551 = vpack.c.bf16 %v521, %v519
  %v552 = vpack.c.bf16 %v522, %v520
  %v553 = vpack.c.bf16 %v525, %v523
  %v554 = vpack.c.bf16 %v526, %v524
  %v555 = vpack.c.bf16 %v529, %v527
  %v556 = vpack.c.bf16 %v530, %v528
  %v557 = vpack.c.bf16 %v533, %v531
  %v558 = vpack.c.bf16 %v534, %v532
  %v559 = vpack.c.bf16 %v537, %v535
  %v560 = vpack.c.bf16 %v538, %v536
  %v561 = vpack.c.bf16 %v541, %v539
  %v562 = vpack.c.bf16 %v542, %v540
  %v563 = vpack.c.bf16 %v545, %v543
  %v564 = vpack.c.bf16 %v546, %v544
  %v565 = vpack.c.bf16 %v549, %v547
  %v566 = vpack.c.bf16 %v550, %v548
  %v567 = vld [vmem:[%s2] sm:$0xf]
  %v568 = vld [vmem:[%s2 + $0x4] sm:$0xf]
  %v569 = vld [vmem:[%s2 + $0x8] sm:$0xf]
  %v570 = vld [vmem:[%s2 + $0xc] sm:$0xf]
  %v571 = vld [vmem:[%s2 + $0x10] sm:$0xf]
  %v572 = vld [vmem:[%s2 + $0x14] sm:$0xf]
  %v573 = vld [vmem:[%s2 + $0x18] sm:$0xf]
  %v574 = vld [vmem:[%s2 + $0x1c] sm:$0xf]
  %v575 = vld [vmem:[%s2 + $0x20] sm:$0xf]
  %v576 = vld [vmem:[%s2 + $0x24] sm:$0xf]
  %v577 = vld [vmem:[%s2 + $0x28] sm:$0xf]
  %v578 = vld [vmem:[%s2 + $0x2c] sm:$0xf]
  %v579 = vld [vmem:[%s2 + $0x30] sm:$0xf]
  %v580 = vld [vmem:[%s2 + $0x34] sm:$0xf]
  %v581 = vld [vmem:[%s2 + $0x38] sm:$0xf]
  %v582 = vld [vmem:[%s2 + $0x3c] sm:$0xf]
  %v583 = vld [vmem:[%s2 + $0x40] sm:$0xf]
  %v584 = vld [vmem:[%s2 + $0x44] sm:$0xf]
  %v585 = vld [vmem:[%s2 + $0x48] sm:$0xf]
  %v586 = vld [vmem:[%s2 + $0x4c] sm:$0xf]
  %v587 = vld [vmem:[%s2 + $0x50] sm:$0xf]
  %v588 = vld [vmem:[%s2 + $0x54] sm:$0xf]
  %v589 = vld [vmem:[%s2 + $0x58] sm:$0xf]
  %v590 = vld [vmem:[%s2 + $0x5c] sm:$0xf]
  %v591 = vld [vmem:[%s2 + $0x60] sm:$0xf]
  %v592 = vld [vmem:[%s2 + $0x64] sm:$0xf]
  %v593 = vld [vmem:[%s2 + $0x68] sm:$0xf]
  %v594 = vld [vmem:[%s2 + $0x6c] sm:$0xf]
  %v595 = vld [vmem:[%s2 + $0x70] sm:$0xf]
  %v596 = vld [vmem:[%s2 + $0x74] sm:$0xf]
  %v597 = vld [vmem:[%s2 + $0x78] sm:$0xf]
  %v598 = vld [vmem:[%s2 + $0x7c] sm:$0xf]
  %v631 = vunpack.c.l.b16 %v567
  %v632 = vunpack.c.l.b16 %v568
  %v633 = vunpack.c.l.b16 %v569
  %v634 = vunpack.c.l.b16 %v570
  %v635 = vunpack.c.l.b16 %v571
  %v636 = vunpack.c.l.b16 %v572
  %v637 = vunpack.c.l.b16 %v573
  %v638 = vunpack.c.l.b16 %v574
  %v639 = vunpack.c.l.b16 %v575
  %v640 = vunpack.c.l.b16 %v576
  %v641 = vunpack.c.l.b16 %v577
  %v642 = vunpack.c.l.b16 %v578
  %v643 = vunpack.c.l.b16 %v579
  %v644 = vunpack.c.l.b16 %v580
  %v645 = vunpack.c.l.b16 %v581
  %v646 = vunpack.c.l.b16 %v582
  %v647 = vunpack.c.l.b16 %v583
  %v648 = vunpack.c.l.b16 %v584
  %v649 = vunpack.c.l.b16 %v585
  %v650 = vunpack.c.l.b16 %v586
  %v651 = vunpack.c.l.b16 %v587
  %v652 = vunpack.c.l.b16 %v588
  %v653 = vunpack.c.l.b16 %v589
  %v654 = vunpack.c.l.b16 %v590
  %v655 = vunpack.c.l.b16 %v591
  %v656 = vunpack.c.l.b16 %v592
  %v657 = vunpack.c.l.b16 %v593
  %v658 = vunpack.c.l.b16 %v594
  %v659 = vunpack.c.l.b16 %v595
  %v660 = vunpack.c.l.b16 %v596
  %v661 = vunpack.c.l.b16 %v597
  %v662 = vunpack.c.l.b16 %v598
  %v663 = vpack.c.b16 %v632, %v631
  %v664 = vpack.c.b16 %v634, %v633
  %v665 = vpack.c.b16 %v636, %v635
  %v666 = vpack.c.b16 %v638, %v637
  %v667 = vpack.c.b16 %v640, %v639
  %v668 = vpack.c.b16 %v642, %v641
  %v669 = vpack.c.b16 %v644, %v643
  %v670 = vpack.c.b16 %v646, %v645
  %v671 = vpack.c.b16 %v648, %v647
  %v672 = vpack.c.b16 %v650, %v649
  %v673 = vpack.c.b16 %v652, %v651
  %v674 = vpack.c.b16 %v654, %v653
  %v675 = vpack.c.b16 %v656, %v655
  %v676 = vpack.c.b16 %v658, %v657
  %v677 = vpack.c.b16 %v660, %v659
  %v678 = vpack.c.b16 %v662, %v661
  %695 = vmatprep.subr.bf16.mxu0 0
  %696 = vmatpush1.bf16.msra.mxu0 %v663
  %697 = vmatprep.subr.bf16.mxu0 0
  %698 = vmatpush1.bf16.msra.mxu0 %v664
  %699 = vmatprep.subr.bf16.mxu0 0
  %700 = vmatpush1.bf16.msra.mxu0 %v665
  %701 = vmatprep.subr.bf16.mxu0 0
  %702 = vmatpush1.bf16.msra.mxu0 %v666
  %703 = vmatprep.subr.bf16.mxu0 0
  %704 = vmatpush1.bf16.msra.mxu0 %v667
  %705 = vmatprep.subr.bf16.mxu0 0
  %706 = vmatpush1.bf16.msra.mxu0 %v668
  %707 = vmatprep.subr.bf16.mxu0 0
  %708 = vmatpush1.bf16.msra.mxu0 %v669
  %709 = vmatprep.subr.bf16.mxu0 0
  %710 = vmatpush1.bf16.msra.mxu0 %v670
  %711 = vmatprep.subr.bf16.mxu0 0
  %712 = vmatpush1.bf16.msra.mxu0 %v671
  %713 = vmatprep.subr.bf16.mxu0 0
  %714 = vmatpush1.bf16.msra.mxu0 %v672
  %715 = vmatprep.subr.bf16.mxu0 0
  %716 = vmatpush1.bf16.msra.mxu0 %v673
  %717 = vmatprep.subr.bf16.mxu0 0
  %718 = vmatpush1.bf16.msra.mxu0 %v674
  %719 = vmatprep.subr.bf16.mxu0 0
  %720 = vmatpush1.bf16.msra.mxu0 %v675
  %721 = vmatprep.subr.bf16.mxu0 0
  %722 = vmatpush1.bf16.msra.mxu0 %v676
  %723 = vmatprep.subr.bf16.mxu0 0
  %724 = vmatpush1.bf16.msra.mxu0 %v677
  %725 = vmatprep.subr.bf16.mxu0 0
  %726 = vmatpush1.bf16.msra.mxu0 %v678
  %727 = vmatprep.mubr.bf16.mxu0 %v552
  %728 = vmatmul.mubr.bf16.gmra.mrb[0].mxu0 %v551
  %v729 = vpop.f32.mrb[0].mxu0
  %v730 = vadd.f32 0.0, %v729
  %v731 = vpop.f32.mrb[0].mxu0
  %v732 = vpop.f32.mrb[0].mxu0
  %v733 = vadd.f32 0.0, %v732
  %v734 = vpop.f32.mrb[0].mxu0
  %735 = vmatprep.mubr.bf16.mxu0 %v554
  %736 = vmatmul.mubr.bf16.gmra.mrb[0].mxu0 %v553
  %v737 = vpop.f32.mrb[0].mxu0
  %v738 = vadd.f32 0.0, %v737
  %v739 = vpop.f32.mrb[0].mxu0
  %v740 = vpop.f32.mrb[0].mxu0
  %v741 = vadd.f32 0.0, %v740
  %v742 = vpop.f32.mrb[0].mxu0
  %743 = vmatprep.mubr.bf16.mxu0 %v556
  %744 = vmatmul.mubr.bf16.gmra.mrb[0].mxu0 %v555
  %v745 = vpop.f32.mrb[0].mxu0
  %v746 = vadd.f32 0.0, %v745
  %v747 = vpop.f32.mrb[0].mxu0
  %v748 = vpop.f32.mrb[0].mxu0
  %v749 = vadd.f32 0.0, %v748
  %v750 = vpop.f32.mrb[0].mxu0
  %751 = vmatprep.mubr.bf16.mxu0 %v558
  %752 = vmatmul.mubr.bf16.gmra.mrb[0].mxu0 %v557
  %v753 = vpop.f32.mrb[0].mxu0
  %v754 = vadd.f32 0.0, %v753
  %v755 = vpop.f32.mrb[0].mxu0
  %v756 = vpop.f32.mrb[0].mxu0
  %v757 = vadd.f32 0.0, %v756
  %v758 = vpop.f32.mrb[0].mxu0
  %759 = vmatprep.mubr.bf16.mxu0 %v560
  %760 = vmatmul.mubr.bf16.gmra.mrb[0].mxu0 %v559
  %v761 = vpop.f32.mrb[0].mxu0
  %v762 = vadd.f32 0.0, %v761
  %v763 = vpop.f32.mrb[0].mxu0
  %v764 = vpop.f32.mrb[0].mxu0
  %v765 = vadd.f32 0.0, %v764
  %v766 = vpop.f32.mrb[0].mxu0
  %767 = vmatprep.mubr.bf16.mxu0 %v562
  %768 = vmatmul.mubr.bf16.gmra.mrb[0].mxu0 %v561
  %v769 = vpop.f32.mrb[0].mxu0
  %v770 = vadd.f32 0.0, %v769
  %v771 = vpop.f32.mrb[0].mxu0
  %v772 = vpop.f32.mrb[0].mxu0
  %v773 = vadd.f32 0.0, %v772
  %v774 = vpop.f32.mrb[0].mxu0
  %775 = vmatprep.mubr.bf16.mxu0 %v564
  %776 = vmatmul.mubr.bf16.gmra.mrb[0].mxu0 %v563
  %v777 = vpop.f32.mrb[0].mxu0
  %v778 = vadd.f32 0.0, %v777
  %v779 = vpop.f32.mrb[0].mxu0
  %v780 = vpop.f32.mrb[0].mxu0
  %v781 = vadd.f32 0.0, %v780
  %v782 = vpop.f32.mrb[0].mxu0
  %783 = vmatprep.mubr.bf16.mxu0 %v566
  %784 = vmatmul.mubr.bf16.gmra.mrb[0].mxu0 %v565
  %v785 = vpop.f32.mrb[0].mxu0
  %v786 = vadd.f32 0.0, %v785
  %v787 = vpop.f32.mrb[0].mxu0
  %v788 = vpop.f32.mrb[0].mxu0
  %v789 = vadd.f32 0.0, %v788
  %v790 = vpop.f32.mrb[0].mxu0
  %791 = vdwg.mxu0
  %vm792 = vcmask 261120
  %v793 = vsel %vm792, %v730, 0.0
  %794 = vadd.xlane.f32.xlu0 %v793
  %v795 = vpop.xlane.xlu0 %794
  %v796 = vsel %vm792, %v733, 0.0
  %797 = vadd.xlane.f32.xlu0 %v796
  %v798 = vpop.xlane.xlu0 %797
  %v799 = vsel %vm792, %v738, 0.0
  %800 = vadd.xlane.f32.xlu0 %v799
  %v801 = vpop.xlane.xlu0 %800
  %v802 = vsel %vm792, %v741, 0.0
  %803 = vadd.xlane.f32.xlu0 %v802
  %v804 = vpop.xlane.xlu0 %803
  %v805 = vsel %vm792, %v746, 0.0
  %806 = vadd.xlane.f32.xlu0 %v805
  %v807 = vpop.xlane.xlu0 %806
  %v808 = vsel %vm792, %v749, 0.0
  %809 = vadd.xlane.f32.xlu0 %v808
  %v810 = vpop.xlane.xlu0 %809
  %v811 = vsel %vm792, %v754, 0.0
  %812 = vadd.xlane.f32.xlu0 %v811
  %v813 = vpop.xlane.xlu0 %812
  %v814 = vsel %vm792, %v757, 0.0
  %815 = vadd.xlane.f32.xlu0 %v814
  %v816 = vpop.xlane.xlu0 %815
  %v817 = vsel %vm792, %v762, 0.0
  %818 = vadd.xlane.f32.xlu0 %v817
  %v819 = vpop.xlane.xlu0 %818
  %v820 = vsel %vm792, %v765, 0.0
  %821 = vadd.xlane.f32.xlu0 %v820
  %v822 = vpop.xlane.xlu0 %821
  %v823 = vsel %vm792, %v770, 0.0
  %824 = vadd.xlane.f32.xlu0 %v823
  %v825 = vpop.xlane.xlu0 %824
  %v826 = vsel %vm792, %v773, 0.0
  %827 = vadd.xlane.f32.xlu0 %v826
  %v828 = vpop.xlane.xlu0 %827
  %v829 = vsel %vm792, %v778, 0.0
  %830 = vadd.xlane.f32.xlu0 %v829
  %v831 = vpop.xlane.xlu0 %830
  %v832 = vsel %vm792, %v781, 0.0
  %833 = vadd.xlane.f32.xlu0 %v832
  %v834 = vpop.xlane.xlu0 %833
  %v835 = vsel %vm792, %v786, 0.0
  %836 = vadd.xlane.f32.xlu0 %v835
  %v837 = vpop.xlane.xlu0 %836
  %v838 = vsel %vm792, %v789, 0.0
  %839 = vadd.xlane.f32.xlu0 %v838
  %v840 = vpop.xlane.xlu0 %839
  %v841 = vrcp.pop 32.0
  %v842 = vmul.f32 %v795, %v841
  %v843 = vmul.f32 %v798, %v841
  %v844 = vmul.f32 %v801, %v841
  %v845 = vmul.f32 %v804, %v841
  %v846 = vmul.f32 %v807, %v841
  %v847 = vmul.f32 %v810, %v841
  %v848 = vmul.f32 %v813, %v841
  %v849 = vmul.f32 %v816, %v841
  %v850 = vmul.f32 %v819, %v841
  %v851 = vmul.f32 %v822, %v841
  %v852 = vmul.f32 %v825, %v841
  %v853 = vmul.f32 %v828, %v841
  %v854 = vmul.f32 %v831, %v841
  %v855 = vmul.f32 %v834, %v841
  %v856 = vmul.f32 %v837, %v841
  %v857 = vmul.f32 %v840, %v841
  %v858 = vsub.f32 %v730, %v842
  %v859 = vsub.f32 %v733, %v843
  %v860 = vsub.f32 %v738, %v844
  %v861 = vsub.f32 %v741, %v845
  %v862 = vsub.f32 %v746, %v846
  %v863 = vsub.f32 %v749, %v847
  %v864 = vsub.f32 %v754, %v848
  %v865 = vsub.f32 %v757, %v849
  %v866 = vsub.f32 %v762, %v850
  %v867 = vsub.f32 %v765, %v851
  %v868 = vsub.f32 %v770, %v852
  %v869 = vsub.f32 %v773, %v853
  %v870 = vsub.f32 %v778, %v854
  %v871 = vsub.f32 %v781, %v855
  %v872 = vsub.f32 %v786, %v856
  %v873 = vsub.f32 %v789, %v857
  %v874 = vmul.f32 %v858, %v858
  %v875 = vmul.f32 %v859, %v859
  %v876 = vmul.f32 %v860, %v860
  %v877 = vmul.f32 %v861, %v861
  %v878 = vmul.f32 %v862, %v862
  %v879 = vmul.f32 %v863, %v863
  %v880 = vmul.f32 %v864, %v864
  %v881 = vmul.f32 %v865, %v865
  %v882 = vmul.f32 %v866, %v866
  %v883 = vmul.f32 %v867, %v867
  %v884 = vmul.f32 %v868, %v868
  %v885 = vmul.f32 %v869, %v869
  %v886 = vmul.f32 %v870, %v870
  %v887 = vmul.f32 %v871, %v871
  %v888 = vmul.f32 %v872, %v872
  %v889 = vmul.f32 %v873, %v873
  %v890 = vsel %vm792, %v874, 0.0
  %891 = vadd.xlane.f32.xlu0 %v890
  %v892 = vpop.xlane.xlu0 %891
  %v893 = vsel %vm792, %v875, 0.0
  %894 = vadd.xlane.f32.xlu0 %v893
  %v895 = vpop.xlane.xlu0 %894
  %v896 = vsel %vm792, %v876, 0.0
  %897 = vadd.xlane.f32.xlu0 %v896
  %v898 = vpop.xlane.xlu0 %897
  %v899 = vsel %vm792, %v877, 0.0
  %900 = vadd.xlane.f32.xlu0 %v899
  %v901 = vpop.xlane.xlu0 %900
  %v902 = vsel %vm792, %v878, 0.0
  %903 = vadd.xlane.f32.xlu0 %v902
  %v904 = vpop.xlane.xlu0 %903
  %v905 = vsel %vm792, %v879, 0.0
  %906 = vadd.xlane.f32.xlu0 %v905
  %v907 = vpop.xlane.xlu0 %906
  %v908 = vsel %vm792, %v880, 0.0
  %909 = vadd.xlane.f32.xlu0 %v908
  %v910 = vpop.xlane.xlu0 %909
  %v911 = vsel %vm792, %v881, 0.0
  %912 = vadd.xlane.f32.xlu0 %v911
  %v913 = vpop.xlane.xlu0 %912
  %v914 = vsel %vm792, %v882, 0.0
  %915 = vadd.xlane.f32.xlu0 %v914
  %v916 = vpop.xlane.xlu0 %915
  %v917 = vsel %vm792, %v883, 0.0
  %918 = vadd.xlane.f32.xlu0 %v917
  %v919 = vpop.xlane.xlu0 %918
  %v920 = vsel %vm792, %v884, 0.0
  %921 = vadd.xlane.f32.xlu0 %v920
  %v922 = vpop.xlane.xlu0 %921
  %v923 = vsel %vm792, %v885, 0.0
  %924 = vadd.xlane.f32.xlu0 %v923
  %v925 = vpop.xlane.xlu0 %924
  %v926 = vsel %vm792, %v886, 0.0
  %927 = vadd.xlane.f32.xlu0 %v926
  %v928 = vpop.xlane.xlu0 %927
  %v929 = vsel %vm792, %v887, 0.0
  %930 = vadd.xlane.f32.xlu0 %v929
  %v931 = vpop.xlane.xlu0 %930
  %v932 = vsel %vm792, %v888, 0.0
  %933 = vadd.xlane.f32.xlu0 %v932
  %v934 = vpop.xlane.xlu0 %933
  %v935 = vsel %vm792, %v889, 0.0
  %936 = vadd.xlane.f32.xlu0 %v935
  %v937 = vpop.xlane.xlu0 %936
  %v938 = vmul.f32 %v892, %v841
  %v939 = vmul.f32 %v895, %v841
  %v940 = vmul.f32 %v898, %v841
  %v941 = vmul.f32 %v901, %v841
  %v942 = vmul.f32 %v904, %v841
  %v943 = vmul.f32 %v907, %v841
  %v944 = vmul.f32 %v910, %v841
  %v945 = vmul.f32 %v913, %v841
  %v946 = vmul.f32 %v916, %v841
  %v947 = vmul.f32 %v919, %v841
  %v948 = vmul.f32 %v922, %v841
  %v949 = vmul.f32 %v925, %v841
  %v950 = vmul.f32 %v928, %v841
  %v951 = vmul.f32 %v931, %v841
  %v952 = vmul.f32 %v934, %v841
  %v953 = vmul.f32 %v937, %v841
  %v954 = vadd.f32 %v938, 1e-05
  %v955 = vadd.f32 %v939, 1e-05
  %v956 = vadd.f32 %v940, 1e-05
  %v957 = vadd.f32 %v941, 1e-05
  %v958 = vadd.f32 %v942, 1e-05
  %v959 = vadd.f32 %v943, 1e-05
  %v960 = vadd.f32 %v944, 1e-05
  %v961 = vadd.f32 %v945, 1e-05
  %v962 = vadd.f32 %v946, 1e-05
  %v963 = vadd.f32 %v947, 1e-05
  %v964 = vadd.f32 %v948, 1e-05
  %v965 = vadd.f32 %v949, 1e-05
  %v966 = vadd.f32 %v950, 1e-05
  %v967 = vadd.f32 %v951, 1e-05
  %v968 = vadd.f32 %v952, 1e-05
  %v969 = vadd.f32 %v953, 1e-05
  %v970 = vrsqrt.pop %v954
  %v971 = vrsqrt.pop %v955
  %v972 = vrsqrt.pop %v956
  %v973 = vrsqrt.pop %v957
  %v974 = vrsqrt.pop %v958
  %v975 = vrsqrt.pop %v959
  %v976 = vrsqrt.pop %v960
  %v977 = vrsqrt.pop %v961
  %v978 = vrsqrt.pop %v962
  %v979 = vrsqrt.pop %v963
  %v980 = vrsqrt.pop %v964
  %v981 = vrsqrt.pop %v965
  %v982 = vrsqrt.pop %v966
  %v983 = vrsqrt.pop %v967
  %v984 = vrsqrt.pop %v968
  %v985 = vrsqrt.pop %v969
  %v986 = vmul.f32 %v858, %v970
  %v987 = vmul.f32 %v859, %v971
  %v988 = vmul.f32 %v860, %v972
  %v989 = vmul.f32 %v861, %v973
  %v990 = vmul.f32 %v862, %v974
  %v991 = vmul.f32 %v863, %v975
  %v992 = vmul.f32 %v864, %v976
  %v993 = vmul.f32 %v865, %v977
  %v994 = vmul.f32 %v866, %v978
  %v995 = vmul.f32 %v867, %v979
  %v996 = vmul.f32 %v868, %v980
  %v997 = vmul.f32 %v869, %v981
  %v998 = vmul.f32 %v870, %v982
  %v999 = vmul.f32 %v871, %v983
  %v1000 = vmul.f32 %v872, %v984
  %v1001 = vmul.f32 %v873, %v985
  %v1002 = vld [vmem:[%s3] sm:$0x1]
  %v1004 = vlaneseq
  %v1005 = vshrl.u32 %v1004, 7
  %v1006 = vsub.s32 0, %v1005
  %v1007 = vrot.slane %v1002, %v1006
  %v1009 = vmul.f32 %v986, %v1007
  %v1010 = vmul.f32 %v987, %v1007
  %v1011 = vmul.f32 %v988, %v1007
  %v1012 = vmul.f32 %v989, %v1007
  %v1013 = vmul.f32 %v990, %v1007
  %v1014 = vmul.f32 %v991, %v1007
  %v1015 = vmul.f32 %v992, %v1007
  %v1016 = vmul.f32 %v993, %v1007
  %v1017 = vmul.f32 %v994, %v1007
  %v1018 = vmul.f32 %v995, %v1007
  %v1019 = vmul.f32 %v996, %v1007
  %v1020 = vmul.f32 %v997, %v1007
  %v1021 = vmul.f32 %v998, %v1007
  %v1022 = vmul.f32 %v999, %v1007
  %v1023 = vmul.f32 %v1000, %v1007
  %v1024 = vmul.f32 %v1001, %v1007
  %v1025 = vld [vmem:[%s4] sm:$0x1]
  %v1027 = vlaneseq
  %v1028 = vshrl.u32 %v1027, 7
  %v1029 = vsub.s32 0, %v1028
  %v1030 = vrot.slane %v1025, %v1029
  %v1032 = vadd.f32 %v1009, %v1030
  %v1033 = vadd.f32 %v1010, %v1030
  %v1034 = vadd.f32 %v1011, %v1030
  %v1035 = vadd.f32 %v1012, %v1030
  %v1036 = vadd.f32 %v1013, %v1030
  %v1037 = vadd.f32 %v1014, %v1030
  %v1038 = vadd.f32 %v1015, %v1030
  %v1039 = vadd.f32 %v1016, %v1030
  %v1040 = vadd.f32 %v1017, %v1030
  %v1041 = vadd.f32 %v1018, %v1030
  %v1042 = vadd.f32 %v1019, %v1030
  %v1043 = vadd.f32 %v1020, %v1030
  %v1044 = vadd.f32 %v1021, %v1030
  %v1045 = vadd.f32 %v1022, %v1030
  %v1046 = vadd.f32 %v1023, %v1030
  %v1047 = vadd.f32 %v1024, %v1030
  %1048 = vst.msk [vmem:[%s5] sm:$0xff] %vm792, %v1032
  %1049 = vst.msk [vmem:[%s5 + $0x8] sm:$0xff] %vm792, %v1033
  %1050 = vst.msk [vmem:[%s5 + $0x10] sm:$0xff] %vm792, %v1034
  %1051 = vst.msk [vmem:[%s5 + $0x18] sm:$0xff] %vm792, %v1035
  %1052 = vst.msk [vmem:[%s5 + $0x20] sm:$0xff] %vm792, %v1036
  %1053 = vst.msk [vmem:[%s5 + $0x28] sm:$0xff] %vm792, %v1037
  %1054 = vst.msk [vmem:[%s5 + $0x30] sm:$0xff] %vm792, %v1038
  %1055 = vst.msk [vmem:[%s5 + $0x38] sm:$0xff] %vm792, %v1039
  %1056 = vst.msk [vmem:[%s5 + $0x40] sm:$0xff] %vm792, %v1040
  %1057 = vst.msk [vmem:[%s5 + $0x48] sm:$0xff] %vm792, %v1041
  %1058 = vst.msk [vmem:[%s5 + $0x50] sm:$0xff] %vm792, %v1042
  %1059 = vst.msk [vmem:[%s5 + $0x58] sm:$0xff] %vm792, %v1043
  %1060 = vst.msk [vmem:[%s5 + $0x60] sm:$0xff] %vm792, %v1044
  %1061 = vst.msk [vmem:[%s5 + $0x68] sm:$0xff] %vm792, %v1045
  %1062 = vst.msk [vmem:[%s5 + $0x70] sm:$0xff] %vm792, %v1046
  %1063 = vst.msk [vmem:[%s5 + $0x78] sm:$0xff] %vm792, %v1047
  // Predicated region
  $region22: #{_lambda_.38} parent=0 // pred_check
    _
  $region23: #{_lambda_.38} parent=0 // pred_check_branch
    %1065 = sbr.rel (0) target = $region25
  $region24: #{_lambda_.38} parent=0 // pred_region
    _
  $region25: #{_lambda_.38} parent=0 // pred_fallthru
    _
  // Predicated region
  $region26: #{_lambda_.38} parent=0 // pred_check
    _
  $region27: #{_lambda_.38} parent=0 // pred_check_branch
    %1067 = sbr.rel (0) target = $region29
  $region28: #{_lambda_.38} parent=0 // pred_region
    _
  $region29: #{_lambda_.38} parent=0 // pred_fallthru
    _

// kernel: _lambda_.46
$region0: #{_lambda_.46}
  #allocation0 [shape = 'u32[]', space=smem, size = 0x4, offset = 0x4, fixed_abs, tag = 'smem constant byte address 0x4 - core index']
  #allocation1 [shape = 'u32[144,128]{1,0:T(1,128)}', space=vmem, size = 0x12000, scoped, tag = 'internal scratch']
  %s0 = inlined_call_operand.vmem [shape: bf16[2,16,256], index: 0, kind: input, shape index: {}]
  %s1 = inlined_call_operand.vmem [shape: bf16[32,16], index: 1, kind: input, shape index: {}]
  %s2 = inlined_call_operand.vmem [shape: f32[32,1], index: 2, kind: input, shape index: {}]
  %s3 = inlined_call_operand.vmem [shape: f32[2,32,256], index: 3, kind: output, shape index: {}]
  %s4 = sld [smem:[#allocation0]]
  $region45: #{_lambda_.46} parent=0
    _
  %s6 = ssub.s32 1, %s4
  %s7 = scalar_select 0, %s6, %s4
  loop: start=0, step=1, limit=4
  $region2: #{_lambda_.46} parent=0 // loop_pre_header
    _
  $region3: #{_lambda_.46} parent=0 // loop_header
    %s9 = sphi 0, %s13
    %p10 = scmp.ge.s32.totalorder %s9, 4
    %s16 = sphi 0, %s28
    %s17 = sphi 0, %s24
    %s18 = sphi 0, %s16
    %s19 = sphi 0, %s17
    %s20 = sphi 0, %s18
    %s21 = sphi 0, %s19
    %s33 = sphi 0, %s35
    %s36 = sphi 0, %s33
    %s37 = sphi 0, %s36
    %s53 = sphi 0, %s37
    %s57 = sphi 0, %s57
    %s59 = sphi 0, %s57
    %s60 = sphi 0, %s59
    %s74 = sphi 0, %s60
    %s78 = sphi 0, %s78
    %s80 = sphi 0, %s78
    %s81 = sphi 0, %s80
    %s95 = sphi 0, %s81
    %s103 = sphi 0, %s105
    %s106 = sphi 0, %s103
    %s107 = sphi 0, %s106
    %s123 = sphi 0, %s107
  $region4: #{_lambda_.46} parent=0 // loop_header_branch
    %12 = sbr.rel (%p10) target = $region8
  $region5: #{_lambda_.46} parent=0 // loop_body
    %s14 = ssub.s32 %s9, 1
    %s15 = ssub.s32 %s9, 2
    %s22 = sadd.s32 1, %s17
    %p23 = scmp.ge.s32.totalorder %s22, 1
    %s24 = scalar_select %p23, 0, %s22
    %s25 = sadd.s32 1, %s16
    %s26 = scalar_select %p23, %s25, %s16
    %p27 = scmp.ge.s32.totalorder %s26, 2
    %s28 = scalar_select %p27, 0, %s26
    %s29 = ssub.s32 %s16, %s28
    %s30 = ssub.s32 %s17, %s24
    %s31 = sor.u32 %s29, %s30
    %p32 = scmp.eq.s32.totalorder %s31, 0
    %s34 = sadd.s32 %s33, 1
    %s35 = scalar_select %p32, %s33, %s34
    %p38 = pneg %p32
    %p39 = scmp.eq.s32.totalorder %s9, 1
    %p40 = por %p38, %p39
    %p41 = scmp.ne.s32.totalorder %s33, %s36
    %p42 = scmp.eq.s32.totalorder %s9, 0
    %p43 = por %p41, %p42
    %p44 = scmp.ne.s32.totalorder %s33, %s36
    %p45 = scmp.eq.s32.totalorder %s14, 1
    %p46 = por %p44, %p45
    %p47 = scmp.ne.s32.totalorder %s36, %s37
    %p48 = scmp.eq.s32.totalorder %s14, 0
    %p49 = por %p47, %p48
    %p50 = scmp.ne.s32.totalorder %s36, %s37
    %p51 = scmp.eq.s32.totalorder %s15, 1
    %p52 = por %p50, %p51
    %p54 = scmp.ne.s32.totalorder %s37, %s53
    %p55 = scmp.eq.s32.totalorder %s15, 0
    %p56 = por %p54, %p55
    %s58 = sadd.s32 %s57, 1
    %p61 = scmp.eq.s32.totalorder %s9, 1
    %p62 = scmp.ne.s32.totalorder %s57, %s59
    %p63 = scmp.eq.s32.totalorder %s9, 0
    %p64 = por %p62, %p63
    %p65 = scmp.ne.s32.totalorder %s57, %s59
    %p66 = scmp.eq.s32.totalorder %s14, 1
    %p67 = por %p65, %p66
    %p68 = scmp.ne.s32.totalorder %s59, %s60
    %p69 = scmp.eq.s32.totalorder %s14, 0
    %p70 = por %p68, %p69
    %p71 = scmp.ne.s32.totalorder %s59, %s60
    %p72 = scmp.eq.s32.totalorder %s15, 1
    %p73 = por %p71, %p72
    %p75 = scmp.ne.s32.totalorder %s60, %s74
    %p76 = scmp.eq.s32.totalorder %s15, 0
    %p77 = por %p75, %p76
    %s79 = sadd.s32 %s78, 1
    %p82 = scmp.eq.s32.totalorder %s9, 1
    %p83 = scmp.ne.s32.totalorder %s78, %s80
    %p84 = scmp.eq.s32.totalorder %s9, 0
    %p85 = por %p83, %p84
    %p86 = scmp.ne.s32.totalorder %s78, %s80
    %p87 = scmp.eq.s32.totalorder %s14, 1
    %p88 = por %p86, %p87
    %p89 = scmp.ne.s32.totalorder %s80, %s81
    %p90 = scmp.eq.s32.totalorder %s14, 0
    %p91 = por %p89, %p90
    %p92 = scmp.ne.s32.totalorder %s80, %s81
    %p93 = scmp.eq.s32.totalorder %s15, 1
    %p94 = por %p92, %p93
    %p96 = scmp.ne.s32.totalorder %s81, %s95
    %p97 = scmp.eq.s32.totalorder %s15, 0
    %p98 = por %p96, %p97
    %s99 = ssub.s32 %s16, %s28
    %s100 = ssub.s32 %s17, %s24
    %s101 = sor.u32 %s99, %s100
    %p102 = scmp.eq.s32.totalorder %s101, 0
    %s104 = sadd.s32 %s103, 1
    %s105 = scalar_select %p102, %s103, %s104
    %p108 = pneg %p102
    %p109 = scmp.eq.s32.totalorder %s9, 1
    %p110 = por %p108, %p109
    %p111 = scmp.ne.s32.totalorder %s103, %s106
    %p112 = scmp.eq.s32.totalorder %s9, 0
    %p113 = por %p111, %p112
    %p114 = scmp.ne.s32.totalorder %s103, %s106
    %p115 = scmp.eq.s32.totalorder %s14, 1
    %p116 = por %p114, %p115
    %p117 = scmp.ne.s32.totalorder %s106, %s107
    %p118 = scmp.eq.s32.totalorder %s14, 0
    %p119 = por %p117, %p118
    %p120 = scmp.ne.s32.totalorder %s106, %s107
    %p121 = scmp.eq.s32.totalorder %s15, 1
    %p122 = por %p120, %p121
    %p124 = scmp.ne.s32.totalorder %s107, %s123
    %p125 = scmp.eq.s32.totalorder %s15, 0
    %p126 = por %p124, %p125
    %p127 = scmp.le.s32.totalorder 1, %s9
    %p128 = scmp.lt.s32.totalorder %s9, 3
    %p129 = pnand %p127, %p128
    %p130 = pneg %p129
    // Predicated region
    $region9: #{_lambda_.46} parent=5 // pred_check
      _
    $region10: #{_lambda_.46} parent=5 // pred_check_branch
      %132 = sbr.rel (%p129) target = $region12
    $region11: #{_lambda_.46} parent=5 // pred_region
      %s133 = ssub.s32 %s9, 1
      // Predicated region
      $region13: #{_lambda_.46} parent=11 // pred_check
        %p134 = pneg %p70
      $region14: #{_lambda_.46} parent=11 // pred_check_branch
        %136 = sbr.rel (%p134) target = $region16
      $region15: #{_lambda_.46} parent=11 // pred_region
        _
      $region16: #{_lambda_.46} parent=11 // pred_fallthru
        _
      // Predicated region
      $region17: #{_lambda_.46} parent=11 // pred_check
        %p137 = pneg %p91
      $region18: #{_lambda_.46} parent=11 // pred_check_branch
        %139 = sbr.rel (%p137) target = $region20
      $region19: #{_lambda_.46} parent=11 // pred_region
        _
      $region20: #{_lambda_.46} parent=11 // pred_fallthru
        _
    $region12: #{_lambda_.46} parent=5 // pred_fallthru
      _
    %p140 = scmp.lt.s32.totalorder %s9, 2
    // Predicated region
    $region21: #{_lambda_.46} parent=5 // pred_check
      %p141 = pneg %p140
    $region22: #{_lambda_.46} parent=5 // pred_check_branch
      %143 = sbr.rel (%p141) target = $region24
    $region23: #{_lambda_.46} parent=5 // pred_region
      // Predicated region
      $region25: #{_lambda_.46} parent=23 // pred_check
        %p144 = pneg %p43
      $region26: #{_lambda_.46} parent=23 // pred_check_branch
        %146 = sbr.rel (%p144) target = $region28
      $region27: #{_lambda_.46} parent=23 // pred_region
        %s147 = smul.u32 2, %s17
        %p148 = scmp.lt.s32.totalorder %s16, 1
        %s149 = scalar_select %p148, %s16, 1
        %p150 = scmp.lt.s32.totalorder %s147, 1
        %s151 = scalar_select %p150, %s147, 1
        %s152 = smul.addr %s149, 4
        %s153 = sadd.s32 %s151, %s152
        %s154 = smul.addr %s153, 4
        %s155 = scalar_lea.vmem %s0, %s154
        %s156 = smul.u32 2, %s17
      $region28: #{_lambda_.46} parent=23 // pred_fallthru
        _
    $region24: #{_lambda_.46} parent=5 // pred_fallthru
      _
    %p157 = scmp.le.s32.totalorder 1, %s9
    %p158 = scmp.lt.s32.totalorder %s9, 3
    %p159 = pnand %p157, %p158
    %p160 = pneg %p159
    // Predicated region
    $region29: #{_lambda_.46} parent=5 // pred_check
      _
    $region30: #{_lambda_.46} parent=5 // pred_check_branch
      %162 = sbr.rel (%p159) target = $region32
    $region31: #{_lambda_.46} parent=5 // pred_region
      %s163 = ssub.s32 %s9, 1
      %s164 = smul.u32 2, %s19
      %p165 = scmp.lt.s32.totalorder %s18, 1
      %s166 = scalar_select %p165, %s18, 1
      %p167 = scmp.lt.s32.totalorder %s164, 1
      %s168 = scalar_select %p167, %s164, 1
      %s169 = smul.addr %s166, 4
      %s170 = sadd.s32 %s168, %s169
      %s171 = smul.addr %s170, 4
      %s172 = scalar_lea.vmem %s0, %s171
      %p173 = pneg %p49
      %p174 = pneg %p46
      %p175 = pneg %p70
      %p176 = pneg %p67
      %p177 = pneg %p91
      %p178 = pneg %p88
      %p179 = pneg %p119
      %p180 = pneg %p116
      %s181 = smul.u32 2, %s19
      %p182 = scmp.lt.s32.totalorder %s18, 1
      %s183 = scalar_select %p182, %s18, 1
      %p184 = scmp.lt.s32.totalorder %s181, 1
      %s185 = scalar_select %p184, %s181, 1
      %s186 = smul.addr %s183, 8
      %s187 = sadd.s32 %s185, %s186
      %s188 = smul.addr %s187, 8
      %s189 = scalar_lea.vmem %s3, %s188
      %s190 = smul.u32 2, %s19
      %p191 = scmp.lt.s32.totalorder %s18, 1
      %s192 = scalar_select %p191, %s18, 1
      %p193 = scmp.lt.s32.totalorder %s190, 1
      %s194 = scalar_select %p193, %s190, 1
      %s195 = smul.addr %s192, 4
      %s196 = sadd.s32 %s194, %s195
      %s197 = smul.addr %s196, 4
      %s198 = scalar_lea.vmem %s0, %s197
      %s199 = smul.u32 2, %s19
      %s200 = smul.u32 2, %s19
      %p201 = scmp.lt.s32.totalorder %s18, 1
      %s202 = scalar_select %p201, %s18, 1
      %p203 = scmp.lt.s32.totalorder %s200, 1
      %s204 = scalar_select %p203, %s200, 1
      %s205 = smul.addr %s202, 8
      %s206 = sadd.s32 %s204, %s205
      %s207 = smul.addr %s206, 8
      %s208 = scalar_lea.vmem %s3, %s207
      %s209 = smul.u32 2, %s19
      %v211 = vld [vmem:[%s1] sm:$0xf]
      %v212 = vld [vmem:[%s1 + $0x4] sm:$0xf]
      %v213 = vld [vmem:[%s1 + $0x8] sm:$0xf]
      %v214 = vld [vmem:[%s1 + $0xc] sm:$0xf]
      %v215 = vld [vmem:[%s198] sm:$0xff]
      %v216 = vld [vmem:[%s198 + $0x8] sm:$0xff]
      %v217 = vld [vmem:[%s2] sm:$0xff]
      %v218 = vld [vmem:[%s2 + $0x8] sm:$0xff]
      %v219 = vld [vmem:[%s2 + $0x10] sm:$0xff]
      %v220 = vld [vmem:[%s2 + $0x18] sm:$0xff]
      %222 = vset.pattern.permute.xlu0 0
      %223 = vperm.xlu0 %222, %v217
      %v224 = vpop.permute.xlu0 %223
      %227 = vset.pattern.permute.xlu0 0
      %228 = vperm.xlu0 %227, %v218
      %v229 = vpop.permute.xlu0 %228
      %232 = vset.pattern.permute.xlu0 0
      %233 = vperm.xlu0 %232, %v219
      %v234 = vpop.permute.xlu0 %233
      %237 = vset.pattern.permute.xlu0 0
      %238 = vperm.xlu0 %237, %v220
      %v239 = vpop.permute.xlu0 %238
      %v245 = vunpack.c.l.b16 %v211
      %v246 = vunpack.c.l.b16 %v212
      %v247 = vunpack.c.l.b16 %v213
      %v248 = vunpack.c.l.b16 %v214
      %v249 = vpack.c.b16 %v246, %v245
      %v250 = vpack.c.b16 %v248, %v247
      %v253 = vunpack.c.l.b16 %v215
      %v254 = vunpack.c.h.b16 %v215
      %v255 = vunpack.c.l.b16 %v216
      %v256 = vunpack.c.h.b16 %v216
      %v257 = vpack.c.b16 %v255, %v253
      %v258 = vpack.c.b16 %v256, %v254
      %vm261 = vcmask 130048
      %v263 = vsel %vm261, %v249, 0
      %v266 = vsel %vm261, %v250, 0
      %268 = vmatprep.subr.bf16.mxu0 %v258
      %269 = vmatpush1.bf16.msra.mxu0 %v257
      %270 = vmatprep.subr.bf16.mxu0 0
      %271 = vmatpush1.bf16.msra.mxu0 0
      %272 = vmatprep.subr.bf16.mxu0 0
      %273 = vmatpush1.bf16.msra.mxu0 0
      %274 = vmatprep.subr.bf16.mxu0 0
      %275 = vmatpush1.bf16.msra.mxu0 0
      %276 = vmatprep.subr.bf16.mxu0 0
      %277 = vmatpush1.bf16.msra.mxu0 0
      %278 = vmatprep.subr.bf16.mxu0 0
      %279 = vmatpush1.bf16.msra.mxu0 0
      %280 = vmatprep.subr.bf16.mxu0 0
      %281 = vmatpush1.bf16.msra.mxu0 0
      %282 = vmatprep.subr.bf16.mxu0 0
      %283 = vmatpush1.bf16.msra.mxu0 0
      %284 = vmatprep.subr.bf16.mxu0 0
      %285 = vmatpush1.bf16.msra.mxu0 0
      %286 = vmatprep.subr.bf16.mxu0 0
      %287 = vmatpush1.bf16.msra.mxu0 0
      %288 = vmatprep.subr.bf16.mxu0 0
      %289 = vmatpush1.bf16.msra.mxu0 0
      %290 = vmatprep.subr.bf16.mxu0 0
      %291 = vmatpush1.bf16.msra.mxu0 0
      %292 = vmatprep.subr.bf16.mxu0 0
      %293 = vmatpush1.bf16.msra.mxu0 0
      %294 = vmatprep.subr.bf16.mxu0 0
      %295 = vmatpush1.bf16.msra.mxu0 0
      %296 = vmatprep.subr.bf16.mxu0 0
      %297 = vmatpush1.bf16.msra.mxu0 0
      %298 = vmatprep.subr.bf16.mxu0 0
      %299 = vmatpush1.bf16.msra.mxu0 0
      %300 = vmatprep.mubr.bf16.mxu0 0
      %301 = vmatmul.mubr.bf16.gmra.mrb[0].mxu0 %v263
      %v302 = vpop.f32.mrb[0].mxu0
      %v303 = vadd.f32 %v224, %v302
      %v304 = vpop.f32.mrb[0].mxu0
      %v305 = vadd.f32 %v224, %v304
      %v306 = vpop.f32.mrb[0].mxu0
      %v307 = vadd.f32 %v229, %v306
      %v308 = vpop.f32.mrb[0].mxu0
      %v309 = vadd.f32 %v229, %v308
      %310 = vmatprep.mubr.bf16.mxu0 0
      %311 = vmatmul.mubr.bf16.gmra.mrb[0].mxu0 %v266
      %v312 = vpop.f32.mrb[0].mxu0
      %v313 = vadd.f32 %v234, %v312
      %v314 = vpop.f32.mrb[0].mxu0
      %v315 = vadd.f32 %v234, %v314
      %v316 = vpop.f32.mrb[0].mxu0
      %v317 = vadd.f32 %v239, %v316
      %v318 = vpop.f32.mrb[0].mxu0
      %v319 = vadd.f32 %v239, %v318
      %320 = vdwg.mxu0
      %321 = vst [vmem:[%s208] sm:$0xff] %v303
      %322 = vst [vmem:[%s208 + $0x8] sm:$0xff] %v305
      %323 = vst [vmem:[%s208 + $0x10] sm:$0xff] %v307
      %324 = vst [vmem:[%s208 + $0x18] sm:$0xff] %v309
      %325 = vst [vmem:[%s208 + $0x20] sm:$0xff] %v313
      %326 = vst [vmem:[%s208 + $0x28] sm:$0xff] %v315
      %327 = vst [vmem:[%s208 + $0x30] sm:$0xff] %v317
      %328 = vst [vmem:[%s208 + $0x38] sm:$0xff] %v319
      %s329 = smul.u32 2, %s19
      %p330 = scmp.lt.s32.totalorder %s18, 1
      %s331 = scalar_select %p330, %s18, 1
      %p332 = scmp.lt.s32.totalorder %s329, 1
      %s333 = scalar_select %p332, %s329, 1
      %s334 = smul.addr %s331, 8
      %s335 = sadd.s32 %s333, %s334
      %s336 = smul.addr %s335, 8
      %s337 = scalar_lea.vmem %s3, %s336
      // Predicated region
      $region33: #{_lambda_.46} parent=31 // pred_check
        %p338 = pneg %p116
      $region34: #{_lambda_.46} parent=31 // pred_check_branch
        %340 = sbr.rel (%p338) target = $region36
      $region35: #{_lambda_.46} parent=31 // pred_region
        %s341 = smul.u32 2, %s19
      $region36: #{_lambda_.46} parent=31 // pred_fallthru
        _
    $region32: #{_lambda_.46} parent=5 // pred_fallthru
      _
    %p342 = scmp.le.s32.totalorder 2, %s9
    // Predicated region
    $region37: #{_lambda_.46} parent=5 // pred_check
      %p343 = pneg %p342
    $region38: #{_lambda_.46} parent=5 // pred_check_branch
      %345 = sbr.rel (%p343) target = $region40
    $region39: #{_lambda_.46} parent=5 // pred_region
      %s346 = ssub.s32 %s9, 2
      // Predicated region
      $region41: #{_lambda_.46} parent=39 // pred_check
        %p347 = pneg %p122
      $region42: #{_lambda_.46} parent=39 // pred_check_branch
        %349 = sbr.rel (%p347) target = $region44
      $region43: #{_lambda_.46} parent=39 // pred_region
        %s350 = smul.u32 2, %s21
        %p351 = scmp.lt.s32.totalorder %s20, 1
        %s352 = scalar_select %p351, %s20, 1
        %p353 = scmp.lt.s32.totalorder %s350, 1
        %s354 = scalar_select %p353, %s350, 1
        %s355 = smul.addr %s352, 8
        %s356 = sadd.s32 %s354, %s355
        %s357 = smul.addr %s356, 8
        %s358 = scalar_lea.vmem %s3, %s357
      $region44: #{_lambda_.46} parent=39 // pred_fallthru
        _
    $region40: #{_lambda_.46} parent=5 // pred_fallthru
      _
  $region6: #{_lambda_.46} parent=0 // loop_footer
    %s13 = sadd.s32 1, %s9
  $region7: #{_lambda_.46} parent=0 // loop_footer_branch
    %8 = sbr.rel target = $region3
  $region8: #{_lambda_.46} parent=0 // loop_exit
    _

// kernel: _lambda_.48
$region0: #{_lambda_.48}
  #allocation0 [shape = 'u32[]', space=smem, size = 0x4, offset = 0x4, fixed_abs, tag = 'smem constant byte address 0x4 - core index']
  #allocation1 [shape = 'u32[144,128]{1,0:T(1,128)}', space=vmem, size = 0x12000, scoped, tag = 'internal scratch']
  %s0 = inlined_call_operand.vmem [shape: bf16[2,8,1024], index: 0, kind: input, shape index: {}]
  %s1 = inlined_call_operand.vmem [shape: bf16[32,8], index: 1, kind: input, shape index: {}]
  %s2 = inlined_call_operand.vmem [shape: f32[32,1], index: 2, kind: input, shape index: {}]
  %s3 = inlined_call_operand.vmem [shape: f32[2,32,1024], index: 3, kind: output, shape index: {}]
  %s4 = sld [smem:[#allocation0]]
  $region45: #{_lambda_.48} parent=0
    _
  %s6 = ssub.s32 1, %s4
  %s7 = scalar_select 0, %s6, %s4
  loop: start=0, step=1, limit=4
  $region2: #{_lambda_.48} parent=0 // loop_pre_header
    _
  $region3: #{_lambda_.48} parent=0 // loop_header
    %s9 = sphi 0, %s13
    %p10 = scmp.ge.s32.totalorder %s9, 4
    %s16 = sphi 0, %s28
    %s17 = sphi 0, %s24
    %s18 = sphi 0, %s16
    %s19 = sphi 0, %s17
    %s20 = sphi 0, %s18
    %s21 = sphi 0, %s19
    %s33 = sphi 0, %s35
    %s36 = sphi 0, %s33
    %s37 = sphi 0, %s36
    %s53 = sphi 0, %s37
    %s57 = sphi 0, %s57
    %s59 = sphi 0, %s57
    %s60 = sphi 0, %s59
    %s74 = sphi 0, %s60
    %s78 = sphi 0, %s78
    %s80 = sphi 0, %s78
    %s81 = sphi 0, %s80
    %s95 = sphi 0, %s81
    %s103 = sphi 0, %s105
    %s106 = sphi 0, %s103
    %s107 = sphi 0, %s106
    %s123 = sphi 0, %s107
  $region4: #{_lambda_.48} parent=0 // loop_header_branch
    %12 = sbr.rel (%p10) target = $region8
  $region5: #{_lambda_.48} parent=0 // loop_body
    %s14 = ssub.s32 %s9, 1
    %s15 = ssub.s32 %s9, 2
    %s22 = sadd.s32 1, %s17
    %p23 = scmp.ge.s32.totalorder %s22, 1
    %s24 = scalar_select %p23, 0, %s22
    %s25 = sadd.s32 1, %s16
    %s26 = scalar_select %p23, %s25, %s16
    %p27 = scmp.ge.s32.totalorder %s26, 2
    %s28 = scalar_select %p27, 0, %s26
    %s29 = ssub.s32 %s16, %s28
    %s30 = ssub.s32 %s17, %s24
    %s31 = sor.u32 %s29, %s30
    %p32 = scmp.eq.s32.totalorder %s31, 0
    %s34 = sadd.s32 %s33, 1
    %s35 = scalar_select %p32, %s33, %s34
    %p38 = pneg %p32
    %p39 = scmp.eq.s32.totalorder %s9, 1
    %p40 = por %p38, %p39
    %p41 = scmp.ne.s32.totalorder %s33, %s36
    %p42 = scmp.eq.s32.totalorder %s9, 0
    %p43 = por %p41, %p42
    %p44 = scmp.ne.s32.totalorder %s33, %s36
    %p45 = scmp.eq.s32.totalorder %s14, 1
    %p46 = por %p44, %p45
    %p47 = scmp.ne.s32.totalorder %s36, %s37
    %p48 = scmp.eq.s32.totalorder %s14, 0
    %p49 = por %p47, %p48
    %p50 = scmp.ne.s32.totalorder %s36, %s37
    %p51 = scmp.eq.s32.totalorder %s15, 1
    %p52 = por %p50, %p51
    %p54 = scmp.ne.s32.totalorder %s37, %s53
    %p55 = scmp.eq.s32.totalorder %s15, 0
    %p56 = por %p54, %p55
    %s58 = sadd.s32 %s57, 1
    %p61 = scmp.eq.s32.totalorder %s9, 1
    %p62 = scmp.ne.s32.totalorder %s57, %s59
    %p63 = scmp.eq.s32.totalorder %s9, 0
    %p64 = por %p62, %p63
    %p65 = scmp.ne.s32.totalorder %s57, %s59
    %p66 = scmp.eq.s32.totalorder %s14, 1
    %p67 = por %p65, %p66
    %p68 = scmp.ne.s32.totalorder %s59, %s60
    %p69 = scmp.eq.s32.totalorder %s14, 0
    %p70 = por %p68, %p69
    %p71 = scmp.ne.s32.totalorder %s59, %s60
    %p72 = scmp.eq.s32.totalorder %s15, 1
    %p73 = por %p71, %p72
    %p75 = scmp.ne.s32.totalorder %s60, %s74
    %p76 = scmp.eq.s32.totalorder %s15, 0
    %p77 = por %p75, %p76
    %s79 = sadd.s32 %s78, 1
    %p82 = scmp.eq.s32.totalorder %s9, 1
    %p83 = scmp.ne.s32.totalorder %s78, %s80
    %p84 = scmp.eq.s32.totalorder %s9, 0
    %p85 = por %p83, %p84
    %p86 = scmp.ne.s32.totalorder %s78, %s80
    %p87 = scmp.eq.s32.totalorder %s14, 1
    %p88 = por %p86, %p87
    %p89 = scmp.ne.s32.totalorder %s80, %s81
    %p90 = scmp.eq.s32.totalorder %s14, 0
    %p91 = por %p89, %p90
    %p92 = scmp.ne.s32.totalorder %s80, %s81
    %p93 = scmp.eq.s32.totalorder %s15, 1
    %p94 = por %p92, %p93
    %p96 = scmp.ne.s32.totalorder %s81, %s95
    %p97 = scmp.eq.s32.totalorder %s15, 0
    %p98 = por %p96, %p97
    %s99 = ssub.s32 %s16, %s28
    %s100 = ssub.s32 %s17, %s24
    %s101 = sor.u32 %s99, %s100
    %p102 = scmp.eq.s32.totalorder %s101, 0
    %s104 = sadd.s32 %s103, 1
    %s105 = scalar_select %p102, %s103, %s104
    %p108 = pneg %p102
    %p109 = scmp.eq.s32.totalorder %s9, 1
    %p110 = por %p108, %p109
    %p111 = scmp.ne.s32.totalorder %s103, %s106
    %p112 = scmp.eq.s32.totalorder %s9, 0
    %p113 = por %p111, %p112
    %p114 = scmp.ne.s32.totalorder %s103, %s106
    %p115 = scmp.eq.s32.totalorder %s14, 1
    %p116 = por %p114, %p115
    %p117 = scmp.ne.s32.totalorder %s106, %s107
    %p118 = scmp.eq.s32.totalorder %s14, 0
    %p119 = por %p117, %p118
    %p120 = scmp.ne.s32.totalorder %s106, %s107
    %p121 = scmp.eq.s32.totalorder %s15, 1
    %p122 = por %p120, %p121
    %p124 = scmp.ne.s32.totalorder %s107, %s123
    %p125 = scmp.eq.s32.totalorder %s15, 0
    %p126 = por %p124, %p125
    %p127 = scmp.le.s32.totalorder 1, %s9
    %p128 = scmp.lt.s32.totalorder %s9, 3
    %p129 = pnand %p127, %p128
    %p130 = pneg %p129
    // Predicated region
    $region9: #{_lambda_.48} parent=5 // pred_check
      _
    $region10: #{_lambda_.48} parent=5 // pred_check_branch
      %132 = sbr.rel (%p129) target = $region12
    $region11: #{_lambda_.48} parent=5 // pred_region
      %s133 = ssub.s32 %s9, 1
      // Predicated region
      $region13: #{_lambda_.48} parent=11 // pred_check
        %p134 = pneg %p70
      $region14: #{_lambda_.48} parent=11 // pred_check_branch
        %136 = sbr.rel (%p134) target = $region16
      $region15: #{_lambda_.48} parent=11 // pred_region
        _
      $region16: #{_lambda_.48} parent=11 // pred_fallthru
        _
      // Predicated region
      $region17: #{_lambda_.48} parent=11 // pred_check
        %p137 = pneg %p91
      $region18: #{_lambda_.48} parent=11 // pred_check_branch
        %139 = sbr.rel (%p137) target = $region20
      $region19: #{_lambda_.48} parent=11 // pred_region
        _
      $region20: #{_lambda_.48} parent=11 // pred_fallthru
        _
    $region12: #{_lambda_.48} parent=5 // pred_fallthru
      _
    %p140 = scmp.lt.s32.totalorder %s9, 2
    // Predicated region
    $region21: #{_lambda_.48} parent=5 // pred_check
      %p141 = pneg %p140
    $region22: #{_lambda_.48} parent=5 // pred_check_branch
      %143 = sbr.rel (%p141) target = $region24
    $region23: #{_lambda_.48} parent=5 // pred_region
      // Predicated region
      $region25: #{_lambda_.48} parent=23 // pred_check
        %p144 = pneg %p43
      $region26: #{_lambda_.48} parent=23 // pred_check_branch
        %146 = sbr.rel (%p144) target = $region28
      $region27: #{_lambda_.48} parent=23 // pred_region
        %s147 = smul.u32 8, %s17
        %p148 = scmp.lt.s32.totalorder %s16, 1
        %s149 = scalar_select %p148, %s16, 1
        %p150 = scmp.lt.s32.totalorder %s147, 7
        %s151 = scalar_select %p150, %s147, 7
        %s152 = smul.addr %s149, 8
        %s153 = sadd.s32 %s151, %s152
        %s154 = smul.addr %s153, 4
        %s155 = scalar_lea.vmem %s0, %s154
        %s156 = smul.u32 8, %s17
      $region28: #{_lambda_.48} parent=23 // pred_fallthru
        _
    $region24: #{_lambda_.48} parent=5 // pred_fallthru
      _
    %p157 = scmp.le.s32.totalorder 1, %s9
    %p158 = scmp.lt.s32.totalorder %s9, 3
    %p159 = pnand %p157, %p158
    %p160 = pneg %p159
    // Predicated region
    $region29: #{_lambda_.48} parent=5 // pred_check
      _
    $region30: #{_lambda_.48} parent=5 // pred_check_branch
      %162 = sbr.rel (%p159) target = $region32
    $region31: #{_lambda_.48} parent=5 // pred_region
      %s163 = ssub.s32 %s9, 1
      %s164 = smul.u32 8, %s19
      %p165 = scmp.lt.s32.totalorder %s18, 1
      %s166 = scalar_select %p165, %s18, 1
      %p167 = scmp.lt.s32.totalorder %s164, 7
      %s168 = scalar_select %p167, %s164, 7
      %s169 = smul.addr %s166, 8
      %s170 = sadd.s32 %s168, %s169
      %s171 = smul.addr %s170, 4
      %s172 = scalar_lea.vmem %s0, %s171
      %p173 = pneg %p49
      %p174 = pneg %p46
      %p175 = pneg %p70
      %p176 = pneg %p67
      %p177 = pneg %p91
      %p178 = pneg %p88
      %p179 = pneg %p119
      %p180 = pneg %p116
      %s181 = smul.u32 8, %s19
      %p182 = scmp.lt.s32.totalorder %s18, 1
      %s183 = scalar_select %p182, %s18, 1
      %p184 = scmp.lt.s32.totalorder %s181, 7
      %s185 = scalar_select %p184, %s181, 7
      %s186 = smul.addr %s183, 32
      %s187 = sadd.s32 %s185, %s186
      %s188 = smul.addr %s187, 8
      %s189 = scalar_lea.vmem %s3, %s188
      %s190 = smul.u32 8, %s19
      %p191 = scmp.lt.s32.totalorder %s18, 1
      %s192 = scalar_select %p191, %s18, 1
      %p193 = scmp.lt.s32.totalorder %s190, 7
      %s194 = scalar_select %p193, %s190, 7
      %s195 = smul.addr %s192, 8
      %s196 = sadd.s32 %s194, %s195
      %s197 = smul.addr %s196, 4
      %s198 = scalar_lea.vmem %s0, %s197
      %s199 = smul.u32 8, %s19
      %s200 = smul.u32 8, %s19
      %p201 = scmp.lt.s32.totalorder %s18, 1
      %s202 = scalar_select %p201, %s18, 1
      %p203 = scmp.lt.s32.totalorder %s200, 7
      %s204 = scalar_select %p203, %s200, 7
      %s205 = smul.addr %s202, 32
      %s206 = sadd.s32 %s204, %s205
      %s207 = smul.addr %s206, 8
      %s208 = scalar_lea.vmem %s3, %s207
      %s209 = smul.u32 8, %s19
      %v211 = vld [vmem:[%s1] sm:$0xf]
      %v212 = vld [vmem:[%s1 + $0x4] sm:$0xf]
      %v213 = vld [vmem:[%s1 + $0x8] sm:$0xf]
      %v214 = vld [vmem:[%s1 + $0xc] sm:$0xf]
      %v215 = vld [vmem:[%s198] sm:$0xff]
      %v216 = vld [vmem:[%s198 + $0x8] sm:$0xff]
      %v217 = vld [vmem:[%s198 + $0x10] sm:$0xff]
      %v218 = vld [vmem:[%s198 + $0x18] sm:$0xff]
      %v219 = vld [vmem:[%s2] sm:$0xff]
      %v220 = vld [vmem:[%s2 + $0x8] sm:$0xff]
      %v221 = vld [vmem:[%s2 + $0x10] sm:$0xff]
      %v222 = vld [vmem:[%s2 + $0x18] sm:$0xff]
      %224 = vset.pattern.permute.xlu0 0
      %225 = vperm.xlu0 %224, %v219
      %v226 = vpop.permute.xlu0 %225
      %229 = vset.pattern.permute.xlu0 0
      %230 = vperm.xlu0 %229, %v220
      %v231 = vpop.permute.xlu0 %230
      %234 = vset.pattern.permute.xlu0 0
      %235 = vperm.xlu0 %234, %v221
      %v236 = vpop.permute.xlu0 %235
      %239 = vset.pattern.permute.xlu0 0
      %240 = vperm.xlu0 %239, %v222
      %v241 = vpop.permute.xlu0 %240
      %v247 = vunpack.c.l.b16 %v211
      %v248 = vunpack.c.l.b16 %v212
      %v249 = vunpack.c.l.b16 %v213
      %v250 = vunpack.c.l.b16 %v214
      %v251 = vpack.c.b16 %v248, %v247
      %v252 = vpack.c.b16 %v250, %v249
      %v257 = vunpack.c.l.b16 %v215
      %v258 = vunpack.c.h.b16 %v215
      %v259 = vunpack.c.l.b16 %v216
      %v260 = vunpack.c.h.b16 %v216
      %v261 = vunpack.c.l.b16 %v217
      %v262 = vunpack.c.h.b16 %v217
      %v263 = vunpack.c.l.b16 %v218
      %v264 = vunpack.c.h.b16 %v218
      %v265 = vpack.c.b16 %v257, %v257
      %v266 = vpack.c.b16 %v258, %v258
      %v267 = vpack.c.b16 %v259, %v259
      %v268 = vpack.c.b16 %v260, %v260
      %v269 = vpack.c.b16 %v261, %v261
      %v270 = vpack.c.b16 %v262, %v262
      %v271 = vpack.c.b16 %v263, %v263
      %v272 = vpack.c.b16 %v264, %v264
      %vm273 = vcmask 64512
      %v275 = vsel %vm273, %v251, 0
      %v278 = vsel %vm273, %v252, 0
      %vm280 = vcmask 1043456
      %v282 = vsel %vm280, %v265, 0
      %v285 = vsel %vm280, %v266, 0
      %v288 = vsel %vm280, %v267, 0
      %v291 = vsel %vm280, %v268, 0
      %v294 = vsel %vm280, %v269, 0
      %v297 = vsel %vm280, %v270, 0
      %v300 = vsel %vm280, %v271, 0
      %v303 = vsel %vm280, %v272, 0
      %305 = vmatprep.subr.bf16.mxu0 %v285
      %306 = vmatpush1.bf16.msra.mxu0 %v282
      %307 = vmatprep.subr.bf16.mxu0 0
      %308 = vmatpush1.bf16.msra.mxu0 0
      %309 = vmatprep.subr.bf16.mxu0 0
      %310 = vmatpush1.bf16.msra.mxu0 0
      %311 = vmatprep.subr.bf16.mxu0 0
      %312 = vmatpush1.bf16.msra.mxu0 0
      %313 = vmatprep.subr.bf16.mxu0 0
      %314 = vmatpush1.bf16.msra.mxu0 0
      %315 = vmatprep.subr.bf16.mxu0 0
      %316 = vmatpush1.bf16.msra.mxu0 0
      %317 = vmatprep.subr.bf16.mxu0 0
      %318 = vmatpush1.bf16.msra.mxu0 0
      %319 = vmatprep.subr.bf16.mxu0 0
      %320 = vmatpush1.bf16.msra.mxu0 0
      %321 = vmatprep.subr.bf16.mxu0 0
      %322 = vmatpush1.bf16.msra.mxu0 0
      %323 = vmatprep.subr.bf16.mxu0 0
      %324 = vmatpush1.bf16.msra.mxu0 0
      %325 = vmatprep.subr.bf16.mxu0 0
      %326 = vmatpush1.bf16.msra.mxu0 0
      %327 = vmatprep.subr.bf16.mxu0 0
      %328 = vmatpush1.bf16.msra.mxu0 0
      %329 = vmatprep.subr.bf16.mxu0 0
      %330 = vmatpush1.bf16.msra.mxu0 0
      %331 = vmatprep.subr.bf16.mxu0 0
      %332 = vmatpush1.bf16.msra.mxu0 0
      %333 = vmatprep.subr.bf16.mxu0 0
      %334 = vmatpush1.bf16.msra.mxu0 0
      %335 = vmatprep.subr.bf16.mxu0 0
      %336 = vmatpush1.bf16.msra.mxu0 0
      %337 = vmatprep.mubr.bf16.mxu0 0
      %338 = vmatmul.mubr.bf16.gmra.mrb[0].mxu0 %v275
      %v339 = vpop.f32.mrb[0].mxu0
      %v340 = vadd.f32 %v226, %v339
      %v341 = vpop.f32.mrb[0].mxu0
      %v342 = vadd.f32 %v226, %v341
      %v343 = vpop.f32.mrb[0].mxu0
      %v344 = vadd.f32 %v231, %v343
      %v345 = vpop.f32.mrb[0].mxu0
      %v346 = vadd.f32 %v231, %v345
      %347 = vmatprep.mubr.bf16.mxu0 0
      %348 = vmatmul.mubr.bf16.gmra.mrb[0].mxu0 %v278
      %v349 = vpop.f32.mrb[0].mxu0
      %v350 = vadd.f32 %v236, %v349
      %v351 = vpop.f32.mrb[0].mxu0
      %v352 = vadd.f32 %v236, %v351
      %v353 = vpop.f32.mrb[0].mxu0
      %v354 = vadd.f32 %v241, %v353
      %v355 = vpop.f32.mrb[0].mxu0
      %v356 = vadd.f32 %v241, %v355
      %357 = vdwg.mxu0
      %358 = vmatprep.subr.bf16.mxu0 %v291
      %359 = vmatpush1.bf16.msra.mxu0 %v288
      %360 = vmatprep.subr.bf16.mxu0 0
      %361 = vmatpush1.bf16.msra.mxu0 0
      %362 = vmatprep.subr.bf16.mxu0 0
      %363 = vmatpush1.bf16.msra.mxu0 0
      %364 = vmatprep.subr.bf16.mxu0 0
      %365 = vmatpush1.bf16.msra.mxu0 0
      %366 = vmatprep.subr.bf16.mxu0 0
      %367 = vmatpush1.bf16.msra.mxu0 0
      %368 = vmatprep.subr.bf16.mxu0 0
      %369 = vmatpush1.bf16.msra.mxu0 0
      %370 = vmatprep.subr.bf16.mxu0 0
      %371 = vmatpush1.bf16.msra.mxu0 0
      %372 = vmatprep.subr.bf16.mxu0 0
      %373 = vmatpush1.bf16.msra.mxu0 0
      %374 = vmatprep.subr.bf16.mxu0 0
      %375 = vmatpush1.bf16.msra.mxu0 0
      %376 = vmatprep.subr.bf16.mxu0 0
      %377 = vmatpush1.bf16.msra.mxu0 0
      %378 = vmatprep.subr.bf16.mxu0 0
      %379 = vmatpush1.bf16.msra.mxu0 0
      %380 = vmatprep.subr.bf16.mxu0 0
      %381 = vmatpush1.bf16.msra.mxu0 0
      %382 = vmatprep.subr.bf16.mxu0 0
      %383 = vmatpush1.bf16.msra.mxu0 0
      %384 = vmatprep.subr.bf16.mxu0 0
      %385 = vmatpush1.bf16.msra.mxu0 0
      %386 = vmatprep.subr.bf16.mxu0 0
      %387 = vmatpush1.bf16.msra.mxu0 0
      %388 = vmatprep.subr.bf16.mxu0 0
      %389 = vmatpush1.bf16.msra.mxu0 0
      %390 = vmatprep.mubr.bf16.mxu0 0
      %391 = vmatmul.mubr.bf16.gmra.mrb[0].mxu0 %v275
      %v392 = vpop.f32.mrb[0].mxu0
      %v393 = vadd.f32 %v226, %v392
      %v394 = vpop.f32.mrb[0].mxu0
      %v395 = vadd.f32 %v226, %v394
      %v396 = vpop.f32.mrb[0].mxu0
      %v397 = vadd.f32 %v231, %v396
      %v398 = vpop.f32.mrb[0].mxu0
      %v399 = vadd.f32 %v231, %v398
      %400 = vmatprep.mubr.bf16.mxu0 0
      %401 = vmatmul.mubr.bf16.gmra.mrb[0].mxu0 %v278
      %v402 = vpop.f32.mrb[0].mxu0
      %v403 = vadd.f32 %v236, %v402
      %v404 = vpop.f32.mrb[0].mxu0
      %v405 = vadd.f32 %v236, %v404
      %v406 = vpop.f32.mrb[0].mxu0
      %v407 = vadd.f32 %v241, %v406
      %v408 = vpop.f32.mrb[0].mxu0
      %v409 = vadd.f32 %v241, %v408
      %410 = vdwg.mxu0
      %411 = vmatprep.subr.bf16.mxu0 %v297
      %412 = vmatpush1.bf16.msra.mxu0 %v294
      %413 = vmatprep.subr.bf16.mxu0 0
      %414 = vmatpush1.bf16.msra.mxu0 0
      %415 = vmatprep.subr.bf16.mxu0 0
      %416 = vmatpush1.bf16.msra.mxu0 0
      %417 = vmatprep.subr.bf16.mxu0 0
      %418 = vmatpush1.bf16.msra.mxu0 0
      %419 = vmatprep.subr.bf16.mxu0 0
      %420 = vmatpush1.bf16.msra.mxu0 0
      %421 = vmatprep.subr.bf16.mxu0 0
      %422 = vmatpush1.bf16.msra.mxu0 0
      %423 = vmatprep.subr.bf16.mxu0 0
      %424 = vmatpush1.bf16.msra.mxu0 0
      %425 = vmatprep.subr.bf16.mxu0 0
      %426 = vmatpush1.bf16.msra.mxu0 0
      %427 = vmatprep.subr.bf16.mxu0 0
      %428 = vmatpush1.bf16.msra.mxu0 0
      %429 = vmatprep.subr.bf16.mxu0 0
      %430 = vmatpush1.bf16.msra.mxu0 0
      %431 = vmatprep.subr.bf16.mxu0 0
      %432 = vmatpush1.bf16.msra.mxu0 0
      %433 = vmatprep.subr.bf16.mxu0 0
      %434 = vmatpush1.bf16.msra.mxu0 0
      %435 = vmatprep.subr.bf16.mxu0 0
      %436 = vmatpush1.bf16.msra.mxu0 0
      %437 = vmatprep.subr.bf16.mxu0 0
      %438 = vmatpush1.bf16.msra.mxu0 0
      %439 = vmatprep.subr.bf16.mxu0 0
      %440 = vmatpush1.bf16.msra.mxu0 0
      %441 = vmatprep.subr.bf16.mxu0 0
      %442 = vmatpush1.bf16.msra.mxu0 0
      %443 = vmatprep.mubr.bf16.mxu0 0
      %444 = vmatmul.mubr.bf16.gmra.mrb[0].mxu0 %v275
      %v445 = vpop.f32.mrb[0].mxu0
      %v446 = vadd.f32 %v226, %v445
      %v447 = vpop.f32.mrb[0].mxu0
      %v448 = vadd.f32 %v226, %v447
      %v449 = vpop.f32.mrb[0].mxu0
      %v450 = vadd.f32 %v231, %v449
      %v451 = vpop.f32.mrb[0].mxu0
      %v452 = vadd.f32 %v231, %v451
      %453 = vmatprep.mubr.bf16.mxu0 0
      %454 = vmatmul.mubr.bf16.gmra.mrb[0].mxu0 %v278
      %v455 = vpop.f32.mrb[0].mxu0
      %v456 = vadd.f32 %v236, %v455
      %v457 = vpop.f32.mrb[0].mxu0
      %v458 = vadd.f32 %v236, %v457
      %v459 = vpop.f32.mrb[0].mxu0
      %v460 = vadd.f32 %v241, %v459
      %v461 = vpop.f32.mrb[0].mxu0
      %v462 = vadd.f32 %v241, %v461
      %463 = vdwg.mxu0
      %464 = vmatprep.subr.bf16.mxu0 %v303
      %465 = vmatpush1.bf16.msra.mxu0 %v300
      %466 = vmatprep.subr.bf16.mxu0 0
      %467 = vmatpush1.bf16.msra.mxu0 0
      %468 = vmatprep.subr.bf16.mxu0 0
      %469 = vmatpush1.bf16.msra.mxu0 0
      %470 = vmatprep.subr.bf16.mxu0 0
      %471 = vmatpush1.bf16.msra.mxu0 0
      %472 = vmatprep.subr.bf16.mxu0 0
      %473 = vmatpush1.bf16.msra.mxu0 0
      %474 = vmatprep.subr.bf16.mxu0 0
      %475 = vmatpush1.bf16.msra.mxu0 0
      %476 = vmatprep.subr.bf16.mxu0 0
      %477 = vmatpush1.bf16.msra.mxu0 0
      %478 = vmatprep.subr.bf16.mxu0 0
      %479 = vmatpush1.bf16.msra.mxu0 0
      %480 = vmatprep.subr.bf16.mxu0 0
      %481 = vmatpush1.bf16.msra.mxu0 0
      %482 = vmatprep.subr.bf16.mxu0 0
      %483 = vmatpush1.bf16.msra.mxu0 0
      %484 = vmatprep.subr.bf16.mxu0 0
      %485 = vmatpush1.bf16.msra.mxu0 0
      %486 = vmatprep.subr.bf16.mxu0 0
      %487 = vmatpush1.bf16.msra.mxu0 0
      %488 = vmatprep.subr.bf16.mxu0 0
      %489 = vmatpush1.bf16.msra.mxu0 0
      %490 = vmatprep.subr.bf16.mxu0 0
      %491 = vmatpush1.bf16.msra.mxu0 0
      %492 = vmatprep.subr.bf16.mxu0 0
      %493 = vmatpush1.bf16.msra.mxu0 0
      %494 = vmatprep.subr.bf16.mxu0 0
      %495 = vmatpush1.bf16.msra.mxu0 0
      %496 = vmatprep.mubr.bf16.mxu0 0
      %497 = vmatmul.mubr.bf16.gmra.mrb[0].mxu0 %v275
      %v498 = vpop.f32.mrb[0].mxu0
      %v499 = vadd.f32 %v226, %v498
      %v500 = vpop.f32.mrb[0].mxu0
      %v501 = vadd.f32 %v226, %v500
      %v502 = vpop.f32.mrb[0].mxu0
      %v503 = vadd.f32 %v231, %v502
      %v504 = vpop.f32.mrb[0].mxu0
      %v505 = vadd.f32 %v231, %v504
      %506 = vmatprep.mubr.bf16.mxu0 0
      %507 = vmatmul.mubr.bf16.gmra.mrb[0].mxu0 %v278
      %v508 = vpop.f32.mrb[0].mxu0
      %v509 = vadd.f32 %v236, %v508
      %v510 = vpop.f32.mrb[0].mxu0
      %v511 = vadd.f32 %v236, %v510
      %v512 = vpop.f32.mrb[0].mxu0
      %v513 = vadd.f32 %v241, %v512
      %v514 = vpop.f32.mrb[0].mxu0
      %v515 = vadd.f32 %v241, %v514
      %516 = vdwg.mxu0
      %517 = vst [vmem:[%s208] sm:$0xff] %v340
      %518 = vst [vmem:[%s208 + $0x8] sm:$0xff] %v342
      %519 = vst [vmem:[%s208 + $0x10] sm:$0xff] %v393
      %520 = vst [vmem:[%s208 + $0x18] sm:$0xff] %v395
      %521 = vst [vmem:[%s208 + $0x20] sm:$0xff] %v446
      %522 = vst [vmem:[%s208 + $0x28] sm:$0xff] %v448
      %523 = vst [vmem:[%s208 + $0x30] sm:$0xff] %v499
      %524 = vst [vmem:[%s208 + $0x38] sm:$0xff] %v501
      %525 = vst [vmem:[%s208 + $0x40] sm:$0xff] %v344
      %526 = vst [vmem:[%s208 + $0x48] sm:$0xff] %v346
      %527 = vst [vmem:[%s208 + $0x50] sm:$0xff] %v397
      %528 = vst [vmem:[%s208 + $0x58] sm:$0xff] %v399
      %529 = vst [vmem:[%s208 + $0x60] sm:$0xff] %v450
      %530 = vst [vmem:[%s208 + $0x68] sm:$0xff] %v452
      %531 = vst [vmem:[%s208 + $0x70] sm:$0xff] %v503
      %532 = vst [vmem:[%s208 + $0x78] sm:$0xff] %v505
      %533 = vst [vmem:[%s208 + $0x80] sm:$0xff] %v350
      %534 = vst [vmem:[%s208 + $0x88] sm:$0xff] %v352
      %535 = vst [vmem:[%s208 + $0x90] sm:$0xff] %v403
      %536 = vst [vmem:[%s208 + $0x98] sm:$0xff] %v405
      %537 = vst [vmem:[%s208 + $0xa0] sm:$0xff] %v456
      %538 = vst [vmem:[%s208 + $0xa8] sm:$0xff] %v458
      %539 = vst [vmem:[%s208 + $0xb0] sm:$0xff] %v509
      %540 = vst [vmem:[%s208 + $0xb8] sm:$0xff] %v511
      %541 = vst [vmem:[%s208 + $0xc0] sm:$0xff] %v354
      %542 = vst [vmem:[%s208 + $0xc8] sm:$0xff] %v356
      %543 = vst [vmem:[%s208 + $0xd0] sm:$0xff] %v407
      %544 = vst [vmem:[%s208 + $0xd8] sm:$0xff] %v409
      %545 = vst [vmem:[%s208 + $0xe0] sm:$0xff] %v460
      %546 = vst [vmem:[%s208 + $0xe8] sm:$0xff] %v462
      %547 = vst [vmem:[%s208 + $0xf0] sm:$0xff] %v513
      %548 = vst [vmem:[%s208 + $0xf8] sm:$0xff] %v515
      %s549 = smul.u32 8, %s19
      %p550 = scmp.lt.s32.totalorder %s18, 1
      %s551 = scalar_select %p550, %s18, 1
      %p552 = scmp.lt.s32.totalorder %s549, 7
      %s553 = scalar_select %p552, %s549, 7
      %s554 = smul.addr %s551, 32
      %s555 = sadd.s32 %s553, %s554
      %s556 = smul.addr %s555, 8
      %s557 = scalar_lea.vmem %s3, %s556
      // Predicated region
      $region33: #{_lambda_.48} parent=31 // pred_check
        %p558 = pneg %p116
      $region34: #{_lambda_.48} parent=31 // pred_check_branch
        %560 = sbr.rel (%p558) target = $region36
      $region35: #{_lambda_.48} parent=31 // pred_region
        %s561 = smul.u32 8, %s19
      $region36: #{_lambda_.48} parent=31 // pred_fallthru
        _
    $region32: #{_lambda_.48} parent=5 // pred_fallthru
      _
    %p562 = scmp.le.s32.totalorder 2, %s9
    // Predicated region
    $region37: #{_lambda_.48} parent=5 // pred_check
      %p563 = pneg %p562
    $region38: #{_lambda_.48} parent=5 // pred_check_branch
      %565 = sbr.rel (%p563) target = $region40
    $region39: #{_lambda_.48} parent=5 // pred_region
      %s566 = ssub.s32 %s9, 2
      // Predicated region
      $region41: #{_lambda_.48} parent=39 // pred_check
        %p567 = pneg %p122
      $region42: #{_lambda_.48} parent=39 // pred_check_branch
        %569 = sbr.rel (%p567) target = $region44
      $region43: #{_lambda_.48} parent=39 // pred_region
        %s570 = smul.u32 8, %s21
        %p571 = scmp.lt.s32.totalorder %s20, 1
        %s572 = scalar_select %p571, %s20, 1
        %p573 = scmp.lt.s32.totalorder %s570, 7
        %s574 = scalar_select %p573, %s570, 7
        %s575 = smul.addr %s572, 32
        %s576 = sadd.s32 %s574, %s575
        %s577 = smul.addr %s576, 8
        %s578 = scalar_lea.vmem %s3, %s577
      $region44: #{_lambda_.48} parent=39 // pred_fallthru
        _
    $region40: #{_lambda_.48} parent=5 // pred_fallthru
      _
  $region6: #{_lambda_.48} parent=0 // loop_footer
    %s13 = sadd.s32 1, %s9
  $region7: #{_lambda_.48} parent=0 // loop_footer_branch
    %8 = sbr.rel target = $region3
  $region8: #{_lambda_.48} parent=0 // loop_exit
    _

// kernel: _lambda_.49
$region0: #{_lambda_.49}
  #allocation0 [shape = 'u32[]', space=smem, size = 0x4, offset = 0x4, fixed_abs, tag = 'smem constant byte address 0x4 - core index']
  #allocation1 [shape = 'u32[144,128]{1,0:T(1,128)}', space=vmem, size = 0x12000, scoped, tag = 'internal scratch']
  %s0 = inlined_call_operand.vmem [shape: bf16[2,288,1024], index: 0, kind: input, shape index: {}]
  %s1 = inlined_call_operand.vmem [shape: bf16[8,288], index: 1, kind: input, shape index: {}]
  %s2 = inlined_call_operand.vmem [shape: f32[8,1], index: 2, kind: input, shape index: {}]
  %s3 = inlined_call_operand.vmem [shape: f32[2,8,1024], index: 3, kind: output, shape index: {}]
  %s4 = sld [smem:[#allocation0]]
  $region45: #{_lambda_.49} parent=0
    _
  %s6 = ssub.s32 1, %s4
  %s7 = scalar_select 0, %s6, %s4
  loop: start=0, step=1, limit=4
  $region2: #{_lambda_.49} parent=0 // loop_pre_header
    _
  $region3: #{_lambda_.49} parent=0 // loop_header
    %s9 = sphi 0, %s13
    %p10 = scmp.ge.s32.totalorder %s9, 4
    %s16 = sphi 0, %s28
    %s17 = sphi 0, %s24
    %s18 = sphi 0, %s16
    %s19 = sphi 0, %s17
    %s20 = sphi 0, %s18
    %s21 = sphi 0, %s19
    %s33 = sphi 0, %s35
    %s36 = sphi 0, %s33
    %s37 = sphi 0, %s36
    %s53 = sphi 0, %s37
    %s57 = sphi 0, %s57
    %s59 = sphi 0, %s57
    %s60 = sphi 0, %s59
    %s74 = sphi 0, %s60
    %s78 = sphi 0, %s78
    %s80 = sphi 0, %s78
    %s81 = sphi 0, %s80
    %s95 = sphi 0, %s81
    %s103 = sphi 0, %s105
    %s106 = sphi 0, %s103
    %s107 = sphi 0, %s106
    %s123 = sphi 0, %s107
  $region4: #{_lambda_.49} parent=0 // loop_header_branch
    %12 = sbr.rel (%p10) target = $region8
  $region5: #{_lambda_.49} parent=0 // loop_body
    %s14 = ssub.s32 %s9, 1
    %s15 = ssub.s32 %s9, 2
    %s22 = sadd.s32 1, %s17
    %p23 = scmp.ge.s32.totalorder %s22, 1
    %s24 = scalar_select %p23, 0, %s22
    %s25 = sadd.s32 1, %s16
    %s26 = scalar_select %p23, %s25, %s16
    %p27 = scmp.ge.s32.totalorder %s26, 2
    %s28 = scalar_select %p27, 0, %s26
    %s29 = ssub.s32 %s16, %s28
    %s30 = ssub.s32 %s17, %s24
    %s31 = sor.u32 %s29, %s30
    %p32 = scmp.eq.s32.totalorder %s31, 0
    %s34 = sadd.s32 %s33, 1
    %s35 = scalar_select %p32, %s33, %s34
    %p38 = pneg %p32
    %p39 = scmp.eq.s32.totalorder %s9, 1
    %p40 = por %p38, %p39
    %p41 = scmp.ne.s32.totalorder %s33, %s36
    %p42 = scmp.eq.s32.totalorder %s9, 0
    %p43 = por %p41, %p42
    %p44 = scmp.ne.s32.totalorder %s33, %s36
    %p45 = scmp.eq.s32.totalorder %s14, 1
    %p46 = por %p44, %p45
    %p47 = scmp.ne.s32.totalorder %s36, %s37
    %p48 = scmp.eq.s32.totalorder %s14, 0
    %p49 = por %p47, %p48
    %p50 = scmp.ne.s32.totalorder %s36, %s37
    %p51 = scmp.eq.s32.totalorder %s15, 1
    %p52 = por %p50, %p51
    %p54 = scmp.ne.s32.totalorder %s37, %s53
    %p55 = scmp.eq.s32.totalorder %s15, 0
    %p56 = por %p54, %p55
    %s58 = sadd.s32 %s57, 1
    %p61 = scmp.eq.s32.totalorder %s9, 1
    %p62 = scmp.ne.s32.totalorder %s57, %s59
    %p63 = scmp.eq.s32.totalorder %s9, 0
    %p64 = por %p62, %p63
    %p65 = scmp.ne.s32.totalorder %s57, %s59
    %p66 = scmp.eq.s32.totalorder %s14, 1
    %p67 = por %p65, %p66
    %p68 = scmp.ne.s32.totalorder %s59, %s60
    %p69 = scmp.eq.s32.totalorder %s14, 0
    %p70 = por %p68, %p69
    %p71 = scmp.ne.s32.totalorder %s59, %s60
    %p72 = scmp.eq.s32.totalorder %s15, 1
    %p73 = por %p71, %p72
    %p75 = scmp.ne.s32.totalorder %s60, %s74
    %p76 = scmp.eq.s32.totalorder %s15, 0
    %p77 = por %p75, %p76
    %s79 = sadd.s32 %s78, 1
    %p82 = scmp.eq.s32.totalorder %s9, 1
    %p83 = scmp.ne.s32.totalorder %s78, %s80
    %p84 = scmp.eq.s32.totalorder %s9, 0
    %p85 = por %p83, %p84
    %p86 = scmp.ne.s32.totalorder %s78, %s80
    %p87 = scmp.eq.s32.totalorder %s14, 1
    %p88 = por %p86, %p87
    %p89 = scmp.ne.s32.totalorder %s80, %s81
    %p90 = scmp.eq.s32.totalorder %s14, 0
    %p91 = por %p89, %p90
    %p92 = scmp.ne.s32.totalorder %s80, %s81
    %p93 = scmp.eq.s32.totalorder %s15, 1
    %p94 = por %p92, %p93
    %p96 = scmp.ne.s32.totalorder %s81, %s95
    %p97 = scmp.eq.s32.totalorder %s15, 0
    %p98 = por %p96, %p97
    %s99 = ssub.s32 %s16, %s28
    %s100 = ssub.s32 %s17, %s24
    %s101 = sor.u32 %s99, %s100
    %p102 = scmp.eq.s32.totalorder %s101, 0
    %s104 = sadd.s32 %s103, 1
    %s105 = scalar_select %p102, %s103, %s104
    %p108 = pneg %p102
    %p109 = scmp.eq.s32.totalorder %s9, 1
    %p110 = por %p108, %p109
    %p111 = scmp.ne.s32.totalorder %s103, %s106
    %p112 = scmp.eq.s32.totalorder %s9, 0
    %p113 = por %p111, %p112
    %p114 = scmp.ne.s32.totalorder %s103, %s106
    %p115 = scmp.eq.s32.totalorder %s14, 1
    %p116 = por %p114, %p115
    %p117 = scmp.ne.s32.totalorder %s106, %s107
    %p118 = scmp.eq.s32.totalorder %s14, 0
    %p119 = por %p117, %p118
    %p120 = scmp.ne.s32.totalorder %s106, %s107
    %p121 = scmp.eq.s32.totalorder %s15, 1
    %p122 = por %p120, %p121
    %p124 = scmp.ne.s32.totalorder %s107, %s123
    %p125 = scmp.eq.s32.totalorder %s15, 0
    %p126 = por %p124, %p125
    %p127 = scmp.le.s32.totalorder 1, %s9
    %p128 = scmp.lt.s32.totalorder %s9, 3
    %p129 = pnand %p127, %p128
    %p130 = pneg %p129
    // Predicated region
    $region9: #{_lambda_.49} parent=5 // pred_check
      _
    $region10: #{_lambda_.49} parent=5 // pred_check_branch
      %132 = sbr.rel (%p129) target = $region12
    $region11: #{_lambda_.49} parent=5 // pred_region
      %s133 = ssub.s32 %s9, 1
      // Predicated region
      $region13: #{_lambda_.49} parent=11 // pred_check
        %p134 = pneg %p70
      $region14: #{_lambda_.49} parent=11 // pred_check_branch
        %136 = sbr.rel (%p134) target = $region16
      $region15: #{_lambda_.49} parent=11 // pred_region
        _
      $region16: #{_lambda_.49} parent=11 // pred_fallthru
        _
      // Predicated region
      $region17: #{_lambda_.49} parent=11 // pred_check
        %p137 = pneg %p91
      $region18: #{_lambda_.49} parent=11 // pred_check_branch
        %139 = sbr.rel (%p137) target = $region20
      $region19: #{_lambda_.49} parent=11 // pred_region
        _
      $region20: #{_lambda_.49} parent=11 // pred_fallthru
        _
    $region12: #{_lambda_.49} parent=5 // pred_fallthru
      _
    %p140 = scmp.lt.s32.totalorder %s9, 2
    // Predicated region
    $region21: #{_lambda_.49} parent=5 // pred_check
      %p141 = pneg %p140
    $region22: #{_lambda_.49} parent=5 // pred_check_branch
      %143 = sbr.rel (%p141) target = $region24
    $region23: #{_lambda_.49} parent=5 // pred_region
      // Predicated region
      $region25: #{_lambda_.49} parent=23 // pred_check
        %p144 = pneg %p43
      $region26: #{_lambda_.49} parent=23 // pred_check_branch
        %146 = sbr.rel (%p144) target = $region28
      $region27: #{_lambda_.49} parent=23 // pred_region
        %s147 = smul.u32 8, %s17
        %p148 = scmp.lt.s32.totalorder %s16, 1
        %s149 = scalar_select %p148, %s16, 1
        %p150 = scmp.lt.s32.totalorder %s147, 7
        %s151 = scalar_select %p150, %s147, 7
        %s152 = smul.addr %s149, 288
        %s153 = sadd.s32 %s151, %s152
        %s154 = smul.addr %s153, 4
        %s155 = scalar_lea.vmem %s0, %s154
        %s156 = smul.u32 8, %s17
      $region28: #{_lambda_.49} parent=23 // pred_fallthru
        _
    $region24: #{_lambda_.49} parent=5 // pred_fallthru
      _
    %p157 = scmp.le.s32.totalorder 1, %s9
    %p158 = scmp.lt.s32.totalorder %s9, 3
    %p159 = pnand %p157, %p158
    %p160 = pneg %p159
    // Predicated region
    $region29: #{_lambda_.49} parent=5 // pred_check
      _
    $region30: #{_lambda_.49} parent=5 // pred_check_branch
      %162 = sbr.rel (%p159) target = $region32
    $region31: #{_lambda_.49} parent=5 // pred_region
      %s163 = ssub.s32 %s9, 1
      %s164 = smul.u32 8, %s19
      %p165 = scmp.lt.s32.totalorder %s18, 1
      %s166 = scalar_select %p165, %s18, 1
      %p167 = scmp.lt.s32.totalorder %s164, 7
      %s168 = scalar_select %p167, %s164, 7
      %s169 = smul.addr %s166, 288
      %s170 = sadd.s32 %s168, %s169
      %s171 = smul.addr %s170, 4
      %s172 = scalar_lea.vmem %s0, %s171
      %p173 = pneg %p49
      %p174 = pneg %p46
      %p175 = pneg %p70
      %p176 = pneg %p67
      %p177 = pneg %p91
      %p178 = pneg %p88
      %p179 = pneg %p119
      %p180 = pneg %p116
      %s181 = smul.u32 8, %s19
      %p182 = scmp.lt.s32.totalorder %s18, 1
      %s183 = scalar_select %p182, %s18, 1
      %p184 = scmp.lt.s32.totalorder %s181, 7
      %s185 = scalar_select %p184, %s181, 7
      %s186 = smul.addr %s183, 8
      %s187 = sadd.s32 %s185, %s186
      %s188 = smul.addr %s187, 8
      %s189 = scalar_lea.vmem %s3, %s188
      %s190 = smul.u32 8, %s19
      %p191 = scmp.lt.s32.totalorder %s18, 1
      %s192 = scalar_select %p191, %s18, 1
      %p193 = scmp.lt.s32.totalorder %s190, 7
      %s194 = scalar_select %p193, %s190, 7
      %s195 = smul.addr %s192, 288
      %s196 = sadd.s32 %s194, %s195
      %s197 = smul.addr %s196, 4
      %s198 = scalar_lea.vmem %s0, %s197
      %s199 = smul.u32 8, %s19
      %s200 = smul.u32 8, %s19
      %p201 = scmp.lt.s32.totalorder %s18, 1
      %s202 = scalar_select %p201, %s18, 1
      %p203 = scmp.lt.s32.totalorder %s200, 7
      %s204 = scalar_select %p203, %s200, 7
      %s205 = smul.addr %s202, 8
      %s206 = sadd.s32 %s204, %s205
      %s207 = smul.addr %s206, 8
      %s208 = scalar_lea.vmem %s3, %s207
      %s209 = smul.u32 8, %s19
      %v211 = vld [vmem:[%s1] sm:$0xff]
      %v212 = vld [vmem:[%s1 + $0x8] sm:$0xf]
      %v213 = vld [vmem:[%s198] sm:$0xff]
      %v214 = vld [vmem:[%s198 + $0x8] sm:$0xff]
      %v215 = vld [vmem:[%s198 + $0x10] sm:$0xff]
      %v216 = vld [vmem:[%s198 + $0x18] sm:$0xff]
      %v217 = vld [vmem:[%s198 + $0x20] sm:$0xff]
      %v218 = vld [vmem:[%s198 + $0x28] sm:$0xff]
      %v219 = vld [vmem:[%s198 + $0x30] sm:$0xff]
      %v220 = vld [vmem:[%s198 + $0x38] sm:$0xff]
      %v221 = vld [vmem:[%s198 + $0x40] sm:$0xff]
      %v222 = vld [vmem:[%s198 + $0x48] sm:$0xff]
      %v223 = vld [vmem:[%s198 + $0x50] sm:$0xff]
      %v224 = vld [vmem:[%s198 + $0x58] sm:$0xff]
      %v225 = vld [vmem:[%s198 + $0x60] sm:$0xff]
      %v226 = vld [vmem:[%s198 + $0x68] sm:$0xff]
      %v227 = vld [vmem:[%s198 + $0x70] sm:$0xff]
      %v228 = vld [vmem:[%s198 + $0x78] sm:$0xff]
      %v229 = vld [vmem:[%s198 + $0x80] sm:$0xff]
      %v230 = vld [vmem:[%s198 + $0x88] sm:$0xff]
      %v231 = vld [vmem:[%s198 + $0x90] sm:$0xff]
      %v232 = vld [vmem:[%s198 + $0x98] sm:$0xff]
      %v233 = vld [vmem:[%s198 + $0xa0] sm:$0xff]
      %v234 = vld [vmem:[%s198 + $0xa8] sm:$0xff]
      %v235 = vld [vmem:[%s198 + $0xb0] sm:$0xff]
      %v236 = vld [vmem:[%s198 + $0xb8] sm:$0xff]
      %v237 = vld [vmem:[%s198 + $0xc0] sm:$0xff]
      %v238 = vld [vmem:[%s198 + $0xc8] sm:$0xff]
      %v239 = vld [vmem:[%s198 + $0xd0] sm:$0xff]
      %v240 = vld [vmem:[%s198 + $0xd8] sm:$0xff]
      %v241 = vld [vmem:[%s198 + $0xe0] sm:$0xff]
      %v242 = vld [vmem:[%s198 + $0xe8] sm:$0xff]
      %v243 = vld [vmem:[%s198 + $0xf0] sm:$0xff]
      %v244 = vld [vmem:[%s198 + $0xf8] sm:$0xff]
      %v245 = vld [vmem:[%s198 + $0x100] sm:$0xff]
      %v246 = vld [vmem:[%s198 + $0x108] sm:$0xff]
      %v247 = vld [vmem:[%s198 + $0x110] sm:$0xff]
      %v248 = vld [vmem:[%s198 + $0x118] sm:$0xff]
      %v249 = vld [vmem:[%s198 + $0x120] sm:$0xff]
      %v250 = vld [vmem:[%s198 + $0x128] sm:$0xff]
      %v251 = vld [vmem:[%s198 + $0x130] sm:$0xff]
      %v252 = vld [vmem:[%s198 + $0x138] sm:$0xff]
      %v253 = vld [vmem:[%s198 + $0x140] sm:$0xff]
      %v254 = vld [vmem:[%s198 + $0x148] sm:$0xff]
      %v255 = vld [vmem:[%s198 + $0x150] sm:$0xff]
      %v256 = vld [vmem:[%s198 + $0x158] sm:$0xff]
      %v257 = vld [vmem:[%s198 + $0x160] sm:$0xff]
      %v258 = vld [vmem:[%s198 + $0x168] sm:$0xff]
      %v259 = vld [vmem:[%s198 + $0x170] sm:$0xff]
      %v260 = vld [vmem:[%s198 + $0x178] sm:$0xff]
      %v261 = vld [vmem:[%s198 + $0x180] sm:$0xff]
      %v262 = vld [vmem:[%s198 + $0x188] sm:$0xff]
      %v263 = vld [vmem:[%s198 + $0x190] sm:$0xff]
      %v264 = vld [vmem:[%s198 + $0x198] sm:$0xff]
      %v265 = vld [vmem:[%s198 + $0x1a0] sm:$0xff]
      %v266 = vld [vmem:[%s198 + $0x1a8] sm:$0xff]
      %v267 = vld [vmem:[%s198 + $0x1b0] sm:$0xff]
      %v268 = vld [vmem:[%s198 + $0x1b8] sm:$0xff]
      %v269 = vld [vmem:[%s198 + $0x1c0] sm:$0xff]
      %v270 = vld [vmem:[%s198 + $0x1c8] sm:$0xff]
      %v271 = vld [vmem:[%s198 + $0x1d0] sm:$0xff]
      %v272 = vld [vmem:[%s198 + $0x1d8] sm:$0xff]
      %v273 = vld [vmem:[%s198 + $0x1e0] sm:$0xff]
      %v274 = vld [vmem:[%s198 + $0x1e8] sm:$0xff]
      %v275 = vld [vmem:[%s198 + $0x1f0] sm:$0xff]
      %v276 = vld [vmem:[%s198 + $0x1f8] sm:$0xff]
      %v277 = vld [vmem:[%s198 + $0x200] sm:$0xff]
      %v278 = vld [vmem:[%s198 + $0x208] sm:$0xff]
      %v279 = vld [vmem:[%s198 + $0x210] sm:$0xff]
      %v280 = vld [vmem:[%s198 + $0x218] sm:$0xff]
      %v281 = vld [vmem:[%s198 + $0x220] sm:$0xff]
      %v282 = vld [vmem:[%s198 + $0x228] sm:$0xff]
      %v283 = vld [vmem:[%s198 + $0x230] sm:$0xff]
      %v284 = vld [vmem:[%s198 + $0x238] sm:$0xff]
      %v285 = vld [vmem:[%s198 + $0x240] sm:$0xff]
      %v286 = vld [vmem:[%s198 + $0x248] sm:$0xff]
      %v287 = vld [vmem:[%s198 + $0x250] sm:$0xff]
      %v288 = vld [vmem:[%s198 + $0x258] sm:$0xff]
      %v289 = vld [vmem:[%s198 + $0x260] sm:$0xff]
      %v290 = vld [vmem:[%s198 + $0x268] sm:$0xff]
      %v291 = vld [vmem:[%s198 + $0x270] sm:$0xff]
      %v292 = vld [vmem:[%s198 + $0x278] sm:$0xff]
      %v293 = vld [vmem:[%s198 + $0x280] sm:$0xff]
      %v294 = vld [vmem:[%s198 + $0x288] sm:$0xff]
      %v295 = vld [vmem:[%s198 + $0x290] sm:$0xff]
      %v296 = vld [vmem:[%s198 + $0x298] sm:$0xff]
      %v297 = vld [vmem:[%s198 + $0x2a0] sm:$0xff]
      %v298 = vld [vmem:[%s198 + $0x2a8] sm:$0xff]
      %v299 = vld [vmem:[%s198 + $0x2b0] sm:$0xff]
      %v300 = vld [vmem:[%s198 + $0x2b8] sm:$0xff]
      %v301 = vld [vmem:[%s198 + $0x2c0] sm:$0xff]
      %v302 = vld [vmem:[%s198 + $0x2c8] sm:$0xff]
      %v303 = vld [vmem:[%s198 + $0x2d0] sm:$0xff]
      %v304 = vld [vmem:[%s198 + $0x2d8] sm:$0xff]
      %v305 = vld [vmem:[%s198 + $0x2e0] sm:$0xff]
      %v306 = vld [vmem:[%s198 + $0x2e8] sm:$0xff]
      %v307 = vld [vmem:[%s198 + $0x2f0] sm:$0xff]
      %v308 = vld [vmem:[%s198 + $0x2f8] sm:$0xff]
      %v309 = vld [vmem:[%s198 + $0x300] sm:$0xff]
      %v310 = vld [vmem:[%s198 + $0x308] sm:$0xff]
      %v311 = vld [vmem:[%s198 + $0x310] sm:$0xff]
      %v312 = vld [vmem:[%s198 + $0x318] sm:$0xff]
      %v313 = vld [vmem:[%s198 + $0x320] sm:$0xff]
      %v314 = vld [vmem:[%s198 + $0x328] sm:$0xff]
      %v315 = vld [vmem:[%s198 + $0x330] sm:$0xff]
      %v316 = vld [vmem:[%s198 + $0x338] sm:$0xff]
      %v317 = vld [vmem:[%s198 + $0x340] sm:$0xff]
      %v318 = vld [vmem:[%s198 + $0x348] sm:$0xff]
      %v319 = vld [vmem:[%s198 + $0x350] sm:$0xff]
      %v320 = vld [vmem:[%s198 + $0x358] sm:$0xff]
      %v321 = vld [vmem:[%s198 + $0x360] sm:$0xff]
      %v322 = vld [vmem:[%s198 + $0x368] sm:$0xff]
      %v323 = vld [vmem:[%s198 + $0x370] sm:$0xff]
      %v324 = vld [vmem:[%s198 + $0x378] sm:$0xff]
      %v325 = vld [vmem:[%s198 + $0x380] sm:$0xff]
      %v326 = vld [vmem:[%s198 + $0x388] sm:$0xff]
      %v327 = vld [vmem:[%s198 + $0x390] sm:$0xff]
      %v328 = vld [vmem:[%s198 + $0x398] sm:$0xff]
      %v329 = vld [vmem:[%s198 + $0x3a0] sm:$0xff]
      %v330 = vld [vmem:[%s198 + $0x3a8] sm:$0xff]
      %v331 = vld [vmem:[%s198 + $0x3b0] sm:$0xff]
      %v332 = vld [vmem:[%s198 + $0x3b8] sm:$0xff]
      %v333 = vld [vmem:[%s198 + $0x3c0] sm:$0xff]
      %v334 = vld [vmem:[%s198 + $0x3c8] sm:$0xff]
      %v335 = vld [vmem:[%s198 + $0x3d0] sm:$0xff]
      %v336 = vld [vmem:[%s198 + $0x3d8] sm:$0xff]
      %v337 = vld [vmem:[%s198 + $0x3e0] sm:$0xff]
      %v338 = vld [vmem:[%s198 + $0x3e8] sm:$0xff]
      %v339 = vld [vmem:[%s198 + $0x3f0] sm:$0xff]
      %v340 = vld [vmem:[%s198 + $0x3f8] sm:$0xff]
      %v341 = vld [vmem:[%s198 + $0x400] sm:$0xff]
      %v342 = vld [vmem:[%s198 + $0x408] sm:$0xff]
      %v343 = vld [vmem:[%s198 + $0x410] sm:$0xff]
      %v344 = vld [vmem:[%s198 + $0x418] sm:$0xff]
      %v345 = vld [vmem:[%s198 + $0x420] sm:$0xff]
      %v346 = vld [vmem:[%s198 + $0x428] sm:$0xff]
      %v347 = vld [vmem:[%s198 + $0x430] sm:$0xff]
      %v348 = vld [vmem:[%s198 + $0x438] sm:$0xff]
      %v349 = vld [vmem:[%s198 + $0x440] sm:$0xff]
      %v350 = vld [vmem:[%s198 + $0x448] sm:$0xff]
      %v351 = vld [vmem:[%s198 + $0x450] sm:$0xff]
      %v352 = vld [vmem:[%s198 + $0x458] sm:$0xff]
      %v353 = vld [vmem:[%s198 + $0x460] sm:$0xff]
      %v354 = vld [vmem:[%s198 + $0x468] sm:$0xff]
      %v355 = vld [vmem:[%s198 + $0x470] sm:$0xff]
      %v356 = vld [vmem:[%s198 + $0x478] sm:$0xff]
      %v357 = vld [vmem:[%s2] sm:$0xff]
      %359 = vset.pattern.permute.xlu0 0
      %360 = vperm.xlu0 %359, %v357
      %v361 = vpop.permute.xlu0 %360
      %v365 = vunpack.c.l.b16 %v211
      %v366 = vunpack.c.h.b16 %v211
      %v367 = vunpack.c.l.b16 %v212
      %v368 = vpack.c.b16 %v365, %v365
      %v369 = vpack.c.b16 %v366, %v366
      %v370 = vpack.c.b16 %v367, %v367
      %v517 = vunpack.c.l.b16 %v213
      %v518 = vunpack.c.h.b16 %v213
      %v519 = vunpack.c.l.b16 %v214
      %v520 = vunpack.c.h.b16 %v214
      %v521 = vunpack.c.l.b16 %v215
      %v522 = vunpack.c.h.b16 %v215
      %v523 = vunpack.c.l.b16 %v216
      %v524 = vunpack.c.h.b16 %v216
      %v525 = vunpack.c.l.b16 %v217
      %v526 = vunpack.c.h.b16 %v217
      %v527 = vunpack.c.l.b16 %v218
      %v528 = vunpack.c.h.b16 %v218
      %v529 = vunpack.c.l.b16 %v219
      %v530 = vunpack.c.h.b16 %v219
      %v531 = vunpack.c.l.b16 %v220
      %v532 = vunpack.c.h.b16 %v220
      %v533 = vunpack.c.l.b16 %v221
      %v534 = vunpack.c.h.b16 %v221
      %v535 = vunpack.c.l.b16 %v222
      %v536 = vunpack.c.h.b16 %v222
      %v537 = vunpack.c.l.b16 %v223
      %v538 = vunpack.c.h.b16 %v223
      %v539 = vunpack.c.l.b16 %v224
      %v540 = vunpack.c.h.b16 %v224
      %v541 = vunpack.c.l.b16 %v225
      %v542 = vunpack.c.h.b16 %v225
      %v543 = vunpack.c.l.b16 %v226
      %v544 = vunpack.c.h.b16 %v226
      %v545 = vunpack.c.l.b16 %v227
      %v546 = vunpack.c.h.b16 %v227
      %v547 = vunpack.c.l.b16 %v228
      %v548 = vunpack.c.h.b16 %v228
      %v549 = vunpack.c.l.b16 %v229
      %v550 = vunpack.c.h.b16 %v229
      %v551 = vunpack.c.l.b16 %v230
      %v552 = vunpack.c.h.b16 %v230
      %v553 = vunpack.c.l.b16 %v231
      %v554 = vunpack.c.h.b16 %v231
      %v555 = vunpack.c.l.b16 %v232
      %v556 = vunpack.c.h.b16 %v232
      %v557 = vunpack.c.l.b16 %v233
      %v558 = vunpack.c.h.b16 %v233
      %v559 = vunpack.c.l.b16 %v234
      %v560 = vunpack.c.h.b16 %v234
      %v561 = vunpack.c.l.b16 %v235
      %v562 = vunpack.c.h.b16 %v235
      %v563 = vunpack.c.l.b16 %v236
      %v564 = vunpack.c.h.b16 %v236
      %v565 = vunpack.c.l.b16 %v237
      %v566 = vunpack.c.h.b16 %v237
      %v567 = vunpack.c.l.b16 %v238
      %v568 = vunpack.c.h.b16 %v238
      %v569 = vunpack.c.l.b16 %v239
      %v570 = vunpack.c.h.b16 %v239
      %v571 = vunpack.c.l.b16 %v240
      %v572 = vunpack.c.h.b16 %v240
      %v573 = vunpack.c.l.b16 %v241
      %v574 = vunpack.c.h.b16 %v241
      %v575 = vunpack.c.l.b16 %v242
      %v576 = vunpack.c.h.b16 %v242
      %v577 = vunpack.c.l.b16 %v243
      %v578 = vunpack.c.h.b16 %v243
      %v579 = vunpack.c.l.b16 %v244
      %v580 = vunpack.c.h.b16 %v244
      %v581 = vunpack.c.l.b16 %v245
      %v582 = vunpack.c.h.b16 %v245
      %v583 = vunpack.c.l.b16 %v246
      %v584 = vunpack.c.h.b16 %v246
      %v585 = vunpack.c.l.b16 %v247
      %v586 = vunpack.c.h.b16 %v247
      %v587 = vunpack.c.l.b16 %v248
      %v588 = vunpack.c.h.b16 %v248
      %v589 = vunpack.c.l.b16 %v249
      %v590 = vunpack.c.h.b16 %v249
      %v591 = vunpack.c.l.b16 %v250
      %v592 = vunpack.c.h.b16 %v250
      %v593 = vunpack.c.l.b16 %v251
      %v594 = vunpack.c.h.b16 %v251
      %v595 = vunpack.c.l.b16 %v252
      %v596 = vunpack.c.h.b16 %v252
      %v597 = vunpack.c.l.b16 %v253
      %v598 = vunpack.c.h.b16 %v253
      %v599 = vunpack.c.l.b16 %v254
      %v600 = vunpack.c.h.b16 %v254
      %v601 = vunpack.c.l.b16 %v255
      %v602 = vunpack.c.h.b16 %v255
      %v603 = vunpack.c.l.b16 %v256
      %v604 = vunpack.c.h.b16 %v256
      %v605 = vunpack.c.l.b16 %v257
      %v606 = vunpack.c.h.b16 %v257
      %v607 = vunpack.c.l.b16 %v258
      %v608 = vunpack.c.h.b16 %v258
      %v609 = vunpack.c.l.b16 %v259
      %v610 = vunpack.c.h.b16 %v259
      %v611 = vunpack.c.l.b16 %v260
      %v612 = vunpack.c.h.b16 %v260
      %v613 = vunpack.c.l.b16 %v261
      %v614 = vunpack.c.h.b16 %v261
      %v615 = vunpack.c.l.b16 %v262
      %v616 = vunpack.c.h.b16 %v262
      %v617 = vunpack.c.l.b16 %v263
      %v618 = vunpack.c.h.b16 %v263
      %v619 = vunpack.c.l.b16 %v264
      %v620 = vunpack.c.h.b16 %v264
      %v621 = vunpack.c.l.b16 %v265
      %v622 = vunpack.c.h.b16 %v265
      %v623 = vunpack.c.l.b16 %v266
      %v624 = vunpack.c.h.b16 %v266
      %v625 = vunpack.c.l.b16 %v267
      %v626 = vunpack.c.h.b16 %v267
      %v627 = vunpack.c.l.b16 %v268
      %v628 = vunpack.c.h.b16 %v268
      %v629 = vunpack.c.l.b16 %v269
      %v630 = vunpack.c.h.b16 %v269
      %v631 = vunpack.c.l.b16 %v270
      %v632 = vunpack.c.h.b16 %v270
      %v633 = vunpack.c.l.b16 %v271
      %v634 = vunpack.c.h.b16 %v271
      %v635 = vunpack.c.l.b16 %v272
      %v636 = vunpack.c.h.b16 %v272
      %v637 = vunpack.c.l.b16 %v273
      %v638 = vunpack.c.h.b16 %v273
      %v639 = vunpack.c.l.b16 %v274
      %v640 = vunpack.c.h.b16 %v274
      %v641 = vunpack.c.l.b16 %v275
      %v642 = vunpack.c.h.b16 %v275
      %v643 = vunpack.c.l.b16 %v276
      %v644 = vunpack.c.h.b16 %v276
      %v645 = vunpack.c.l.b16 %v277
      %v646 = vunpack.c.h.b16 %v277
      %v647 = vunpack.c.l.b16 %v278
      %v648 = vunpack.c.h.b16 %v278
      %v649 = vunpack.c.l.b16 %v279
      %v650 = vunpack.c.h.b16 %v279
      %v651 = vunpack.c.l.b16 %v280
      %v652 = vunpack.c.h.b16 %v280
      %v653 = vunpack.c.l.b16 %v281
      %v654 = vunpack.c.h.b16 %v281
      %v655 = vunpack.c.l.b16 %v282
      %v656 = vunpack.c.h.b16 %v282
      %v657 = vunpack.c.l.b16 %v283
      %v658 = vunpack.c.h.b16 %v283
      %v659 = vunpack.c.l.b16 %v284
      %v660 = vunpack.c.h.b16 %v284
      %v661 = vunpack.c.l.b16 %v285
      %v662 = vunpack.c.h.b16 %v285
      %v663 = vunpack.c.l.b16 %v286
      %v664 = vunpack.c.h.b16 %v286
      %v665 = vunpack.c.l.b16 %v287
      %v666 = vunpack.c.h.b16 %v287
      %v667 = vunpack.c.l.b16 %v288
      %v668 = vunpack.c.h.b16 %v288
      %v669 = vunpack.c.l.b16 %v289
      %v670 = vunpack.c.h.b16 %v289
      %v671 = vunpack.c.l.b16 %v290
      %v672 = vunpack.c.h.b16 %v290
      %v673 = vunpack.c.l.b16 %v291
      %v674 = vunpack.c.h.b16 %v291
      %v675 = vunpack.c.l.b16 %v292
      %v676 = vunpack.c.h.b16 %v292
      %v677 = vunpack.c.l.b16 %v293
      %v678 = vunpack.c.h.b16 %v293
      %v679 = vunpack.c.l.b16 %v294
      %v680 = vunpack.c.h.b16 %v294
      %v681 = vunpack.c.l.b16 %v295
      %v682 = vunpack.c.h.b16 %v295
      %v683 = vunpack.c.l.b16 %v296
      %v684 = vunpack.c.h.b16 %v296
      %v685 = vunpack.c.l.b16 %v297
      %v686 = vunpack.c.h.b16 %v297
      %v687 = vunpack.c.l.b16 %v298
      %v688 = vunpack.c.h.b16 %v298
      %v689 = vunpack.c.l.b16 %v299
      %v690 = vunpack.c.h.b16 %v299
      %v691 = vunpack.c.l.b16 %v300
      %v692 = vunpack.c.h.b16 %v300
      %v693 = vunpack.c.l.b16 %v301
      %v694 = vunpack.c.h.b16 %v301
      %v695 = vunpack.c.l.b16 %v302
      %v696 = vunpack.c.h.b16 %v302
      %v697 = vunpack.c.l.b16 %v303
      %v698 = vunpack.c.h.b16 %v303
      %v699 = vunpack.c.l.b16 %v304
      %v700 = vunpack.c.h.b16 %v304
      %v701 = vunpack.c.l.b16 %v305
      %v702 = vunpack.c.h.b16 %v305
      %v703 = vunpack.c.l.b16 %v306
      %v704 = vunpack.c.h.b16 %v306
      %v705 = vunpack.c.l.b16 %v307
      %v706 = vunpack.c.h.b16 %v307
      %v707 = vunpack.c.l.b16 %v308
      %v708 = vunpack.c.h.b16 %v308
      %v709 = vunpack.c.l.b16 %v309
      %v710 = vunpack.c.h.b16 %v309
      %v711 = vunpack.c.l.b16 %v310
      %v712 = vunpack.c.h.b16 %v310
      %v713 = vunpack.c.l.b16 %v311
      %v714 = vunpack.c.h.b16 %v311
      %v715 = vunpack.c.l.b16 %v312
      %v716 = vunpack.c.h.b16 %v312
      %v717 = vunpack.c.l.b16 %v313
      %v718 = vunpack.c.h.b16 %v313
      %v719 = vunpack.c.l.b16 %v314
      %v720 = vunpack.c.h.b16 %v314
      %v721 = vunpack.c.l.b16 %v315
      %v722 = vunpack.c.h.b16 %v315
      %v723 = vunpack.c.l.b16 %v316
      %v724 = vunpack.c.h.b16 %v316
      %v725 = vunpack.c.l.b16 %v317
      %v726 = vunpack.c.h.b16 %v317
      %v727 = vunpack.c.l.b16 %v318
      %v728 = vunpack.c.h.b16 %v318
      %v729 = vunpack.c.l.b16 %v319
      %v730 = vunpack.c.h.b16 %v319
      %v731 = vunpack.c.l.b16 %v320
      %v732 = vunpack.c.h.b16 %v320
      %v733 = vunpack.c.l.b16 %v321
      %v734 = vunpack.c.h.b16 %v321
      %v735 = vunpack.c.l.b16 %v322
      %v736 = vunpack.c.h.b16 %v322
      %v737 = vunpack.c.l.b16 %v323
      %v738 = vunpack.c.h.b16 %v323
      %v739 = vunpack.c.l.b16 %v324
      %v740 = vunpack.c.h.b16 %v324
      %v741 = vunpack.c.l.b16 %v325
      %v742 = vunpack.c.h.b16 %v325
      %v743 = vunpack.c.l.b16 %v326
      %v744 = vunpack.c.h.b16 %v326
      %v745 = vunpack.c.l.b16 %v327
      %v746 = vunpack.c.h.b16 %v327
      %v747 = vunpack.c.l.b16 %v328
      %v748 = vunpack.c.h.b16 %v328
      %v749 = vunpack.c.l.b16 %v329
      %v750 = vunpack.c.h.b16 %v329
      %v751 = vunpack.c.l.b16 %v330
      %v752 = vunpack.c.h.b16 %v330
      %v753 = vunpack.c.l.b16 %v331
      %v754 = vunpack.c.h.b16 %v331
      %v755 = vunpack.c.l.b16 %v332
      %v756 = vunpack.c.h.b16 %v332
      %v757 = vunpack.c.l.b16 %v333
      %v758 = vunpack.c.h.b16 %v333
      %v759 = vunpack.c.l.b16 %v334
      %v760 = vunpack.c.h.b16 %v334
      %v761 = vunpack.c.l.b16 %v335
      %v762 = vunpack.c.h.b16 %v335
      %v763 = vunpack.c.l.b16 %v336
      %v764 = vunpack.c.h.b16 %v336
      %v765 = vunpack.c.l.b16 %v337
      %v766 = vunpack.c.h.b16 %v337
      %v767 = vunpack.c.l.b16 %v338
      %v768 = vunpack.c.h.b16 %v338
      %v769 = vunpack.c.l.b16 %v339
      %v770 = vunpack.c.h.b16 %v339
      %v771 = vunpack.c.l.b16 %v340
      %v772 = vunpack.c.h.b16 %v340
      %v773 = vunpack.c.l.b16 %v341
      %v774 = vunpack.c.h.b16 %v341
      %v775 = vunpack.c.l.b16 %v342
      %v776 = vunpack.c.h.b16 %v342
      %v777 = vunpack.c.l.b16 %v343
      %v778 = vunpack.c.h.b16 %v343
      %v779 = vunpack.c.l.b16 %v344
      %v780 = vunpack.c.h.b16 %v344
      %v781 = vunpack.c.l.b16 %v345
      %v782 = vunpack.c.h.b16 %v345
      %v783 = vunpack.c.l.b16 %v346
      %v784 = vunpack.c.h.b16 %v346
      %v785 = vunpack.c.l.b16 %v347
      %v786 = vunpack.c.h.b16 %v347
      %v787 = vunpack.c.l.b16 %v348
      %v788 = vunpack.c.h.b16 %v348
      %v789 = vunpack.c.l.b16 %v349
      %v790 = vunpack.c.h.b16 %v349
      %v791 = vunpack.c.l.b16 %v350
      %v792 = vunpack.c.h.b16 %v350
      %v793 = vunpack.c.l.b16 %v351
      %v794 = vunpack.c.h.b16 %v351
      %v795 = vunpack.c.l.b16 %v352
      %v796 = vunpack.c.h.b16 %v352
      %v797 = vunpack.c.l.b16 %v353
      %v798 = vunpack.c.h.b16 %v353
      %v799 = vunpack.c.l.b16 %v354
      %v800 = vunpack.c.h.b16 %v354
      %v801 = vunpack.c.l.b16 %v355
      %v802 = vunpack.c.h.b16 %v355
      %v803 = vunpack.c.l.b16 %v356
      %v804 = vunpack.c.h.b16 %v356
      %v805 = vpack.c.b16 %v525, %v517
      %v806 = vpack.c.b16 %v526, %v518
      %v807 = vpack.c.b16 %v527, %v519
      %v808 = vpack.c.b16 %v528, %v520
      %v809 = vpack.c.b16 %v529, %v521
      %v810 = vpack.c.b16 %v530, %v522
      %v811 = vpack.c.b16 %v531, %v523
      %v812 = vpack.c.b16 %v532, %v524
      %v813 = vpack.c.b16 %v541, %v533
      %v814 = vpack.c.b16 %v542, %v534
      %v815 = vpack.c.b16 %v543, %v535
      %v816 = vpack.c.b16 %v544, %v536
      %v817 = vpack.c.b16 %v545, %v537
      %v818 = vpack.c.b16 %v546, %v538
      %v819 = vpack.c.b16 %v547, %v539
      %v820 = vpack.c.b16 %v548, %v540
      %v821 = vpack.c.b16 %v557, %v549
      %v822 = vpack.c.b16 %v558, %v550
      %v823 = vpack.c.b16 %v559, %v551
      %v824 = vpack.c.b16 %v560, %v552
      %v825 = vpack.c.b16 %v561, %v553
      %v826 = vpack.c.b16 %v562, %v554
      %v827 = vpack.c.b16 %v563, %v555
      %v828 = vpack.c.b16 %v564, %v556
      %v829 = vpack.c.b16 %v573, %v565
      %v830 = vpack.c.b16 %v574, %v566
      %v831 = vpack.c.b16 %v575, %v567
      %v832 = vpack.c.b16 %v576, %v568
      %v833 = vpack.c.b16 %v577, %v569
      %v834 = vpack.c.b16 %v578, %v570
      %v835 = vpack.c.b16 %v579, %v571
      %v836 = vpack.c.b16 %v580, %v572
      %v837 = vpack.c.b16 %v589, %v581
      %v838 = vpack.c.b16 %v590, %v582
      %v839 = vpack.c.b16 %v591, %v583
      %v840 = vpack.c.b16 %v592, %v584
      %v841 = vpack.c.b16 %v593, %v585
      %v842 = vpack.c.b16 %v594, %v586
      %v843 = vpack.c.b16 %v595, %v587
      %v844 = vpack.c.b16 %v596, %v588
      %v845 = vpack.c.b16 %v605, %v597
      %v846 = vpack.c.b16 %v606, %v598
      %v847 = vpack.c.b16 %v607, %v599
      %v848 = vpack.c.b16 %v608, %v600
      %v849 = vpack.c.b16 %v609, %v601
      %v850 = vpack.c.b16 %v610, %v602
      %v851 = vpack.c.b16 %v611, %v603
      %v852 = vpack.c.b16 %v612, %v604
      %v853 = vpack.c.b16 %v621, %v613
      %v854 = vpack.c.b16 %v622, %v614
      %v855 = vpack.c.b16 %v623, %v615
      %v856 = vpack.c.b16 %v624, %v616
      %v857 = vpack.c.b16 %v625, %v617
      %v858 = vpack.c.b16 %v626, %v618
      %v859 = vpack.c.b16 %v627, %v619
      %v860 = vpack.c.b16 %v628, %v620
      %v861 = vpack.c.b16 %v637, %v629
      %v862 = vpack.c.b16 %v638, %v630
      %v863 = vpack.c.b16 %v639, %v631
      %v864 = vpack.c.b16 %v640, %v632
      %v865 = vpack.c.b16 %v641, %v633
      %v866 = vpack.c.b16 %v642, %v634
      %v867 = vpack.c.b16 %v643, %v635
      %v868 = vpack.c.b16 %v644, %v636
      %v869 = vpack.c.b16 %v653, %v645
      %v870 = vpack.c.b16 %v654, %v646
      %v871 = vpack.c.b16 %v655, %v647
      %v872 = vpack.c.b16 %v656, %v648
      %v873 = vpack.c.b16 %v657, %v649
      %v874 = vpack.c.b16 %v658, %v650
      %v875 = vpack.c.b16 %v659, %v651
      %v876 = vpack.c.b16 %v660, %v652
      %v877 = vpack.c.b16 %v669, %v661
      %v878 = vpack.c.b16 %v670, %v662
      %v879 = vpack.c.b16 %v671, %v663
      %v880 = vpack.c.b16 %v672, %v664
      %v881 = vpack.c.b16 %v673, %v665
      %v882 = vpack.c.b16 %v674, %v666
      %v883 = vpack.c.b16 %v675, %v667
      %v884 = vpack.c.b16 %v676, %v668
      %v885 = vpack.c.b16 %v685, %v677
      %v886 = vpack.c.b16 %v686, %v678
      %v887 = vpack.c.b16 %v687, %v679
      %v888 = vpack.c.b16 %v688, %v680
      %v889 = vpack.c.b16 %v689, %v681
      %v890 = vpack.c.b16 %v690, %v682
      %v891 = vpack.c.b16 %v691, %v683
      %v892 = vpack.c.b16 %v692, %v684
      %v893 = vpack.c.b16 %v701, %v693
      %v894 = vpack.c.b16 %v702, %v694
      %v895 = vpack.c.b16 %v703, %v695
      %v896 = vpack.c.b16 %v704, %v696
      %v897 = vpack.c.b16 %v705, %v697
      %v898 = vpack.c.b16 %v706, %v698
      %v899 = vpack.c.b16 %v707, %v699
      %v900 = vpack.c.b16 %v708, %v700
      %v901 = vpack.c.b16 %v717, %v709
      %v902 = vpack.c.b16 %v718, %v710
      %v903 = vpack.c.b16 %v719, %v711
      %v904 = vpack.c.b16 %v720, %v712
      %v905 = vpack.c.b16 %v721, %v713
      %v906 = vpack.c.b16 %v722, %v714
      %v907 = vpack.c.b16 %v723, %v715
      %v908 = vpack.c.b16 %v724, %v716
      %v909 = vpack.c.b16 %v733, %v725
      %v910 = vpack.c.b16 %v734, %v726
      %v911 = vpack.c.b16 %v735, %v727
      %v912 = vpack.c.b16 %v736, %v728
      %v913 = vpack.c.b16 %v737, %v729
      %v914 = vpack.c.b16 %v738, %v730
      %v915 = vpack.c.b16 %v739, %v731
      %v916 = vpack.c.b16 %v740, %v732
      %v917 = vpack.c.b16 %v749, %v741
      %v918 = vpack.c.b16 %v750, %v742
      %v919 = vpack.c.b16 %v751, %v743
      %v920 = vpack.c.b16 %v752, %v744
      %v921 = vpack.c.b16 %v753, %v745
      %v922 = vpack.c.b16 %v754, %v746
      %v923 = vpack.c.b16 %v755, %v747
      %v924 = vpack.c.b16 %v756, %v748
      %v925 = vpack.c.b16 %v765, %v757
      %v926 = vpack.c.b16 %v766, %v758
      %v927 = vpack.c.b16 %v767, %v759
      %v928 = vpack.c.b16 %v768, %v760
      %v929 = vpack.c.b16 %v769, %v761
      %v930 = vpack.c.b16 %v770, %v762
      %v931 = vpack.c.b16 %v771, %v763
      %v932 = vpack.c.b16 %v772, %v764
      %v933 = vpack.c.b16 %v781, %v773
      %v934 = vpack.c.b16 %v782, %v774
      %v935 = vpack.c.b16 %v783, %v775
      %v936 = vpack.c.b16 %v784, %v776
      %v937 = vpack.c.b16 %v785, %v777
      %v938 = vpack.c.b16 %v786, %v778
      %v939 = vpack.c.b16 %v787, %v779
      %v940 = vpack.c.b16 %v788, %v780
      %v941 = vpack.c.b16 %v797, %v789
      %v942 = vpack.c.b16 %v798, %v790
      %v943 = vpack.c.b16 %v799, %v791
      %v944 = vpack.c.b16 %v800, %v792
      %v945 = vpack.c.b16 %v801, %v793
      %v946 = vpack.c.b16 %v802, %v794
      %v947 = vpack.c.b16 %v803, %v795
      %v948 = vpack.c.b16 %v804, %v796
      %vm1093 = vcmask 261120
      %v1095 = vsel %vm1093, %v370, 0
      %1097 = vmatprep.subr.bf16.mxu0 %v806
      %1098 = vmatpush1.bf16.msra.mxu0 %v805
      %1099 = vmatprep.subr.bf16.mxu0 %v814
      %1100 = vmatpush1.bf16.msra.mxu0 %v813
      %1101 = vmatprep.subr.bf16.mxu0 %v822
      %1102 = vmatpush1.bf16.msra.mxu0 %v821
      %1103 = vmatprep.subr.bf16.mxu0 %v830
      %1104 = vmatpush1.bf16.msra.mxu0 %v829
      %1105 = vmatprep.subr.bf16.mxu0 %v838
      %1106 = vmatpush1.bf16.msra.mxu0 %v837
      %1107 = vmatprep.subr.bf16.mxu0 %v846
      %1108 = vmatpush1.bf16.msra.mxu0 %v845
      %1109 = vmatprep.subr.bf16.mxu0 %v854
      %1110 = vmatpush1.bf16.msra.mxu0 %v853
      %1111 = vmatprep.subr.bf16.mxu0 %v862
      %1112 = vmatpush1.bf16.msra.mxu0 %v861
      %1113 = vmatprep.subr.bf16.mxu0 %v870
      %1114 = vmatpush1.bf16.msra.mxu0 %v869
      %1115 = vmatprep.subr.bf16.mxu0 %v878
      %1116 = vmatpush1.bf16.msra.mxu0 %v877
      %1117 = vmatprep.subr.bf16.mxu0 %v886
      %1118 = vmatpush1.bf16.msra.mxu0 %v885
      %1119 = vmatprep.subr.bf16.mxu0 %v894
      %1120 = vmatpush1.bf16.msra.mxu0 %v893
      %1121 = vmatprep.subr.bf16.mxu0 %v902
      %1122 = vmatpush1.bf16.msra.mxu0 %v901
      %1123 = vmatprep.subr.bf16.mxu0 %v910
      %1124 = vmatpush1.bf16.msra.mxu0 %v909
      %1125 = vmatprep.subr.bf16.mxu0 %v918
      %1126 = vmatpush1.bf16.msra.mxu0 %v917
      %1127 = vmatprep.subr.bf16.mxu0 %v926
      %1128 = vmatpush1.bf16.msra.mxu0 %v925
      %1129 = vmatprep.mubr.bf16.mxu0 %v369
      %1130 = vmatmul.mubr.bf16.gmra.mrb[0].mxu0 %v368
      %v1131 = vpop.f32.mrb[0].mxu0
      %v1132 = vadd.f32 %v361, %v1131
      %v1133 = vpop.f32.mrb[0].mxu0
      %v1134 = vadd.f32 %v361, %v1133
      %v1135 = vpop.f32.mrb[0].mxu0
      %v1136 = vpop.f32.mrb[0].mxu0
      %1137 = vdwg.mxu0
      %1138 = vmatprep.subr.bf16.mxu0 %v934
      %1139 = vmatpush1.bf16.msra.mxu0 %v933
      %1140 = vmatprep.subr.bf16.mxu0 %v942
      %1141 = vmatpush1.bf16.msra.mxu0 %v941
      %1142 = vmatprep.subr.bf16.mxu0 0
      %1143 = vmatpush1.bf16.msra.mxu0 0
      %1144 = vmatprep.subr.bf16.mxu0 0
      %1145 = vmatpush1.bf16.msra.mxu0 0
      %1146 = vmatprep.subr.bf16.mxu0 0
      %1147 = vmatpush1.bf16.msra.mxu0 0
      %1148 = vmatprep.subr.bf16.mxu0 0
      %1149 = vmatpush1.bf16.msra.mxu0 0
      %1150 = vmatprep.subr.bf16.mxu0 0
      %1151 = vmatpush1.bf16.msra.mxu0 0
      %1152 = vmatprep.subr.bf16.mxu0 0
      %1153 = vmatpush1.bf16.msra.mxu0 0
      %1154 = vmatprep.subr.bf16.mxu0 0
      %1155 = vmatpush1.bf16.msra.mxu0 0
      %1156 = vmatprep.subr.bf16.mxu0 0
      %1157 = vmatpush1.bf16.msra.mxu0 0
      %1158 = vmatprep.subr.bf16.mxu0 0
      %1159 = vmatpush1.bf16.msra.mxu0 0
      %1160 = vmatprep.subr.bf16.mxu0 0
      %1161 = vmatpush1.bf16.msra.mxu0 0
      %1162 = vmatprep.subr.bf16.mxu0 0
      %1163 = vmatpush1.bf16.msra.mxu0 0
      %1164 = vmatprep.subr.bf16.mxu0 0
      %1165 = vmatpush1.bf16.msra.mxu0 0
      %1166 = vmatprep.subr.bf16.mxu0 0
      %1167 = vmatpush1.bf16.msra.mxu0 0
      %1168 = vmatprep.subr.bf16.mxu0 0
      %1169 = vmatpush1.bf16.msra.mxu0 0
      %1170 = vmatprep.mubr.bf16.mxu0 0
      %1171 = vmatmul.mubr.bf16.gmra.mrb[0].mxu0 %v1095
      %v1172 = vpop.f32.mrb[0].mxu0
      %v1173 = vadd.f32 %v1132, %v1172
      %v1174 = vpop.f32.mrb[0].mxu0
      %v1175 = vadd.f32 %v1134, %v1174
      %v1176 = vpop.f32.mrb[0].mxu0
      %v1177 = vpop.f32.mrb[0].mxu0
      %1178 = vdwg.mxu0
      %1179 = vmatprep.subr.bf16.mxu0 %v808
      %1180 = vmatpush1.bf16.msra.mxu0 %v807
      %1181 = vmatprep.subr.bf16.mxu0 %v816
      %1182 = vmatpush1.bf16.msra.mxu0 %v815
      %1183 = vmatprep.subr.bf16.mxu0 %v824
      %1184 = vmatpush1.bf16.msra.mxu0 %v823
      %1185 = vmatprep.subr.bf16.mxu0 %v832
      %1186 = vmatpush1.bf16.msra.mxu0 %v831
      %1187 = vmatprep.subr.bf16.mxu0 %v840
      %1188 = vmatpush1.bf16.msra.mxu0 %v839
      %1189 = vmatprep.subr.bf16.mxu0 %v848
      %1190 = vmatpush1.bf16.msra.mxu0 %v847
      %1191 = vmatprep.subr.bf16.mxu0 %v856
      %1192 = vmatpush1.bf16.msra.mxu0 %v855
      %1193 = vmatprep.subr.bf16.mxu0 %v864
      %1194 = vmatpush1.bf16.msra.mxu0 %v863
      %1195 = vmatprep.subr.bf16.mxu0 %v872
      %1196 = vmatpush1.bf16.msra.mxu0 %v871
      %1197 = vmatprep.subr.bf16.mxu0 %v880
      %1198 = vmatpush1.bf16.msra.mxu0 %v879
      %1199 = vmatprep.subr.bf16.mxu0 %v888
      %1200 = vmatpush1.bf16.msra.mxu0 %v887
      %1201 = vmatprep.subr.bf16.mxu0 %v896
      %1202 = vmatpush1.bf16.msra.mxu0 %v895
      %1203 = vmatprep.subr.bf16.mxu0 %v904
      %1204 = vmatpush1.bf16.msra.mxu0 %v903
      %1205 = vmatprep.subr.bf16.mxu0 %v912
      %1206 = vmatpush1.bf16.msra.mxu0 %v911
      %1207 = vmatprep.subr.bf16.mxu0 %v920
      %1208 = vmatpush1.bf16.msra.mxu0 %v919
      %1209 = vmatprep.subr.bf16.mxu0 %v928
      %1210 = vmatpush1.bf16.msra.mxu0 %v927
      %1211 = vmatprep.mubr.bf16.mxu0 %v369
      %1212 = vmatmul.mubr.bf16.gmra.mrb[0].mxu0 %v368
      %v1213 = vpop.f32.mrb[0].mxu0
      %v1214 = vadd.f32 %v361, %v1213
      %v1215 = vpop.f32.mrb[0].mxu0
      %v1216 = vadd.f32 %v361, %v1215
      %v1217 = vpop.f32.mrb[0].mxu0
      %v1218 = vpop.f32.mrb[0].mxu0
      %1219 = vdwg.mxu0
      %1220 = vmatprep.subr.bf16.mxu0 %v936
      %1221 = vmatpush1.bf16.msra.mxu0 %v935
      %1222 = vmatprep.subr.bf16.mxu0 %v944
      %1223 = vmatpush1.bf16.msra.mxu0 %v943
      %1224 = vmatprep.subr.bf16.mxu0 0
      %1225 = vmatpush1.bf16.msra.mxu0 0
      %1226 = vmatprep.subr.bf16.mxu0 0
      %1227 = vmatpush1.bf16.msra.mxu0 0
      %1228 = vmatprep.subr.bf16.mxu0 0
      %1229 = vmatpush1.bf16.msra.mxu0 0
      %1230 = vmatprep.subr.bf16.mxu0 0
      %1231 = vmatpush1.bf16.msra.mxu0 0
      %1232 = vmatprep.subr.bf16.mxu0 0
      %1233 = vmatpush1.bf16.msra.mxu0 0
      %1234 = vmatprep.subr.bf16.mxu0 0
      %1235 = vmatpush1.bf16.msra.mxu0 0
      %1236 = vmatprep.subr.bf16.mxu0 0
      %1237 = vmatpush1.bf16.msra.mxu0 0
      %1238 = vmatprep.subr.bf16.mxu0 0
      %1239 = vmatpush1.bf16.msra.mxu0 0
      %1240 = vmatprep.subr.bf16.mxu0 0
      %1241 = vmatpush1.bf16.msra.mxu0 0
      %1242 = vmatprep.subr.bf16.mxu0 0
      %1243 = vmatpush1.bf16.msra.mxu0 0
      %1244 = vmatprep.subr.bf16.mxu0 0
      %1245 = vmatpush1.bf16.msra.mxu0 0
      %1246 = vmatprep.subr.bf16.mxu0 0
      %1247 = vmatpush1.bf16.msra.mxu0 0
      %1248 = vmatprep.subr.bf16.mxu0 0
      %1249 = vmatpush1.bf16.msra.mxu0 0
      %1250 = vmatprep.subr.bf16.mxu0 0
      %1251 = vmatpush1.bf16.msra.mxu0 0
      %1252 = vmatprep.mubr.bf16.mxu0 0
      %1253 = vmatmul.mubr.bf16.gmra.mrb[0].mxu0 %v1095
      %v1254 = vpop.f32.mrb[0].mxu0
      %v1255 = vadd.f32 %v1214, %v1254
      %v1256 = vpop.f32.mrb[0].mxu0
      %v1257 = vadd.f32 %v1216, %v1256
      %v1258 = vpop.f32.mrb[0].mxu0
      %v1259 = vpop.f32.mrb[0].mxu0
      %1260 = vdwg.mxu0
      %1261 = vmatprep.subr.bf16.mxu0 %v810
      %1262 = vmatpush1.bf16.msra.mxu0 %v809
      %1263 = vmatprep.subr.bf16.mxu0 %v818
      %1264 = vmatpush1.bf16.msra.mxu0 %v817
      %1265 = vmatprep.subr.bf16.mxu0 %v826
      %1266 = vmatpush1.bf16.msra.mxu0 %v825
      %1267 = vmatprep.subr.bf16.mxu0 %v834
      %1268 = vmatpush1.bf16.msra.mxu0 %v833
      %1269 = vmatprep.subr.bf16.mxu0 %v842
      %1270 = vmatpush1.bf16.msra.mxu0 %v841
      %1271 = vmatprep.subr.bf16.mxu0 %v850
      %1272 = vmatpush1.bf16.msra.mxu0 %v849
      %1273 = vmatprep.subr.bf16.mxu0 %v858
      %1274 = vmatpush1.bf16.msra.mxu0 %v857
      %1275 = vmatprep.subr.bf16.mxu0 %v866
      %1276 = vmatpush1.bf16.msra.mxu0 %v865
      %1277 = vmatprep.subr.bf16.mxu0 %v874
      %1278 = vmatpush1.bf16.msra.mxu0 %v873
      %1279 = vmatprep.subr.bf16.mxu0 %v882
      %1280 = vmatpush1.bf16.msra.mxu0 %v881
      %1281 = vmatprep.subr.bf16.mxu0 %v890
      %1282 = vmatpush1.bf16.msra.mxu0 %v889
      %1283 = vmatprep.subr.bf16.mxu0 %v898
      %1284 = vmatpush1.bf16.msra.mxu0 %v897
      %1285 = vmatprep.subr.bf16.mxu0 %v906
      %1286 = vmatpush1.bf16.msra.mxu0 %v905
      %1287 = vmatprep.subr.bf16.mxu0 %v914
      %1288 = vmatpush1.bf16.msra.mxu0 %v913
      %1289 = vmatprep.subr.bf16.mxu0 %v922
      %1290 = vmatpush1.bf16.msra.mxu0 %v921
      %1291 = vmatprep.subr.bf16.mxu0 %v930
      %1292 = vmatpush1.bf16.msra.mxu0 %v929
      %1293 = vmatprep.mubr.bf16.mxu0 %v369
      %1294 = vmatmul.mubr.bf16.gmra.mrb[0].mxu0 %v368
      %v1295 = vpop.f32.mrb[0].mxu0
      %v1296 = vadd.f32 %v361, %v1295
      %v1297 = vpop.f32.mrb[0].mxu0
      %v1298 = vadd.f32 %v361, %v1297
      %v1299 = vpop.f32.mrb[0].mxu0
      %v1300 = vpop.f32.mrb[0].mxu0
      %1301 = vdwg.mxu0
      %1302 = vmatprep.subr.bf16.mxu0 %v938
      %1303 = vmatpush1.bf16.msra.mxu0 %v937
      %1304 = vmatprep.subr.bf16.mxu0 %v946
      %1305 = vmatpush1.bf16.msra.mxu0 %v945
      %1306 = vmatprep.subr.bf16.mxu0 0
      %1307 = vmatpush1.bf16.msra.mxu0 0
      %1308 = vmatprep.subr.bf16.mxu0 0
      %1309 = vmatpush1.bf16.msra.mxu0 0
      %1310 = vmatprep.subr.bf16.mxu0 0
      %1311 = vmatpush1.bf16.msra.mxu0 0
      %1312 = vmatprep.subr.bf16.mxu0 0
      %1313 = vmatpush1.bf16.msra.mxu0 0
      %1314 = vmatprep.subr.bf16.mxu0 0
      %1315 = vmatpush1.bf16.msra.mxu0 0
      %1316 = vmatprep.subr.bf16.mxu0 0
      %1317 = vmatpush1.bf16.msra.mxu0 0
      %1318 = vmatprep.subr.bf16.mxu0 0
      %1319 = vmatpush1.bf16.msra.mxu0 0
      %1320 = vmatprep.subr.bf16.mxu0 0
      %1321 = vmatpush1.bf16.msra.mxu0 0
      %1322 = vmatprep.subr.bf16.mxu0 0
      %1323 = vmatpush1.bf16.msra.mxu0 0
      %1324 = vmatprep.subr.bf16.mxu0 0
      %1325 = vmatpush1.bf16.msra.mxu0 0
      %1326 = vmatprep.subr.bf16.mxu0 0
      %1327 = vmatpush1.bf16.msra.mxu0 0
      %1328 = vmatprep.subr.bf16.mxu0 0
      %1329 = vmatpush1.bf16.msra.mxu0 0
      %1330 = vmatprep.subr.bf16.mxu0 0
      %1331 = vmatpush1.bf16.msra.mxu0 0
      %1332 = vmatprep.subr.bf16.mxu0 0
      %1333 = vmatpush1.bf16.msra.mxu0 0
      %1334 = vmatprep.mubr.bf16.mxu0 0
      %1335 = vmatmul.mubr.bf16.gmra.mrb[0].mxu0 %v1095
      %v1336 = vpop.f32.mrb[0].mxu0
      %v1337 = vadd.f32 %v1296, %v1336
      %v1338 = vpop.f32.mrb[0].mxu0
      %v1339 = vadd.f32 %v1298, %v1338
      %v1340 = vpop.f32.mrb[0].mxu0
      %v1341 = vpop.f32.mrb[0].mxu0
      %1342 = vdwg.mxu0
      %1343 = vmatprep.subr.bf16.mxu0 %v812
      %1344 = vmatpush1.bf16.msra.mxu0 %v811
      %1345 = vmatprep.subr.bf16.mxu0 %v820
      %1346 = vmatpush1.bf16.msra.mxu0 %v819
      %1347 = vmatprep.subr.bf16.mxu0 %v828
      %1348 = vmatpush1.bf16.msra.mxu0 %v827
      %1349 = vmatprep.subr.bf16.mxu0 %v836
      %1350 = vmatpush1.bf16.msra.mxu0 %v835
      %1351 = vmatprep.subr.bf16.mxu0 %v844
      %1352 = vmatpush1.bf16.msra.mxu0 %v843
      %1353 = vmatprep.subr.bf16.mxu0 %v852
      %1354 = vmatpush1.bf16.msra.mxu0 %v851
      %1355 = vmatprep.subr.bf16.mxu0 %v860
      %1356 = vmatpush1.bf16.msra.mxu0 %v859
      %1357 = vmatprep.subr.bf16.mxu0 %v868
      %1358 = vmatpush1.bf16.msra.mxu0 %v867
      %1359 = vmatprep.subr.bf16.mxu0 %v876
      %1360 = vmatpush1.bf16.msra.mxu0 %v875
      %1361 = vmatprep.subr.bf16.mxu0 %v884
      %1362 = vmatpush1.bf16.msra.mxu0 %v883
      %1363 = vmatprep.subr.bf16.mxu0 %v892
      %1364 = vmatpush1.bf16.msra.mxu0 %v891
      %1365 = vmatprep.subr.bf16.mxu0 %v900
      %1366 = vmatpush1.bf16.msra.mxu0 %v899
      %1367 = vmatprep.subr.bf16.mxu0 %v908
      %1368 = vmatpush1.bf16.msra.mxu0 %v907
      %1369 = vmatprep.subr.bf16.mxu0 %v916
      %1370 = vmatpush1.bf16.msra.mxu0 %v915
      %1371 = vmatprep.subr.bf16.mxu0 %v924
      %1372 = vmatpush1.bf16.msra.mxu0 %v923
      %1373 = vmatprep.subr.bf16.mxu0 %v932
      %1374 = vmatpush1.bf16.msra.mxu0 %v931
      %1375 = vmatprep.mubr.bf16.mxu0 %v369
      %1376 = vmatmul.mubr.bf16.gmra.mrb[0].mxu0 %v368
      %v1377 = vpop.f32.mrb[0].mxu0
      %v1378 = vadd.f32 %v361, %v1377
      %v1379 = vpop.f32.mrb[0].mxu0
      %v1380 = vadd.f32 %v361, %v1379
      %v1381 = vpop.f32.mrb[0].mxu0
      %v1382 = vpop.f32.mrb[0].mxu0
      %1383 = vdwg.mxu0
      %1384 = vmatprep.subr.bf16.mxu0 %v940
      %1385 = vmatpush1.bf16.msra.mxu0 %v939
      %1386 = vmatprep.subr.bf16.mxu0 %v948
      %1387 = vmatpush1.bf16.msra.mxu0 %v947
      %1388 = vmatprep.subr.bf16.mxu0 0
      %1389 = vmatpush1.bf16.msra.mxu0 0
      %1390 = vmatprep.subr.bf16.mxu0 0
      %1391 = vmatpush1.bf16.msra.mxu0 0
      %1392 = vmatprep.subr.bf16.mxu0 0
      %1393 = vmatpush1.bf16.msra.mxu0 0
      %1394 = vmatprep.subr.bf16.mxu0 0
      %1395 = vmatpush1.bf16.msra.mxu0 0
      %1396 = vmatprep.subr.bf16.mxu0 0
      %1397 = vmatpush1.bf16.msra.mxu0 0
      %1398 = vmatprep.subr.bf16.mxu0 0
      %1399 = vmatpush1.bf16.msra.mxu0 0
      %1400 = vmatprep.subr.bf16.mxu0 0
      %1401 = vmatpush1.bf16.msra.mxu0 0
      %1402 = vmatprep.subr.bf16.mxu0 0
      %1403 = vmatpush1.bf16.msra.mxu0 0
      %1404 = vmatprep.subr.bf16.mxu0 0
      %1405 = vmatpush1.bf16.msra.mxu0 0
      %1406 = vmatprep.subr.bf16.mxu0 0
      %1407 = vmatpush1.bf16.msra.mxu0 0
      %1408 = vmatprep.subr.bf16.mxu0 0
      %1409 = vmatpush1.bf16.msra.mxu0 0
      %1410 = vmatprep.subr.bf16.mxu0 0
      %1411 = vmatpush1.bf16.msra.mxu0 0
      %1412 = vmatprep.subr.bf16.mxu0 0
      %1413 = vmatpush1.bf16.msra.mxu0 0
      %1414 = vmatprep.subr.bf16.mxu0 0
      %1415 = vmatpush1.bf16.msra.mxu0 0
      %1416 = vmatprep.mubr.bf16.mxu0 0
      %1417 = vmatmul.mubr.bf16.gmra.mrb[0].mxu0 %v1095
      %v1418 = vpop.f32.mrb[0].mxu0
      %v1419 = vadd.f32 %v1378, %v1418
      %v1420 = vpop.f32.mrb[0].mxu0
      %v1421 = vadd.f32 %v1380, %v1420
      %v1422 = vpop.f32.mrb[0].mxu0
      %v1423 = vpop.f32.mrb[0].mxu0
      %1424 = vdwg.mxu0
      %1425 = vst [vmem:[%s208] sm:$0xff] %v1173
      %1426 = vst [vmem:[%s208 + $0x8] sm:$0xff] %v1175
      %1427 = vst [vmem:[%s208 + $0x10] sm:$0xff] %v1255
      %1428 = vst [vmem:[%s208 + $0x18] sm:$0xff] %v1257
      %1429 = vst [vmem:[%s208 + $0x20] sm:$0xff] %v1337
      %1430 = vst [vmem:[%s208 + $0x28] sm:$0xff] %v1339
      %1431 = vst [vmem:[%s208 + $0x30] sm:$0xff] %v1419
      %1432 = vst [vmem:[%s208 + $0x38] sm:$0xff] %v1421
      %s1433 = smul.u32 8, %s19
      %p1434 = scmp.lt.s32.totalorder %s18, 1
      %s1435 = scalar_select %p1434, %s18, 1
      %p1436 = scmp.lt.s32.totalorder %s1433, 7
      %s1437 = scalar_select %p1436, %s1433, 7
      %s1438 = smul.addr %s1435, 8
      %s1439 = sadd.s32 %s1437, %s1438
      %s1440 = smul.addr %s1439, 8
      %s1441 = scalar_lea.vmem %s3, %s1440
      // Predicated region
      $region33: #{_lambda_.49} parent=31 // pred_check
        %p1442 = pneg %p116
      $region34: #{_lambda_.49} parent=31 // pred_check_branch
        %1444 = sbr.rel (%p1442) target = $region36
      $region35: #{_lambda_.49} parent=31 // pred_region
        %s1445 = smul.u32 8, %s19
      $region36: #{_lambda_.49} parent=31 // pred_fallthru
        _
    $region32: #{_lambda_.49} parent=5 // pred_fallthru
      _
    %p1446 = scmp.le.s32.totalorder 2, %s9
    // Predicated region
    $region37: #{_lambda_.49} parent=5 // pred_check
      %p1447 = pneg %p1446
    $region38: #{_lambda_.49} parent=5 // pred_check_branch
      %1449 = sbr.rel (%p1447) target = $region40
    $region39: #{_lambda_.49} parent=5 // pred_region
      %s1450 = ssub.s32 %s9, 2
      // Predicated region
      $region41: #{_lambda_.49} parent=39 // pred_check
        %p1451 = pneg %p122
      $region42: #{_lambda_.49} parent=39 // pred_check_branch
        %1453 = sbr.rel (%p1451) target = $region44
      $region43: #{_lambda_.49} parent=39 // pred_region
        %s1454 = smul.u32 8, %s21
        %p1455 = scmp.lt.s32.totalorder %s20, 1
        %s1456 = scalar_select %p1455, %s20, 1
        %p1457 = scmp.lt.s32.totalorder %s1454, 7
        %s1458 = scalar_select %p1457, %s1454, 7
        %s1459 = smul.addr %s1456, 8
        %s1460 = sadd.s32 %s1458, %s1459
        %s1461 = smul.addr %s1460, 8
        %s1462 = scalar_lea.vmem %s3, %s1461
      $region44: #{_lambda_.49} parent=39 // pred_fallthru
        _
    $region40: #{_lambda_.49} parent=5 // pred_fallthru
      _
  $region6: #{_lambda_.49} parent=0 // loop_footer
    %s13 = sadd.s32 1, %s9
  $region7: #{_lambda_.49} parent=0 // loop_footer_branch
    %8 = sbr.rel target = $region3
  $region8: #{_lambda_.49} parent=0 // loop_exit
    _

// kernel: _lambda_.47
$region0: #{_lambda_.47}
  #allocation0 [shape = 'u32[]', space=smem, size = 0x4, offset = 0x4, fixed_abs, tag = 'smem constant byte address 0x4 - core index']
  #allocation1 [shape = 'u32[144,128]{1,0:T(1,128)}', space=vmem, size = 0x12000, scoped, tag = 'internal scratch']
  %s0 = inlined_call_operand.vmem [shape: bf16[2,288,256], index: 0, kind: input, shape index: {}]
  %s1 = inlined_call_operand.vmem [shape: bf16[16,288], index: 1, kind: input, shape index: {}]
  %s2 = inlined_call_operand.vmem [shape: f32[16,1], index: 2, kind: input, shape index: {}]
  %s3 = inlined_call_operand.vmem [shape: f32[2,16,256], index: 3, kind: output, shape index: {}]
  %s4 = sld [smem:[#allocation0]]
  $region45: #{_lambda_.47} parent=0
    _
  %s6 = ssub.s32 1, %s4
  %s7 = scalar_select 0, %s6, %s4
  loop: start=0, step=1, limit=4
  $region2: #{_lambda_.47} parent=0 // loop_pre_header
    _
  $region3: #{_lambda_.47} parent=0 // loop_header
    %s9 = sphi 0, %s13
    %p10 = scmp.ge.s32.totalorder %s9, 4
    %s16 = sphi 0, %s28
    %s17 = sphi 0, %s24
    %s18 = sphi 0, %s16
    %s19 = sphi 0, %s17
    %s20 = sphi 0, %s18
    %s21 = sphi 0, %s19
    %s33 = sphi 0, %s35
    %s36 = sphi 0, %s33
    %s37 = sphi 0, %s36
    %s53 = sphi 0, %s37
    %s57 = sphi 0, %s57
    %s59 = sphi 0, %s57
    %s60 = sphi 0, %s59
    %s74 = sphi 0, %s60
    %s78 = sphi 0, %s78
    %s80 = sphi 0, %s78
    %s81 = sphi 0, %s80
    %s95 = sphi 0, %s81
    %s103 = sphi 0, %s105
    %s106 = sphi 0, %s103
    %s107 = sphi 0, %s106
    %s123 = sphi 0, %s107
  $region4: #{_lambda_.47} parent=0 // loop_header_branch
    %12 = sbr.rel (%p10) target = $region8
  $region5: #{_lambda_.47} parent=0 // loop_body
    %s14 = ssub.s32 %s9, 1
    %s15 = ssub.s32 %s9, 2
    %s22 = sadd.s32 1, %s17
    %p23 = scmp.ge.s32.totalorder %s22, 1
    %s24 = scalar_select %p23, 0, %s22
    %s25 = sadd.s32 1, %s16
    %s26 = scalar_select %p23, %s25, %s16
    %p27 = scmp.ge.s32.totalorder %s26, 2
    %s28 = scalar_select %p27, 0, %s26
    %s29 = ssub.s32 %s16, %s28
    %s30 = ssub.s32 %s17, %s24
    %s31 = sor.u32 %s29, %s30
    %p32 = scmp.eq.s32.totalorder %s31, 0
    %s34 = sadd.s32 %s33, 1
    %s35 = scalar_select %p32, %s33, %s34
    %p38 = pneg %p32
    %p39 = scmp.eq.s32.totalorder %s9, 1
    %p40 = por %p38, %p39
    %p41 = scmp.ne.s32.totalorder %s33, %s36
    %p42 = scmp.eq.s32.totalorder %s9, 0
    %p43 = por %p41, %p42
    %p44 = scmp.ne.s32.totalorder %s33, %s36
    %p45 = scmp.eq.s32.totalorder %s14, 1
    %p46 = por %p44, %p45
    %p47 = scmp.ne.s32.totalorder %s36, %s37
    %p48 = scmp.eq.s32.totalorder %s14, 0
    %p49 = por %p47, %p48
    %p50 = scmp.ne.s32.totalorder %s36, %s37
    %p51 = scmp.eq.s32.totalorder %s15, 1
    %p52 = por %p50, %p51
    %p54 = scmp.ne.s32.totalorder %s37, %s53
    %p55 = scmp.eq.s32.totalorder %s15, 0
    %p56 = por %p54, %p55
    %s58 = sadd.s32 %s57, 1
    %p61 = scmp.eq.s32.totalorder %s9, 1
    %p62 = scmp.ne.s32.totalorder %s57, %s59
    %p63 = scmp.eq.s32.totalorder %s9, 0
    %p64 = por %p62, %p63
    %p65 = scmp.ne.s32.totalorder %s57, %s59
    %p66 = scmp.eq.s32.totalorder %s14, 1
    %p67 = por %p65, %p66
    %p68 = scmp.ne.s32.totalorder %s59, %s60
    %p69 = scmp.eq.s32.totalorder %s14, 0
    %p70 = por %p68, %p69
    %p71 = scmp.ne.s32.totalorder %s59, %s60
    %p72 = scmp.eq.s32.totalorder %s15, 1
    %p73 = por %p71, %p72
    %p75 = scmp.ne.s32.totalorder %s60, %s74
    %p76 = scmp.eq.s32.totalorder %s15, 0
    %p77 = por %p75, %p76
    %s79 = sadd.s32 %s78, 1
    %p82 = scmp.eq.s32.totalorder %s9, 1
    %p83 = scmp.ne.s32.totalorder %s78, %s80
    %p84 = scmp.eq.s32.totalorder %s9, 0
    %p85 = por %p83, %p84
    %p86 = scmp.ne.s32.totalorder %s78, %s80
    %p87 = scmp.eq.s32.totalorder %s14, 1
    %p88 = por %p86, %p87
    %p89 = scmp.ne.s32.totalorder %s80, %s81
    %p90 = scmp.eq.s32.totalorder %s14, 0
    %p91 = por %p89, %p90
    %p92 = scmp.ne.s32.totalorder %s80, %s81
    %p93 = scmp.eq.s32.totalorder %s15, 1
    %p94 = por %p92, %p93
    %p96 = scmp.ne.s32.totalorder %s81, %s95
    %p97 = scmp.eq.s32.totalorder %s15, 0
    %p98 = por %p96, %p97
    %s99 = ssub.s32 %s16, %s28
    %s100 = ssub.s32 %s17, %s24
    %s101 = sor.u32 %s99, %s100
    %p102 = scmp.eq.s32.totalorder %s101, 0
    %s104 = sadd.s32 %s103, 1
    %s105 = scalar_select %p102, %s103, %s104
    %p108 = pneg %p102
    %p109 = scmp.eq.s32.totalorder %s9, 1
    %p110 = por %p108, %p109
    %p111 = scmp.ne.s32.totalorder %s103, %s106
    %p112 = scmp.eq.s32.totalorder %s9, 0
    %p113 = por %p111, %p112
    %p114 = scmp.ne.s32.totalorder %s103, %s106
    %p115 = scmp.eq.s32.totalorder %s14, 1
    %p116 = por %p114, %p115
    %p117 = scmp.ne.s32.totalorder %s106, %s107
    %p118 = scmp.eq.s32.totalorder %s14, 0
    %p119 = por %p117, %p118
    %p120 = scmp.ne.s32.totalorder %s106, %s107
    %p121 = scmp.eq.s32.totalorder %s15, 1
    %p122 = por %p120, %p121
    %p124 = scmp.ne.s32.totalorder %s107, %s123
    %p125 = scmp.eq.s32.totalorder %s15, 0
    %p126 = por %p124, %p125
    %p127 = scmp.le.s32.totalorder 1, %s9
    %p128 = scmp.lt.s32.totalorder %s9, 3
    %p129 = pnand %p127, %p128
    %p130 = pneg %p129
    // Predicated region
    $region9: #{_lambda_.47} parent=5 // pred_check
      _
    $region10: #{_lambda_.47} parent=5 // pred_check_branch
      %132 = sbr.rel (%p129) target = $region12
    $region11: #{_lambda_.47} parent=5 // pred_region
      %s133 = ssub.s32 %s9, 1
      // Predicated region
      $region13: #{_lambda_.47} parent=11 // pred_check
        %p134 = pneg %p70
      $region14: #{_lambda_.47} parent=11 // pred_check_branch
        %136 = sbr.rel (%p134) target = $region16
      $region15: #{_lambda_.47} parent=11 // pred_region
        _
      $region16: #{_lambda_.47} parent=11 // pred_fallthru
        _
      // Predicated region
      $region17: #{_lambda_.47} parent=11 // pred_check
        %p137 = pneg %p91
      $region18: #{_lambda_.47} parent=11 // pred_check_branch
        %139 = sbr.rel (%p137) target = $region20
      $region19: #{_lambda_.47} parent=11 // pred_region
        _
      $region20: #{_lambda_.47} parent=11 // pred_fallthru
        _
    $region12: #{_lambda_.47} parent=5 // pred_fallthru
      _
    %p140 = scmp.lt.s32.totalorder %s9, 2
    // Predicated region
    $region21: #{_lambda_.47} parent=5 // pred_check
      %p141 = pneg %p140
    $region22: #{_lambda_.47} parent=5 // pred_check_branch
      %143 = sbr.rel (%p141) target = $region24
    $region23: #{_lambda_.47} parent=5 // pred_region
      // Predicated region
      $region25: #{_lambda_.47} parent=23 // pred_check
        %p144 = pneg %p43
      $region26: #{_lambda_.47} parent=23 // pred_check_branch
        %146 = sbr.rel (%p144) target = $region28
      $region27: #{_lambda_.47} parent=23 // pred_region
        %s147 = smul.u32 2, %s17
        %p148 = scmp.lt.s32.totalorder %s16, 1
        %s149 = scalar_select %p148, %s16, 1
        %p150 = scmp.lt.s32.totalorder %s147, 1
        %s151 = scalar_select %p150, %s147, 1
        %s152 = smul.addr %s149, 72
        %s153 = sadd.s32 %s151, %s152
        %s154 = smul.addr %s153, 4
        %s155 = scalar_lea.vmem %s0, %s154
        %s156 = smul.u32 2, %s17
      $region28: #{_lambda_.47} parent=23 // pred_fallthru
        _
    $region24: #{_lambda_.47} parent=5 // pred_fallthru
      _
    %p157 = scmp.le.s32.totalorder 1, %s9
    %p158 = scmp.lt.s32.totalorder %s9, 3
    %p159 = pnand %p157, %p158
    %p160 = pneg %p159
    // Predicated region
    $region29: #{_lambda_.47} parent=5 // pred_check
      _
    $region30: #{_lambda_.47} parent=5 // pred_check_branch
      %162 = sbr.rel (%p159) target = $region32
    $region31: #{_lambda_.47} parent=5 // pred_region
      %s163 = ssub.s32 %s9, 1
      %s164 = smul.u32 2, %s19
      %p165 = scmp.lt.s32.totalorder %s18, 1
      %s166 = scalar_select %p165, %s18, 1
      %p167 = scmp.lt.s32.totalorder %s164, 1
      %s168 = scalar_select %p167, %s164, 1
      %s169 = smul.addr %s166, 72
      %s170 = sadd.s32 %s168, %s169
      %s171 = smul.addr %s170, 4
      %s172 = scalar_lea.vmem %s0, %s171
      %p173 = pneg %p49
      %p174 = pneg %p46
      %p175 = pneg %p70
      %p176 = pneg %p67
      %p177 = pneg %p91
      %p178 = pneg %p88
      %p179 = pneg %p119
      %p180 = pneg %p116
      %s181 = smul.u32 2, %s19
      %p182 = scmp.lt.s32.totalorder %s18, 1
      %s183 = scalar_select %p182, %s18, 1
      %p184 = scmp.lt.s32.totalorder %s181, 1
      %s185 = scalar_select %p184, %s181, 1
      %s186 = smul.addr %s183, 4
      %s187 = sadd.s32 %s185, %s186
      %s188 = smul.addr %s187, 8
      %s189 = scalar_lea.vmem %s3, %s188
      %s190 = smul.u32 2, %s19
      %p191 = scmp.lt.s32.totalorder %s18, 1
      %s192 = scalar_select %p191, %s18, 1
      %p193 = scmp.lt.s32.totalorder %s190, 1
      %s194 = scalar_select %p193, %s190, 1
      %s195 = smul.addr %s192, 72
      %s196 = sadd.s32 %s194, %s195
      %s197 = smul.addr %s196, 4
      %s198 = scalar_lea.vmem %s0, %s197
      %s199 = smul.u32 2, %s19
      %s200 = smul.u32 2, %s19
      %p201 = scmp.lt.s32.totalorder %s18, 1
      %s202 = scalar_select %p201, %s18, 1
      %p203 = scmp.lt.s32.totalorder %s200, 1
      %s204 = scalar_select %p203, %s200, 1
      %s205 = smul.addr %s202, 4
      %s206 = sadd.s32 %s204, %s205
      %s207 = smul.addr %s206, 8
      %s208 = scalar_lea.vmem %s3, %s207
      %s209 = smul.u32 2, %s19
      %v211 = vld [vmem:[%s1] sm:$0xff]
      %v212 = vld [vmem:[%s1 + $0x8] sm:$0xf]
      %v213 = vld [vmem:[%s1 + $0xc] sm:$0xff]
      %v214 = vld [vmem:[%s1 + $0x14] sm:$0xf]
      %v215 = vld [vmem:[%s198] sm:$0xff]
      %v216 = vld [vmem:[%s198 + $0x8] sm:$0xff]
      %v217 = vld [vmem:[%s198 + $0x10] sm:$0xff]
      %v218 = vld [vmem:[%s198 + $0x18] sm:$0xff]
      %v219 = vld [vmem:[%s198 + $0x20] sm:$0xff]
      %v220 = vld [vmem:[%s198 + $0x28] sm:$0xff]
      %v221 = vld [vmem:[%s198 + $0x30] sm:$0xff]
      %v222 = vld [vmem:[%s198 + $0x38] sm:$0xff]
      %v223 = vld [vmem:[%s198 + $0x40] sm:$0xff]
      %v224 = vld [vmem:[%s198 + $0x48] sm:$0xff]
      %v225 = vld [vmem:[%s198 + $0x50] sm:$0xff]
      %v226 = vld [vmem:[%s198 + $0x58] sm:$0xff]
      %v227 = vld [vmem:[%s198 + $0x60] sm:$0xff]
      %v228 = vld [vmem:[%s198 + $0x68] sm:$0xff]
      %v229 = vld [vmem:[%s198 + $0x70] sm:$0xff]
      %v230 = vld [vmem:[%s198 + $0x78] sm:$0xff]
      %v231 = vld [vmem:[%s198 + $0x80] sm:$0xff]
      %v232 = vld [vmem:[%s198 + $0x88] sm:$0xff]
      %v233 = vld [vmem:[%s198 + $0x90] sm:$0xff]
      %v234 = vld [vmem:[%s198 + $0x98] sm:$0xff]
      %v235 = vld [vmem:[%s198 + $0xa0] sm:$0xff]
      %v236 = vld [vmem:[%s198 + $0xa8] sm:$0xff]
      %v237 = vld [vmem:[%s198 + $0xb0] sm:$0xff]
      %v238 = vld [vmem:[%s198 + $0xb8] sm:$0xff]
      %v239 = vld [vmem:[%s198 + $0xc0] sm:$0xff]
      %v240 = vld [vmem:[%s198 + $0xc8] sm:$0xff]
      %v241 = vld [vmem:[%s198 + $0xd0] sm:$0xff]
      %v242 = vld [vmem:[%s198 + $0xd8] sm:$0xff]
      %v243 = vld [vmem:[%s198 + $0xe0] sm:$0xff]
      %v244 = vld [vmem:[%s198 + $0xe8] sm:$0xff]
      %v245 = vld [vmem:[%s198 + $0xf0] sm:$0xff]
      %v246 = vld [vmem:[%s198 + $0xf8] sm:$0xff]
      %v247 = vld [vmem:[%s198 + $0x100] sm:$0xff]
      %v248 = vld [vmem:[%s198 + $0x108] sm:$0xff]
      %v249 = vld [vmem:[%s198 + $0x110] sm:$0xff]
      %v250 = vld [vmem:[%s198 + $0x118] sm:$0xff]
      %v251 = vld [vmem:[%s2] sm:$0xff]
      %v252 = vld [vmem:[%s2 + $0x8] sm:$0xff]
      %254 = vset.pattern.permute.xlu0 0
      %255 = vperm.xlu0 %254, %v251
      %v256 = vpop.permute.xlu0 %255
      %259 = vset.pattern.permute.xlu0 0
      %260 = vperm.xlu0 %259, %v252
      %v261 = vpop.permute.xlu0 %260
      %v267 = vunpack.c.l.b16 %v211
      %v268 = vunpack.c.h.b16 %v211
      %v269 = vunpack.c.l.b16 %v212
      %v270 = vunpack.c.l.b16 %v213
      %v271 = vunpack.c.h.b16 %v213
      %v272 = vunpack.c.l.b16 %v214
      %v273 = vpack.c.b16 %v270, %v267
      %v274 = vpack.c.b16 %v271, %v268
      %v275 = vpack.c.b16 %v272, %v269
      %v314 = vunpack.c.l.b16 %v215
      %v315 = vunpack.c.h.b16 %v215
      %v316 = vunpack.c.l.b16 %v216
      %v317 = vunpack.c.h.b16 %v216
      %v318 = vunpack.c.l.b16 %v217
      %v319 = vunpack.c.h.b16 %v217
      %v320 = vunpack.c.l.b16 %v218
      %v321 = vunpack.c.h.b16 %v218
      %v322 = vunpack.c.l.b16 %v219
      %v323 = vunpack.c.h.b16 %v219
      %v324 = vunpack.c.l.b16 %v220
      %v325 = vunpack.c.h.b16 %v220
      %v326 = vunpack.c.l.b16 %v221
      %v327 = vunpack.c.h.b16 %v221
      %v328 = vunpack.c.l.b16 %v222
      %v329 = vunpack.c.h.b16 %v222
      %v330 = vunpack.c.l.b16 %v223
      %v331 = vunpack.c.h.b16 %v223
      %v332 = vunpack.c.l.b16 %v224
      %v333 = vunpack.c.h.b16 %v224
      %v334 = vunpack.c.l.b16 %v225
      %v335 = vunpack.c.h.b16 %v225
      %v336 = vunpack.c.l.b16 %v226
      %v337 = vunpack.c.h.b16 %v226
      %v338 = vunpack.c.l.b16 %v227
      %v339 = vunpack.c.h.b16 %v227
      %v340 = vunpack.c.l.b16 %v228
      %v341 = vunpack.c.h.b16 %v228
      %v342 = vunpack.c.l.b16 %v229
      %v343 = vunpack.c.h.b16 %v229
      %v344 = vunpack.c.l.b16 %v230
      %v345 = vunpack.c.h.b16 %v230
      %v346 = vunpack.c.l.b16 %v231
      %v347 = vunpack.c.h.b16 %v231
      %v348 = vunpack.c.l.b16 %v232
      %v349 = vunpack.c.h.b16 %v232
      %v350 = vunpack.c.l.b16 %v233
      %v351 = vunpack.c.h.b16 %v233
      %v352 = vunpack.c.l.b16 %v234
      %v353 = vunpack.c.h.b16 %v234
      %v354 = vunpack.c.l.b16 %v235
      %v355 = vunpack.c.h.b16 %v235
      %v356 = vunpack.c.l.b16 %v236
      %v357 = vunpack.c.h.b16 %v236
      %v358 = vunpack.c.l.b16 %v237
      %v359 = vunpack.c.h.b16 %v237
      %v360 = vunpack.c.l.b16 %v238
      %v361 = vunpack.c.h.b16 %v238
      %v362 = vunpack.c.l.b16 %v239
      %v363 = vunpack.c.h.b16 %v239
      %v364 = vunpack.c.l.b16 %v240
      %v365 = vunpack.c.h.b16 %v240
      %v366 = vunpack.c.l.b16 %v241
      %v367 = vunpack.c.h.b16 %v241
      %v368 = vunpack.c.l.b16 %v242
      %v369 = vunpack.c.h.b16 %v242
      %v370 = vunpack.c.l.b16 %v243
      %v371 = vunpack.c.h.b16 %v243
      %v372 = vunpack.c.l.b16 %v244
      %v373 = vunpack.c.h.b16 %v244
      %v374 = vunpack.c.l.b16 %v245
      %v375 = vunpack.c.h.b16 %v245
      %v376 = vunpack.c.l.b16 %v246
      %v377 = vunpack.c.h.b16 %v246
      %v378 = vunpack.c.l.b16 %v247
      %v379 = vunpack.c.h.b16 %v247
      %v380 = vunpack.c.l.b16 %v248
      %v381 = vunpack.c.h.b16 %v248
      %v382 = vunpack.c.l.b16 %v249
      %v383 = vunpack.c.h.b16 %v249
      %v384 = vunpack.c.l.b16 %v250
      %v385 = vunpack.c.h.b16 %v250
      %v386 = vpack.c.b16 %v316, %v314
      %v387 = vpack.c.b16 %v317, %v315
      %v388 = vpack.c.b16 %v320, %v318
      %v389 = vpack.c.b16 %v321, %v319
      %v390 = vpack.c.b16 %v324, %v322
      %v391 = vpack.c.b16 %v325, %v323
      %v392 = vpack.c.b16 %v328, %v326
      %v393 = vpack.c.b16 %v329, %v327
      %v394 = vpack.c.b16 %v332, %v330
      %v395 = vpack.c.b16 %v333, %v331
      %v396 = vpack.c.b16 %v336, %v334
      %v397 = vpack.c.b16 %v337, %v335
      %v398 = vpack.c.b16 %v340, %v338
      %v399 = vpack.c.b16 %v341, %v339
      %v400 = vpack.c.b16 %v344, %v342
      %v401 = vpack.c.b16 %v345, %v343
      %v402 = vpack.c.b16 %v348, %v346
      %v403 = vpack.c.b16 %v349, %v347
      %v404 = vpack.c.b16 %v352, %v350
      %v405 = vpack.c.b16 %v353, %v351
      %v406 = vpack.c.b16 %v356, %v354
      %v407 = vpack.c.b16 %v357, %v355
      %v408 = vpack.c.b16 %v360, %v358
      %v409 = vpack.c.b16 %v361, %v359
      %v410 = vpack.c.b16 %v364, %v362
      %v411 = vpack.c.b16 %v365, %v363
      %v412 = vpack.c.b16 %v368, %v366
      %v413 = vpack.c.b16 %v369, %v367
      %v414 = vpack.c.b16 %v372, %v370
      %v415 = vpack.c.b16 %v373, %v371
      %v416 = vpack.c.b16 %v376, %v374
      %v417 = vpack.c.b16 %v377, %v375
      %v418 = vpack.c.b16 %v380, %v378
      %v419 = vpack.c.b16 %v381, %v379
      %v420 = vpack.c.b16 %v384, %v382
      %v421 = vpack.c.b16 %v385, %v383
      %vm458 = vcmask 261120
      %v460 = vsel %vm458, %v275, 0
      %462 = vmatprep.subr.bf16.mxu0 %v387
      %463 = vmatpush1.bf16.msra.mxu0 %v386
      %464 = vmatprep.subr.bf16.mxu0 %v389
      %465 = vmatpush1.bf16.msra.mxu0 %v388
      %466 = vmatprep.subr.bf16.mxu0 %v391
      %467 = vmatpush1.bf16.msra.mxu0 %v390
      %468 = vmatprep.subr.bf16.mxu0 %v393
      %469 = vmatpush1.bf16.msra.mxu0 %v392
      %470 = vmatprep.subr.bf16.mxu0 %v395
      %471 = vmatpush1.bf16.msra.mxu0 %v394
      %472 = vmatprep.subr.bf16.mxu0 %v397
      %473 = vmatpush1.bf16.msra.mxu0 %v396
      %474 = vmatprep.subr.bf16.mxu0 %v399
      %475 = vmatpush1.bf16.msra.mxu0 %v398
      %476 = vmatprep.subr.bf16.mxu0 %v401
      %477 = vmatpush1.bf16.msra.mxu0 %v400
      %478 = vmatprep.subr.bf16.mxu0 %v403
      %479 = vmatpush1.bf16.msra.mxu0 %v402
      %480 = vmatprep.subr.bf16.mxu0 %v405
      %481 = vmatpush1.bf16.msra.mxu0 %v404
      %482 = vmatprep.subr.bf16.mxu0 %v407
      %483 = vmatpush1.bf16.msra.mxu0 %v406
      %484 = vmatprep.subr.bf16.mxu0 %v409
      %485 = vmatpush1.bf16.msra.mxu0 %v408
      %486 = vmatprep.subr.bf16.mxu0 %v411
      %487 = vmatpush1.bf16.msra.mxu0 %v410
      %488 = vmatprep.subr.bf16.mxu0 %v413
      %489 = vmatpush1.bf16.msra.mxu0 %v412
      %490 = vmatprep.subr.bf16.mxu0 %v415
      %491 = vmatpush1.bf16.msra.mxu0 %v414
      %492 = vmatprep.subr.bf16.mxu0 %v417
      %493 = vmatpush1.bf16.msra.mxu0 %v416
      %494 = vmatprep.mubr.bf16.mxu0 %v274
      %495 = vmatmul.mubr.bf16.gmra.mrb[0].mxu0 %v273
      %v496 = vpop.f32.mrb[0].mxu0
      %v497 = vadd.f32 %v256, %v496
      %v498 = vpop.f32.mrb[0].mxu0
      %v499 = vadd.f32 %v256, %v498
      %v500 = vpop.f32.mrb[0].mxu0
      %v501 = vadd.f32 %v261, %v500
      %v502 = vpop.f32.mrb[0].mxu0
      %v503 = vadd.f32 %v261, %v502
      %504 = vdwg.mxu0
      %505 = vmatprep.subr.bf16.mxu0 %v419
      %506 = vmatpush1.bf16.msra.mxu0 %v418
      %507 = vmatprep.subr.bf16.mxu0 %v421
      %508 = vmatpush1.bf16.msra.mxu0 %v420
      %509 = vmatprep.subr.bf16.mxu0 0
      %510 = vmatpush1.bf16.msra.mxu0 0
      %511 = vmatprep.subr.bf16.mxu0 0
      %512 = vmatpush1.bf16.msra.mxu0 0
      %513 = vmatprep.subr.bf16.mxu0 0
      %514 = vmatpush1.bf16.msra.mxu0 0
      %515 = vmatprep.subr.bf16.mxu0 0
      %516 = vmatpush1.bf16.msra.mxu0 0
      %517 = vmatprep.subr.bf16.mxu0 0
      %518 = vmatpush1.bf16.msra.mxu0 0
      %519 = vmatprep.subr.bf16.mxu0 0
      %520 = vmatpush1.bf16.msra.mxu0 0
      %521 = vmatprep.subr.bf16.mxu0 0
      %522 = vmatpush1.bf16.msra.mxu0 0
      %523 = vmatprep.subr.bf16.mxu0 0
      %524 = vmatpush1.bf16.msra.mxu0 0
      %525 = vmatprep.subr.bf16.mxu0 0
      %526 = vmatpush1.bf16.msra.mxu0 0
      %527 = vmatprep.subr.bf16.mxu0 0
      %528 = vmatpush1.bf16.msra.mxu0 0
      %529 = vmatprep.subr.bf16.mxu0 0
      %530 = vmatpush1.bf16.msra.mxu0 0
      %531 = vmatprep.subr.bf16.mxu0 0
      %532 = vmatpush1.bf16.msra.mxu0 0
      %533 = vmatprep.subr.bf16.mxu0 0
      %534 = vmatpush1.bf16.msra.mxu0 0
      %535 = vmatprep.subr.bf16.mxu0 0
      %536 = vmatpush1.bf16.msra.mxu0 0
      %537 = vmatprep.mubr.bf16.mxu0 0
      %538 = vmatmul.mubr.bf16.gmra.mrb[0].mxu0 %v460
      %v539 = vpop.f32.mrb[0].mxu0
      %v540 = vadd.f32 %v497, %v539
      %v541 = vpop.f32.mrb[0].mxu0
      %v542 = vadd.f32 %v499, %v541
      %v543 = vpop.f32.mrb[0].mxu0
      %v544 = vadd.f32 %v501, %v543
      %v545 = vpop.f32.mrb[0].mxu0
      %v546 = vadd.f32 %v503, %v545
      %547 = vdwg.mxu0
      %548 = vst [vmem:[%s208] sm:$0xff] %v540
      %549 = vst [vmem:[%s208 + $0x8] sm:$0xff] %v542
      %550 = vst [vmem:[%s208 + $0x10] sm:$0xff] %v544
      %551 = vst [vmem:[%s208 + $0x18] sm:$0xff] %v546
      %s552 = smul.u32 2, %s19
      %p553 = scmp.lt.s32.totalorder %s18, 1
      %s554 = scalar_select %p553, %s18, 1
      %p555 = scmp.lt.s32.totalorder %s552, 1
      %s556 = scalar_select %p555, %s552, 1
      %s557 = smul.addr %s554, 4
      %s558 = sadd.s32 %s556, %s557
      %s559 = smul.addr %s558, 8
      %s560 = scalar_lea.vmem %s3, %s559
      // Predicated region
      $region33: #{_lambda_.47} parent=31 // pred_check
        %p561 = pneg %p116
      $region34: #{_lambda_.47} parent=31 // pred_check_branch
        %563 = sbr.rel (%p561) target = $region36
      $region35: #{_lambda_.47} parent=31 // pred_region
        %s564 = smul.u32 2, %s19
      $region36: #{_lambda_.47} parent=31 // pred_fallthru
        _
    $region32: #{_lambda_.47} parent=5 // pred_fallthru
      _
    %p565 = scmp.le.s32.totalorder 2, %s9
    // Predicated region
    $region37: #{_lambda_.47} parent=5 // pred_check
      %p566 = pneg %p565
    $region38: #{_lambda_.47} parent=5 // pred_check_branch
      %568 = sbr.rel (%p566) target = $region40
    $region39: #{_lambda_.47} parent=5 // pred_region
      %s569 = ssub.s32 %s9, 2
      // Predicated region
      $region41: #{_lambda_.47} parent=39 // pred_check
        %p570 = pneg %p122
      $region42: #{_lambda_.47} parent=39 // pred_check_branch
        %572 = sbr.rel (%p570) target = $region44
      $region43: #{_lambda_.47} parent=39 // pred_region
        %s573 = smul.u32 2, %s21
        %p574 = scmp.lt.s32.totalorder %s20, 1
        %s575 = scalar_select %p574, %s20, 1
        %p576 = scmp.lt.s32.totalorder %s573, 1
        %s577 = scalar_select %p576, %s573, 1
        %s578 = smul.addr %s575, 4
        %s579 = sadd.s32 %s577, %s578
        %s580 = smul.addr %s579, 8
        %s581 = scalar_lea.vmem %s3, %s580
      $region44: #{_lambda_.47} parent=39 // pred_fallthru
        _
    $region40: #{_lambda_.47} parent=5 // pred_fallthru
      _
  $region6: #{_lambda_.47} parent=0 // loop_footer
    %s13 = sadd.s32 1, %s9
  $region7: #{_lambda_.47} parent=0 // loop_footer_branch
    %8 = sbr.rel target = $region3
  $region8: #{_lambda_.47} parent=0 // loop_exit
    _

// kernel: _lambda_.45
$region0: #{_lambda_.45}
  #allocation0 [shape = 'u32[]', space=smem, size = 0x4, offset = 0x4, fixed_abs, tag = 'smem constant byte address 0x4 - core index']
  #allocation1 [shape = 'u32[144,128]{1,0:T(1,128)}', space=vmem, size = 0x12000, scoped, tag = 'internal scratch']
  %s0 = inlined_call_operand.vmem [shape: bf16[2,32,64], index: 0, kind: input, shape index: {}]
  %s1 = inlined_call_operand.vmem [shape: bf16[32,32], index: 1, kind: input, shape index: {}]
  %s2 = inlined_call_operand.vmem [shape: f32[32,1], index: 2, kind: input, shape index: {}]
  %s3 = inlined_call_operand.vmem [shape: f32[2,32,64], index: 3, kind: output, shape index: {}]
  %s4 = sld [smem:[#allocation0]]
  $region45: #{_lambda_.45} parent=0
    _
  %s6 = ssub.s32 1, %s4
  %s7 = scalar_select 0, %s6, %s4
  loop: start=0, step=1, limit=4
  $region2: #{_lambda_.45} parent=0 // loop_pre_header
    _
  $region3: #{_lambda_.45} parent=0 // loop_header
    %s9 = sphi 0, %s13
    %p10 = scmp.ge.s32.totalorder %s9, 4
    %s16 = sphi 0, %s28
    %s17 = sphi 0, %s24
    %s18 = sphi 0, %s16
    %s19 = sphi 0, %s17
    %s20 = sphi 0, %s18
    %s21 = sphi 0, %s19
    %s33 = sphi 0, %s35
    %s36 = sphi 0, %s33
    %s37 = sphi 0, %s36
    %s53 = sphi 0, %s37
    %s57 = sphi 0, %s57
    %s59 = sphi 0, %s57
    %s60 = sphi 0, %s59
    %s74 = sphi 0, %s60
    %s78 = sphi 0, %s78
    %s80 = sphi 0, %s78
    %s81 = sphi 0, %s80
    %s95 = sphi 0, %s81
    %s103 = sphi 0, %s105
    %s106 = sphi 0, %s103
    %s107 = sphi 0, %s106
    %s123 = sphi 0, %s107
  $region4: #{_lambda_.45} parent=0 // loop_header_branch
    %12 = sbr.rel (%p10) target = $region8
  $region5: #{_lambda_.45} parent=0 // loop_body
    %s14 = ssub.s32 %s9, 1
    %s15 = ssub.s32 %s9, 2
    %s22 = sadd.s32 1, %s17
    %p23 = scmp.ge.s32.totalorder %s22, 1
    %s24 = scalar_select %p23, 0, %s22
    %s25 = sadd.s32 1, %s16
    %s26 = scalar_select %p23, %s25, %s16
    %p27 = scmp.ge.s32.totalorder %s26, 2
    %s28 = scalar_select %p27, 0, %s26
    %s29 = ssub.s32 %s16, %s28
    %s30 = ssub.s32 %s17, %s24
    %s31 = sor.u32 %s29, %s30
    %p32 = scmp.eq.s32.totalorder %s31, 0
    %s34 = sadd.s32 %s33, 1
    %s35 = scalar_select %p32, %s33, %s34
    %p38 = pneg %p32
    %p39 = scmp.eq.s32.totalorder %s9, 1
    %p40 = por %p38, %p39
    %p41 = scmp.ne.s32.totalorder %s33, %s36
    %p42 = scmp.eq.s32.totalorder %s9, 0
    %p43 = por %p41, %p42
    %p44 = scmp.ne.s32.totalorder %s33, %s36
    %p45 = scmp.eq.s32.totalorder %s14, 1
    %p46 = por %p44, %p45
    %p47 = scmp.ne.s32.totalorder %s36, %s37
    %p48 = scmp.eq.s32.totalorder %s14, 0
    %p49 = por %p47, %p48
    %p50 = scmp.ne.s32.totalorder %s36, %s37
    %p51 = scmp.eq.s32.totalorder %s15, 1
    %p52 = por %p50, %p51
    %p54 = scmp.ne.s32.totalorder %s37, %s53
    %p55 = scmp.eq.s32.totalorder %s15, 0
    %p56 = por %p54, %p55
    %s58 = sadd.s32 %s57, 1
    %p61 = scmp.eq.s32.totalorder %s9, 1
    %p62 = scmp.ne.s32.totalorder %s57, %s59
    %p63 = scmp.eq.s32.totalorder %s9, 0
    %p64 = por %p62, %p63
    %p65 = scmp.ne.s32.totalorder %s57, %s59
    %p66 = scmp.eq.s32.totalorder %s14, 1
    %p67 = por %p65, %p66
    %p68 = scmp.ne.s32.totalorder %s59, %s60
    %p69 = scmp.eq.s32.totalorder %s14, 0
    %p70 = por %p68, %p69
    %p71 = scmp.ne.s32.totalorder %s59, %s60
    %p72 = scmp.eq.s32.totalorder %s15, 1
    %p73 = por %p71, %p72
    %p75 = scmp.ne.s32.totalorder %s60, %s74
    %p76 = scmp.eq.s32.totalorder %s15, 0
    %p77 = por %p75, %p76
    %s79 = sadd.s32 %s78, 1
    %p82 = scmp.eq.s32.totalorder %s9, 1
    %p83 = scmp.ne.s32.totalorder %s78, %s80
    %p84 = scmp.eq.s32.totalorder %s9, 0
    %p85 = por %p83, %p84
    %p86 = scmp.ne.s32.totalorder %s78, %s80
    %p87 = scmp.eq.s32.totalorder %s14, 1
    %p88 = por %p86, %p87
    %p89 = scmp.ne.s32.totalorder %s80, %s81
    %p90 = scmp.eq.s32.totalorder %s14, 0
    %p91 = por %p89, %p90
    %p92 = scmp.ne.s32.totalorder %s80, %s81
    %p93 = scmp.eq.s32.totalorder %s15, 1
    %p94 = por %p92, %p93
    %p96 = scmp.ne.s32.totalorder %s81, %s95
    %p97 = scmp.eq.s32.totalorder %s15, 0
    %p98 = por %p96, %p97
    %s99 = ssub.s32 %s16, %s28
    %s100 = ssub.s32 %s17, %s24
    %s101 = sor.u32 %s99, %s100
    %p102 = scmp.eq.s32.totalorder %s101, 0
    %s104 = sadd.s32 %s103, 1
    %s105 = scalar_select %p102, %s103, %s104
    %p108 = pneg %p102
    %p109 = scmp.eq.s32.totalorder %s9, 1
    %p110 = por %p108, %p109
    %p111 = scmp.ne.s32.totalorder %s103, %s106
    %p112 = scmp.eq.s32.totalorder %s9, 0
    %p113 = por %p111, %p112
    %p114 = scmp.ne.s32.totalorder %s103, %s106
    %p115 = scmp.eq.s32.totalorder %s14, 1
    %p116 = por %p114, %p115
    %p117 = scmp.ne.s32.totalorder %s106, %s107
    %p118 = scmp.eq.s32.totalorder %s14, 0
    %p119 = por %p117, %p118
    %p120 = scmp.ne.s32.totalorder %s106, %s107
    %p121 = scmp.eq.s32.totalorder %s15, 1
    %p122 = por %p120, %p121
    %p124 = scmp.ne.s32.totalorder %s107, %s123
    %p125 = scmp.eq.s32.totalorder %s15, 0
    %p126 = por %p124, %p125
    %p127 = scmp.le.s32.totalorder 1, %s9
    %p128 = scmp.lt.s32.totalorder %s9, 3
    %p129 = pnand %p127, %p128
    %p130 = pneg %p129
    // Predicated region
    $region9: #{_lambda_.45} parent=5 // pred_check
      _
    $region10: #{_lambda_.45} parent=5 // pred_check_branch
      %132 = sbr.rel (%p129) target = $region12
    $region11: #{_lambda_.45} parent=5 // pred_region
      %s133 = ssub.s32 %s9, 1
      // Predicated region
      $region13: #{_lambda_.45} parent=11 // pred_check
        %p134 = pneg %p70
      $region14: #{_lambda_.45} parent=11 // pred_check_branch
        %136 = sbr.rel (%p134) target = $region16
      $region15: #{_lambda_.45} parent=11 // pred_region
        _
      $region16: #{_lambda_.45} parent=11 // pred_fallthru
        _
      // Predicated region
      $region17: #{_lambda_.45} parent=11 // pred_check
        %p137 = pneg %p91
      $region18: #{_lambda_.45} parent=11 // pred_check_branch
        %139 = sbr.rel (%p137) target = $region20
      $region19: #{_lambda_.45} parent=11 // pred_region
        _
      $region20: #{_lambda_.45} parent=11 // pred_fallthru
        _
    $region12: #{_lambda_.45} parent=5 // pred_fallthru
      _
    %p140 = scmp.lt.s32.totalorder %s9, 2
    // Predicated region
    $region21: #{_lambda_.45} parent=5 // pred_check
      %p141 = pneg %p140
    $region22: #{_lambda_.45} parent=5 // pred_check_branch
      %143 = sbr.rel (%p141) target = $region24
    $region23: #{_lambda_.45} parent=5 // pred_region
      // Predicated region
      $region25: #{_lambda_.45} parent=23 // pred_check
        %p144 = pneg %p43
      $region26: #{_lambda_.45} parent=23 // pred_check_branch
        %146 = sbr.rel (%p144) target = $region28
      $region27: #{_lambda_.45} parent=23 // pred_region
        %p147 = scmp.lt.s32.totalorder %s16, 1
        %s148 = scalar_select %p147, %s16, 1
        %p149 = scmp.lt.s32.totalorder %s17, 0
        %s150 = scalar_select %p149, %s17, 0
        %s151 = smul.addr %s148, 4
        %s152 = sadd.s32 %s150, %s151
        %s153 = smul.addr %s152, 4
        %s154 = scalar_lea.vmem %s0, %s153
      $region28: #{_lambda_.45} parent=23 // pred_fallthru
        _
    $region24: #{_lambda_.45} parent=5 // pred_fallthru
      _
    %p155 = scmp.le.s32.totalorder 1, %s9
    %p156 = scmp.lt.s32.totalorder %s9, 3
    %p157 = pnand %p155, %p156
    %p158 = pneg %p157
    // Predicated region
    $region29: #{_lambda_.45} parent=5 // pred_check
      _
    $region30: #{_lambda_.45} parent=5 // pred_check_branch
      %160 = sbr.rel (%p157) target = $region32
    $region31: #{_lambda_.45} parent=5 // pred_region
      %s161 = ssub.s32 %s9, 1
      %p162 = scmp.lt.s32.totalorder %s18, 1
      %s163 = scalar_select %p162, %s18, 1
      %p164 = scmp.lt.s32.totalorder %s19, 0
      %s165 = scalar_select %p164, %s19, 0
      %s166 = smul.addr %s163, 4
      %s167 = sadd.s32 %s165, %s166
      %s168 = smul.addr %s167, 4
      %s169 = scalar_lea.vmem %s0, %s168
      %p170 = pneg %p49
      %p171 = pneg %p46
      %p172 = pneg %p70
      %p173 = pneg %p67
      %p174 = pneg %p91
      %p175 = pneg %p88
      %p176 = pneg %p119
      %p177 = pneg %p116
      %p178 = scmp.lt.s32.totalorder %s18, 1
      %s179 = scalar_select %p178, %s18, 1
      %p180 = scmp.lt.s32.totalorder %s19, 0
      %s181 = scalar_select %p180, %s19, 0
      %s182 = smul.addr %s179, 4
      %s183 = sadd.s32 %s181, %s182
      %s184 = smul.addr %s183, 8
      %s185 = scalar_lea.vmem %s3, %s184
      %p186 = scmp.lt.s32.totalorder %s18, 1
      %s187 = scalar_select %p186, %s18, 1
      %p188 = scmp.lt.s32.totalorder %s19, 0
      %s189 = scalar_select %p188, %s19, 0
      %s190 = smul.addr %s187, 4
      %s191 = sadd.s32 %s189, %s190
      %s192 = smul.addr %s191, 4
      %s193 = scalar_lea.vmem %s0, %s192
      %p194 = scmp.lt.s32.totalorder %s18, 1
      %s195 = scalar_select %p194, %s18, 1
      %p196 = scmp.lt.s32.totalorder %s19, 0
      %s197 = scalar_select %p196, %s19, 0
      %s198 = smul.addr %s195, 4
      %s199 = sadd.s32 %s197, %s198
      %s200 = smul.addr %s199, 8
      %s201 = scalar_lea.vmem %s3, %s200
      %v203 = vld [vmem:[%s1] sm:$0xf]
      %v204 = vld [vmem:[%s1 + $0x4] sm:$0xf]
      %v205 = vld [vmem:[%s1 + $0x8] sm:$0xf]
      %v206 = vld [vmem:[%s1 + $0xc] sm:$0xf]
      %v207 = vld [vmem:[%s193] sm:$0xf]
      %v208 = vld [vmem:[%s193 + $0x4] sm:$0xf]
      %v209 = vld [vmem:[%s193 + $0x8] sm:$0xf]
      %v210 = vld [vmem:[%s193 + $0xc] sm:$0xf]
      %v211 = vld [vmem:[%s2] sm:$0xff]
      %v212 = vld [vmem:[%s2 + $0x8] sm:$0xff]
      %v213 = vld [vmem:[%s2 + $0x10] sm:$0xff]
      %v214 = vld [vmem:[%s2 + $0x18] sm:$0xff]
      %216 = vset.pattern.permute.xlu0 0
      %217 = vperm.xlu0 %216, %v211
      %v218 = vpop.permute.xlu0 %217
      %221 = vset.pattern.permute.xlu0 0
      %222 = vperm.xlu0 %221, %v212
      %v223 = vpop.permute.xlu0 %222
      %226 = vset.pattern.permute.xlu0 0
      %227 = vperm.xlu0 %226, %v213
      %v228 = vpop.permute.xlu0 %227
      %231 = vset.pattern.permute.xlu0 0
      %232 = vperm.xlu0 %231, %v214
      %v233 = vpop.permute.xlu0 %232
      %v239 = vunpack.c.l.b16 %v203
      %v240 = vunpack.c.l.b16 %v204
      %v241 = vunpack.c.l.b16 %v205
      %v242 = vunpack.c.l.b16 %v206
      %v243 = vpack.c.b16 %v240, %v239
      %v244 = vpack.c.b16 %v242, %v241
      %v249 = vunpack.c.l.b16 %v207
      %v250 = vunpack.c.l.b16 %v208
      %v251 = vunpack.c.l.b16 %v209
      %v252 = vunpack.c.l.b16 %v210
      %v253 = vpack.c.b16 %v250, %v249
      %v254 = vpack.c.b16 %v252, %v251
      %vm257 = vcmask 261120
      %v259 = vsel %vm257, %v243, 0
      %v262 = vsel %vm257, %v244, 0
      %264 = vmatprep.subr.bf16.mxu0 0
      %265 = vmatpush1.bf16.msra.mxu0 %v253
      %266 = vmatprep.subr.bf16.mxu0 0
      %267 = vmatpush1.bf16.msra.mxu0 %v254
      %268 = vmatprep.subr.bf16.mxu0 0
      %269 = vmatpush1.bf16.msra.mxu0 0
      %270 = vmatprep.subr.bf16.mxu0 0
      %271 = vmatpush1.bf16.msra.mxu0 0
      %272 = vmatprep.subr.bf16.mxu0 0
      %273 = vmatpush1.bf16.msra.mxu0 0
      %274 = vmatprep.subr.bf16.mxu0 0
      %275 = vmatpush1.bf16.msra.mxu0 0
      %276 = vmatprep.subr.bf16.mxu0 0
      %277 = vmatpush1.bf16.msra.mxu0 0
      %278 = vmatprep.subr.bf16.mxu0 0
      %279 = vmatpush1.bf16.msra.mxu0 0
      %280 = vmatprep.subr.bf16.mxu0 0
      %281 = vmatpush1.bf16.msra.mxu0 0
      %282 = vmatprep.subr.bf16.mxu0 0
      %283 = vmatpush1.bf16.msra.mxu0 0
      %284 = vmatprep.subr.bf16.mxu0 0
      %285 = vmatpush1.bf16.msra.mxu0 0
      %286 = vmatprep.subr.bf16.mxu0 0
      %287 = vmatpush1.bf16.msra.mxu0 0
      %288 = vmatprep.subr.bf16.mxu0 0
      %289 = vmatpush1.bf16.msra.mxu0 0
      %290 = vmatprep.subr.bf16.mxu0 0
      %291 = vmatpush1.bf16.msra.mxu0 0
      %292 = vmatprep.subr.bf16.mxu0 0
      %293 = vmatpush1.bf16.msra.mxu0 0
      %294 = vmatprep.subr.bf16.mxu0 0
      %295 = vmatpush1.bf16.msra.mxu0 0
      %296 = vmatprep.mubr.bf16.mxu0 0
      %297 = vmatmul.mubr.bf16.gmra.mrb[0].mxu0 %v259
      %v298 = vpop.f32.mrb[0].mxu0
      %v299 = vadd.f32 %v218, %v298
      %v300 = vpop.f32.mrb[0].mxu0
      %v301 = vpop.f32.mrb[0].mxu0
      %v302 = vadd.f32 %v223, %v301
      %v303 = vpop.f32.mrb[0].mxu0
      %304 = vmatprep.mubr.bf16.mxu0 0
      %305 = vmatmul.mubr.bf16.gmra.mrb[0].mxu0 %v262
      %v306 = vpop.f32.mrb[0].mxu0
      %v307 = vadd.f32 %v228, %v306
      %v308 = vpop.f32.mrb[0].mxu0
      %v309 = vpop.f32.mrb[0].mxu0
      %v310 = vadd.f32 %v233, %v309
      %v311 = vpop.f32.mrb[0].mxu0
      %312 = vdwg.mxu0
      %vm313 = vcmask 523264
      %314 = vst.msk [vmem:[%s201] sm:$0xff] %vm313, %v299
      %315 = vst.msk [vmem:[%s201 + $0x8] sm:$0xff] %vm313, %v302
      %316 = vst.msk [vmem:[%s201 + $0x10] sm:$0xff] %vm313, %v307
      %317 = vst.msk [vmem:[%s201 + $0x18] sm:$0xff] %vm313, %v310
      %p318 = scmp.lt.s32.totalorder %s18, 1
      %s319 = scalar_select %p318, %s18, 1
      %p320 = scmp.lt.s32.totalorder %s19, 0
      %s321 = scalar_select %p320, %s19, 0
      %s322 = smul.addr %s319, 4
      %s323 = sadd.s32 %s321, %s322
      %s324 = smul.addr %s323, 8
      %s325 = scalar_lea.vmem %s3, %s324
      // Predicated region
      $region33: #{_lambda_.45} parent=31 // pred_check
        %p326 = pneg %p116
      $region34: #{_lambda_.45} parent=31 // pred_check_branch
        %328 = sbr.rel (%p326) target = $region36
      $region35: #{_lambda_.45} parent=31 // pred_region
        _
      $region36: #{_lambda_.45} parent=31 // pred_fallthru
        _
    $region32: #{_lambda_.45} parent=5 // pred_fallthru
      _
    %p329 = scmp.le.s32.totalorder 2, %s9
    // Predicated region
    $region37: #{_lambda_.45} parent=5 // pred_check
      %p330 = pneg %p329
    $region38: #{_lambda_.45} parent=5 // pred_check_branch
      %332 = sbr.rel (%p330) target = $region40
    $region39: #{_lambda_.45} parent=5 // pred_region
      %s333 = ssub.s32 %s9, 2
      // Predicated region
      $region41: #{_lambda_.45} parent=39 // pred_check
        %p334 = pneg %p122
      $region42: #{_lambda_.45} parent=39 // pred_check_branch
        %336 = sbr.rel (%p334) target = $region44
      $region43: #{_lambda_.45} parent=39 // pred_region
        %p337 = scmp.lt.s32.totalorder %s20, 1
        %s338 = scalar_select %p337, %s20, 1
        %p339 = scmp.lt.s32.totalorder %s21, 0
        %s340 = scalar_select %p339, %s21, 0
        %s341 = smul.addr %s338, 4
        %s342 = sadd.s32 %s340, %s341
        %s343 = smul.addr %s342, 8
        %s344 = scalar_lea.vmem %s3, %s343
      $region44: #{_lambda_.45} parent=39 // pred_fallthru
        _
    $region40: #{_lambda_.45} parent=5 // pred_fallthru
      _
  $region6: #{_lambda_.45} parent=0 // loop_footer
    %s13 = sadd.s32 1, %s9
  $region7: #{_lambda_.45} parent=0 // loop_footer_branch
    %8 = sbr.rel target = $region3
  $region8: #{_lambda_.45} parent=0 // loop_exit
    _

</llo_original>
